<compile_context>
chip_gen: v5e
topology: v5e:2x2
jax: 0.10.0
libtpu: 0.0.40
codegen_flags: <defaults>
</compile_context>

<pallas_src>
import numpy as np
import jax
import jax.numpy as jnp
from jax.experimental import pallas as pl
from jax.experimental.pallas import tpu as pltpu

C_OUT = 256
BN_EPS = 1e-5


def _dest_rect(dh, dw, h, w):
    """Valid destination rectangle (r0, r1, c0, c1) of a shifted tap."""
    return (max(-dh, 0), h - max(dh, 0), max(-dw, 0), w - max(dw, 0))


def _rect_covers(tap_b, tap_a, h, w):
    """True iff tap_b's destination rectangle contains tap_a's."""
    b = _dest_rect(tap_b[0], tap_b[1], h, w)
    a = _dest_rect(tap_a[0], tap_a[1], h, w)
    return b[0] <= a[0] and b[1] >= a[1] and b[2] <= a[2] and b[3] >= a[3]


def _make_kernel(bt, h, w, cin, pt_branch_idx, dil_branches, k_max):
    """Kernel closed over the static shape / tap configuration.

    pt_branch_idx: branch indices (into the 5-branch output/bias tables)
        handled by the single merged pointwise matmul.
    dil_branches:  tuple of (branch_idx, taps) for the non-degenerate dilated
        3x3 branches, already sorted by decreasing dilation.
    """
    hw = h * w
    m = bt * hw
    n_dil = len(dil_branches)

    def kernel(*refs):
        x_ref = refs[0]
        w_pt_ref = refs[1]
        wd_refs = refs[2:2 + n_dil]
        wp_ref = refs[2 + n_dil]
        bias_ref = refs[3 + n_dil]
        o_ref = refs[4 + n_dil]
        tap_ref = refs[5 + n_dil] if n_dil else None

        def bias_act(y, idx, relu=True):
            # BN scale already folded into the conv weights: bias (+ReLU) only.
            y = y + bias_ref[idx:idx + 1, :]
            if relu:
                y = jnp.maximum(y, 0.0)
            return y.astype(o_ref.dtype)

        def store(bidx, y2d):
            o_ref[:, :, bidx * C_OUT:(bidx + 1) * C_OUT] = y2d.reshape(
                bt, hw, C_OUT)

        x2 = x_ref[...].reshape(m, cin)                     # (M, Cin) bf16

        # ---- merged pointwise group: 1x1 branch + centre-only dilated
        # branches, one (M, Cin) x (Cin, npt*256) MXU matmul. ----
        y_pt = jnp.dot(x2, w_pt_ref[...], preferred_element_type=jnp.float32)
        for j, bidx in enumerate(pt_branch_idx):
            store(bidx, bias_act(y_pt[:, j * C_OUT:(j + 1) * C_OUT], bidx))

        # ---- dilated 3x3 branches: shifted taps built channel-major into a
        # shared VMEM slab (zeroed once per step, decreasing-dilation order),
        # then one (M, ntaps*Cin) x (ntaps*Cin, 256) matmul per branch. ----
        slab_state = None                       # None => contents unknown
        for di, (bidx, taps) in enumerate(dil_branches):
            n_taps = len(taps)
            need_memset = slab_state is None or any(
                slab_state[k] is not None
                and not _rect_covers(taps[k], slab_state[k], h, w)
                for k in range(n_taps))
            if need_memset:
                tap_ref[...] = jnp.zeros(tap_ref.shape, tap_ref.dtype)
                slab_state = [None] * (k_max // cin)
            for b in range(bt):
                for k, (dh, dw) in enumerate(taps):
                    nh, nw = h - abs(dh), w - abs(dw)
                    hs, ws = max(dh, 0), max(dw, 0)
                    hd, wd = max(-dh, 0), max(-dw, 0)
                    tap_ref[b, hd:hd + nh, wd:wd + nw,
                            k * cin:(k + 1) * cin] = (
                        x_ref[b, hs:hs + nh, ws:ws + nw, :])
            for k in range(n_taps):
                slab_state[k] = taps[k]
            slab = tap_ref[...]
            if n_taps * cin != k_max:
                slab = slab[:, :, :, :n_taps * cin]
            t2d = slab.reshape(m, n_taps * cin)
            y = jnp.dot(t2d, wd_refs[di][...],
                        preferred_element_type=jnp.float32)
            store(bidx, bias_act(y, bidx))

        # ---- image-pool branch: global mean -> 1x1 conv -> BN bias ->
        # broadcast (bilinear upsample of a 1x1 map, align_corners=True).
        # No ReLU on this branch (matches the source). ----
        xm = jnp.mean(x_ref[...].astype(jnp.float32).reshape(bt, hw, cin),
                      axis=1)                                  # (Bt, Cin) f32
        y5 = jnp.dot(xm.astype(jnp.bfloat16), wp_ref[...],
                     preferred_element_type=jnp.float32)
        y5 = bias_act(y5, 4, relu=False)                       # (Bt, 256)
        o_ref[:, :, 4 * C_OUT:5 * C_OUT] = jnp.broadcast_to(
            y5.reshape(bt, 1, C_OUT), (bt, hw, C_OUT))

    return kernel


def ins_context_block(x_nchw, p, dilations=(6, 12, 18),
                      out_dtype=jnp.bfloat16, out_format="NHWC"):
    """ASPP forward. Returns (N, H, W, 5*256) NHWC by default (cheapest for a
    downstream consumer); pass out_format="NCHW" to match the PyTorch layout."""
    n, cin, h, w = x_nchw.shape
    hw = h * w
    xh = jnp.transpose(x_nchw, (0, 2, 3, 1)).astype(jnp.bfloat16)   # NHWC bf16

    # Batch tile: amortize per-grid-step overhead, raise MXU M utilization.
    bt = max(d for d in (8, 4, 2, 1) if n % d == 0)
    grid = (n // bt,)

    # Static tap lists. Tap (dh, dw) reads only zero padding (is exactly zero)
    # iff |dh| >= H or |dw| >= W -> dropped together with its weight slice.
    branch_taps = tuple(
        tuple((dh, dw) for dh in (-d, 0, d) for dw in (-d, 0, d)
              if abs(dh) < h and abs(dw) < w)
        for d in dilations)

    scale = p['scale'].astype(jnp.float32)                          # (5, 256)
    bias = p['bias'].astype(jnp.float32)                            # (5, 256)

    def fold(wmat, idx):        # (Cin, 256) f32: fold BN scale, cast to bf16
        return (wmat * scale[idx][None, :]).astype(jnp.bfloat16)

    def tap_w(wt, d, dh, dw):   # OIHW conv weight -> (Cin, 256) slice, f32
        return wt[:, :, dh // d + 1, dw // d + 1].T.astype(jnp.float32)

    # Pointwise group: 1x1 branch + any dilated branch degenerated to its
    # centre tap -> one merged matmul.  Remaining dilated branches keep their
    # stacked (ntaps*Cin, 256) weights, sorted by decreasing dilation.
    pt_idx = [0]
    pt_w = [fold(p['w1'][:, :, 0, 0].T.astype(jnp.float32), 0)]
    dil = []                                  # (branch_idx, d, taps, weight)
    for bi, (d, taps) in enumerate(zip(dilations, branch_taps)):
        bidx = 1 + bi
        wt = p[f'w{d}']
        if taps == ((0, 0),):
            pt_idx.append(bidx)
            pt_w.append(fold(tap_w(wt, d, 0, 0), bidx))
        else:
            mats = [tap_w(wt, d, dh, dw) for (dh, dw) in taps]
            dil.append((bidx, d, taps,
                        fold(jnp.concatenate(mats, axis=0), bidx)))
    dil.sort(key=lambda t: -t[1])             # largest dilation first

    w_pt = jnp.concatenate(pt_w, axis=1)                       # (Cin, npt*256)
    wp = fold(p['wp'][:, :, 0, 0].T.astype(jnp.float32), 4)    # (Cin, 256)

    dil_branches = tuple((t[0], t[2]) for t in dil)
    dil_weights = [t[3] for t in dil]
    k_max = max((len(t) for _, t in dil_branches), default=0) * cin

    weight_args = [w_pt] + dil_weights + [wp, bias]
    # TODO(synk): at production Cin, single-buffer these constant-index weight
    # inputs (pipeline_mode=pl.Buffered(1)) to halve their VMEM footprint.
    weight_specs = [pl.BlockSpec(a.shape, lambda i: (0, 0))
                    for a in weight_args]
    scratch = ([pltpu.VMEM((bt, h, w, k_max), jnp.bfloat16)]
               if dil_branches else [])

    out = pl.pallas_call(
        _make_kernel(bt, h, w, cin, tuple(pt_idx), dil_branches, k_max),
        out_shape=jax.ShapeDtypeStruct((n, hw, 5 * C_OUT), out_dtype),
        grid_spec=pltpu.PrefetchScalarGridSpec(
            num_scalar_prefetch=0,
            grid=grid,
            in_specs=[pl.BlockSpec((bt, h, w, cin),
                                   lambda i: (i, 0, 0, 0))] + weight_specs,
            out_specs=pl.BlockSpec((bt, hw, 5 * C_OUT), lambda i: (i, 0, 0)),
            scratch_shapes=scratch,
        ),
        compiler_params=pltpu.CompilerParams(
            dimension_semantics=("parallel",)),
    )(xh, *weight_args)

    out = out.reshape(n, h, w, 5 * C_OUT)
    if out_format == "NCHW":
        out = jnp.transpose(out, (0, 3, 1, 2))
    return out


def init_params(key, cin):
    keys = jax.random.split(key, 25)

    def cw(k, kh, kw):
        return jax.random.normal(k, (C_OUT, cin, kh, kw), jnp.float32) * 0.05

    w1, w6, w12, w18, wp = (cw(keys[0], 1, 1), cw(keys[1], 3, 3),
                            cw(keys[2], 3, 3), cw(keys[3], 3, 3),
                            cw(keys[4], 1, 1))
    scales, biases = [], []
    for i in range(5):
        kg, kb, km, kv = (keys[5 + 4 * i], keys[6 + 4 * i],
                          keys[7 + 4 * i], keys[8 + 4 * i])
        gamma = 1.0 + 0.1 * jax.random.normal(kg, (C_OUT,), jnp.float32)
        beta = 0.1 * jax.random.normal(kb, (C_OUT,), jnp.float32)
        mean = 0.1 * jax.random.normal(km, (C_OUT,), jnp.float32)
        var = 0.5 + jax.random.uniform(kv, (C_OUT,), jnp.float32)
        s = gamma / jnp.sqrt(var + BN_EPS)
        scales.append(s)
        biases.append(beta - mean * s)
    return dict(w1=w1, w6=w6, w12=w12, w18=w18, wp=wp,
                scale=jnp.stack(scales), bias=jnp.stack(biases))


def ref_forward(x_nchw, p):
    """Pure-JAX f32 reference (lax.conv) with identical BN folding."""
    def conv(x, wt, pad, dil):
        return jax.lax.conv_general_dilated(
            x, wt, window_strides=(1, 1),
            padding=((pad, pad), (pad, pad)),
            rhs_dilation=(dil, dil),
            dimension_numbers=('NCHW', 'OIHW', 'NCHW'))

    def bn(y, idx, relu=True):
        s = p['scale'][idx].reshape(1, C_OUT, 1, 1)
        b = p['bias'][idx].reshape(1, C_OUT, 1, 1)
        y = y * s + b
        return jnp.maximum(y, 0.0) if relu else y

    x1 = bn(conv(x_nchw, p['w1'], 0, 1), 0)
    x2 = bn(conv(x_nchw, p['w6'], 6, 6), 1)
    x3 = bn(conv(x_nchw, p['w12'], 12, 12), 2)
    x4 = bn(conv(x_nchw, p['w18'], 18, 18), 3)
    xm = jnp.mean(x_nchw, axis=(2, 3), keepdims=True)
    x5 = bn(conv(xm, p['wp'], 0, 1), 4, relu=False)
    x5 = jnp.broadcast_to(x5, x1.shape)
    return jnp.concatenate([x1, x2, x3, x4, x5], axis=1)


if __name__ == "__main__":
    key = jax.random.PRNGKey(0)
    kx, kp = jax.random.split(key)
    N, CIN, H, W = 2, 32, 16, 16
    x = jax.random.normal(kx, (N, CIN, H, W), jnp.float32)
    params = init_params(kp, CIN)

    out_nhwc = jax.block_until_ready(ins_context_block(x, params))
    assert out_nhwc.shape == (N, H, W, 5 * C_OUT)

    ref = ref_forward(x, params)                               # NCHW, f32
    out_nchw = jnp.transpose(out_nhwc.astype(jnp.float32), (0, 3, 1, 2))
    # bf16 matmul operands + bf16 output vs f32 reference -> loose tolerance.
    np.testing.assert_allclose(np.asarray(out_nchw), np.asarray(ref),
                               rtol=4e-2, atol=4e-2)
    print("KERNEL_OK")
</pallas_src>

<mosaic_0001>
module attributes {stable_mosaic.version = 11 : i64} {
  func.func @kernel(%arg0: i32, %arg1: memref<2x16x16x32xbf16, #tpu.memory_space<vmem>>, %arg2: memref<32x512xbf16, #tpu.memory_space<vmem>>, %arg3: memref<288x256xbf16, #tpu.memory_space<vmem>>, %arg4: memref<288x256xbf16, #tpu.memory_space<vmem>>, %arg5: memref<32x256xbf16, #tpu.memory_space<vmem>>, %arg6: memref<5x256xf32, #tpu.memory_space<vmem>>, %arg7: memref<2x256x1280xbf16, #tpu.memory_space<vmem>>, %arg8: memref<2x16x16x288xbf16, #tpu.memory_space<vmem>>) attributes {dimension_semantics = [#tpu.dimension_semantics<parallel>], iteration_bounds = array<i64: 1>, scalar_prefetch = 0 : i64, scratch_operands = 1 : i64, tpu.core_type = #tpu.core_type<tc>, window_params = [{transform_indices = @transform_0, window_bounds = array<i64: 2, 16, 16, 32>}, {pipeline_mode = #tpu.pipeline_mode<synchronous>, transform_indices = @transform_1, window_bounds = array<i64: 32, 512>}, {pipeline_mode = #tpu.pipeline_mode<synchronous>, transform_indices = @transform_2, window_bounds = array<i64: 288, 256>}, {pipeline_mode = #tpu.pipeline_mode<synchronous>, transform_indices = @transform_3, window_bounds = array<i64: 288, 256>}, {pipeline_mode = #tpu.pipeline_mode<synchronous>, transform_indices = @transform_4, window_bounds = array<i64: 32, 256>}, {pipeline_mode = #tpu.pipeline_mode<synchronous>, transform_indices = @transform_5, window_bounds = array<i64: 5, 256>}, {transform_indices = @transform_6, window_bounds = array<i64: 2, 256, 1280>}]} {
    %c0 = arith.constant 0 : index
    %c0_0 = arith.constant 0 : index
    %c0_1 = arith.constant 0 : index
    %c0_2 = arith.constant 0 : index
    %0 = vector.load %arg1[%c0, %c0_0, %c0_1, %c0_2] : memref<2x16x16x32xbf16, #tpu.memory_space<vmem>>, vector<2x16x16x32xbf16>
    %1 = vector.shape_cast %0 : vector<2x16x16x32xbf16> to vector<512x32xbf16>
    %c0_3 = arith.constant 0 : index
    %c0_4 = arith.constant 0 : index
    %2 = vector.load %arg2[%c0_3, %c0_4] : memref<32x512xbf16, #tpu.memory_space<vmem>>, vector<32x512xbf16>
    %cst = arith.constant dense<0.000000e+00> : vector<512x512xf32>
    %3 = tpu.matmul %1, %2, %cst {dimension_numbers = #tpu.dot_dimension_numbers<[1], [0], [0], [1], [0, 0, 1, 1], [], []>} : vector<512x32xbf16>, vector<32x512xbf16>, vector<512x512xf32> -> vector<512x512xf32>
    %4 = vector.extract_strided_slice %3 {offsets = [0, 0], sizes = [512, 256], strides = [1, 1]} : vector<512x512xf32> to vector<512x256xf32>
    %c0_5 = arith.constant 0 : index
    %c0_6 = arith.constant 0 : index
    %5 = vector.load %arg6[%c0_5, %c0_6] : memref<5x256xf32, #tpu.memory_space<vmem>>, vector<1x256xf32>
    %6 = vector.broadcast %5 : vector<1x256xf32> to vector<512x256xf32>
    %7 = arith.addf %4, %6 : vector<512x256xf32>
    %cst_7 = arith.constant 0.000000e+00 : f32
    %8 = vector.broadcast %cst_7 : f32 to vector<512x256xf32>
    %9 = arith.maximumf %7, %8 : vector<512x256xf32>
    %10 = arith.truncf %9 : vector<512x256xf32> to vector<512x256xbf16>
    %11 = vector.shape_cast %10 : vector<512x256xbf16> to vector<2x256x256xbf16>
    %c0_8 = arith.constant 0 : index
    %c0_9 = arith.constant 0 : index
    %c0_10 = arith.constant 0 : index
    %12 = vector.load %arg7[%c0_8, %c0_9, %c0_10] : memref<2x256x1280xbf16, #tpu.memory_space<vmem>>, vector<2x256x256xbf16>
    tpu.vector_store %arg7[%c0_8, %c0_9, %c0_10], %11 {strides = array<i32>} : memref<2x256x1280xbf16, #tpu.memory_space<vmem>>, vector<2x256x256xbf16>,
    %13 = vector.extract_strided_slice %3 {offsets = [0, 256], sizes = [512, 256], strides = [1, 1]} : vector<512x512xf32> to vector<512x256xf32>
    %c3 = arith.constant 3 : index
    %c0_11 = arith.constant 0 : index
    %14 = vector.load %arg6[%c3, %c0_11] : memref<5x256xf32, #tpu.memory_space<vmem>>, vector<1x256xf32>
    %15 = vector.broadcast %14 : vector<1x256xf32> to vector<512x256xf32>
    %16 = arith.addf %13, %15 : vector<512x256xf32>
    %cst_12 = arith.constant 0.000000e+00 : f32
    %17 = vector.broadcast %cst_12 : f32 to vector<512x256xf32>
    %18 = arith.maximumf %16, %17 : vector<512x256xf32>
    %19 = arith.truncf %18 : vector<512x256xf32> to vector<512x256xbf16>
    %20 = vector.shape_cast %19 : vector<512x256xbf16> to vector<2x256x256xbf16>
    %c0_13 = arith.constant 0 : index
    %c0_14 = arith.constant 0 : index
    %c768 = arith.constant 768 : index
    %21 = vector.load %arg7[%c0_13, %c0_14, %c768] : memref<2x256x1280xbf16, #tpu.memory_space<vmem>>, vector<2x256x256xbf16>
    tpu.vector_store %arg7[%c0_13, %c0_14, %c768], %20 {strides = array<i32>} : memref<2x256x1280xbf16, #tpu.memory_space<vmem>>, vector<2x256x256xbf16>,
    %cst_15 = arith.constant 0.000000e+00 : bf16
    %22 = vector.broadcast %cst_15 : bf16 to vector<2x16x16x288xbf16>
    %c0_16 = arith.constant 0 : index
    %c0_17 = arith.constant 0 : index
    %c0_18 = arith.constant 0 : index
    %c0_19 = arith.constant 0 : index
    %23 = vector.load %arg8[%c0_16, %c0_17, %c0_18, %c0_19] : memref<2x16x16x288xbf16, #tpu.memory_space<vmem>>, vector<2x16x16x288xbf16>
    tpu.vector_store %arg8[%c0_16, %c0_17, %c0_18, %c0_19], %22 {strides = array<i32>} : memref<2x16x16x288xbf16, #tpu.memory_space<vmem>>, vector<2x16x16x288xbf16>,
    %c0_20 = arith.constant 0 : index
    %c0_21 = arith.constant 0 : index
    %c0_22 = arith.constant 0 : index
    %c0_23 = arith.constant 0 : index
    %24 = vector.load %arg1[%c0_20, %c0_21, %c0_22, %c0_23] : memref<2x16x16x32xbf16, #tpu.memory_space<vmem>>, vector<1x4x4x32xbf16>
    %25 = vector.shape_cast %24 : vector<1x4x4x32xbf16> to vector<4x4x32xbf16>
    %c0_24 = arith.constant 0 : index
    %c12 = arith.constant 12 : index
    %c12_25 = arith.constant 12 : index
    %c0_26 = arith.constant 0 : index
    %26 = vector.load %arg8[%c0_24, %c12, %c12_25, %c0_26] : memref<2x16x16x288xbf16, #tpu.memory_space<vmem>>, vector<1x4x4x32xbf16>
    %27 = vector.shape_cast %26 : vector<1x4x4x32xbf16> to vector<4x4x32xbf16>
    %28 = vector.shape_cast %25 : vector<4x4x32xbf16> to vector<1x4x4x32xbf16>
    tpu.vector_store %arg8[%c0_24, %c12, %c12_25, %c0_26], %28 {strides = array<i32>} : memref<2x16x16x288xbf16, #tpu.memory_space<vmem>>, vector<1x4x4x32xbf16>,
    %c0_27 = arith.constant 0 : index
    %c0_28 = arith.constant 0 : index
    %c0_29 = arith.constant 0 : index
    %c0_30 = arith.constant 0 : index
    %29 = vector.load %arg1[%c0_27, %c0_28, %c0_29, %c0_30] : memref<2x16x16x32xbf16, #tpu.memory_space<vmem>>, vector<1x4x16x32xbf16>
    %30 = vector.shape_cast %29 : vector<1x4x16x32xbf16> to vector<4x16x32xbf16>
    %c0_31 = arith.constant 0 : index
    %c12_32 = arith.constant 12 : index
    %c0_33 = arith.constant 0 : index
    %c32 = arith.constant 32 : index
    %31 = vector.load %arg8[%c0_31, %c12_32, %c0_33, %c32] : memref<2x16x16x288xbf16, #tpu.memory_space<vmem>>, vector<1x4x16x32xbf16>
    %32 = vector.shape_cast %31 : vector<1x4x16x32xbf16> to vector<4x16x32xbf16>
    %33 = vector.shape_cast %30 : vector<4x16x32xbf16> to vector<1x4x16x32xbf16>
    tpu.vector_store %arg8[%c0_31, %c12_32, %c0_33, %c32], %33 {strides = array<i32>} : memref<2x16x16x288xbf16, #tpu.memory_space<vmem>>, vector<1x4x16x32xbf16>,
    %c0_34 = arith.constant 0 : index
    %c0_35 = arith.constant 0 : index
    %c12_36 = arith.constant 12 : index
    %c0_37 = arith.constant 0 : index
    %34 = vector.load %arg1[%c0_34, %c0_35, %c12_36, %c0_37] : memref<2x16x16x32xbf16, #tpu.memory_space<vmem>>, vector<1x4x4x32xbf16>
    %35 = vector.shape_cast %34 : vector<1x4x4x32xbf16> to vector<4x4x32xbf16>
    %c0_38 = arith.constant 0 : index
    %c12_39 = arith.constant 12 : index
    %c0_40 = arith.constant 0 : index
    %c64 = arith.constant 64 : index
    %36 = vector.load %arg8[%c0_38, %c12_39, %c0_40, %c64] : memref<2x16x16x288xbf16, #tpu.memory_space<vmem>>, vector<1x4x4x32xbf16>
    %37 = vector.shape_cast %36 : vector<1x4x4x32xbf16> to vector<4x4x32xbf16>
    %38 = vector.shape_cast %35 : vector<4x4x32xbf16> to vector<1x4x4x32xbf16>
    tpu.vector_store %arg8[%c0_38, %c12_39, %c0_40, %c64], %38 {strides = array<i32>} : memref<2x16x16x288xbf16, #tpu.memory_space<vmem>>, vector<1x4x4x32xbf16>,
    %c0_41 = arith.constant 0 : index
    %c0_42 = arith.constant 0 : index
    %c0_43 = arith.constant 0 : index
    %c0_44 = arith.constant 0 : index
    %39 = vector.load %arg1[%c0_41, %c0_42, %c0_43, %c0_44] : memref<2x16x16x32xbf16, #tpu.memory_space<vmem>>, vector<1x16x4x32xbf16>
    %40 = vector.shape_cast %39 : vector<1x16x4x32xbf16> to vector<16x4x32xbf16>
    %c0_45 = arith.constant 0 : index
    %c0_46 = arith.constant 0 : index
    %c12_47 = arith.constant 12 : index
    %c96 = arith.constant 96 : index
    %41 = vector.load %arg8[%c0_45, %c0_46, %c12_47, %c96] : memref<2x16x16x288xbf16, #tpu.memory_space<vmem>>, vector<1x16x4x32xbf16>
    %42 = vector.shape_cast %41 : vector<1x16x4x32xbf16> to vector<16x4x32xbf16>
    %43 = vector.shape_cast %40 : vector<16x4x32xbf16> to vector<1x16x4x32xbf16>
    tpu.vector_store %arg8[%c0_45, %c0_46, %c12_47, %c96], %43 {strides = array<i32>} : memref<2x16x16x288xbf16, #tpu.memory_space<vmem>>, vector<1x16x4x32xbf16>,
    %c0_48 = arith.constant 0 : index
    %c0_49 = arith.constant 0 : index
    %c0_50 = arith.constant 0 : index
    %c0_51 = arith.constant 0 : index
    %44 = vector.load %arg1[%c0_48, %c0_49, %c0_50, %c0_51] : memref<2x16x16x32xbf16, #tpu.memory_space<vmem>>, vector<1x16x16x32xbf16>
    %45 = vector.shape_cast %44 : vector<1x16x16x32xbf16> to vector<16x16x32xbf16>
    %c0_52 = arith.constant 0 : index
    %c0_53 = arith.constant 0 : index
    %c0_54 = arith.constant 0 : index
    %c128 = arith.constant 128 : index
    %46 = vector.load %arg8[%c0_52, %c0_53, %c0_54, %c128] : memref<2x16x16x288xbf16, #tpu.memory_space<vmem>>, vector<1x16x16x32xbf16>
    %47 = vector.shape_cast %46 : vector<1x16x16x32xbf16> to vector<16x16x32xbf16>
    %48 = vector.shape_cast %45 : vector<16x16x32xbf16> to vector<1x16x16x32xbf16>
    tpu.vector_store %arg8[%c0_52, %c0_53, %c0_54, %c128], %48 {strides = array<i32>} : memref<2x16x16x288xbf16, #tpu.memory_space<vmem>>, vector<1x16x16x32xbf16>,
    %c0_55 = arith.constant 0 : index
    %c0_56 = arith.constant 0 : index
    %c12_57 = arith.constant 12 : index
    %c0_58 = arith.constant 0 : index
    %49 = vector.load %arg1[%c0_55, %c0_56, %c12_57, %c0_58] : memref<2x16x16x32xbf16, #tpu.memory_space<vmem>>, vector<1x16x4x32xbf16>
    %50 = vector.shape_cast %49 : vector<1x16x4x32xbf16> to vector<16x4x32xbf16>
    %c0_59 = arith.constant 0 : index
    %c0_60 = arith.constant 0 : index
    %c0_61 = arith.constant 0 : index
    %c160 = arith.constant 160 : index
    %51 = vector.load %arg8[%c0_59, %c0_60, %c0_61, %c160] : memref<2x16x16x288xbf16, #tpu.memory_space<vmem>>, vector<1x16x4x32xbf16>
    %52 = vector.shape_cast %51 : vector<1x16x4x32xbf16> to vector<16x4x32xbf16>
    %53 = vector.shape_cast %50 : vector<16x4x32xbf16> to vector<1x16x4x32xbf16>
    tpu.vector_store %arg8[%c0_59, %c0_60, %c0_61, %c160], %53 {strides = array<i32>} : memref<2x16x16x288xbf16, #tpu.memory_space<vmem>>, vector<1x16x4x32xbf16>,
    %c0_62 = arith.constant 0 : index
    %c12_63 = arith.constant 12 : index
    %c0_64 = arith.constant 0 : index
    %c0_65 = arith.constant 0 : index
    %54 = vector.load %arg1[%c0_62, %c12_63, %c0_64, %c0_65] : memref<2x16x16x32xbf16, #tpu.memory_space<vmem>>, vector<1x4x4x32xbf16>
    %55 = vector.shape_cast %54 : vector<1x4x4x32xbf16> to vector<4x4x32xbf16>
    %c0_66 = arith.constant 0 : index
    %c0_67 = arith.constant 0 : index
    %c12_68 = arith.constant 12 : index
    %c192 = arith.constant 192 : index
    %56 = vector.load %arg8[%c0_66, %c0_67, %c12_68, %c192] : memref<2x16x16x288xbf16, #tpu.memory_space<vmem>>, vector<1x4x4x32xbf16>
    %57 = vector.shape_cast %56 : vector<1x4x4x32xbf16> to vector<4x4x32xbf16>
    %58 = vector.shape_cast %55 : vector<4x4x32xbf16> to vector<1x4x4x32xbf16>
    tpu.vector_store %arg8[%c0_66, %c0_67, %c12_68, %c192], %58 {strides = array<i32>} : memref<2x16x16x288xbf16, #tpu.memory_space<vmem>>, vector<1x4x4x32xbf16>,
    %c0_69 = arith.constant 0 : index
    %c12_70 = arith.constant 12 : index
    %c0_71 = arith.constant 0 : index
    %c0_72 = arith.constant 0 : index
    %59 = vector.load %arg1[%c0_69, %c12_70, %c0_71, %c0_72] : memref<2x16x16x32xbf16, #tpu.memory_space<vmem>>, vector<1x4x16x32xbf16>
    %60 = vector.shape_cast %59 : vector<1x4x16x32xbf16> to vector<4x16x32xbf16>
    %c0_73 = arith.constant 0 : index
    %c0_74 = arith.constant 0 : index
    %c0_75 = arith.constant 0 : index
    %c224 = arith.constant 224 : index
    %61 = vector.load %arg8[%c0_73, %c0_74, %c0_75, %c224] : memref<2x16x16x288xbf16, #tpu.memory_space<vmem>>, vector<1x4x16x32xbf16>
    %62 = vector.shape_cast %61 : vector<1x4x16x32xbf16> to vector<4x16x32xbf16>
    %63 = vector.shape_cast %60 : vector<4x16x32xbf16> to vector<1x4x16x32xbf16>
    tpu.vector_store %arg8[%c0_73, %c0_74, %c0_75, %c224], %63 {strides = array<i32>} : memref<2x16x16x288xbf16, #tpu.memory_space<vmem>>, vector<1x4x16x32xbf16>,
    %c0_76 = arith.constant 0 : index
    %c12_77 = arith.constant 12 : index
    %c12_78 = arith.constant 12 : index
    %c0_79 = arith.constant 0 : index
    %64 = vector.load %arg1[%c0_76, %c12_77, %c12_78, %c0_79] : memref<2x16x16x32xbf16, #tpu.memory_space<vmem>>, vector<1x4x4x32xbf16>
    %65 = vector.shape_cast %64 : vector<1x4x4x32xbf16> to vector<4x4x32xbf16>
    %c0_80 = arith.constant 0 : index
    %c0_81 = arith.constant 0 : index
    %c0_82 = arith.constant 0 : index
    %c256 = arith.constant 256 : index
    %66 = vector.load %arg8[%c0_80, %c0_81, %c0_82, %c256] : memref<2x16x16x288xbf16, #tpu.memory_space<vmem>>, vector<1x4x4x32xbf16>
    %67 = vector.shape_cast %66 : vector<1x4x4x32xbf16> to vector<4x4x32xbf16>
    %68 = vector.shape_cast %65 : vector<4x4x32xbf16> to vector<1x4x4x32xbf16>
    tpu.vector_store %arg8[%c0_80, %c0_81, %c0_82, %c256], %68 {strides = array<i32>} : memref<2x16x16x288xbf16, #tpu.memory_space<vmem>>, vector<1x4x4x32xbf16>,
    %c1 = arith.constant 1 : index
    %c0_83 = arith.constant 0 : index
    %c0_84 = arith.constant 0 : index
    %c0_85 = arith.constant 0 : index
    %69 = vector.load %arg1[%c1, %c0_83, %c0_84, %c0_85] : memref<2x16x16x32xbf16, #tpu.memory_space<vmem>>, vector<1x4x4x32xbf16>
    %70 = vector.shape_cast %69 : vector<1x4x4x32xbf16> to vector<4x4x32xbf16>
    %c1_86 = arith.constant 1 : index
    %c12_87 = arith.constant 12 : index
    %c12_88 = arith.constant 12 : index
    %c0_89 = arith.constant 0 : index
    %71 = vector.load %arg8[%c1_86, %c12_87, %c12_88, %c0_89] : memref<2x16x16x288xbf16, #tpu.memory_space<vmem>>, vector<1x4x4x32xbf16>
    %72 = vector.shape_cast %71 : vector<1x4x4x32xbf16> to vector<4x4x32xbf16>
    %73 = vector.shape_cast %70 : vector<4x4x32xbf16> to vector<1x4x4x32xbf16>
    tpu.vector_store %arg8[%c1_86, %c12_87, %c12_88, %c0_89], %73 {strides = array<i32>} : memref<2x16x16x288xbf16, #tpu.memory_space<vmem>>, vector<1x4x4x32xbf16>,
    %c1_90 = arith.constant 1 : index
    %c0_91 = arith.constant 0 : index
    %c0_92 = arith.constant 0 : index
    %c0_93 = arith.constant 0 : index
    %74 = vector.load %arg1[%c1_90, %c0_91, %c0_92, %c0_93] : memref<2x16x16x32xbf16, #tpu.memory_space<vmem>>, vector<1x4x16x32xbf16>
    %75 = vector.shape_cast %74 : vector<1x4x16x32xbf16> to vector<4x16x32xbf16>
    %c1_94 = arith.constant 1 : index
    %c12_95 = arith.constant 12 : index
    %c0_96 = arith.constant 0 : index
    %c32_97 = arith.constant 32 : index
    %76 = vector.load %arg8[%c1_94, %c12_95, %c0_96, %c32_97] : memref<2x16x16x288xbf16, #tpu.memory_space<vmem>>, vector<1x4x16x32xbf16>
    %77 = vector.shape_cast %76 : vector<1x4x16x32xbf16> to vector<4x16x32xbf16>
    %78 = vector.shape_cast %75 : vector<4x16x32xbf16> to vector<1x4x16x32xbf16>
    tpu.vector_store %arg8[%c1_94, %c12_95, %c0_96, %c32_97], %78 {strides = array<i32>} : memref<2x16x16x288xbf16, #tpu.memory_space<vmem>>, vector<1x4x16x32xbf16>,
    %c1_98 = arith.constant 1 : index
    %c0_99 = arith.constant 0 : index
    %c12_100 = arith.constant 12 : index
    %c0_101 = arith.constant 0 : index
    %79 = vector.load %arg1[%c1_98, %c0_99, %c12_100, %c0_101] : memref<2x16x16x32xbf16, #tpu.memory_space<vmem>>, vector<1x4x4x32xbf16>
    %80 = vector.shape_cast %79 : vector<1x4x4x32xbf16> to vector<4x4x32xbf16>
    %c1_102 = arith.constant 1 : index
    %c12_103 = arith.constant 12 : index
    %c0_104 = arith.constant 0 : index
    %c64_105 = arith.constant 64 : index
    %81 = vector.load %arg8[%c1_102, %c12_103, %c0_104, %c64_105] : memref<2x16x16x288xbf16, #tpu.memory_space<vmem>>, vector<1x4x4x32xbf16>
    %82 = vector.shape_cast %81 : vector<1x4x4x32xbf16> to vector<4x4x32xbf16>
    %83 = vector.shape_cast %80 : vector<4x4x32xbf16> to vector<1x4x4x32xbf16>
    tpu.vector_store %arg8[%c1_102, %c12_103, %c0_104, %c64_105], %83 {strides = array<i32>} : memref<2x16x16x288xbf16, #tpu.memory_space<vmem>>, vector<1x4x4x32xbf16>,
    %c1_106 = arith.constant 1 : index
    %c0_107 = arith.constant 0 : index
    %c0_108 = arith.constant 0 : index
    %c0_109 = arith.constant 0 : index
    %84 = vector.load %arg1[%c1_106, %c0_107, %c0_108, %c0_109] : memref<2x16x16x32xbf16, #tpu.memory_space<vmem>>, vector<1x16x4x32xbf16>
    %85 = vector.shape_cast %84 : vector<1x16x4x32xbf16> to vector<16x4x32xbf16>
    %c1_110 = arith.constant 1 : index
    %c0_111 = arith.constant 0 : index
    %c12_112 = arith.constant 12 : index
    %c96_113 = arith.constant 96 : index
    %86 = vector.load %arg8[%c1_110, %c0_111, %c12_112, %c96_113] : memref<2x16x16x288xbf16, #tpu.memory_space<vmem>>, vector<1x16x4x32xbf16>
    %87 = vector.shape_cast %86 : vector<1x16x4x32xbf16> to vector<16x4x32xbf16>
    %88 = vector.shape_cast %85 : vector<16x4x32xbf16> to vector<1x16x4x32xbf16>
    tpu.vector_store %arg8[%c1_110, %c0_111, %c12_112, %c96_113], %88 {strides = array<i32>} : memref<2x16x16x288xbf16, #tpu.memory_space<vmem>>, vector<1x16x4x32xbf16>,
    %c1_114 = arith.constant 1 : index
    %c0_115 = arith.constant 0 : index
    %c0_116 = arith.constant 0 : index
    %c0_117 = arith.constant 0 : index
    %89 = vector.load %arg1[%c1_114, %c0_115, %c0_116, %c0_117] : memref<2x16x16x32xbf16, #tpu.memory_space<vmem>>, vector<1x16x16x32xbf16>
    %90 = vector.shape_cast %89 : vector<1x16x16x32xbf16> to vector<16x16x32xbf16>
    %c1_118 = arith.constant 1 : index
    %c0_119 = arith.constant 0 : index
    %c0_120 = arith.constant 0 : index
    %c128_121 = arith.constant 128 : index
    %91 = vector.load %arg8[%c1_118, %c0_119, %c0_120, %c128_121] : memref<2x16x16x288xbf16, #tpu.memory_space<vmem>>, vector<1x16x16x32xbf16>
    %92 = vector.shape_cast %91 : vector<1x16x16x32xbf16> to vector<16x16x32xbf16>
    %93 = vector.shape_cast %90 : vector<16x16x32xbf16> to vector<1x16x16x32xbf16>
    tpu.vector_store %arg8[%c1_118, %c0_119, %c0_120, %c128_121], %93 {strides = array<i32>} : memref<2x16x16x288xbf16, #tpu.memory_space<vmem>>, vector<1x16x16x32xbf16>,
    %c1_122 = arith.constant 1 : index
    %c0_123 = arith.constant 0 : index
    %c12_124 = arith.constant 12 : index
    %c0_125 = arith.constant 0 : index
    %94 = vector.load %arg1[%c1_122, %c0_123, %c12_124, %c0_125] : memref<2x16x16x32xbf16, #tpu.memory_space<vmem>>, vector<1x16x4x32xbf16>
    %95 = vector.shape_cast %94 : vector<1x16x4x32xbf16> to vector<16x4x32xbf16>
    %c1_126 = arith.constant 1 : index
    %c0_127 = arith.constant 0 : index
    %c0_128 = arith.constant 0 : index
    %c160_129 = arith.constant 160 : index
    %96 = vector.load %arg8[%c1_126, %c0_127, %c0_128, %c160_129] : memref<2x16x16x288xbf16, #tpu.memory_space<vmem>>, vector<1x16x4x32xbf16>
    %97 = vector.shape_cast %96 : vector<1x16x4x32xbf16> to vector<16x4x32xbf16>
    %98 = vector.shape_cast %95 : vector<16x4x32xbf16> to vector<1x16x4x32xbf16>
    tpu.vector_store %arg8[%c1_126, %c0_127, %c0_128, %c160_129], %98 {strides = array<i32>} : memref<2x16x16x288xbf16, #tpu.memory_space<vmem>>, vector<1x16x4x32xbf16>,
    %c1_130 = arith.constant 1 : index
    %c12_131 = arith.constant 12 : index
    %c0_132 = arith.constant 0 : index
    %c0_133 = arith.constant 0 : index
    %99 = vector.load %arg1[%c1_130, %c12_131, %c0_132, %c0_133] : memref<2x16x16x32xbf16, #tpu.memory_space<vmem>>, vector<1x4x4x32xbf16>
    %100 = vector.shape_cast %99 : vector<1x4x4x32xbf16> to vector<4x4x32xbf16>
    %c1_134 = arith.constant 1 : index
    %c0_135 = arith.constant 0 : index
    %c12_136 = arith.constant 12 : index
    %c192_137 = arith.constant 192 : index
    %101 = vector.load %arg8[%c1_134, %c0_135, %c12_136, %c192_137] : memref<2x16x16x288xbf16, #tpu.memory_space<vmem>>, vector<1x4x4x32xbf16>
    %102 = vector.shape_cast %101 : vector<1x4x4x32xbf16> to vector<4x4x32xbf16>
    %103 = vector.shape_cast %100 : vector<4x4x32xbf16> to vector<1x4x4x32xbf16>
    tpu.vector_store %arg8[%c1_134, %c0_135, %c12_136, %c192_137], %103 {strides = array<i32>} : memref<2x16x16x288xbf16, #tpu.memory_space<vmem>>, vector<1x4x4x32xbf16>,
    %c1_138 = arith.constant 1 : index
    %c12_139 = arith.constant 12 : index
    %c0_140 = arith.constant 0 : index
    %c0_141 = arith.constant 0 : index
    %104 = vector.load %arg1[%c1_138, %c12_139, %c0_140, %c0_141] : memref<2x16x16x32xbf16, #tpu.memory_space<vmem>>, vector<1x4x16x32xbf16>
    %105 = vector.shape_cast %104 : vector<1x4x16x32xbf16> to vector<4x16x32xbf16>
    %c1_142 = arith.constant 1 : index
    %c0_143 = arith.constant 0 : index
    %c0_144 = arith.constant 0 : index
    %c224_145 = arith.constant 224 : index
    %106 = vector.load %arg8[%c1_142, %c0_143, %c0_144, %c224_145] : memref<2x16x16x288xbf16, #tpu.memory_space<vmem>>, vector<1x4x16x32xbf16>
    %107 = vector.shape_cast %106 : vector<1x4x16x32xbf16> to vector<4x16x32xbf16>
    %108 = vector.shape_cast %105 : vector<4x16x32xbf16> to vector<1x4x16x32xbf16>
    tpu.vector_store %arg8[%c1_142, %c0_143, %c0_144, %c224_145], %108 {strides = array<i32>} : memref<2x16x16x288xbf16, #tpu.memory_space<vmem>>, vector<1x4x16x32xbf16>,
    %c1_146 = arith.constant 1 : index
    %c12_147 = arith.constant 12 : index
    %c12_148 = arith.constant 12 : index
    %c0_149 = arith.constant 0 : index
    %109 = vector.load %arg1[%c1_146, %c12_147, %c12_148, %c0_149] : memref<2x16x16x32xbf16, #tpu.memory_space<vmem>>, vector<1x4x4x32xbf16>
    %110 = vector.shape_cast %109 : vector<1x4x4x32xbf16> to vector<4x4x32xbf16>
    %c1_150 = arith.constant 1 : index
    %c0_151 = arith.constant 0 : index
    %c0_152 = arith.constant 0 : index
    %c256_153 = arith.constant 256 : index
    %111 = vector.load %arg8[%c1_150, %c0_151, %c0_152, %c256_153] : memref<2x16x16x288xbf16, #tpu.memory_space<vmem>>, vector<1x4x4x32xbf16>
    %112 = vector.shape_cast %111 : vector<1x4x4x32xbf16> to vector<4x4x32xbf16>
    %113 = vector.shape_cast %110 : vector<4x4x32xbf16> to vector<1x4x4x32xbf16>
    tpu.vector_store %arg8[%c1_150, %c0_151, %c0_152, %c256_153], %113 {strides = array<i32>} : memref<2x16x16x288xbf16, #tpu.memory_space<vmem>>, vector<1x4x4x32xbf16>,
    %c0_154 = arith.constant 0 : index
    %c0_155 = arith.constant 0 : index
    %c0_156 = arith.constant 0 : index
    %c0_157 = arith.constant 0 : index
    %114 = vector.load %arg8[%c0_154, %c0_155, %c0_156, %c0_157] : memref<2x16x16x288xbf16, #tpu.memory_space<vmem>>, vector<2x16x16x288xbf16>
    %115 = vector.shape_cast %114 : vector<2x16x16x288xbf16> to vector<512x288xbf16>
    %c0_158 = arith.constant 0 : index
    %c0_159 = arith.constant 0 : index
    %116 = vector.load %arg3[%c0_158, %c0_159] : memref<288x256xbf16, #tpu.memory_space<vmem>>, vector<288x256xbf16>
    %cst_160 = arith.constant dense<0.000000e+00> : vector<512x256xf32>
    %117 = tpu.matmul %115, %116, %cst_160 {dimension_numbers = #tpu.dot_dimension_numbers<[1], [0], [0], [1], [0, 0, 1, 1], [], []>} : vector<512x288xbf16>, vector<288x256xbf16>, vector<512x256xf32> -> vector<512x256xf32>
    %c2 = arith.constant 2 : index
    %c0_161 = arith.constant 0 : index
    %118 = vector.load %arg6[%c2, %c0_161] : memref<5x256xf32, #tpu.memory_space<vmem>>, vector<1x256xf32>
    %119 = vector.broadcast %118 : vector<1x256xf32> to vector<512x256xf32>
    %120 = arith.addf %117, %119 : vector<512x256xf32>
    %cst_162 = arith.constant 0.000000e+00 : f32
    %121 = vector.broadcast %cst_162 : f32 to vector<512x256xf32>
    %122 = arith.maximumf %120, %121 : vector<512x256xf32>
    %123 = arith.truncf %122 : vector<512x256xf32> to vector<512x256xbf16>
    %124 = vector.shape_cast %123 : vector<512x256xbf16> to vector<2x256x256xbf16>
    %c0_163 = arith.constant 0 : index
    %c0_164 = arith.constant 0 : index
    %c512 = arith.constant 512 : index
    %125 = vector.load %arg7[%c0_163, %c0_164, %c512] : memref<2x256x1280xbf16, #tpu.memory_space<vmem>>, vector<2x256x256xbf16>
    tpu.vector_store %arg7[%c0_163, %c0_164, %c512], %124 {strides = array<i32>} : memref<2x256x1280xbf16, #tpu.memory_space<vmem>>, vector<2x256x256xbf16>,
    %c0_165 = arith.constant 0 : index
    %c0_166 = arith.constant 0 : index
    %c0_167 = arith.constant 0 : index
    %c0_168 = arith.constant 0 : index
    %126 = vector.load %arg1[%c0_165, %c0_166, %c0_167, %c0_168] : memref<2x16x16x32xbf16, #tpu.memory_space<vmem>>, vector<1x10x10x32xbf16>
    %127 = vector.shape_cast %126 : vector<1x10x10x32xbf16> to vector<10x10x32xbf16>
    %c0_169 = arith.constant 0 : index
    %c6 = arith.constant 6 : index
    %c6_170 = arith.constant 6 : index
    %c0_171 = arith.constant 0 : index
    %128 = vector.load %arg8[%c0_169, %c6, %c6_170, %c0_171] : memref<2x16x16x288xbf16, #tpu.memory_space<vmem>>, vector<1x10x10x32xbf16>
    %129 = vector.shape_cast %128 : vector<1x10x10x32xbf16> to vector<10x10x32xbf16>
    %130 = vector.shape_cast %127 : vector<10x10x32xbf16> to vector<1x10x10x32xbf16>
    tpu.vector_store %arg8[%c0_169, %c6, %c6_170, %c0_171], %130 {strides = array<i32>} : memref<2x16x16x288xbf16, #tpu.memory_space<vmem>>, vector<1x10x10x32xbf16>,
    %c0_172 = arith.constant 0 : index
    %c0_173 = arith.constant 0 : index
    %c0_174 = arith.constant 0 : index
    %c0_175 = arith.constant 0 : index
    %131 = vector.load %arg1[%c0_172, %c0_173, %c0_174, %c0_175] : memref<2x16x16x32xbf16, #tpu.memory_space<vmem>>, vector<1x10x16x32xbf16>
    %132 = vector.shape_cast %131 : vector<1x10x16x32xbf16> to vector<10x16x32xbf16>
    %c0_176 = arith.constant 0 : index
    %c6_177 = arith.constant 6 : index
    %c0_178 = arith.constant 0 : index
    %c32_179 = arith.constant 32 : index
    %133 = vector.load %arg8[%c0_176, %c6_177, %c0_178, %c32_179] : memref<2x16x16x288xbf16, #tpu.memory_space<vmem>>, vector<1x10x16x32xbf16>
    %134 = vector.shape_cast %133 : vector<1x10x16x32xbf16> to vector<10x16x32xbf16>
    %135 = vector.shape_cast %132 : vector<10x16x32xbf16> to vector<1x10x16x32xbf16>
    tpu.vector_store %arg8[%c0_176, %c6_177, %c0_178, %c32_179], %135 {strides = array<i32>} : memref<2x16x16x288xbf16, #tpu.memory_space<vmem>>, vector<1x10x16x32xbf16>,
    %c0_180 = arith.constant 0 : index
    %c0_181 = arith.constant 0 : index
    %c6_182 = arith.constant 6 : index
    %c0_183 = arith.constant 0 : index
    %136 = vector.load %arg1[%c0_180, %c0_181, %c6_182, %c0_183] : memref<2x16x16x32xbf16, #tpu.memory_space<vmem>>, vector<1x10x10x32xbf16>
    %137 = vector.shape_cast %136 : vector<1x10x10x32xbf16> to vector<10x10x32xbf16>
    %c0_184 = arith.constant 0 : index
    %c6_185 = arith.constant 6 : index
    %c0_186 = arith.constant 0 : index
    %c64_187 = arith.constant 64 : index
    %138 = vector.load %arg8[%c0_184, %c6_185, %c0_186, %c64_187] : memref<2x16x16x288xbf16, #tpu.memory_space<vmem>>, vector<1x10x10x32xbf16>
    %139 = vector.shape_cast %138 : vector<1x10x10x32xbf16> to vector<10x10x32xbf16>
    %140 = vector.shape_cast %137 : vector<10x10x32xbf16> to vector<1x10x10x32xbf16>
    tpu.vector_store %arg8[%c0_184, %c6_185, %c0_186, %c64_187], %140 {strides = array<i32>} : memref<2x16x16x288xbf16, #tpu.memory_space<vmem>>, vector<1x10x10x32xbf16>,
    %c0_188 = arith.constant 0 : index
    %c0_189 = arith.constant 0 : index
    %c0_190 = arith.constant 0 : index
    %c0_191 = arith.constant 0 : index
    %141 = vector.load %arg1[%c0_188, %c0_189, %c0_190, %c0_191] : memref<2x16x16x32xbf16, #tpu.memory_space<vmem>>, vector<1x16x10x32xbf16>
    %142 = vector.shape_cast %141 : vector<1x16x10x32xbf16> to vector<16x10x32xbf16>
    %c0_192 = arith.constant 0 : index
    %c0_193 = arith.constant 0 : index
    %c6_194 = arith.constant 6 : index
    %c96_195 = arith.constant 96 : index
    %143 = vector.load %arg8[%c0_192, %c0_193, %c6_194, %c96_195] : memref<2x16x16x288xbf16, #tpu.memory_space<vmem>>, vector<1x16x10x32xbf16>
    %144 = vector.shape_cast %143 : vector<1x16x10x32xbf16> to vector<16x10x32xbf16>
    %145 = vector.shape_cast %142 : vector<16x10x32xbf16> to vector<1x16x10x32xbf16>
    tpu.vector_store %arg8[%c0_192, %c0_193, %c6_194, %c96_195], %145 {strides = array<i32>} : memref<2x16x16x288xbf16, #tpu.memory_space<vmem>>, vector<1x16x10x32xbf16>,
    %c0_196 = arith.constant 0 : index
    %c0_197 = arith.constant 0 : index
    %c0_198 = arith.constant 0 : index
    %c0_199 = arith.constant 0 : index
    %146 = vector.load %arg1[%c0_196, %c0_197, %c0_198, %c0_199] : memref<2x16x16x32xbf16, #tpu.memory_space<vmem>>, vector<1x16x16x32xbf16>
    %147 = vector.shape_cast %146 : vector<1x16x16x32xbf16> to vector<16x16x32xbf16>
    %c0_200 = arith.constant 0 : index
    %c0_201 = arith.constant 0 : index
    %c0_202 = arith.constant 0 : index
    %c128_203 = arith.constant 128 : index
    %148 = vector.load %arg8[%c0_200, %c0_201, %c0_202, %c128_203] : memref<2x16x16x288xbf16, #tpu.memory_space<vmem>>, vector<1x16x16x32xbf16>
    %149 = vector.shape_cast %148 : vector<1x16x16x32xbf16> to vector<16x16x32xbf16>
    %150 = vector.shape_cast %147 : vector<16x16x32xbf16> to vector<1x16x16x32xbf16>
    tpu.vector_store %arg8[%c0_200, %c0_201, %c0_202, %c128_203], %150 {strides = array<i32>} : memref<2x16x16x288xbf16, #tpu.memory_space<vmem>>, vector<1x16x16x32xbf16>,
    %c0_204 = arith.constant 0 : index
    %c0_205 = arith.constant 0 : index
    %c6_206 = arith.constant 6 : index
    %c0_207 = arith.constant 0 : index
    %151 = vector.load %arg1[%c0_204, %c0_205, %c6_206, %c0_207] : memref<2x16x16x32xbf16, #tpu.memory_space<vmem>>, vector<1x16x10x32xbf16>
    %152 = vector.shape_cast %151 : vector<1x16x10x32xbf16> to vector<16x10x32xbf16>
    %c0_208 = arith.constant 0 : index
    %c0_209 = arith.constant 0 : index
    %c0_210 = arith.constant 0 : index
    %c160_211 = arith.constant 160 : index
    %153 = vector.load %arg8[%c0_208, %c0_209, %c0_210, %c160_211] : memref<2x16x16x288xbf16, #tpu.memory_space<vmem>>, vector<1x16x10x32xbf16>
    %154 = vector.shape_cast %153 : vector<1x16x10x32xbf16> to vector<16x10x32xbf16>
    %155 = vector.shape_cast %152 : vector<16x10x32xbf16> to vector<1x16x10x32xbf16>
    tpu.vector_store %arg8[%c0_208, %c0_209, %c0_210, %c160_211], %155 {strides = array<i32>} : memref<2x16x16x288xbf16, #tpu.memory_space<vmem>>, vector<1x16x10x32xbf16>,
    %c0_212 = arith.constant 0 : index
    %c6_213 = arith.constant 6 : index
    %c0_214 = arith.constant 0 : index
    %c0_215 = arith.constant 0 : index
    %156 = vector.load %arg1[%c0_212, %c6_213, %c0_214, %c0_215] : memref<2x16x16x32xbf16, #tpu.memory_space<vmem>>, vector<1x10x10x32xbf16>
    %157 = vector.shape_cast %156 : vector<1x10x10x32xbf16> to vector<10x10x32xbf16>
    %c0_216 = arith.constant 0 : index
    %c0_217 = arith.constant 0 : index
    %c6_218 = arith.constant 6 : index
    %c192_219 = arith.constant 192 : index
    %158 = vector.load %arg8[%c0_216, %c0_217, %c6_218, %c192_219] : memref<2x16x16x288xbf16, #tpu.memory_space<vmem>>, vector<1x10x10x32xbf16>
    %159 = vector.shape_cast %158 : vector<1x10x10x32xbf16> to vector<10x10x32xbf16>
    %160 = vector.shape_cast %157 : vector<10x10x32xbf16> to vector<1x10x10x32xbf16>
    tpu.vector_store %arg8[%c0_216, %c0_217, %c6_218, %c192_219], %160 {strides = array<i32>} : memref<2x16x16x288xbf16, #tpu.memory_space<vmem>>, vector<1x10x10x32xbf16>,
    %c0_220 = arith.constant 0 : index
    %c6_221 = arith.constant 6 : index
    %c0_222 = arith.constant 0 : index
    %c0_223 = arith.constant 0 : index
    %161 = vector.load %arg1[%c0_220, %c6_221, %c0_222, %c0_223] : memref<2x16x16x32xbf16, #tpu.memory_space<vmem>>, vector<1x10x16x32xbf16>
    %162 = vector.shape_cast %161 : vector<1x10x16x32xbf16> to vector<10x16x32xbf16>
    %c0_224 = arith.constant 0 : index
    %c0_225 = arith.constant 0 : index
    %c0_226 = arith.constant 0 : index
    %c224_227 = arith.constant 224 : index
    %163 = vector.load %arg8[%c0_224, %c0_225, %c0_226, %c224_227] : memref<2x16x16x288xbf16, #tpu.memory_space<vmem>>, vector<1x10x16x32xbf16>
    %164 = vector.shape_cast %163 : vector<1x10x16x32xbf16> to vector<10x16x32xbf16>
    %165 = vector.shape_cast %162 : vector<10x16x32xbf16> to vector<1x10x16x32xbf16>
    tpu.vector_store %arg8[%c0_224, %c0_225, %c0_226, %c224_227], %165 {strides = array<i32>} : memref<2x16x16x288xbf16, #tpu.memory_space<vmem>>, vector<1x10x16x32xbf16>,
    %c0_228 = arith.constant 0 : index
    %c6_229 = arith.constant 6 : index
    %c6_230 = arith.constant 6 : index
    %c0_231 = arith.constant 0 : index
    %166 = vector.load %arg1[%c0_228, %c6_229, %c6_230, %c0_231] : memref<2x16x16x32xbf16, #tpu.memory_space<vmem>>, vector<1x10x10x32xbf16>
    %167 = vector.shape_cast %166 : vector<1x10x10x32xbf16> to vector<10x10x32xbf16>
    %c0_232 = arith.constant 0 : index
    %c0_233 = arith.constant 0 : index
    %c0_234 = arith.constant 0 : index
    %c256_235 = arith.constant 256 : index
    %168 = vector.load %arg8[%c0_232, %c0_233, %c0_234, %c256_235] : memref<2x16x16x288xbf16, #tpu.memory_space<vmem>>, vector<1x10x10x32xbf16>
    %169 = vector.shape_cast %168 : vector<1x10x10x32xbf16> to vector<10x10x32xbf16>
    %170 = vector.shape_cast %167 : vector<10x10x32xbf16> to vector<1x10x10x32xbf16>
    tpu.vector_store %arg8[%c0_232, %c0_233, %c0_234, %c256_235], %170 {strides = array<i32>} : memref<2x16x16x288xbf16, #tpu.memory_space<vmem>>, vector<1x10x10x32xbf16>,
    %c1_236 = arith.constant 1 : index
    %c0_237 = arith.constant 0 : index
    %c0_238 = arith.constant 0 : index
    %c0_239 = arith.constant 0 : index
    %171 = vector.load %arg1[%c1_236, %c0_237, %c0_238, %c0_239] : memref<2x16x16x32xbf16, #tpu.memory_space<vmem>>, vector<1x10x10x32xbf16>
    %172 = vector.shape_cast %171 : vector<1x10x10x32xbf16> to vector<10x10x32xbf16>
    %c1_240 = arith.constant 1 : index
    %c6_241 = arith.constant 6 : index
    %c6_242 = arith.constant 6 : index
    %c0_243 = arith.constant 0 : index
    %173 = vector.load %arg8[%c1_240, %c6_241, %c6_242, %c0_243] : memref<2x16x16x288xbf16, #tpu.memory_space<vmem>>, vector<1x10x10x32xbf16>
    %174 = vector.shape_cast %173 : vector<1x10x10x32xbf16> to vector<10x10x32xbf16>
    %175 = vector.shape_cast %172 : vector<10x10x32xbf16> to vector<1x10x10x32xbf16>
    tpu.vector_store %arg8[%c1_240, %c6_241, %c6_242, %c0_243], %175 {strides = array<i32>} : memref<2x16x16x288xbf16, #tpu.memory_space<vmem>>, vector<1x10x10x32xbf16>,
    %c1_244 = arith.constant 1 : index
    %c0_245 = arith.constant 0 : index
    %c0_246 = arith.constant 0 : index
    %c0_247 = arith.constant 0 : index
    %176 = vector.load %arg1[%c1_244, %c0_245, %c0_246, %c0_247] : memref<2x16x16x32xbf16, #tpu.memory_space<vmem>>, vector<1x10x16x32xbf16>
    %177 = vector.shape_cast %176 : vector<1x10x16x32xbf16> to vector<10x16x32xbf16>
    %c1_248 = arith.constant 1 : index
    %c6_249 = arith.constant 6 : index
    %c0_250 = arith.constant 0 : index
    %c32_251 = arith.constant 32 : index
    %178 = vector.load %arg8[%c1_248, %c6_249, %c0_250, %c32_251] : memref<2x16x16x288xbf16, #tpu.memory_space<vmem>>, vector<1x10x16x32xbf16>
    %179 = vector.shape_cast %178 : vector<1x10x16x32xbf16> to vector<10x16x32xbf16>
    %180 = vector.shape_cast %177 : vector<10x16x32xbf16> to vector<1x10x16x32xbf16>
    tpu.vector_store %arg8[%c1_248, %c6_249, %c0_250, %c32_251], %180 {strides = array<i32>} : memref<2x16x16x288xbf16, #tpu.memory_space<vmem>>, vector<1x10x16x32xbf16>,
    %c1_252 = arith.constant 1 : index
    %c0_253 = arith.constant 0 : index
    %c6_254 = arith.constant 6 : index
    %c0_255 = arith.constant 0 : index
    %181 = vector.load %arg1[%c1_252, %c0_253, %c6_254, %c0_255] : memref<2x16x16x32xbf16, #tpu.memory_space<vmem>>, vector<1x10x10x32xbf16>
    %182 = vector.shape_cast %181 : vector<1x10x10x32xbf16> to vector<10x10x32xbf16>
    %c1_256 = arith.constant 1 : index
    %c6_257 = arith.constant 6 : index
    %c0_258 = arith.constant 0 : index
    %c64_259 = arith.constant 64 : index
    %183 = vector.load %arg8[%c1_256, %c6_257, %c0_258, %c64_259] : memref<2x16x16x288xbf16, #tpu.memory_space<vmem>>, vector<1x10x10x32xbf16>
    %184 = vector.shape_cast %183 : vector<1x10x10x32xbf16> to vector<10x10x32xbf16>
    %185 = vector.shape_cast %182 : vector<10x10x32xbf16> to vector<1x10x10x32xbf16>
    tpu.vector_store %arg8[%c1_256, %c6_257, %c0_258, %c64_259], %185 {strides = array<i32>} : memref<2x16x16x288xbf16, #tpu.memory_space<vmem>>, vector<1x10x10x32xbf16>,
    %c1_260 = arith.constant 1 : index
    %c0_261 = arith.constant 0 : index
    %c0_262 = arith.constant 0 : index
    %c0_263 = arith.constant 0 : index
    %186 = vector.load %arg1[%c1_260, %c0_261, %c0_262, %c0_263] : memref<2x16x16x32xbf16, #tpu.memory_space<vmem>>, vector<1x16x10x32xbf16>
    %187 = vector.shape_cast %186 : vector<1x16x10x32xbf16> to vector<16x10x32xbf16>
    %c1_264 = arith.constant 1 : index
    %c0_265 = arith.constant 0 : index
    %c6_266 = arith.constant 6 : index
    %c96_267 = arith.constant 96 : index
    %188 = vector.load %arg8[%c1_264, %c0_265, %c6_266, %c96_267] : memref<2x16x16x288xbf16, #tpu.memory_space<vmem>>, vector<1x16x10x32xbf16>
    %189 = vector.shape_cast %188 : vector<1x16x10x32xbf16> to vector<16x10x32xbf16>
    %190 = vector.shape_cast %187 : vector<16x10x32xbf16> to vector<1x16x10x32xbf16>
    tpu.vector_store %arg8[%c1_264, %c0_265, %c6_266, %c96_267], %190 {strides = array<i32>} : memref<2x16x16x288xbf16, #tpu.memory_space<vmem>>, vector<1x16x10x32xbf16>,
    %c1_268 = arith.constant 1 : index
    %c0_269 = arith.constant 0 : index
    %c0_270 = arith.constant 0 : index
    %c0_271 = arith.constant 0 : index
    %191 = vector.load %arg1[%c1_268, %c0_269, %c0_270, %c0_271] : memref<2x16x16x32xbf16, #tpu.memory_space<vmem>>, vector<1x16x16x32xbf16>
    %192 = vector.shape_cast %191 : vector<1x16x16x32xbf16> to vector<16x16x32xbf16>
    %c1_272 = arith.constant 1 : index
    %c0_273 = arith.constant 0 : index
    %c0_274 = arith.constant 0 : index
    %c128_275 = arith.constant 128 : index
    %193 = vector.load %arg8[%c1_272, %c0_273, %c0_274, %c128_275] : memref<2x16x16x288xbf16, #tpu.memory_space<vmem>>, vector<1x16x16x32xbf16>
    %194 = vector.shape_cast %193 : vector<1x16x16x32xbf16> to vector<16x16x32xbf16>
    %195 = vector.shape_cast %192 : vector<16x16x32xbf16> to vector<1x16x16x32xbf16>
    tpu.vector_store %arg8[%c1_272, %c0_273, %c0_274, %c128_275], %195 {strides = array<i32>} : memref<2x16x16x288xbf16, #tpu.memory_space<vmem>>, vector<1x16x16x32xbf16>,
    %c1_276 = arith.constant 1 : index
    %c0_277 = arith.constant 0 : index
    %c6_278 = arith.constant 6 : index
    %c0_279 = arith.constant 0 : index
    %196 = vector.load %arg1[%c1_276, %c0_277, %c6_278, %c0_279] : memref<2x16x16x32xbf16, #tpu.memory_space<vmem>>, vector<1x16x10x32xbf16>
    %197 = vector.shape_cast %196 : vector<1x16x10x32xbf16> to vector<16x10x32xbf16>
    %c1_280 = arith.constant 1 : index
    %c0_281 = arith.constant 0 : index
    %c0_282 = arith.constant 0 : index
    %c160_283 = arith.constant 160 : index
    %198 = vector.load %arg8[%c1_280, %c0_281, %c0_282, %c160_283] : memref<2x16x16x288xbf16, #tpu.memory_space<vmem>>, vector<1x16x10x32xbf16>
    %199 = vector.shape_cast %198 : vector<1x16x10x32xbf16> to vector<16x10x32xbf16>
    %200 = vector.shape_cast %197 : vector<16x10x32xbf16> to vector<1x16x10x32xbf16>
    tpu.vector_store %arg8[%c1_280, %c0_281, %c0_282, %c160_283], %200 {strides = array<i32>} : memref<2x16x16x288xbf16, #tpu.memory_space<vmem>>, vector<1x16x10x32xbf16>,
    %c1_284 = arith.constant 1 : index
    %c6_285 = arith.constant 6 : index
    %c0_286 = arith.constant 0 : index
    %c0_287 = arith.constant 0 : index
    %201 = vector.load %arg1[%c1_284, %c6_285, %c0_286, %c0_287] : memref<2x16x16x32xbf16, #tpu.memory_space<vmem>>, vector<1x10x10x32xbf16>
    %202 = vector.shape_cast %201 : vector<1x10x10x32xbf16> to vector<10x10x32xbf16>
    %c1_288 = arith.constant 1 : index
    %c0_289 = arith.constant 0 : index
    %c6_290 = arith.constant 6 : index
    %c192_291 = arith.constant 192 : index
    %203 = vector.load %arg8[%c1_288, %c0_289, %c6_290, %c192_291] : memref<2x16x16x288xbf16, #tpu.memory_space<vmem>>, vector<1x10x10x32xbf16>
    %204 = vector.shape_cast %203 : vector<1x10x10x32xbf16> to vector<10x10x32xbf16>
    %205 = vector.shape_cast %202 : vector<10x10x32xbf16> to vector<1x10x10x32xbf16>
    tpu.vector_store %arg8[%c1_288, %c0_289, %c6_290, %c192_291], %205 {strides = array<i32>} : memref<2x16x16x288xbf16, #tpu.memory_space<vmem>>, vector<1x10x10x32xbf16>,
    %c1_292 = arith.constant 1 : index
    %c6_293 = arith.constant 6 : index
    %c0_294 = arith.constant 0 : index
    %c0_295 = arith.constant 0 : index
    %206 = vector.load %arg1[%c1_292, %c6_293, %c0_294, %c0_295] : memref<2x16x16x32xbf16, #tpu.memory_space<vmem>>, vector<1x10x16x32xbf16>
    %207 = vector.shape_cast %206 : vector<1x10x16x32xbf16> to vector<10x16x32xbf16>
    %c1_296 = arith.constant 1 : index
    %c0_297 = arith.constant 0 : index
    %c0_298 = arith.constant 0 : index
    %c224_299 = arith.constant 224 : index
    %208 = vector.load %arg8[%c1_296, %c0_297, %c0_298, %c224_299] : memref<2x16x16x288xbf16, #tpu.memory_space<vmem>>, vector<1x10x16x32xbf16>
    %209 = vector.shape_cast %208 : vector<1x10x16x32xbf16> to vector<10x16x32xbf16>
    %210 = vector.shape_cast %207 : vector<10x16x32xbf16> to vector<1x10x16x32xbf16>
    tpu.vector_store %arg8[%c1_296, %c0_297, %c0_298, %c224_299], %210 {strides = array<i32>} : memref<2x16x16x288xbf16, #tpu.memory_space<vmem>>, vector<1x10x16x32xbf16>,
    %c1_300 = arith.constant 1 : index
    %c6_301 = arith.constant 6 : index
    %c6_302 = arith.constant 6 : index
    %c0_303 = arith.constant 0 : index
    %211 = vector.load %arg1[%c1_300, %c6_301, %c6_302, %c0_303] : memref<2x16x16x32xbf16, #tpu.memory_space<vmem>>, vector<1x10x10x32xbf16>
    %212 = vector.shape_cast %211 : vector<1x10x10x32xbf16> to vector<10x10x32xbf16>
    %c1_304 = arith.constant 1 : index
    %c0_305 = arith.constant 0 : index
    %c0_306 = arith.constant 0 : index
    %c256_307 = arith.constant 256 : index
    %213 = vector.load %arg8[%c1_304, %c0_305, %c0_306, %c256_307] : memref<2x16x16x288xbf16, #tpu.memory_space<vmem>>, vector<1x10x10x32xbf16>
    %214 = vector.shape_cast %213 : vector<1x10x10x32xbf16> to vector<10x10x32xbf16>
    %215 = vector.shape_cast %212 : vector<10x10x32xbf16> to vector<1x10x10x32xbf16>
    tpu.vector_store %arg8[%c1_304, %c0_305, %c0_306, %c256_307], %215 {strides = array<i32>} : memref<2x16x16x288xbf16, #tpu.memory_space<vmem>>, vector<1x10x10x32xbf16>,
    %c0_308 = arith.constant 0 : index
    %c0_309 = arith.constant 0 : index
    %c0_310 = arith.constant 0 : index
    %c0_311 = arith.constant 0 : index
    %216 = vector.load %arg8[%c0_308, %c0_309, %c0_310, %c0_311] : memref<2x16x16x288xbf16, #tpu.memory_space<vmem>>, vector<2x16x16x288xbf16>
    %217 = vector.shape_cast %216 : vector<2x16x16x288xbf16> to vector<512x288xbf16>
    %c0_312 = arith.constant 0 : index
    %c0_313 = arith.constant 0 : index
    %218 = vector.load %arg4[%c0_312, %c0_313] : memref<288x256xbf16, #tpu.memory_space<vmem>>, vector<288x256xbf16>
    %cst_314 = arith.constant dense<0.000000e+00> : vector<512x256xf32>
    %219 = tpu.matmul %217, %218, %cst_314 {dimension_numbers = #tpu.dot_dimension_numbers<[1], [0], [0], [1], [0, 0, 1, 1], [], []>} : vector<512x288xbf16>, vector<288x256xbf16>, vector<512x256xf32> -> vector<512x256xf32>
    %c1_315 = arith.constant 1 : index
    %c0_316 = arith.constant 0 : index
    %220 = vector.load %arg6[%c1_315, %c0_316] : memref<5x256xf32, #tpu.memory_space<vmem>>, vector<1x256xf32>
    %221 = vector.broadcast %220 : vector<1x256xf32> to vector<512x256xf32>
    %222 = arith.addf %219, %221 : vector<512x256xf32>
    %cst_317 = arith.constant 0.000000e+00 : f32
    %223 = vector.broadcast %cst_317 : f32 to vector<512x256xf32>
    %224 = arith.maximumf %222, %223 : vector<512x256xf32>
    %225 = arith.truncf %224 : vector<512x256xf32> to vector<512x256xbf16>
    %226 = vector.shape_cast %225 : vector<512x256xbf16> to vector<2x256x256xbf16>
    %c0_318 = arith.constant 0 : index
    %c0_319 = arith.constant 0 : index
    %c256_320 = arith.constant 256 : index
    %227 = vector.load %arg7[%c0_318, %c0_319, %c256_320] : memref<2x256x1280xbf16, #tpu.memory_space<vmem>>, vector<2x256x256xbf16>
    tpu.vector_store %arg7[%c0_318, %c0_319, %c256_320], %226 {strides = array<i32>} : memref<2x256x1280xbf16, #tpu.memory_space<vmem>>, vector<2x256x256xbf16>,
    %c0_321 = arith.constant 0 : index
    %c0_322 = arith.constant 0 : index
    %c0_323 = arith.constant 0 : index
    %c0_324 = arith.constant 0 : index
    %228 = vector.load %arg1[%c0_321, %c0_322, %c0_323, %c0_324] : memref<2x16x16x32xbf16, #tpu.memory_space<vmem>>, vector<2x16x16x32xbf16>
    %229 = arith.extf %228 : vector<2x16x16x32xbf16> to vector<2x16x16x32xf32>
    %230 = vector.shape_cast %229 : vector<2x16x16x32xf32> to vector<2x256x32xf32>
    %cst_325 = arith.constant dense<0.000000e+00> : vector<2x32xf32>
    %231 = vector.multi_reduction <add>, %230, %cst_325 [1] : vector<2x256x32xf32> to vector<2x32xf32>
    %cst_326 = arith.constant 2.560000e+02 : f32
    %232 = vector.broadcast %cst_326 : f32 to vector<2x32xf32>
    %233 = arith.divf %231, %232 : vector<2x32xf32>
    %234 = arith.truncf %233 : vector<2x32xf32> to vector<2x32xbf16>
    %c0_327 = arith.constant 0 : index
    %c0_328 = arith.constant 0 : index
    %235 = vector.load %arg5[%c0_327, %c0_328] : memref<32x256xbf16, #tpu.memory_space<vmem>>, vector<32x256xbf16>
    %cst_329 = arith.constant dense<0.000000e+00> : vector<2x256xf32>
    %236 = tpu.matmul %234, %235, %cst_329 {dimension_numbers = #tpu.dot_dimension_numbers<[1], [0], [0], [1], [0, 0, 1, 1], [], []>} : vector<2x32xbf16>, vector<32x256xbf16>, vector<2x256xf32> -> vector<2x256xf32>
    %c4 = arith.constant 4 : index
    %c0_330 = arith.constant 0 : index
    %237 = vector.load %arg6[%c4, %c0_330] : memref<5x256xf32, #tpu.memory_space<vmem>>, vector<1x256xf32>
    %238 = vector.broadcast %237 : vector<1x256xf32> to vector<2x256xf32>
    %239 = arith.addf %236, %238 : vector<2x256xf32>
    %240 = arith.truncf %239 : vector<2x256xf32> to vector<2x256xbf16>
    %241 = vector.shape_cast %240 : vector<2x256xbf16> to vector<2x1x256xbf16>
    %242 = vector.shape_cast %241 : vector<2x1x256xbf16> to vector<2x1x256xbf16>
    %243 = vector.broadcast %242 : vector<2x1x256xbf16> to vector<2x256x256xbf16>
    %c0_331 = arith.constant 0 : index
    %c0_332 = arith.constant 0 : index
    %c1024 = arith.constant 1024 : index
    %244 = vector.load %arg7[%c0_331, %c0_332, %c1024] : memref<2x256x1280xbf16, #tpu.memory_space<vmem>>, vector<2x256x256xbf16>
    tpu.vector_store %arg7[%c0_331, %c0_332, %c1024], %243 {strides = array<i32>} : memref<2x256x1280xbf16, #tpu.memory_space<vmem>>, vector<2x256x256xbf16>,
    return
  }
  func.func @transform_0(%arg0: i32) -> (i32, i32, i32, i32) {
    %c0_i32 = arith.constant 0 : i32
    %c0_i32_0 = arith.constant 0 : i32
    %c0_i32_1 = arith.constant 0 : i32
    %c0_i32_2 = arith.constant 0 : i32
    return %arg0, %c0_i32, %c0_i32_0, %c0_i32_1 : i32, i32, i32, i32
  }
  func.func @transform_1(%arg0: i32) -> (i32, i32) {
    %c0_i32 = arith.constant 0 : i32
    %c0_i32_0 = arith.constant 0 : i32
    %c0_i32_1 = arith.constant 0 : i32
    return %c0_i32, %c0_i32_0 : i32, i32
  }
  func.func @transform_2(%arg0: i32) -> (i32, i32) {
    %c0_i32 = arith.constant 0 : i32
    %c0_i32_0 = arith.constant 0 : i32
    %c0_i32_1 = arith.constant 0 : i32
    return %c0_i32, %c0_i32_0 : i32, i32
  }
  func.func @transform_3(%arg0: i32) -> (i32, i32) {
    %c0_i32 = arith.constant 0 : i32
    %c0_i32_0 = arith.constant 0 : i32
    %c0_i32_1 = arith.constant 0 : i32
    return %c0_i32, %c0_i32_0 : i32, i32
  }
  func.func @transform_4(%arg0: i32) -> (i32, i32) {
    %c0_i32 = arith.constant 0 : i32
    %c0_i32_0 = arith.constant 0 : i32
    %c0_i32_1 = arith.constant 0 : i32
    return %c0_i32, %c0_i32_0 : i32, i32
  }
  func.func @transform_5(%arg0: i32) -> (i32, i32) {
    %c0_i32 = arith.constant 0 : i32
    %c0_i32_0 = arith.constant 0 : i32
    %c0_i32_1 = arith.constant 0 : i32
    return %c0_i32, %c0_i32_0 : i32, i32
  }
  func.func @transform_6(%arg0: i32) -> (i32, i32, i32) {
    %c0_i32 = arith.constant 0 : i32
    %c0_i32_0 = arith.constant 0 : i32
    %c0_i32_1 = arith.constant 0 : i32
    return %arg0, %c0_i32, %c0_i32_0 : i32, i32, i32
  }
}

</mosaic_0001>

<llo_original>
// kernel: tpu_custom_call.1
$region0: #{tpu_custom_call.1}
  #allocation0 [shape = 'u32[]', space=smem, size = 0x4, offset = 0x4, fixed_abs, tag = 'smem constant byte address 0x4 - core index']
  #allocation1 [shape = 'u32[72,128]{1,0:T(1,128)}', space=vmem, size = 0x9000, scoped, tag = 'internal scratch']
  #allocation2 [shape = 'bf16[2,16,16,288]{3,2,1,0:T(8,128)(2,1)}', space=vmem, size = 0x60000, scoped, tag = 'scratch operand']
  %s0 = inlined_call_operand.hbm [shape: bf16[2,16,16,32], index: 0, kind: input, shape index: {}]
  %s1 = inlined_call_operand.hbm [shape: bf16[32,512], index: 1, kind: input, shape index: {}]
  %s2 = inlined_call_operand.hbm [shape: bf16[288,256], index: 2, kind: input, shape index: {}]
  %s3 = inlined_call_operand.hbm [shape: bf16[288,256], index: 3, kind: input, shape index: {}]
  %s4 = inlined_call_operand.hbm [shape: bf16[32,256], index: 4, kind: input, shape index: {}]
  %s5 = inlined_call_operand.hbm [shape: f32[5,256], index: 5, kind: input, shape index: {}]
  %s6 = inlined_call_operand.hbm [shape: bf16[2,256,1280], index: 6, kind: output, shape index: {}]
  %s7 = sld [smem:[#allocation0]]
  $region58: #{tpu_custom_call.1} parent=0
    _
  %s9 = ssub.s32 1, %s7
  %s10 = scalar_select 0, %s9, %s7
  $region1: #{tpu_custom_call.1} parent=0
    #allocation3 [shape = 'u8[131072]{0}', space=vmem, size = 0x20000, scoped, tag = 'input window, operand 0, single buffered']
    #allocation4 [shape = 's32[1]{0}', space=sflag, size = 0x4, scoped, tag = 'scoped memory for tpu_custom_call.1']
    #allocation5 [shape = 's32[1]{0}', space=sflag, size = 0x4, scoped, tag = 'scoped memory for tpu_custom_call.1']
    #allocation6 [shape = 'u8[32768]{0}', space=vmem, size = 0x8000, scoped, tag = 'input window, operand 1, single buffered']
    #allocation7 [shape = 's32[1]{0}', space=sflag, size = 0x4, scoped, tag = 'scoped memory for tpu_custom_call.1']
    #allocation8 [shape = 'u8[147456]{0}', space=vmem, size = 0x24000, scoped, tag = 'input window, operand 2, single buffered']
    #allocation9 [shape = 'u8[147456]{0}', space=vmem, size = 0x24000, scoped, tag = 'input window, operand 3, single buffered']
    #allocation10 [shape = 's32[1]{0}', space=sflag, size = 0x4, scoped, tag = 'scoped memory for tpu_custom_call.1']
    #allocation11 [shape = 'u8[16384]{0}', space=vmem, size = 0x4000, scoped, tag = 'input window, operand 4, single buffered']
    #allocation12 [shape = 'u8[8192]{0}', space=vmem, size = 0x2000, scoped, tag = 'input window, operand 5, single buffered']
    #allocation13 [shape = 's32[1]{0}', space=sflag, size = 0x4, scoped, tag = 'scoped memory for tpu_custom_call.1']
    #allocation14 [shape = 'u8[1310720]{0}', space=vmem, size = 0x140000, scoped, tag = 'output window, operand 0, single buffered']
    %11 = vsyncpa [#allocation4], 0
    %12 = vsyncpa [#allocation7], 0
    %13 = vsyncpa [#allocation10], 0
    %14 = vsyncpa [#allocation13], 0
    %15 = vsyncpa [#allocation5], 0
    // Predicated region
    $region2: #{tpu_custom_call.1} parent=1 // pred_check
      _
    $region3: #{tpu_custom_call.1} parent=1 // pred_check_branch
      %17 = sbr.rel (0) target = $region5
    $region4: #{tpu_custom_call.1} parent=1 // pred_region
      %19 = vsyncadd [#allocation4], 0
      %s20 = sshll.u32 %s0, 4
      %s21 = int_to_ptr.hbm [resolvable:$true] %s20
      %s22 = sshll.u32 [#allocation3], 4
      %s23 = int_to_ptr.vmem [resolvable:$true] %s22
      %28 = dma.hbm_to_vmem [thread:$0]  %s21, 4096, %s23, [#allocation4], 64, 64, 4
    $region5: #{tpu_custom_call.1} parent=1 // pred_fallthru
      _
    // Predicated region
    $region6: #{tpu_custom_call.1} parent=1 // pred_check
      _
    $region7: #{tpu_custom_call.1} parent=1 // pred_check_branch
      %30 = sbr.rel (0) target = $region9
    $region8: #{tpu_custom_call.1} parent=1 // pred_region
      %32 = vsyncadd [#allocation7], 0
      %s33 = sshll.u32 %s1, 4
      %s34 = int_to_ptr.hbm [resolvable:$true] %s33
      %s35 = sshll.u32 [#allocation6], 4
      %s36 = int_to_ptr.vmem [resolvable:$true] %s35
      %41 = dma.hbm_to_vmem [thread:$0]  %s34, 1024, %s36, [#allocation7], 256, 256, 16
    $region9: #{tpu_custom_call.1} parent=1 // pred_fallthru
      _
    // Predicated region
    $region10: #{tpu_custom_call.1} parent=1 // pred_check
      _
    $region11: #{tpu_custom_call.1} parent=1 // pred_check_branch
      %43 = sbr.rel (0) target = $region13
    $region12: #{tpu_custom_call.1} parent=1 // pred_region
      %45 = vsyncadd [#allocation7], 0
      %s46 = sshll.u32 %s2, 4
      %s47 = int_to_ptr.hbm [resolvable:$true] %s46
      %s48 = sshll.u32 [#allocation8], 4
      %s49 = int_to_ptr.vmem [resolvable:$true] %s48
      %54 = dma.hbm_to_vmem [thread:$0]  %s47, 4608, %s49, [#allocation7], 128, 128, 8
    $region13: #{tpu_custom_call.1} parent=1 // pred_fallthru
      _
    // Predicated region
    $region14: #{tpu_custom_call.1} parent=1 // pred_check
      _
    $region15: #{tpu_custom_call.1} parent=1 // pred_check_branch
      %56 = sbr.rel (0) target = $region17
    $region16: #{tpu_custom_call.1} parent=1 // pred_region
      %58 = vsyncadd [#allocation10], 0
      %s59 = sshll.u32 %s3, 4
      %s60 = int_to_ptr.hbm [resolvable:$true] %s59
      %s61 = sshll.u32 [#allocation9], 4
      %s62 = int_to_ptr.vmem [resolvable:$true] %s61
      %67 = dma.hbm_to_vmem [thread:$0]  %s60, 4608, %s62, [#allocation10], 128, 128, 8
    $region17: #{tpu_custom_call.1} parent=1 // pred_fallthru
      _
    // Predicated region
    $region18: #{tpu_custom_call.1} parent=1 // pred_check
      _
    $region19: #{tpu_custom_call.1} parent=1 // pred_check_branch
      %69 = sbr.rel (0) target = $region21
    $region20: #{tpu_custom_call.1} parent=1 // pred_region
      %71 = vsyncadd [#allocation10], 0
      %s72 = sshll.u32 %s4, 4
      %s73 = int_to_ptr.hbm [resolvable:$true] %s72
      %s74 = sshll.u32 [#allocation11], 4
      %s75 = int_to_ptr.vmem [resolvable:$true] %s74
      %80 = dma.hbm_to_vmem [thread:$0]  %s73, 512, %s75, [#allocation10], 128, 128, 8
    $region21: #{tpu_custom_call.1} parent=1 // pred_fallthru
      _
    // Predicated region
    $region22: #{tpu_custom_call.1} parent=1 // pred_check
      _
    $region23: #{tpu_custom_call.1} parent=1 // pred_check_branch
      %82 = sbr.rel (0) target = $region25
    $region24: #{tpu_custom_call.1} parent=1 // pred_region
      %84 = vsyncadd [#allocation13], 0
      %s86 = sshll.u32 %s5, 4
      %s87 = int_to_ptr.hbm [resolvable:$true] %s86
      %s88 = sshll.u32 [#allocation12], 4
      %s89 = int_to_ptr.vmem [resolvable:$true] %s88
      %91 = dma.hbm_to_vmem [thread:$0]  %s87, 256, %s89, [#allocation13]
    $region25: #{tpu_custom_call.1} parent=1 // pred_fallthru
      _
    // Predicated region
    $region26: #{tpu_custom_call.1} parent=1 // pred_check
      _
    $region27: #{tpu_custom_call.1} parent=1 // pred_check_branch
      %93 = sbr.rel (0) target = $region29
    $region28: #{tpu_custom_call.1} parent=1 // pred_region
      %95 = dma.done [#allocation4], 4096
    $region29: #{tpu_custom_call.1} parent=1 // pred_fallthru
      _
    // Predicated region
    $region30: #{tpu_custom_call.1} parent=1 // pred_check
      _
    $region31: #{tpu_custom_call.1} parent=1 // pred_check_branch
      %97 = sbr.rel (0) target = $region33
    $region32: #{tpu_custom_call.1} parent=1 // pred_region
      %99 = dma.done [#allocation7], 1024
    $region33: #{tpu_custom_call.1} parent=1 // pred_fallthru
      _
    // Predicated region
    $region34: #{tpu_custom_call.1} parent=1 // pred_check
      _
    $region35: #{tpu_custom_call.1} parent=1 // pred_check_branch
      %101 = sbr.rel (0) target = $region37
    $region36: #{tpu_custom_call.1} parent=1 // pred_region
      %103 = dma.done [#allocation7], 4608
    $region37: #{tpu_custom_call.1} parent=1 // pred_fallthru
      _
    // Predicated region
    $region38: #{tpu_custom_call.1} parent=1 // pred_check
      _
    $region39: #{tpu_custom_call.1} parent=1 // pred_check_branch
      %105 = sbr.rel (0) target = $region41
    $region40: #{tpu_custom_call.1} parent=1 // pred_region
      %107 = dma.done [#allocation10], 4608
    $region41: #{tpu_custom_call.1} parent=1 // pred_fallthru
      _
    // Predicated region
    $region42: #{tpu_custom_call.1} parent=1 // pred_check
      _
    $region43: #{tpu_custom_call.1} parent=1 // pred_check_branch
      %109 = sbr.rel (0) target = $region45
    $region44: #{tpu_custom_call.1} parent=1 // pred_region
      %111 = dma.done [#allocation10], 512
    $region45: #{tpu_custom_call.1} parent=1 // pred_fallthru
      _
    // Predicated region
    $region46: #{tpu_custom_call.1} parent=1 // pred_check
      _
    $region47: #{tpu_custom_call.1} parent=1 // pred_check_branch
      %113 = sbr.rel (0) target = $region49
    $region48: #{tpu_custom_call.1} parent=1 // pred_region
      %115 = dma.done [#allocation13], 256
    $region49: #{tpu_custom_call.1} parent=1 // pred_fallthru
      _
    %v117 = vld [vmem:[#allocation3] sm:$0xf]
    %v118 = vld [vmem:[#allocation3 + $0x4] sm:$0xf]
    %v119 = vld [vmem:[#allocation3 + $0x8] sm:$0xf]
    %v120 = vld [vmem:[#allocation3 + $0xc] sm:$0xf]
    %v121 = vld [vmem:[#allocation3 + $0x10] sm:$0xf]
    %v122 = vld [vmem:[#allocation3 + $0x14] sm:$0xf]
    %v123 = vld [vmem:[#allocation3 + $0x18] sm:$0xf]
    %v124 = vld [vmem:[#allocation3 + $0x1c] sm:$0xf]
    %v125 = vld [vmem:[#allocation3 + $0x20] sm:$0xf]
    %v126 = vld [vmem:[#allocation3 + $0x24] sm:$0xf]
    %v127 = vld [vmem:[#allocation3 + $0x28] sm:$0xf]
    %v128 = vld [vmem:[#allocation3 + $0x2c] sm:$0xf]
    %v129 = vld [vmem:[#allocation3 + $0x30] sm:$0xf]
    %v130 = vld [vmem:[#allocation3 + $0x34] sm:$0xf]
    %v131 = vld [vmem:[#allocation3 + $0x38] sm:$0xf]
    %v132 = vld [vmem:[#allocation3 + $0x3c] sm:$0xf]
    %v133 = vld [vmem:[#allocation3 + $0x40] sm:$0xf]
    %v134 = vld [vmem:[#allocation3 + $0x44] sm:$0xf]
    %v135 = vld [vmem:[#allocation3 + $0x48] sm:$0xf]
    %v136 = vld [vmem:[#allocation3 + $0x4c] sm:$0xf]
    %v137 = vld [vmem:[#allocation3 + $0x50] sm:$0xf]
    %v138 = vld [vmem:[#allocation3 + $0x54] sm:$0xf]
    %v139 = vld [vmem:[#allocation3 + $0x58] sm:$0xf]
    %v140 = vld [vmem:[#allocation3 + $0x5c] sm:$0xf]
    %v141 = vld [vmem:[#allocation3 + $0x60] sm:$0xf]
    %v142 = vld [vmem:[#allocation3 + $0x64] sm:$0xf]
    %v143 = vld [vmem:[#allocation3 + $0x68] sm:$0xf]
    %v144 = vld [vmem:[#allocation3 + $0x6c] sm:$0xf]
    %v145 = vld [vmem:[#allocation3 + $0x70] sm:$0xf]
    %v146 = vld [vmem:[#allocation3 + $0x74] sm:$0xf]
    %v147 = vld [vmem:[#allocation3 + $0x78] sm:$0xf]
    %v148 = vld [vmem:[#allocation3 + $0x7c] sm:$0xf]
    %v149 = vld [vmem:[#allocation3 + $0x80] sm:$0xf]
    %v150 = vld [vmem:[#allocation3 + $0x84] sm:$0xf]
    %v151 = vld [vmem:[#allocation3 + $0x88] sm:$0xf]
    %v152 = vld [vmem:[#allocation3 + $0x8c] sm:$0xf]
    %v153 = vld [vmem:[#allocation3 + $0x90] sm:$0xf]
    %v154 = vld [vmem:[#allocation3 + $0x94] sm:$0xf]
    %v155 = vld [vmem:[#allocation3 + $0x98] sm:$0xf]
    %v156 = vld [vmem:[#allocation3 + $0x9c] sm:$0xf]
    %v157 = vld [vmem:[#allocation3 + $0xa0] sm:$0xf]
    %v158 = vld [vmem:[#allocation3 + $0xa4] sm:$0xf]
    %v159 = vld [vmem:[#allocation3 + $0xa8] sm:$0xf]
    %v160 = vld [vmem:[#allocation3 + $0xac] sm:$0xf]
    %v161 = vld [vmem:[#allocation3 + $0xb0] sm:$0xf]
    %v162 = vld [vmem:[#allocation3 + $0xb4] sm:$0xf]
    %v163 = vld [vmem:[#allocation3 + $0xb8] sm:$0xf]
    %v164 = vld [vmem:[#allocation3 + $0xbc] sm:$0xf]
    %v165 = vld [vmem:[#allocation3 + $0xc0] sm:$0xf]
    %v166 = vld [vmem:[#allocation3 + $0xc4] sm:$0xf]
    %v167 = vld [vmem:[#allocation3 + $0xc8] sm:$0xf]
    %v168 = vld [vmem:[#allocation3 + $0xcc] sm:$0xf]
    %v169 = vld [vmem:[#allocation3 + $0xd0] sm:$0xf]
    %v170 = vld [vmem:[#allocation3 + $0xd4] sm:$0xf]
    %v171 = vld [vmem:[#allocation3 + $0xd8] sm:$0xf]
    %v172 = vld [vmem:[#allocation3 + $0xdc] sm:$0xf]
    %v173 = vld [vmem:[#allocation3 + $0xe0] sm:$0xf]
    %v174 = vld [vmem:[#allocation3 + $0xe4] sm:$0xf]
    %v175 = vld [vmem:[#allocation3 + $0xe8] sm:$0xf]
    %v176 = vld [vmem:[#allocation3 + $0xec] sm:$0xf]
    %v177 = vld [vmem:[#allocation3 + $0xf0] sm:$0xf]
    %v178 = vld [vmem:[#allocation3 + $0xf4] sm:$0xf]
    %v179 = vld [vmem:[#allocation3 + $0xf8] sm:$0xf]
    %v180 = vld [vmem:[#allocation3 + $0xfc] sm:$0xf]
    %v181 = vld [vmem:[#allocation6] sm:$0xff]
    %v182 = vld [vmem:[#allocation6 + $0x8] sm:$0xff]
    %v183 = vld [vmem:[#allocation6 + $0x10] sm:$0xff]
    %v184 = vld [vmem:[#allocation6 + $0x18] sm:$0xff]
    %v185 = vld [vmem:[#allocation6 + $0x20] sm:$0xff]
    %v186 = vld [vmem:[#allocation6 + $0x28] sm:$0xff]
    %v187 = vld [vmem:[#allocation6 + $0x30] sm:$0xff]
    %v188 = vld [vmem:[#allocation6 + $0x38] sm:$0xff]
    %v253 = vunpack.c.l.b16 %v117
    %v254 = vunpack.c.l.b16 %v118
    %v255 = vunpack.c.l.b16 %v119
    %v256 = vunpack.c.l.b16 %v120
    %v257 = vunpack.c.l.b16 %v121
    %v258 = vunpack.c.l.b16 %v122
    %v259 = vunpack.c.l.b16 %v123
    %v260 = vunpack.c.l.b16 %v124
    %v261 = vunpack.c.l.b16 %v125
    %v262 = vunpack.c.l.b16 %v126
    %v263 = vunpack.c.l.b16 %v127
    %v264 = vunpack.c.l.b16 %v128
    %v265 = vunpack.c.l.b16 %v129
    %v266 = vunpack.c.l.b16 %v130
    %v267 = vunpack.c.l.b16 %v131
    %v268 = vunpack.c.l.b16 %v132
    %v269 = vunpack.c.l.b16 %v133
    %v270 = vunpack.c.l.b16 %v134
    %v271 = vunpack.c.l.b16 %v135
    %v272 = vunpack.c.l.b16 %v136
    %v273 = vunpack.c.l.b16 %v137
    %v274 = vunpack.c.l.b16 %v138
    %v275 = vunpack.c.l.b16 %v139
    %v276 = vunpack.c.l.b16 %v140
    %v277 = vunpack.c.l.b16 %v141
    %v278 = vunpack.c.l.b16 %v142
    %v279 = vunpack.c.l.b16 %v143
    %v280 = vunpack.c.l.b16 %v144
    %v281 = vunpack.c.l.b16 %v145
    %v282 = vunpack.c.l.b16 %v146
    %v283 = vunpack.c.l.b16 %v147
    %v284 = vunpack.c.l.b16 %v148
    %v285 = vunpack.c.l.b16 %v149
    %v286 = vunpack.c.l.b16 %v150
    %v287 = vunpack.c.l.b16 %v151
    %v288 = vunpack.c.l.b16 %v152
    %v289 = vunpack.c.l.b16 %v153
    %v290 = vunpack.c.l.b16 %v154
    %v291 = vunpack.c.l.b16 %v155
    %v292 = vunpack.c.l.b16 %v156
    %v293 = vunpack.c.l.b16 %v157
    %v294 = vunpack.c.l.b16 %v158
    %v295 = vunpack.c.l.b16 %v159
    %v296 = vunpack.c.l.b16 %v160
    %v297 = vunpack.c.l.b16 %v161
    %v298 = vunpack.c.l.b16 %v162
    %v299 = vunpack.c.l.b16 %v163
    %v300 = vunpack.c.l.b16 %v164
    %v301 = vunpack.c.l.b16 %v165
    %v302 = vunpack.c.l.b16 %v166
    %v303 = vunpack.c.l.b16 %v167
    %v304 = vunpack.c.l.b16 %v168
    %v305 = vunpack.c.l.b16 %v169
    %v306 = vunpack.c.l.b16 %v170
    %v307 = vunpack.c.l.b16 %v171
    %v308 = vunpack.c.l.b16 %v172
    %v309 = vunpack.c.l.b16 %v173
    %v310 = vunpack.c.l.b16 %v174
    %v311 = vunpack.c.l.b16 %v175
    %v312 = vunpack.c.l.b16 %v176
    %v313 = vunpack.c.l.b16 %v177
    %v314 = vunpack.c.l.b16 %v178
    %v315 = vunpack.c.l.b16 %v179
    %v316 = vunpack.c.l.b16 %v180
    %v317 = vpack.c.b16 %v254, %v253
    %v318 = vpack.c.b16 %v256, %v255
    %v319 = vpack.c.b16 %v258, %v257
    %v320 = vpack.c.b16 %v260, %v259
    %v321 = vpack.c.b16 %v262, %v261
    %v322 = vpack.c.b16 %v264, %v263
    %v323 = vpack.c.b16 %v266, %v265
    %v324 = vpack.c.b16 %v268, %v267
    %v325 = vpack.c.b16 %v270, %v269
    %v326 = vpack.c.b16 %v272, %v271
    %v327 = vpack.c.b16 %v274, %v273
    %v328 = vpack.c.b16 %v276, %v275
    %v329 = vpack.c.b16 %v278, %v277
    %v330 = vpack.c.b16 %v280, %v279
    %v331 = vpack.c.b16 %v282, %v281
    %v332 = vpack.c.b16 %v284, %v283
    %v333 = vpack.c.b16 %v286, %v285
    %v334 = vpack.c.b16 %v288, %v287
    %v335 = vpack.c.b16 %v290, %v289
    %v336 = vpack.c.b16 %v292, %v291
    %v337 = vpack.c.b16 %v294, %v293
    %v338 = vpack.c.b16 %v296, %v295
    %v339 = vpack.c.b16 %v298, %v297
    %v340 = vpack.c.b16 %v300, %v299
    %v341 = vpack.c.b16 %v302, %v301
    %v342 = vpack.c.b16 %v304, %v303
    %v343 = vpack.c.b16 %v306, %v305
    %v344 = vpack.c.b16 %v308, %v307
    %v345 = vpack.c.b16 %v310, %v309
    %v346 = vpack.c.b16 %v312, %v311
    %v347 = vpack.c.b16 %v314, %v313
    %v348 = vpack.c.b16 %v316, %v315
    %v357 = vunpack.c.l.b16 %v181
    %v358 = vunpack.c.h.b16 %v181
    %v359 = vunpack.c.l.b16 %v182
    %v360 = vunpack.c.h.b16 %v182
    %v361 = vunpack.c.l.b16 %v183
    %v362 = vunpack.c.h.b16 %v183
    %v363 = vunpack.c.l.b16 %v184
    %v364 = vunpack.c.h.b16 %v184
    %v365 = vunpack.c.l.b16 %v185
    %v366 = vunpack.c.h.b16 %v185
    %v367 = vunpack.c.l.b16 %v186
    %v368 = vunpack.c.h.b16 %v186
    %v369 = vunpack.c.l.b16 %v187
    %v370 = vunpack.c.h.b16 %v187
    %v371 = vunpack.c.l.b16 %v188
    %v372 = vunpack.c.h.b16 %v188
    %v373 = vpack.c.b16 %v361, %v357
    %v374 = vpack.c.b16 %v362, %v358
    %v375 = vpack.c.b16 %v363, %v359
    %v376 = vpack.c.b16 %v364, %v360
    %v377 = vpack.c.b16 %v369, %v365
    %v378 = vpack.c.b16 %v370, %v366
    %v379 = vpack.c.b16 %v371, %v367
    %v380 = vpack.c.b16 %v372, %v368
    %vm389 = vcmask 261120
    %v391 = vsel %vm389, %v317, 0
    %v394 = vsel %vm389, %v318, 0
    %v397 = vsel %vm389, %v319, 0
    %v400 = vsel %vm389, %v320, 0
    %v403 = vsel %vm389, %v321, 0
    %v406 = vsel %vm389, %v322, 0
    %v409 = vsel %vm389, %v323, 0
    %v412 = vsel %vm389, %v324, 0
    %v415 = vsel %vm389, %v325, 0
    %v418 = vsel %vm389, %v326, 0
    %v421 = vsel %vm389, %v327, 0
    %v424 = vsel %vm389, %v328, 0
    %v427 = vsel %vm389, %v329, 0
    %v430 = vsel %vm389, %v330, 0
    %v433 = vsel %vm389, %v331, 0
    %v436 = vsel %vm389, %v332, 0
    %v439 = vsel %vm389, %v333, 0
    %v442 = vsel %vm389, %v334, 0
    %v445 = vsel %vm389, %v335, 0
    %v448 = vsel %vm389, %v336, 0
    %v451 = vsel %vm389, %v337, 0
    %v454 = vsel %vm389, %v338, 0
    %v457 = vsel %vm389, %v339, 0
    %v460 = vsel %vm389, %v340, 0
    %v463 = vsel %vm389, %v341, 0
    %v466 = vsel %vm389, %v342, 0
    %v469 = vsel %vm389, %v343, 0
    %v472 = vsel %vm389, %v344, 0
    %v475 = vsel %vm389, %v345, 0
    %v478 = vsel %vm389, %v346, 0
    %v481 = vsel %vm389, %v347, 0
    %v484 = vsel %vm389, %v348, 0
    %486 = vmatpush.bf16.msra.mxu0 0
    %487 = vmatpush.bf16.msra.mxu0 0
    %488 = vmatpush.bf16.msra.mxu0 0
    %489 = vmatpush.bf16.msra.mxu0 0
    %490 = vmatpush.bf16.msra.mxu0 0
    %491 = vmatpush.bf16.msra.mxu0 0
    %492 = vmatpush.bf16.msra.mxu0 %v377
    %493 = vmatpush.bf16.msra.mxu0 %v373
    %494 = vmatmul.bf16.gmra.mxu0 %v391
    %v495 = vpop.f32.mrf.mxu0
    %v496 = vadd.f32 0.0, %v495
    %v497 = vpop.f32.mrf.mxu0
    %v498 = vadd.f32 0.0, %v497
    %499 = vmatmul.bf16.gmra.mxu0 %v394
    %v500 = vpop.f32.mrf.mxu0
    %v501 = vadd.f32 0.0, %v500
    %v502 = vpop.f32.mrf.mxu0
    %v503 = vadd.f32 0.0, %v502
    %504 = vmatmul.bf16.gmra.mxu0 %v397
    %v505 = vpop.f32.mrf.mxu0
    %v506 = vadd.f32 0.0, %v505
    %v507 = vpop.f32.mrf.mxu0
    %v508 = vadd.f32 0.0, %v507
    %509 = vmatmul.bf16.gmra.mxu0 %v400
    %v510 = vpop.f32.mrf.mxu0
    %v511 = vadd.f32 0.0, %v510
    %v512 = vpop.f32.mrf.mxu0
    %v513 = vadd.f32 0.0, %v512
    %514 = vmatmul.bf16.gmra.mxu0 %v403
    %v515 = vpop.f32.mrf.mxu0
    %v516 = vadd.f32 0.0, %v515
    %v517 = vpop.f32.mrf.mxu0
    %v518 = vadd.f32 0.0, %v517
    %519 = vmatmul.bf16.gmra.mxu0 %v406
    %v520 = vpop.f32.mrf.mxu0
    %v521 = vadd.f32 0.0, %v520
    %v522 = vpop.f32.mrf.mxu0
    %v523 = vadd.f32 0.0, %v522
    %524 = vmatmul.bf16.gmra.mxu0 %v409
    %v525 = vpop.f32.mrf.mxu0
    %v526 = vadd.f32 0.0, %v525
    %v527 = vpop.f32.mrf.mxu0
    %v528 = vadd.f32 0.0, %v527
    %529 = vmatmul.bf16.gmra.mxu0 %v412
    %v530 = vpop.f32.mrf.mxu0
    %v531 = vadd.f32 0.0, %v530
    %v532 = vpop.f32.mrf.mxu0
    %v533 = vadd.f32 0.0, %v532
    %534 = vmatmul.bf16.gmra.mxu0 %v415
    %v535 = vpop.f32.mrf.mxu0
    %v536 = vadd.f32 0.0, %v535
    %v537 = vpop.f32.mrf.mxu0
    %v538 = vadd.f32 0.0, %v537
    %539 = vmatmul.bf16.gmra.mxu0 %v418
    %v540 = vpop.f32.mrf.mxu0
    %v541 = vadd.f32 0.0, %v540
    %v542 = vpop.f32.mrf.mxu0
    %v543 = vadd.f32 0.0, %v542
    %544 = vmatmul.bf16.gmra.mxu0 %v421
    %v545 = vpop.f32.mrf.mxu0
    %v546 = vadd.f32 0.0, %v545
    %v547 = vpop.f32.mrf.mxu0
    %v548 = vadd.f32 0.0, %v547
    %549 = vmatmul.bf16.gmra.mxu0 %v424
    %v550 = vpop.f32.mrf.mxu0
    %v551 = vadd.f32 0.0, %v550
    %v552 = vpop.f32.mrf.mxu0
    %v553 = vadd.f32 0.0, %v552
    %554 = vmatmul.bf16.gmra.mxu0 %v427
    %v555 = vpop.f32.mrf.mxu0
    %v556 = vadd.f32 0.0, %v555
    %v557 = vpop.f32.mrf.mxu0
    %v558 = vadd.f32 0.0, %v557
    %559 = vmatmul.bf16.gmra.mxu0 %v430
    %v560 = vpop.f32.mrf.mxu0
    %v561 = vadd.f32 0.0, %v560
    %v562 = vpop.f32.mrf.mxu0
    %v563 = vadd.f32 0.0, %v562
    %564 = vmatmul.bf16.gmra.mxu0 %v433
    %v565 = vpop.f32.mrf.mxu0
    %v566 = vadd.f32 0.0, %v565
    %v567 = vpop.f32.mrf.mxu0
    %v568 = vadd.f32 0.0, %v567
    %569 = vmatmul.bf16.gmra.mxu0 %v436
    %v570 = vpop.f32.mrf.mxu0
    %v571 = vadd.f32 0.0, %v570
    %v572 = vpop.f32.mrf.mxu0
    %v573 = vadd.f32 0.0, %v572
    %574 = vmatmul.bf16.gmra.mxu0 %v439
    %v575 = vpop.f32.mrf.mxu0
    %v576 = vadd.f32 0.0, %v575
    %v577 = vpop.f32.mrf.mxu0
    %v578 = vadd.f32 0.0, %v577
    %579 = vmatmul.bf16.gmra.mxu0 %v442
    %v580 = vpop.f32.mrf.mxu0
    %v581 = vadd.f32 0.0, %v580
    %v582 = vpop.f32.mrf.mxu0
    %v583 = vadd.f32 0.0, %v582
    %584 = vmatmul.bf16.gmra.mxu0 %v445
    %v585 = vpop.f32.mrf.mxu0
    %v586 = vadd.f32 0.0, %v585
    %v587 = vpop.f32.mrf.mxu0
    %v588 = vadd.f32 0.0, %v587
    %589 = vmatmul.bf16.gmra.mxu0 %v448
    %v590 = vpop.f32.mrf.mxu0
    %v591 = vadd.f32 0.0, %v590
    %v592 = vpop.f32.mrf.mxu0
    %v593 = vadd.f32 0.0, %v592
    %594 = vmatmul.bf16.gmra.mxu0 %v451
    %v595 = vpop.f32.mrf.mxu0
    %v596 = vadd.f32 0.0, %v595
    %v597 = vpop.f32.mrf.mxu0
    %v598 = vadd.f32 0.0, %v597
    %599 = vmatmul.bf16.gmra.mxu0 %v454
    %v600 = vpop.f32.mrf.mxu0
    %v601 = vadd.f32 0.0, %v600
    %v602 = vpop.f32.mrf.mxu0
    %v603 = vadd.f32 0.0, %v602
    %604 = vmatmul.bf16.gmra.mxu0 %v457
    %v605 = vpop.f32.mrf.mxu0
    %v606 = vadd.f32 0.0, %v605
    %v607 = vpop.f32.mrf.mxu0
    %v608 = vadd.f32 0.0, %v607
    %609 = vmatmul.bf16.gmra.mxu0 %v460
    %v610 = vpop.f32.mrf.mxu0
    %v611 = vadd.f32 0.0, %v610
    %v612 = vpop.f32.mrf.mxu0
    %v613 = vadd.f32 0.0, %v612
    %614 = vmatmul.bf16.gmra.mxu0 %v463
    %v615 = vpop.f32.mrf.mxu0
    %v616 = vadd.f32 0.0, %v615
    %v617 = vpop.f32.mrf.mxu0
    %v618 = vadd.f32 0.0, %v617
    %619 = vmatmul.bf16.gmra.mxu0 %v466
    %v620 = vpop.f32.mrf.mxu0
    %v621 = vadd.f32 0.0, %v620
    %v622 = vpop.f32.mrf.mxu0
    %v623 = vadd.f32 0.0, %v622
    %624 = vmatmul.bf16.gmra.mxu0 %v469
    %v625 = vpop.f32.mrf.mxu0
    %v626 = vadd.f32 0.0, %v625
    %v627 = vpop.f32.mrf.mxu0
    %v628 = vadd.f32 0.0, %v627
    %629 = vmatmul.bf16.gmra.mxu0 %v472
    %v630 = vpop.f32.mrf.mxu0
    %v631 = vadd.f32 0.0, %v630
    %v632 = vpop.f32.mrf.mxu0
    %v633 = vadd.f32 0.0, %v632
    %634 = vmatmul.bf16.gmra.mxu0 %v475
    %v635 = vpop.f32.mrf.mxu0
    %v636 = vadd.f32 0.0, %v635
    %v637 = vpop.f32.mrf.mxu0
    %v638 = vadd.f32 0.0, %v637
    %639 = vmatmul.bf16.gmra.mxu0 %v478
    %v640 = vpop.f32.mrf.mxu0
    %v641 = vadd.f32 0.0, %v640
    %v642 = vpop.f32.mrf.mxu0
    %v643 = vadd.f32 0.0, %v642
    %644 = vmatmul.bf16.gmra.mxu0 %v481
    %v645 = vpop.f32.mrf.mxu0
    %v646 = vadd.f32 0.0, %v645
    %v647 = vpop.f32.mrf.mxu0
    %v648 = vadd.f32 0.0, %v647
    %649 = vmatmul.bf16.gmra.mxu0 %v484
    %v650 = vpop.f32.mrf.mxu0
    %v651 = vadd.f32 0.0, %v650
    %v652 = vpop.f32.mrf.mxu0
    %v653 = vadd.f32 0.0, %v652
    %654 = vdwg.mxu0
    %655 = vmatpush.bf16.msra.mxu0 0
    %656 = vmatpush.bf16.msra.mxu0 0
    %657 = vmatpush.bf16.msra.mxu0 0
    %658 = vmatpush.bf16.msra.mxu0 0
    %659 = vmatpush.bf16.msra.mxu0 0
    %660 = vmatpush.bf16.msra.mxu0 0
    %661 = vmatpush.bf16.msra.mxu0 %v378
    %662 = vmatpush.bf16.msra.mxu0 %v374
    %663 = vmatmul.bf16.gmra.mxu0 %v391
    %v664 = vpop.f32.mrf.mxu0
    %v665 = vadd.f32 0.0, %v664
    %v666 = vpop.f32.mrf.mxu0
    %v667 = vadd.f32 0.0, %v666
    %668 = vmatmul.bf16.gmra.mxu0 %v394
    %v669 = vpop.f32.mrf.mxu0
    %v670 = vadd.f32 0.0, %v669
    %v671 = vpop.f32.mrf.mxu0
    %v672 = vadd.f32 0.0, %v671
    %673 = vmatmul.bf16.gmra.mxu0 %v397
    %v674 = vpop.f32.mrf.mxu0
    %v675 = vadd.f32 0.0, %v674
    %v676 = vpop.f32.mrf.mxu0
    %v677 = vadd.f32 0.0, %v676
    %678 = vmatmul.bf16.gmra.mxu0 %v400
    %v679 = vpop.f32.mrf.mxu0
    %v680 = vadd.f32 0.0, %v679
    %v681 = vpop.f32.mrf.mxu0
    %v682 = vadd.f32 0.0, %v681
    %683 = vmatmul.bf16.gmra.mxu0 %v403
    %v684 = vpop.f32.mrf.mxu0
    %v685 = vadd.f32 0.0, %v684
    %v686 = vpop.f32.mrf.mxu0
    %v687 = vadd.f32 0.0, %v686
    %688 = vmatmul.bf16.gmra.mxu0 %v406
    %v689 = vpop.f32.mrf.mxu0
    %v690 = vadd.f32 0.0, %v689
    %v691 = vpop.f32.mrf.mxu0
    %v692 = vadd.f32 0.0, %v691
    %693 = vmatmul.bf16.gmra.mxu0 %v409
    %v694 = vpop.f32.mrf.mxu0
    %v695 = vadd.f32 0.0, %v694
    %v696 = vpop.f32.mrf.mxu0
    %v697 = vadd.f32 0.0, %v696
    %698 = vmatmul.bf16.gmra.mxu0 %v412
    %v699 = vpop.f32.mrf.mxu0
    %v700 = vadd.f32 0.0, %v699
    %v701 = vpop.f32.mrf.mxu0
    %v702 = vadd.f32 0.0, %v701
    %703 = vmatmul.bf16.gmra.mxu0 %v415
    %v704 = vpop.f32.mrf.mxu0
    %v705 = vadd.f32 0.0, %v704
    %v706 = vpop.f32.mrf.mxu0
    %v707 = vadd.f32 0.0, %v706
    %708 = vmatmul.bf16.gmra.mxu0 %v418
    %v709 = vpop.f32.mrf.mxu0
    %v710 = vadd.f32 0.0, %v709
    %v711 = vpop.f32.mrf.mxu0
    %v712 = vadd.f32 0.0, %v711
    %713 = vmatmul.bf16.gmra.mxu0 %v421
    %v714 = vpop.f32.mrf.mxu0
    %v715 = vadd.f32 0.0, %v714
    %v716 = vpop.f32.mrf.mxu0
    %v717 = vadd.f32 0.0, %v716
    %718 = vmatmul.bf16.gmra.mxu0 %v424
    %v719 = vpop.f32.mrf.mxu0
    %v720 = vadd.f32 0.0, %v719
    %v721 = vpop.f32.mrf.mxu0
    %v722 = vadd.f32 0.0, %v721
    %723 = vmatmul.bf16.gmra.mxu0 %v427
    %v724 = vpop.f32.mrf.mxu0
    %v725 = vadd.f32 0.0, %v724
    %v726 = vpop.f32.mrf.mxu0
    %v727 = vadd.f32 0.0, %v726
    %728 = vmatmul.bf16.gmra.mxu0 %v430
    %v729 = vpop.f32.mrf.mxu0
    %v730 = vadd.f32 0.0, %v729
    %v731 = vpop.f32.mrf.mxu0
    %v732 = vadd.f32 0.0, %v731
    %733 = vmatmul.bf16.gmra.mxu0 %v433
    %v734 = vpop.f32.mrf.mxu0
    %v735 = vadd.f32 0.0, %v734
    %v736 = vpop.f32.mrf.mxu0
    %v737 = vadd.f32 0.0, %v736
    %738 = vmatmul.bf16.gmra.mxu0 %v436
    %v739 = vpop.f32.mrf.mxu0
    %v740 = vadd.f32 0.0, %v739
    %v741 = vpop.f32.mrf.mxu0
    %v742 = vadd.f32 0.0, %v741
    %743 = vmatmul.bf16.gmra.mxu0 %v439
    %v744 = vpop.f32.mrf.mxu0
    %v745 = vadd.f32 0.0, %v744
    %v746 = vpop.f32.mrf.mxu0
    %v747 = vadd.f32 0.0, %v746
    %748 = vmatmul.bf16.gmra.mxu0 %v442
    %v749 = vpop.f32.mrf.mxu0
    %v750 = vadd.f32 0.0, %v749
    %v751 = vpop.f32.mrf.mxu0
    %v752 = vadd.f32 0.0, %v751
    %753 = vmatmul.bf16.gmra.mxu0 %v445
    %v754 = vpop.f32.mrf.mxu0
    %v755 = vadd.f32 0.0, %v754
    %v756 = vpop.f32.mrf.mxu0
    %v757 = vadd.f32 0.0, %v756
    %758 = vmatmul.bf16.gmra.mxu0 %v448
    %v759 = vpop.f32.mrf.mxu0
    %v760 = vadd.f32 0.0, %v759
    %v761 = vpop.f32.mrf.mxu0
    %v762 = vadd.f32 0.0, %v761
    %763 = vmatmul.bf16.gmra.mxu0 %v451
    %v764 = vpop.f32.mrf.mxu0
    %v765 = vadd.f32 0.0, %v764
    %v766 = vpop.f32.mrf.mxu0
    %v767 = vadd.f32 0.0, %v766
    %768 = vmatmul.bf16.gmra.mxu0 %v454
    %v769 = vpop.f32.mrf.mxu0
    %v770 = vadd.f32 0.0, %v769
    %v771 = vpop.f32.mrf.mxu0
    %v772 = vadd.f32 0.0, %v771
    %773 = vmatmul.bf16.gmra.mxu0 %v457
    %v774 = vpop.f32.mrf.mxu0
    %v775 = vadd.f32 0.0, %v774
    %v776 = vpop.f32.mrf.mxu0
    %v777 = vadd.f32 0.0, %v776
    %778 = vmatmul.bf16.gmra.mxu0 %v460
    %v779 = vpop.f32.mrf.mxu0
    %v780 = vadd.f32 0.0, %v779
    %v781 = vpop.f32.mrf.mxu0
    %v782 = vadd.f32 0.0, %v781
    %783 = vmatmul.bf16.gmra.mxu0 %v463
    %v784 = vpop.f32.mrf.mxu0
    %v785 = vadd.f32 0.0, %v784
    %v786 = vpop.f32.mrf.mxu0
    %v787 = vadd.f32 0.0, %v786
    %788 = vmatmul.bf16.gmra.mxu0 %v466
    %v789 = vpop.f32.mrf.mxu0
    %v790 = vadd.f32 0.0, %v789
    %v791 = vpop.f32.mrf.mxu0
    %v792 = vadd.f32 0.0, %v791
    %793 = vmatmul.bf16.gmra.mxu0 %v469
    %v794 = vpop.f32.mrf.mxu0
    %v795 = vadd.f32 0.0, %v794
    %v796 = vpop.f32.mrf.mxu0
    %v797 = vadd.f32 0.0, %v796
    %798 = vmatmul.bf16.gmra.mxu0 %v472
    %v799 = vpop.f32.mrf.mxu0
    %v800 = vadd.f32 0.0, %v799
    %v801 = vpop.f32.mrf.mxu0
    %v802 = vadd.f32 0.0, %v801
    %803 = vmatmul.bf16.gmra.mxu0 %v475
    %v804 = vpop.f32.mrf.mxu0
    %v805 = vadd.f32 0.0, %v804
    %v806 = vpop.f32.mrf.mxu0
    %v807 = vadd.f32 0.0, %v806
    %808 = vmatmul.bf16.gmra.mxu0 %v478
    %v809 = vpop.f32.mrf.mxu0
    %v810 = vadd.f32 0.0, %v809
    %v811 = vpop.f32.mrf.mxu0
    %v812 = vadd.f32 0.0, %v811
    %813 = vmatmul.bf16.gmra.mxu0 %v481
    %v814 = vpop.f32.mrf.mxu0
    %v815 = vadd.f32 0.0, %v814
    %v816 = vpop.f32.mrf.mxu0
    %v817 = vadd.f32 0.0, %v816
    %818 = vmatmul.bf16.gmra.mxu0 %v484
    %v819 = vpop.f32.mrf.mxu0
    %v820 = vadd.f32 0.0, %v819
    %v821 = vpop.f32.mrf.mxu0
    %v822 = vadd.f32 0.0, %v821
    %823 = vdwg.mxu0
    %824 = vmatpush.bf16.msra.mxu0 0
    %825 = vmatpush.bf16.msra.mxu0 0
    %826 = vmatpush.bf16.msra.mxu0 0
    %827 = vmatpush.bf16.msra.mxu0 0
    %828 = vmatpush.bf16.msra.mxu0 0
    %829 = vmatpush.bf16.msra.mxu0 0
    %830 = vmatpush.bf16.msra.mxu0 %v379
    %831 = vmatpush.bf16.msra.mxu0 %v375
    %832 = vmatmul.bf16.gmra.mxu0 %v391
    %v833 = vpop.f32.mrf.mxu0
    %v834 = vadd.f32 0.0, %v833
    %v835 = vpop.f32.mrf.mxu0
    %v836 = vadd.f32 0.0, %v835
    %837 = vmatmul.bf16.gmra.mxu0 %v394
    %v838 = vpop.f32.mrf.mxu0
    %v839 = vadd.f32 0.0, %v838
    %v840 = vpop.f32.mrf.mxu0
    %v841 = vadd.f32 0.0, %v840
    %842 = vmatmul.bf16.gmra.mxu0 %v397
    %v843 = vpop.f32.mrf.mxu0
    %v844 = vadd.f32 0.0, %v843
    %v845 = vpop.f32.mrf.mxu0
    %v846 = vadd.f32 0.0, %v845
    %847 = vmatmul.bf16.gmra.mxu0 %v400
    %v848 = vpop.f32.mrf.mxu0
    %v849 = vadd.f32 0.0, %v848
    %v850 = vpop.f32.mrf.mxu0
    %v851 = vadd.f32 0.0, %v850
    %852 = vmatmul.bf16.gmra.mxu0 %v403
    %v853 = vpop.f32.mrf.mxu0
    %v854 = vadd.f32 0.0, %v853
    %v855 = vpop.f32.mrf.mxu0
    %v856 = vadd.f32 0.0, %v855
    %857 = vmatmul.bf16.gmra.mxu0 %v406
    %v858 = vpop.f32.mrf.mxu0
    %v859 = vadd.f32 0.0, %v858
    %v860 = vpop.f32.mrf.mxu0
    %v861 = vadd.f32 0.0, %v860
    %862 = vmatmul.bf16.gmra.mxu0 %v409
    %v863 = vpop.f32.mrf.mxu0
    %v864 = vadd.f32 0.0, %v863
    %v865 = vpop.f32.mrf.mxu0
    %v866 = vadd.f32 0.0, %v865
    %867 = vmatmul.bf16.gmra.mxu0 %v412
    %v868 = vpop.f32.mrf.mxu0
    %v869 = vadd.f32 0.0, %v868
    %v870 = vpop.f32.mrf.mxu0
    %v871 = vadd.f32 0.0, %v870
    %872 = vmatmul.bf16.gmra.mxu0 %v415
    %v873 = vpop.f32.mrf.mxu0
    %v874 = vadd.f32 0.0, %v873
    %v875 = vpop.f32.mrf.mxu0
    %v876 = vadd.f32 0.0, %v875
    %877 = vmatmul.bf16.gmra.mxu0 %v418
    %v878 = vpop.f32.mrf.mxu0
    %v879 = vadd.f32 0.0, %v878
    %v880 = vpop.f32.mrf.mxu0
    %v881 = vadd.f32 0.0, %v880
    %882 = vmatmul.bf16.gmra.mxu0 %v421
    %v883 = vpop.f32.mrf.mxu0
    %v884 = vadd.f32 0.0, %v883
    %v885 = vpop.f32.mrf.mxu0
    %v886 = vadd.f32 0.0, %v885
    %887 = vmatmul.bf16.gmra.mxu0 %v424
    %v888 = vpop.f32.mrf.mxu0
    %v889 = vadd.f32 0.0, %v888
    %v890 = vpop.f32.mrf.mxu0
    %v891 = vadd.f32 0.0, %v890
    %892 = vmatmul.bf16.gmra.mxu0 %v427
    %v893 = vpop.f32.mrf.mxu0
    %v894 = vadd.f32 0.0, %v893
    %v895 = vpop.f32.mrf.mxu0
    %v896 = vadd.f32 0.0, %v895
    %897 = vmatmul.bf16.gmra.mxu0 %v430
    %v898 = vpop.f32.mrf.mxu0
    %v899 = vadd.f32 0.0, %v898
    %v900 = vpop.f32.mrf.mxu0
    %v901 = vadd.f32 0.0, %v900
    %902 = vmatmul.bf16.gmra.mxu0 %v433
    %v903 = vpop.f32.mrf.mxu0
    %v904 = vadd.f32 0.0, %v903
    %v905 = vpop.f32.mrf.mxu0
    %v906 = vadd.f32 0.0, %v905
    %907 = vmatmul.bf16.gmra.mxu0 %v436
    %v908 = vpop.f32.mrf.mxu0
    %v909 = vadd.f32 0.0, %v908
    %v910 = vpop.f32.mrf.mxu0
    %v911 = vadd.f32 0.0, %v910
    %912 = vmatmul.bf16.gmra.mxu0 %v439
    %v913 = vpop.f32.mrf.mxu0
    %v914 = vadd.f32 0.0, %v913
    %v915 = vpop.f32.mrf.mxu0
    %v916 = vadd.f32 0.0, %v915
    %917 = vmatmul.bf16.gmra.mxu0 %v442
    %v918 = vpop.f32.mrf.mxu0
    %v919 = vadd.f32 0.0, %v918
    %v920 = vpop.f32.mrf.mxu0
    %v921 = vadd.f32 0.0, %v920
    %922 = vmatmul.bf16.gmra.mxu0 %v445
    %v923 = vpop.f32.mrf.mxu0
    %v924 = vadd.f32 0.0, %v923
    %v925 = vpop.f32.mrf.mxu0
    %v926 = vadd.f32 0.0, %v925
    %927 = vmatmul.bf16.gmra.mxu0 %v448
    %v928 = vpop.f32.mrf.mxu0
    %v929 = vadd.f32 0.0, %v928
    %v930 = vpop.f32.mrf.mxu0
    %v931 = vadd.f32 0.0, %v930
    %932 = vmatmul.bf16.gmra.mxu0 %v451
    %v933 = vpop.f32.mrf.mxu0
    %v934 = vadd.f32 0.0, %v933
    %v935 = vpop.f32.mrf.mxu0
    %v936 = vadd.f32 0.0, %v935
    %937 = vmatmul.bf16.gmra.mxu0 %v454
    %v938 = vpop.f32.mrf.mxu0
    %v939 = vadd.f32 0.0, %v938
    %v940 = vpop.f32.mrf.mxu0
    %v941 = vadd.f32 0.0, %v940
    %942 = vmatmul.bf16.gmra.mxu0 %v457
    %v943 = vpop.f32.mrf.mxu0
    %v944 = vadd.f32 0.0, %v943
    %v945 = vpop.f32.mrf.mxu0
    %v946 = vadd.f32 0.0, %v945
    %947 = vmatmul.bf16.gmra.mxu0 %v460
    %v948 = vpop.f32.mrf.mxu0
    %v949 = vadd.f32 0.0, %v948
    %v950 = vpop.f32.mrf.mxu0
    %v951 = vadd.f32 0.0, %v950
    %952 = vmatmul.bf16.gmra.mxu0 %v463
    %v953 = vpop.f32.mrf.mxu0
    %v954 = vadd.f32 0.0, %v953
    %v955 = vpop.f32.mrf.mxu0
    %v956 = vadd.f32 0.0, %v955
    %957 = vmatmul.bf16.gmra.mxu0 %v466
    %v958 = vpop.f32.mrf.mxu0
    %v959 = vadd.f32 0.0, %v958
    %v960 = vpop.f32.mrf.mxu0
    %v961 = vadd.f32 0.0, %v960
    %962 = vmatmul.bf16.gmra.mxu0 %v469
    %v963 = vpop.f32.mrf.mxu0
    %v964 = vadd.f32 0.0, %v963
    %v965 = vpop.f32.mrf.mxu0
    %v966 = vadd.f32 0.0, %v965
    %967 = vmatmul.bf16.gmra.mxu0 %v472
    %v968 = vpop.f32.mrf.mxu0
    %v969 = vadd.f32 0.0, %v968
    %v970 = vpop.f32.mrf.mxu0
    %v971 = vadd.f32 0.0, %v970
    %972 = vmatmul.bf16.gmra.mxu0 %v475
    %v973 = vpop.f32.mrf.mxu0
    %v974 = vadd.f32 0.0, %v973
    %v975 = vpop.f32.mrf.mxu0
    %v976 = vadd.f32 0.0, %v975
    %977 = vmatmul.bf16.gmra.mxu0 %v478
    %v978 = vpop.f32.mrf.mxu0
    %v979 = vadd.f32 0.0, %v978
    %v980 = vpop.f32.mrf.mxu0
    %v981 = vadd.f32 0.0, %v980
    %982 = vmatmul.bf16.gmra.mxu0 %v481
    %v983 = vpop.f32.mrf.mxu0
    %v984 = vadd.f32 0.0, %v983
    %v985 = vpop.f32.mrf.mxu0
    %v986 = vadd.f32 0.0, %v985
    %987 = vmatmul.bf16.gmra.mxu0 %v484
    %v988 = vpop.f32.mrf.mxu0
    %v989 = vadd.f32 0.0, %v988
    %v990 = vpop.f32.mrf.mxu0
    %v991 = vadd.f32 0.0, %v990
    %992 = vdwg.mxu0
    %993 = vmatpush.bf16.msra.mxu0 0
    %994 = vmatpush.bf16.msra.mxu0 0
    %995 = vmatpush.bf16.msra.mxu0 0
    %996 = vmatpush.bf16.msra.mxu0 0
    %997 = vmatpush.bf16.msra.mxu0 0
    %998 = vmatpush.bf16.msra.mxu0 0
    %999 = vmatpush.bf16.msra.mxu0 %v380
    %1000 = vmatpush.bf16.msra.mxu0 %v376
    %1001 = vmatmul.bf16.gmra.mxu0 %v391
    %v1002 = vpop.f32.mrf.mxu0
    %v1003 = vadd.f32 0.0, %v1002
    %v1004 = vpop.f32.mrf.mxu0
    %v1005 = vadd.f32 0.0, %v1004
    %1006 = vmatmul.bf16.gmra.mxu0 %v394
    %v1007 = vpop.f32.mrf.mxu0
    %v1008 = vadd.f32 0.0, %v1007
    %v1009 = vpop.f32.mrf.mxu0
    %v1010 = vadd.f32 0.0, %v1009
    %1011 = vmatmul.bf16.gmra.mxu0 %v397
    %v1012 = vpop.f32.mrf.mxu0
    %v1013 = vadd.f32 0.0, %v1012
    %v1014 = vpop.f32.mrf.mxu0
    %v1015 = vadd.f32 0.0, %v1014
    %1016 = vmatmul.bf16.gmra.mxu0 %v400
    %v1017 = vpop.f32.mrf.mxu0
    %v1018 = vadd.f32 0.0, %v1017
    %v1019 = vpop.f32.mrf.mxu0
    %v1020 = vadd.f32 0.0, %v1019
    %1021 = vmatmul.bf16.gmra.mxu0 %v403
    %v1022 = vpop.f32.mrf.mxu0
    %v1023 = vadd.f32 0.0, %v1022
    %v1024 = vpop.f32.mrf.mxu0
    %v1025 = vadd.f32 0.0, %v1024
    %1026 = vmatmul.bf16.gmra.mxu0 %v406
    %v1027 = vpop.f32.mrf.mxu0
    %v1028 = vadd.f32 0.0, %v1027
    %v1029 = vpop.f32.mrf.mxu0
    %v1030 = vadd.f32 0.0, %v1029
    %1031 = vmatmul.bf16.gmra.mxu0 %v409
    %v1032 = vpop.f32.mrf.mxu0
    %v1033 = vadd.f32 0.0, %v1032
    %v1034 = vpop.f32.mrf.mxu0
    %v1035 = vadd.f32 0.0, %v1034
    %1036 = vmatmul.bf16.gmra.mxu0 %v412
    %v1037 = vpop.f32.mrf.mxu0
    %v1038 = vadd.f32 0.0, %v1037
    %v1039 = vpop.f32.mrf.mxu0
    %v1040 = vadd.f32 0.0, %v1039
    %1041 = vmatmul.bf16.gmra.mxu0 %v415
    %v1042 = vpop.f32.mrf.mxu0
    %v1043 = vadd.f32 0.0, %v1042
    %v1044 = vpop.f32.mrf.mxu0
    %v1045 = vadd.f32 0.0, %v1044
    %1046 = vmatmul.bf16.gmra.mxu0 %v418
    %v1047 = vpop.f32.mrf.mxu0
    %v1048 = vadd.f32 0.0, %v1047
    %v1049 = vpop.f32.mrf.mxu0
    %v1050 = vadd.f32 0.0, %v1049
    %1051 = vmatmul.bf16.gmra.mxu0 %v421
    %v1052 = vpop.f32.mrf.mxu0
    %v1053 = vadd.f32 0.0, %v1052
    %v1054 = vpop.f32.mrf.mxu0
    %v1055 = vadd.f32 0.0, %v1054
    %1056 = vmatmul.bf16.gmra.mxu0 %v424
    %v1057 = vpop.f32.mrf.mxu0
    %v1058 = vadd.f32 0.0, %v1057
    %v1059 = vpop.f32.mrf.mxu0
    %v1060 = vadd.f32 0.0, %v1059
    %1061 = vmatmul.bf16.gmra.mxu0 %v427
    %v1062 = vpop.f32.mrf.mxu0
    %v1063 = vadd.f32 0.0, %v1062
    %v1064 = vpop.f32.mrf.mxu0
    %v1065 = vadd.f32 0.0, %v1064
    %1066 = vmatmul.bf16.gmra.mxu0 %v430
    %v1067 = vpop.f32.mrf.mxu0
    %v1068 = vadd.f32 0.0, %v1067
    %v1069 = vpop.f32.mrf.mxu0
    %v1070 = vadd.f32 0.0, %v1069
    %1071 = vmatmul.bf16.gmra.mxu0 %v433
    %v1072 = vpop.f32.mrf.mxu0
    %v1073 = vadd.f32 0.0, %v1072
    %v1074 = vpop.f32.mrf.mxu0
    %v1075 = vadd.f32 0.0, %v1074
    %1076 = vmatmul.bf16.gmra.mxu0 %v436
    %v1077 = vpop.f32.mrf.mxu0
    %v1078 = vadd.f32 0.0, %v1077
    %v1079 = vpop.f32.mrf.mxu0
    %v1080 = vadd.f32 0.0, %v1079
    %1081 = vmatmul.bf16.gmra.mxu0 %v439
    %v1082 = vpop.f32.mrf.mxu0
    %v1083 = vadd.f32 0.0, %v1082
    %v1084 = vpop.f32.mrf.mxu0
    %v1085 = vadd.f32 0.0, %v1084
    %1086 = vmatmul.bf16.gmra.mxu0 %v442
    %v1087 = vpop.f32.mrf.mxu0
    %v1088 = vadd.f32 0.0, %v1087
    %v1089 = vpop.f32.mrf.mxu0
    %v1090 = vadd.f32 0.0, %v1089
    %1091 = vmatmul.bf16.gmra.mxu0 %v445
    %v1092 = vpop.f32.mrf.mxu0
    %v1093 = vadd.f32 0.0, %v1092
    %v1094 = vpop.f32.mrf.mxu0
    %v1095 = vadd.f32 0.0, %v1094
    %1096 = vmatmul.bf16.gmra.mxu0 %v448
    %v1097 = vpop.f32.mrf.mxu0
    %v1098 = vadd.f32 0.0, %v1097
    %v1099 = vpop.f32.mrf.mxu0
    %v1100 = vadd.f32 0.0, %v1099
    %1101 = vmatmul.bf16.gmra.mxu0 %v451
    %v1102 = vpop.f32.mrf.mxu0
    %v1103 = vadd.f32 0.0, %v1102
    %v1104 = vpop.f32.mrf.mxu0
    %v1105 = vadd.f32 0.0, %v1104
    %1106 = vmatmul.bf16.gmra.mxu0 %v454
    %v1107 = vpop.f32.mrf.mxu0
    %v1108 = vadd.f32 0.0, %v1107
    %v1109 = vpop.f32.mrf.mxu0
    %v1110 = vadd.f32 0.0, %v1109
    %1111 = vmatmul.bf16.gmra.mxu0 %v457
    %v1112 = vpop.f32.mrf.mxu0
    %v1113 = vadd.f32 0.0, %v1112
    %v1114 = vpop.f32.mrf.mxu0
    %v1115 = vadd.f32 0.0, %v1114
    %1116 = vmatmul.bf16.gmra.mxu0 %v460
    %v1117 = vpop.f32.mrf.mxu0
    %v1118 = vadd.f32 0.0, %v1117
    %v1119 = vpop.f32.mrf.mxu0
    %v1120 = vadd.f32 0.0, %v1119
    %1121 = vmatmul.bf16.gmra.mxu0 %v463
    %v1122 = vpop.f32.mrf.mxu0
    %v1123 = vadd.f32 0.0, %v1122
    %v1124 = vpop.f32.mrf.mxu0
    %v1125 = vadd.f32 0.0, %v1124
    %1126 = vmatmul.bf16.gmra.mxu0 %v466
    %v1127 = vpop.f32.mrf.mxu0
    %v1128 = vadd.f32 0.0, %v1127
    %v1129 = vpop.f32.mrf.mxu0
    %v1130 = vadd.f32 0.0, %v1129
    %1131 = vmatmul.bf16.gmra.mxu0 %v469
    %v1132 = vpop.f32.mrf.mxu0
    %v1133 = vadd.f32 0.0, %v1132
    %v1134 = vpop.f32.mrf.mxu0
    %v1135 = vadd.f32 0.0, %v1134
    %1136 = vmatmul.bf16.gmra.mxu0 %v472
    %v1137 = vpop.f32.mrf.mxu0
    %v1138 = vadd.f32 0.0, %v1137
    %v1139 = vpop.f32.mrf.mxu0
    %v1140 = vadd.f32 0.0, %v1139
    %1141 = vmatmul.bf16.gmra.mxu0 %v475
    %v1142 = vpop.f32.mrf.mxu0
    %v1143 = vadd.f32 0.0, %v1142
    %v1144 = vpop.f32.mrf.mxu0
    %v1145 = vadd.f32 0.0, %v1144
    %1146 = vmatmul.bf16.gmra.mxu0 %v478
    %v1147 = vpop.f32.mrf.mxu0
    %v1148 = vadd.f32 0.0, %v1147
    %v1149 = vpop.f32.mrf.mxu0
    %v1150 = vadd.f32 0.0, %v1149
    %1151 = vmatmul.bf16.gmra.mxu0 %v481
    %v1152 = vpop.f32.mrf.mxu0
    %v1153 = vadd.f32 0.0, %v1152
    %v1154 = vpop.f32.mrf.mxu0
    %v1155 = vadd.f32 0.0, %v1154
    %1156 = vmatmul.bf16.gmra.mxu0 %v484
    %v1157 = vpop.f32.mrf.mxu0
    %v1158 = vadd.f32 0.0, %v1157
    %v1159 = vpop.f32.mrf.mxu0
    %v1160 = vadd.f32 0.0, %v1159
    %1161 = vdwg.mxu0
    %v1162 = vld [vmem:[#allocation12] ss:$8 sm:$0x3]
    %v1164 = vperm.slane %v1162, 0
    %v1165 = vperm.slane %v1162, 1
    %v1168 = vadd.f32 %v496, %v1164
    %v1169 = vadd.f32 %v665, %v1165
    %v1170 = vadd.f32 %v498, %v1164
    %v1171 = vadd.f32 %v667, %v1165
    %v1172 = vadd.f32 %v501, %v1164
    %v1173 = vadd.f32 %v670, %v1165
    %v1174 = vadd.f32 %v503, %v1164
    %v1175 = vadd.f32 %v672, %v1165
    %v1176 = vadd.f32 %v506, %v1164
    %v1177 = vadd.f32 %v675, %v1165
    %v1178 = vadd.f32 %v508, %v1164
    %v1179 = vadd.f32 %v677, %v1165
    %v1180 = vadd.f32 %v511, %v1164
    %v1181 = vadd.f32 %v680, %v1165
    %v1182 = vadd.f32 %v513, %v1164
    %v1183 = vadd.f32 %v682, %v1165
    %v1184 = vadd.f32 %v516, %v1164
    %v1185 = vadd.f32 %v685, %v1165
    %v1186 = vadd.f32 %v518, %v1164
    %v1187 = vadd.f32 %v687, %v1165
    %v1188 = vadd.f32 %v521, %v1164
    %v1189 = vadd.f32 %v690, %v1165
    %v1190 = vadd.f32 %v523, %v1164
    %v1191 = vadd.f32 %v692, %v1165
    %v1192 = vadd.f32 %v526, %v1164
    %v1193 = vadd.f32 %v695, %v1165
    %v1194 = vadd.f32 %v528, %v1164
    %v1195 = vadd.f32 %v697, %v1165
    %v1196 = vadd.f32 %v531, %v1164
    %v1197 = vadd.f32 %v700, %v1165
    %v1198 = vadd.f32 %v533, %v1164
    %v1199 = vadd.f32 %v702, %v1165
    %v1200 = vadd.f32 %v536, %v1164
    %v1201 = vadd.f32 %v705, %v1165
    %v1202 = vadd.f32 %v538, %v1164
    %v1203 = vadd.f32 %v707, %v1165
    %v1204 = vadd.f32 %v541, %v1164
    %v1205 = vadd.f32 %v710, %v1165
    %v1206 = vadd.f32 %v543, %v1164
    %v1207 = vadd.f32 %v712, %v1165
    %v1208 = vadd.f32 %v546, %v1164
    %v1209 = vadd.f32 %v715, %v1165
    %v1210 = vadd.f32 %v548, %v1164
    %v1211 = vadd.f32 %v717, %v1165
    %v1212 = vadd.f32 %v551, %v1164
    %v1213 = vadd.f32 %v720, %v1165
    %v1214 = vadd.f32 %v553, %v1164
    %v1215 = vadd.f32 %v722, %v1165
    %v1216 = vadd.f32 %v556, %v1164
    %v1217 = vadd.f32 %v725, %v1165
    %v1218 = vadd.f32 %v558, %v1164
    %v1219 = vadd.f32 %v727, %v1165
    %v1220 = vadd.f32 %v561, %v1164
    %v1221 = vadd.f32 %v730, %v1165
    %v1222 = vadd.f32 %v563, %v1164
    %v1223 = vadd.f32 %v732, %v1165
    %v1224 = vadd.f32 %v566, %v1164
    %v1225 = vadd.f32 %v735, %v1165
    %v1226 = vadd.f32 %v568, %v1164
    %v1227 = vadd.f32 %v737, %v1165
    %v1228 = vadd.f32 %v571, %v1164
    %v1229 = vadd.f32 %v740, %v1165
    %v1230 = vadd.f32 %v573, %v1164
    %v1231 = vadd.f32 %v742, %v1165
    %v1232 = vadd.f32 %v576, %v1164
    %v1233 = vadd.f32 %v745, %v1165
    %v1234 = vadd.f32 %v578, %v1164
    %v1235 = vadd.f32 %v747, %v1165
    %v1236 = vadd.f32 %v581, %v1164
    %v1237 = vadd.f32 %v750, %v1165
    %v1238 = vadd.f32 %v583, %v1164
    %v1239 = vadd.f32 %v752, %v1165
    %v1240 = vadd.f32 %v586, %v1164
    %v1241 = vadd.f32 %v755, %v1165
    %v1242 = vadd.f32 %v588, %v1164
    %v1243 = vadd.f32 %v757, %v1165
    %v1244 = vadd.f32 %v591, %v1164
    %v1245 = vadd.f32 %v760, %v1165
    %v1246 = vadd.f32 %v593, %v1164
    %v1247 = vadd.f32 %v762, %v1165
    %v1248 = vadd.f32 %v596, %v1164
    %v1249 = vadd.f32 %v765, %v1165
    %v1250 = vadd.f32 %v598, %v1164
    %v1251 = vadd.f32 %v767, %v1165
    %v1252 = vadd.f32 %v601, %v1164
    %v1253 = vadd.f32 %v770, %v1165
    %v1254 = vadd.f32 %v603, %v1164
    %v1255 = vadd.f32 %v772, %v1165
    %v1256 = vadd.f32 %v606, %v1164
    %v1257 = vadd.f32 %v775, %v1165
    %v1258 = vadd.f32 %v608, %v1164
    %v1259 = vadd.f32 %v777, %v1165
    %v1260 = vadd.f32 %v611, %v1164
    %v1261 = vadd.f32 %v780, %v1165
    %v1262 = vadd.f32 %v613, %v1164
    %v1263 = vadd.f32 %v782, %v1165
    %v1264 = vadd.f32 %v616, %v1164
    %v1265 = vadd.f32 %v785, %v1165
    %v1266 = vadd.f32 %v618, %v1164
    %v1267 = vadd.f32 %v787, %v1165
    %v1268 = vadd.f32 %v621, %v1164
    %v1269 = vadd.f32 %v790, %v1165
    %v1270 = vadd.f32 %v623, %v1164
    %v1271 = vadd.f32 %v792, %v1165
    %v1272 = vadd.f32 %v626, %v1164
    %v1273 = vadd.f32 %v795, %v1165
    %v1274 = vadd.f32 %v628, %v1164
    %v1275 = vadd.f32 %v797, %v1165
    %v1276 = vadd.f32 %v631, %v1164
    %v1277 = vadd.f32 %v800, %v1165
    %v1278 = vadd.f32 %v633, %v1164
    %v1279 = vadd.f32 %v802, %v1165
    %v1280 = vadd.f32 %v636, %v1164
    %v1281 = vadd.f32 %v805, %v1165
    %v1282 = vadd.f32 %v638, %v1164
    %v1283 = vadd.f32 %v807, %v1165
    %v1284 = vadd.f32 %v641, %v1164
    %v1285 = vadd.f32 %v810, %v1165
    %v1286 = vadd.f32 %v643, %v1164
    %v1287 = vadd.f32 %v812, %v1165
    %v1288 = vadd.f32 %v646, %v1164
    %v1289 = vadd.f32 %v815, %v1165
    %v1290 = vadd.f32 %v648, %v1164
    %v1291 = vadd.f32 %v817, %v1165
    %v1292 = vadd.f32 %v651, %v1164
    %v1293 = vadd.f32 %v820, %v1165
    %v1294 = vadd.f32 %v653, %v1164
    %v1295 = vadd.f32 %v822, %v1165
    %v1296 = vmax.f32 %v1168, 0.0
    %v1297 = vmax.f32 %v1169, 0.0
    %v1298 = vmax.f32 %v1170, 0.0
    %v1299 = vmax.f32 %v1171, 0.0
    %v1300 = vmax.f32 %v1172, 0.0
    %v1301 = vmax.f32 %v1173, 0.0
    %v1302 = vmax.f32 %v1174, 0.0
    %v1303 = vmax.f32 %v1175, 0.0
    %v1304 = vmax.f32 %v1176, 0.0
    %v1305 = vmax.f32 %v1177, 0.0
    %v1306 = vmax.f32 %v1178, 0.0
    %v1307 = vmax.f32 %v1179, 0.0
    %v1308 = vmax.f32 %v1180, 0.0
    %v1309 = vmax.f32 %v1181, 0.0
    %v1310 = vmax.f32 %v1182, 0.0
    %v1311 = vmax.f32 %v1183, 0.0
    %v1312 = vmax.f32 %v1184, 0.0
    %v1313 = vmax.f32 %v1185, 0.0
    %v1314 = vmax.f32 %v1186, 0.0
    %v1315 = vmax.f32 %v1187, 0.0
    %v1316 = vmax.f32 %v1188, 0.0
    %v1317 = vmax.f32 %v1189, 0.0
    %v1318 = vmax.f32 %v1190, 0.0
    %v1319 = vmax.f32 %v1191, 0.0
    %v1320 = vmax.f32 %v1192, 0.0
    %v1321 = vmax.f32 %v1193, 0.0
    %v1322 = vmax.f32 %v1194, 0.0
    %v1323 = vmax.f32 %v1195, 0.0
    %v1324 = vmax.f32 %v1196, 0.0
    %v1325 = vmax.f32 %v1197, 0.0
    %v1326 = vmax.f32 %v1198, 0.0
    %v1327 = vmax.f32 %v1199, 0.0
    %v1328 = vmax.f32 %v1200, 0.0
    %v1329 = vmax.f32 %v1201, 0.0
    %v1330 = vmax.f32 %v1202, 0.0
    %v1331 = vmax.f32 %v1203, 0.0
    %v1332 = vmax.f32 %v1204, 0.0
    %v1333 = vmax.f32 %v1205, 0.0
    %v1334 = vmax.f32 %v1206, 0.0
    %v1335 = vmax.f32 %v1207, 0.0
    %v1336 = vmax.f32 %v1208, 0.0
    %v1337 = vmax.f32 %v1209, 0.0
    %v1338 = vmax.f32 %v1210, 0.0
    %v1339 = vmax.f32 %v1211, 0.0
    %v1340 = vmax.f32 %v1212, 0.0
    %v1341 = vmax.f32 %v1213, 0.0
    %v1342 = vmax.f32 %v1214, 0.0
    %v1343 = vmax.f32 %v1215, 0.0
    %v1344 = vmax.f32 %v1216, 0.0
    %v1345 = vmax.f32 %v1217, 0.0
    %v1346 = vmax.f32 %v1218, 0.0
    %v1347 = vmax.f32 %v1219, 0.0
    %v1348 = vmax.f32 %v1220, 0.0
    %v1349 = vmax.f32 %v1221, 0.0
    %v1350 = vmax.f32 %v1222, 0.0
    %v1351 = vmax.f32 %v1223, 0.0
    %v1352 = vmax.f32 %v1224, 0.0
    %v1353 = vmax.f32 %v1225, 0.0
    %v1354 = vmax.f32 %v1226, 0.0
    %v1355 = vmax.f32 %v1227, 0.0
    %v1356 = vmax.f32 %v1228, 0.0
    %v1357 = vmax.f32 %v1229, 0.0
    %v1358 = vmax.f32 %v1230, 0.0
    %v1359 = vmax.f32 %v1231, 0.0
    %v1360 = vmax.f32 %v1232, 0.0
    %v1361 = vmax.f32 %v1233, 0.0
    %v1362 = vmax.f32 %v1234, 0.0
    %v1363 = vmax.f32 %v1235, 0.0
    %v1364 = vmax.f32 %v1236, 0.0
    %v1365 = vmax.f32 %v1237, 0.0
    %v1366 = vmax.f32 %v1238, 0.0
    %v1367 = vmax.f32 %v1239, 0.0
    %v1368 = vmax.f32 %v1240, 0.0
    %v1369 = vmax.f32 %v1241, 0.0
    %v1370 = vmax.f32 %v1242, 0.0
    %v1371 = vmax.f32 %v1243, 0.0
    %v1372 = vmax.f32 %v1244, 0.0
    %v1373 = vmax.f32 %v1245, 0.0
    %v1374 = vmax.f32 %v1246, 0.0
    %v1375 = vmax.f32 %v1247, 0.0
    %v1376 = vmax.f32 %v1248, 0.0
    %v1377 = vmax.f32 %v1249, 0.0
    %v1378 = vmax.f32 %v1250, 0.0
    %v1379 = vmax.f32 %v1251, 0.0
    %v1380 = vmax.f32 %v1252, 0.0
    %v1381 = vmax.f32 %v1253, 0.0
    %v1382 = vmax.f32 %v1254, 0.0
    %v1383 = vmax.f32 %v1255, 0.0
    %v1384 = vmax.f32 %v1256, 0.0
    %v1385 = vmax.f32 %v1257, 0.0
    %v1386 = vmax.f32 %v1258, 0.0
    %v1387 = vmax.f32 %v1259, 0.0
    %v1388 = vmax.f32 %v1260, 0.0
    %v1389 = vmax.f32 %v1261, 0.0
    %v1390 = vmax.f32 %v1262, 0.0
    %v1391 = vmax.f32 %v1263, 0.0
    %v1392 = vmax.f32 %v1264, 0.0
    %v1393 = vmax.f32 %v1265, 0.0
    %v1394 = vmax.f32 %v1266, 0.0
    %v1395 = vmax.f32 %v1267, 0.0
    %v1396 = vmax.f32 %v1268, 0.0
    %v1397 = vmax.f32 %v1269, 0.0
    %v1398 = vmax.f32 %v1270, 0.0
    %v1399 = vmax.f32 %v1271, 0.0
    %v1400 = vmax.f32 %v1272, 0.0
    %v1401 = vmax.f32 %v1273, 0.0
    %v1402 = vmax.f32 %v1274, 0.0
    %v1403 = vmax.f32 %v1275, 0.0
    %v1404 = vmax.f32 %v1276, 0.0
    %v1405 = vmax.f32 %v1277, 0.0
    %v1406 = vmax.f32 %v1278, 0.0
    %v1407 = vmax.f32 %v1279, 0.0
    %v1408 = vmax.f32 %v1280, 0.0
    %v1409 = vmax.f32 %v1281, 0.0
    %v1410 = vmax.f32 %v1282, 0.0
    %v1411 = vmax.f32 %v1283, 0.0
    %v1412 = vmax.f32 %v1284, 0.0
    %v1413 = vmax.f32 %v1285, 0.0
    %v1414 = vmax.f32 %v1286, 0.0
    %v1415 = vmax.f32 %v1287, 0.0
    %v1416 = vmax.f32 %v1288, 0.0
    %v1417 = vmax.f32 %v1289, 0.0
    %v1418 = vmax.f32 %v1290, 0.0
    %v1419 = vmax.f32 %v1291, 0.0
    %v1420 = vmax.f32 %v1292, 0.0
    %v1421 = vmax.f32 %v1293, 0.0
    %v1422 = vmax.f32 %v1294, 0.0
    %v1423 = vmax.f32 %v1295, 0.0
    %v1424 = vpack.c.bf16 %v1297, %v1296
    %v1425 = vpack.c.bf16 %v1299, %v1298
    %v1426 = vpack.c.bf16 %v1301, %v1300
    %v1427 = vpack.c.bf16 %v1303, %v1302
    %v1428 = vpack.c.bf16 %v1305, %v1304
    %v1429 = vpack.c.bf16 %v1307, %v1306
    %v1430 = vpack.c.bf16 %v1309, %v1308
    %v1431 = vpack.c.bf16 %v1311, %v1310
    %v1432 = vpack.c.bf16 %v1313, %v1312
    %v1433 = vpack.c.bf16 %v1315, %v1314
    %v1434 = vpack.c.bf16 %v1317, %v1316
    %v1435 = vpack.c.bf16 %v1319, %v1318
    %v1436 = vpack.c.bf16 %v1321, %v1320
    %v1437 = vpack.c.bf16 %v1323, %v1322
    %v1438 = vpack.c.bf16 %v1325, %v1324
    %v1439 = vpack.c.bf16 %v1327, %v1326
    %v1440 = vpack.c.bf16 %v1329, %v1328
    %v1441 = vpack.c.bf16 %v1331, %v1330
    %v1442 = vpack.c.bf16 %v1333, %v1332
    %v1443 = vpack.c.bf16 %v1335, %v1334
    %v1444 = vpack.c.bf16 %v1337, %v1336
    %v1445 = vpack.c.bf16 %v1339, %v1338
    %v1446 = vpack.c.bf16 %v1341, %v1340
    %v1447 = vpack.c.bf16 %v1343, %v1342
    %v1448 = vpack.c.bf16 %v1345, %v1344
    %v1449 = vpack.c.bf16 %v1347, %v1346
    %v1450 = vpack.c.bf16 %v1349, %v1348
    %v1451 = vpack.c.bf16 %v1351, %v1350
    %v1452 = vpack.c.bf16 %v1353, %v1352
    %v1453 = vpack.c.bf16 %v1355, %v1354
    %v1454 = vpack.c.bf16 %v1357, %v1356
    %v1455 = vpack.c.bf16 %v1359, %v1358
    %v1456 = vpack.c.bf16 %v1361, %v1360
    %v1457 = vpack.c.bf16 %v1363, %v1362
    %v1458 = vpack.c.bf16 %v1365, %v1364
    %v1459 = vpack.c.bf16 %v1367, %v1366
    %v1460 = vpack.c.bf16 %v1369, %v1368
    %v1461 = vpack.c.bf16 %v1371, %v1370
    %v1462 = vpack.c.bf16 %v1373, %v1372
    %v1463 = vpack.c.bf16 %v1375, %v1374
    %v1464 = vpack.c.bf16 %v1377, %v1376
    %v1465 = vpack.c.bf16 %v1379, %v1378
    %v1466 = vpack.c.bf16 %v1381, %v1380
    %v1467 = vpack.c.bf16 %v1383, %v1382
    %v1468 = vpack.c.bf16 %v1385, %v1384
    %v1469 = vpack.c.bf16 %v1387, %v1386
    %v1470 = vpack.c.bf16 %v1389, %v1388
    %v1471 = vpack.c.bf16 %v1391, %v1390
    %v1472 = vpack.c.bf16 %v1393, %v1392
    %v1473 = vpack.c.bf16 %v1395, %v1394
    %v1474 = vpack.c.bf16 %v1397, %v1396
    %v1475 = vpack.c.bf16 %v1399, %v1398
    %v1476 = vpack.c.bf16 %v1401, %v1400
    %v1477 = vpack.c.bf16 %v1403, %v1402
    %v1478 = vpack.c.bf16 %v1405, %v1404
    %v1479 = vpack.c.bf16 %v1407, %v1406
    %v1480 = vpack.c.bf16 %v1409, %v1408
    %v1481 = vpack.c.bf16 %v1411, %v1410
    %v1482 = vpack.c.bf16 %v1413, %v1412
    %v1483 = vpack.c.bf16 %v1415, %v1414
    %v1484 = vpack.c.bf16 %v1417, %v1416
    %v1485 = vpack.c.bf16 %v1419, %v1418
    %v1486 = vpack.c.bf16 %v1421, %v1420
    %v1487 = vpack.c.bf16 %v1423, %v1422
    %1488 = vst [vmem:[#allocation14] sm:$0xff] %v1424
    %1489 = vst [vmem:[#allocation14 + $0x28] sm:$0xff] %v1425
    %1490 = vst [vmem:[#allocation14 + $0x50] sm:$0xff] %v1426
    %1491 = vst [vmem:[#allocation14 + $0x78] sm:$0xff] %v1427
    %1492 = vst [vmem:[#allocation14 + $0xa0] sm:$0xff] %v1428
    %1493 = vst [vmem:[#allocation14 + $0xc8] sm:$0xff] %v1429
    %1494 = vst [vmem:[#allocation14 + $0xf0] sm:$0xff] %v1430
    %1495 = vst [vmem:[#allocation14 + $0x118] sm:$0xff] %v1431
    %1496 = vst [vmem:[#allocation14 + $0x140] sm:$0xff] %v1432
    %1497 = vst [vmem:[#allocation14 + $0x168] sm:$0xff] %v1433
    %1498 = vst [vmem:[#allocation14 + $0x190] sm:$0xff] %v1434
    %1499 = vst [vmem:[#allocation14 + $0x1b8] sm:$0xff] %v1435
    %1500 = vst [vmem:[#allocation14 + $0x1e0] sm:$0xff] %v1436
    %1501 = vst [vmem:[#allocation14 + $0x208] sm:$0xff] %v1437
    %1502 = vst [vmem:[#allocation14 + $0x230] sm:$0xff] %v1438
    %1503 = vst [vmem:[#allocation14 + $0x258] sm:$0xff] %v1439
    %1504 = vst [vmem:[#allocation14 + $0x280] sm:$0xff] %v1440
    %1505 = vst [vmem:[#allocation14 + $0x2a8] sm:$0xff] %v1441
    %1506 = vst [vmem:[#allocation14 + $0x2d0] sm:$0xff] %v1442
    %1507 = vst [vmem:[#allocation14 + $0x2f8] sm:$0xff] %v1443
    %1508 = vst [vmem:[#allocation14 + $0x320] sm:$0xff] %v1444
    %1509 = vst [vmem:[#allocation14 + $0x348] sm:$0xff] %v1445
    %1510 = vst [vmem:[#allocation14 + $0x370] sm:$0xff] %v1446
    %1511 = vst [vmem:[#allocation14 + $0x398] sm:$0xff] %v1447
    %1512 = vst [vmem:[#allocation14 + $0x3c0] sm:$0xff] %v1448
    %1513 = vst [vmem:[#allocation14 + $0x3e8] sm:$0xff] %v1449
    %1514 = vst [vmem:[#allocation14 + $0x410] sm:$0xff] %v1450
    %1515 = vst [vmem:[#allocation14 + $0x438] sm:$0xff] %v1451
    %1516 = vst [vmem:[#allocation14 + $0x460] sm:$0xff] %v1452
    %1517 = vst [vmem:[#allocation14 + $0x488] sm:$0xff] %v1453
    %1518 = vst [vmem:[#allocation14 + $0x4b0] sm:$0xff] %v1454
    %1519 = vst [vmem:[#allocation14 + $0x4d8] sm:$0xff] %v1455
    %1520 = vst [vmem:[#allocation14 + $0x500] sm:$0xff] %v1456
    %1521 = vst [vmem:[#allocation14 + $0x528] sm:$0xff] %v1457
    %1522 = vst [vmem:[#allocation14 + $0x550] sm:$0xff] %v1458
    %1523 = vst [vmem:[#allocation14 + $0x578] sm:$0xff] %v1459
    %1524 = vst [vmem:[#allocation14 + $0x5a0] sm:$0xff] %v1460
    %1525 = vst [vmem:[#allocation14 + $0x5c8] sm:$0xff] %v1461
    %1526 = vst [vmem:[#allocation14 + $0x5f0] sm:$0xff] %v1462
    %1527 = vst [vmem:[#allocation14 + $0x618] sm:$0xff] %v1463
    %1528 = vst [vmem:[#allocation14 + $0x640] sm:$0xff] %v1464
    %1529 = vst [vmem:[#allocation14 + $0x668] sm:$0xff] %v1465
    %1530 = vst [vmem:[#allocation14 + $0x690] sm:$0xff] %v1466
    %1531 = vst [vmem:[#allocation14 + $0x6b8] sm:$0xff] %v1467
    %1532 = vst [vmem:[#allocation14 + $0x6e0] sm:$0xff] %v1468
    %1533 = vst [vmem:[#allocation14 + $0x708] sm:$0xff] %v1469
    %1534 = vst [vmem:[#allocation14 + $0x730] sm:$0xff] %v1470
    %1535 = vst [vmem:[#allocation14 + $0x758] sm:$0xff] %v1471
    %1536 = vst [vmem:[#allocation14 + $0x780] sm:$0xff] %v1472
    %1537 = vst [vmem:[#allocation14 + $0x7a8] sm:$0xff] %v1473
    %1538 = vst [vmem:[#allocation14 + $0x7d0] sm:$0xff] %v1474
    %1539 = vst [vmem:[#allocation14 + $0x7f8] sm:$0xff] %v1475
    %1540 = vst [vmem:[#allocation14 + $0x820] sm:$0xff] %v1476
    %1541 = vst [vmem:[#allocation14 + $0x848] sm:$0xff] %v1477
    %1542 = vst [vmem:[#allocation14 + $0x870] sm:$0xff] %v1478
    %1543 = vst [vmem:[#allocation14 + $0x898] sm:$0xff] %v1479
    %1544 = vst [vmem:[#allocation14 + $0x8c0] sm:$0xff] %v1480
    %1545 = vst [vmem:[#allocation14 + $0x8e8] sm:$0xff] %v1481
    %1546 = vst [vmem:[#allocation14 + $0x910] sm:$0xff] %v1482
    %1547 = vst [vmem:[#allocation14 + $0x938] sm:$0xff] %v1483
    %1548 = vst [vmem:[#allocation14 + $0x960] sm:$0xff] %v1484
    %1549 = vst [vmem:[#allocation14 + $0x988] sm:$0xff] %v1485
    %1550 = vst [vmem:[#allocation14 + $0x9b0] sm:$0xff] %v1486
    %1551 = vst [vmem:[#allocation14 + $0x9d8] sm:$0xff] %v1487
    %s1552 = scalar_lea.vmem [#allocation12], 3
    %v1553 = vld [vmem:[%s1552] ss:$8 sm:$0x3]
    %v1555 = vperm.slane %v1553, 0
    %v1556 = vperm.slane %v1553, 1
    %v1559 = vadd.f32 %v834, %v1555
    %v1560 = vadd.f32 %v1003, %v1556
    %v1561 = vadd.f32 %v836, %v1555
    %v1562 = vadd.f32 %v1005, %v1556
    %v1563 = vadd.f32 %v839, %v1555
    %v1564 = vadd.f32 %v1008, %v1556
    %v1565 = vadd.f32 %v841, %v1555
    %v1566 = vadd.f32 %v1010, %v1556
    %v1567 = vadd.f32 %v844, %v1555
    %v1568 = vadd.f32 %v1013, %v1556
    %v1569 = vadd.f32 %v846, %v1555
    %v1570 = vadd.f32 %v1015, %v1556
    %v1571 = vadd.f32 %v849, %v1555
    %v1572 = vadd.f32 %v1018, %v1556
    %v1573 = vadd.f32 %v851, %v1555
    %v1574 = vadd.f32 %v1020, %v1556
    %v1575 = vadd.f32 %v854, %v1555
    %v1576 = vadd.f32 %v1023, %v1556
    %v1577 = vadd.f32 %v856, %v1555
    %v1578 = vadd.f32 %v1025, %v1556
    %v1579 = vadd.f32 %v859, %v1555
    %v1580 = vadd.f32 %v1028, %v1556
    %v1581 = vadd.f32 %v861, %v1555
    %v1582 = vadd.f32 %v1030, %v1556
    %v1583 = vadd.f32 %v864, %v1555
    %v1584 = vadd.f32 %v1033, %v1556
    %v1585 = vadd.f32 %v866, %v1555
    %v1586 = vadd.f32 %v1035, %v1556
    %v1587 = vadd.f32 %v869, %v1555
    %v1588 = vadd.f32 %v1038, %v1556
    %v1589 = vadd.f32 %v871, %v1555
    %v1590 = vadd.f32 %v1040, %v1556
    %v1591 = vadd.f32 %v874, %v1555
    %v1592 = vadd.f32 %v1043, %v1556
    %v1593 = vadd.f32 %v876, %v1555
    %v1594 = vadd.f32 %v1045, %v1556
    %v1595 = vadd.f32 %v879, %v1555
    %v1596 = vadd.f32 %v1048, %v1556
    %v1597 = vadd.f32 %v881, %v1555
    %v1598 = vadd.f32 %v1050, %v1556
    %v1599 = vadd.f32 %v884, %v1555
    %v1600 = vadd.f32 %v1053, %v1556
    %v1601 = vadd.f32 %v886, %v1555
    %v1602 = vadd.f32 %v1055, %v1556
    %v1603 = vadd.f32 %v889, %v1555
    %v1604 = vadd.f32 %v1058, %v1556
    %v1605 = vadd.f32 %v891, %v1555
    %v1606 = vadd.f32 %v1060, %v1556
    %v1607 = vadd.f32 %v894, %v1555
    %v1608 = vadd.f32 %v1063, %v1556
    %v1609 = vadd.f32 %v896, %v1555
    %v1610 = vadd.f32 %v1065, %v1556
    %v1611 = vadd.f32 %v899, %v1555
    %v1612 = vadd.f32 %v1068, %v1556
    %v1613 = vadd.f32 %v901, %v1555
    %v1614 = vadd.f32 %v1070, %v1556
    %v1615 = vadd.f32 %v904, %v1555
    %v1616 = vadd.f32 %v1073, %v1556
    %v1617 = vadd.f32 %v906, %v1555
    %v1618 = vadd.f32 %v1075, %v1556
    %v1619 = vadd.f32 %v909, %v1555
    %v1620 = vadd.f32 %v1078, %v1556
    %v1621 = vadd.f32 %v911, %v1555
    %v1622 = vadd.f32 %v1080, %v1556
    %v1623 = vadd.f32 %v914, %v1555
    %v1624 = vadd.f32 %v1083, %v1556
    %v1625 = vadd.f32 %v916, %v1555
    %v1626 = vadd.f32 %v1085, %v1556
    %v1627 = vadd.f32 %v919, %v1555
    %v1628 = vadd.f32 %v1088, %v1556
    %v1629 = vadd.f32 %v921, %v1555
    %v1630 = vadd.f32 %v1090, %v1556
    %v1631 = vadd.f32 %v924, %v1555
    %v1632 = vadd.f32 %v1093, %v1556
    %v1633 = vadd.f32 %v926, %v1555
    %v1634 = vadd.f32 %v1095, %v1556
    %v1635 = vadd.f32 %v929, %v1555
    %v1636 = vadd.f32 %v1098, %v1556
    %v1637 = vadd.f32 %v931, %v1555
    %v1638 = vadd.f32 %v1100, %v1556
    %v1639 = vadd.f32 %v934, %v1555
    %v1640 = vadd.f32 %v1103, %v1556
    %v1641 = vadd.f32 %v936, %v1555
    %v1642 = vadd.f32 %v1105, %v1556
    %v1643 = vadd.f32 %v939, %v1555
    %v1644 = vadd.f32 %v1108, %v1556
    %v1645 = vadd.f32 %v941, %v1555
    %v1646 = vadd.f32 %v1110, %v1556
    %v1647 = vadd.f32 %v944, %v1555
    %v1648 = vadd.f32 %v1113, %v1556
    %v1649 = vadd.f32 %v946, %v1555
    %v1650 = vadd.f32 %v1115, %v1556
    %v1651 = vadd.f32 %v949, %v1555
    %v1652 = vadd.f32 %v1118, %v1556
    %v1653 = vadd.f32 %v951, %v1555
    %v1654 = vadd.f32 %v1120, %v1556
    %v1655 = vadd.f32 %v954, %v1555
    %v1656 = vadd.f32 %v1123, %v1556
    %v1657 = vadd.f32 %v956, %v1555
    %v1658 = vadd.f32 %v1125, %v1556
    %v1659 = vadd.f32 %v959, %v1555
    %v1660 = vadd.f32 %v1128, %v1556
    %v1661 = vadd.f32 %v961, %v1555
    %v1662 = vadd.f32 %v1130, %v1556
    %v1663 = vadd.f32 %v964, %v1555
    %v1664 = vadd.f32 %v1133, %v1556
    %v1665 = vadd.f32 %v966, %v1555
    %v1666 = vadd.f32 %v1135, %v1556
    %v1667 = vadd.f32 %v969, %v1555
    %v1668 = vadd.f32 %v1138, %v1556
    %v1669 = vadd.f32 %v971, %v1555
    %v1670 = vadd.f32 %v1140, %v1556
    %v1671 = vadd.f32 %v974, %v1555
    %v1672 = vadd.f32 %v1143, %v1556
    %v1673 = vadd.f32 %v976, %v1555
    %v1674 = vadd.f32 %v1145, %v1556
    %v1675 = vadd.f32 %v979, %v1555
    %v1676 = vadd.f32 %v1148, %v1556
    %v1677 = vadd.f32 %v981, %v1555
    %v1678 = vadd.f32 %v1150, %v1556
    %v1679 = vadd.f32 %v984, %v1555
    %v1680 = vadd.f32 %v1153, %v1556
    %v1681 = vadd.f32 %v986, %v1555
    %v1682 = vadd.f32 %v1155, %v1556
    %v1683 = vadd.f32 %v989, %v1555
    %v1684 = vadd.f32 %v1158, %v1556
    %v1685 = vadd.f32 %v991, %v1555
    %v1686 = vadd.f32 %v1160, %v1556
    %v1687 = vmax.f32 %v1559, 0.0
    %v1688 = vmax.f32 %v1560, 0.0
    %v1689 = vmax.f32 %v1561, 0.0
    %v1690 = vmax.f32 %v1562, 0.0
    %v1691 = vmax.f32 %v1563, 0.0
    %v1692 = vmax.f32 %v1564, 0.0
    %v1693 = vmax.f32 %v1565, 0.0
    %v1694 = vmax.f32 %v1566, 0.0
    %v1695 = vmax.f32 %v1567, 0.0
    %v1696 = vmax.f32 %v1568, 0.0
    %v1697 = vmax.f32 %v1569, 0.0
    %v1698 = vmax.f32 %v1570, 0.0
    %v1699 = vmax.f32 %v1571, 0.0
    %v1700 = vmax.f32 %v1572, 0.0
    %v1701 = vmax.f32 %v1573, 0.0
    %v1702 = vmax.f32 %v1574, 0.0
    %v1703 = vmax.f32 %v1575, 0.0
    %v1704 = vmax.f32 %v1576, 0.0
    %v1705 = vmax.f32 %v1577, 0.0
    %v1706 = vmax.f32 %v1578, 0.0
    %v1707 = vmax.f32 %v1579, 0.0
    %v1708 = vmax.f32 %v1580, 0.0
    %v1709 = vmax.f32 %v1581, 0.0
    %v1710 = vmax.f32 %v1582, 0.0
    %v1711 = vmax.f32 %v1583, 0.0
    %v1712 = vmax.f32 %v1584, 0.0
    %v1713 = vmax.f32 %v1585, 0.0
    %v1714 = vmax.f32 %v1586, 0.0
    %v1715 = vmax.f32 %v1587, 0.0
    %v1716 = vmax.f32 %v1588, 0.0
    %v1717 = vmax.f32 %v1589, 0.0
    %v1718 = vmax.f32 %v1590, 0.0
    %v1719 = vmax.f32 %v1591, 0.0
    %v1720 = vmax.f32 %v1592, 0.0
    %v1721 = vmax.f32 %v1593, 0.0
    %v1722 = vmax.f32 %v1594, 0.0
    %v1723 = vmax.f32 %v1595, 0.0
    %v1724 = vmax.f32 %v1596, 0.0
    %v1725 = vmax.f32 %v1597, 0.0
    %v1726 = vmax.f32 %v1598, 0.0
    %v1727 = vmax.f32 %v1599, 0.0
    %v1728 = vmax.f32 %v1600, 0.0
    %v1729 = vmax.f32 %v1601, 0.0
    %v1730 = vmax.f32 %v1602, 0.0
    %v1731 = vmax.f32 %v1603, 0.0
    %v1732 = vmax.f32 %v1604, 0.0
    %v1733 = vmax.f32 %v1605, 0.0
    %v1734 = vmax.f32 %v1606, 0.0
    %v1735 = vmax.f32 %v1607, 0.0
    %v1736 = vmax.f32 %v1608, 0.0
    %v1737 = vmax.f32 %v1609, 0.0
    %v1738 = vmax.f32 %v1610, 0.0
    %v1739 = vmax.f32 %v1611, 0.0
    %v1740 = vmax.f32 %v1612, 0.0
    %v1741 = vmax.f32 %v1613, 0.0
    %v1742 = vmax.f32 %v1614, 0.0
    %v1743 = vmax.f32 %v1615, 0.0
    %v1744 = vmax.f32 %v1616, 0.0
    %v1745 = vmax.f32 %v1617, 0.0
    %v1746 = vmax.f32 %v1618, 0.0
    %v1747 = vmax.f32 %v1619, 0.0
    %v1748 = vmax.f32 %v1620, 0.0
    %v1749 = vmax.f32 %v1621, 0.0
    %v1750 = vmax.f32 %v1622, 0.0
    %v1751 = vmax.f32 %v1623, 0.0
    %v1752 = vmax.f32 %v1624, 0.0
    %v1753 = vmax.f32 %v1625, 0.0
    %v1754 = vmax.f32 %v1626, 0.0
    %v1755 = vmax.f32 %v1627, 0.0
    %v1756 = vmax.f32 %v1628, 0.0
    %v1757 = vmax.f32 %v1629, 0.0
    %v1758 = vmax.f32 %v1630, 0.0
    %v1759 = vmax.f32 %v1631, 0.0
    %v1760 = vmax.f32 %v1632, 0.0
    %v1761 = vmax.f32 %v1633, 0.0
    %v1762 = vmax.f32 %v1634, 0.0
    %v1763 = vmax.f32 %v1635, 0.0
    %v1764 = vmax.f32 %v1636, 0.0
    %v1765 = vmax.f32 %v1637, 0.0
    %v1766 = vmax.f32 %v1638, 0.0
    %v1767 = vmax.f32 %v1639, 0.0
    %v1768 = vmax.f32 %v1640, 0.0
    %v1769 = vmax.f32 %v1641, 0.0
    %v1770 = vmax.f32 %v1642, 0.0
    %v1771 = vmax.f32 %v1643, 0.0
    %v1772 = vmax.f32 %v1644, 0.0
    %v1773 = vmax.f32 %v1645, 0.0
    %v1774 = vmax.f32 %v1646, 0.0
    %v1775 = vmax.f32 %v1647, 0.0
    %v1776 = vmax.f32 %v1648, 0.0
    %v1777 = vmax.f32 %v1649, 0.0
    %v1778 = vmax.f32 %v1650, 0.0
    %v1779 = vmax.f32 %v1651, 0.0
    %v1780 = vmax.f32 %v1652, 0.0
    %v1781 = vmax.f32 %v1653, 0.0
    %v1782 = vmax.f32 %v1654, 0.0
    %v1783 = vmax.f32 %v1655, 0.0
    %v1784 = vmax.f32 %v1656, 0.0
    %v1785 = vmax.f32 %v1657, 0.0
    %v1786 = vmax.f32 %v1658, 0.0
    %v1787 = vmax.f32 %v1659, 0.0
    %v1788 = vmax.f32 %v1660, 0.0
    %v1789 = vmax.f32 %v1661, 0.0
    %v1790 = vmax.f32 %v1662, 0.0
    %v1791 = vmax.f32 %v1663, 0.0
    %v1792 = vmax.f32 %v1664, 0.0
    %v1793 = vmax.f32 %v1665, 0.0
    %v1794 = vmax.f32 %v1666, 0.0
    %v1795 = vmax.f32 %v1667, 0.0
    %v1796 = vmax.f32 %v1668, 0.0
    %v1797 = vmax.f32 %v1669, 0.0
    %v1798 = vmax.f32 %v1670, 0.0
    %v1799 = vmax.f32 %v1671, 0.0
    %v1800 = vmax.f32 %v1672, 0.0
    %v1801 = vmax.f32 %v1673, 0.0
    %v1802 = vmax.f32 %v1674, 0.0
    %v1803 = vmax.f32 %v1675, 0.0
    %v1804 = vmax.f32 %v1676, 0.0
    %v1805 = vmax.f32 %v1677, 0.0
    %v1806 = vmax.f32 %v1678, 0.0
    %v1807 = vmax.f32 %v1679, 0.0
    %v1808 = vmax.f32 %v1680, 0.0
    %v1809 = vmax.f32 %v1681, 0.0
    %v1810 = vmax.f32 %v1682, 0.0
    %v1811 = vmax.f32 %v1683, 0.0
    %v1812 = vmax.f32 %v1684, 0.0
    %v1813 = vmax.f32 %v1685, 0.0
    %v1814 = vmax.f32 %v1686, 0.0
    %v1815 = vpack.c.bf16 %v1688, %v1687
    %v1816 = vpack.c.bf16 %v1690, %v1689
    %v1817 = vpack.c.bf16 %v1692, %v1691
    %v1818 = vpack.c.bf16 %v1694, %v1693
    %v1819 = vpack.c.bf16 %v1696, %v1695
    %v1820 = vpack.c.bf16 %v1698, %v1697
    %v1821 = vpack.c.bf16 %v1700, %v1699
    %v1822 = vpack.c.bf16 %v1702, %v1701
    %v1823 = vpack.c.bf16 %v1704, %v1703
    %v1824 = vpack.c.bf16 %v1706, %v1705
    %v1825 = vpack.c.bf16 %v1708, %v1707
    %v1826 = vpack.c.bf16 %v1710, %v1709
    %v1827 = vpack.c.bf16 %v1712, %v1711
    %v1828 = vpack.c.bf16 %v1714, %v1713
    %v1829 = vpack.c.bf16 %v1716, %v1715
    %v1830 = vpack.c.bf16 %v1718, %v1717
    %v1831 = vpack.c.bf16 %v1720, %v1719
    %v1832 = vpack.c.bf16 %v1722, %v1721
    %v1833 = vpack.c.bf16 %v1724, %v1723
    %v1834 = vpack.c.bf16 %v1726, %v1725
    %v1835 = vpack.c.bf16 %v1728, %v1727
    %v1836 = vpack.c.bf16 %v1730, %v1729
    %v1837 = vpack.c.bf16 %v1732, %v1731
    %v1838 = vpack.c.bf16 %v1734, %v1733
    %v1839 = vpack.c.bf16 %v1736, %v1735
    %v1840 = vpack.c.bf16 %v1738, %v1737
    %v1841 = vpack.c.bf16 %v1740, %v1739
    %v1842 = vpack.c.bf16 %v1742, %v1741
    %v1843 = vpack.c.bf16 %v1744, %v1743
    %v1844 = vpack.c.bf16 %v1746, %v1745
    %v1845 = vpack.c.bf16 %v1748, %v1747
    %v1846 = vpack.c.bf16 %v1750, %v1749
    %v1847 = vpack.c.bf16 %v1752, %v1751
    %v1848 = vpack.c.bf16 %v1754, %v1753
    %v1849 = vpack.c.bf16 %v1756, %v1755
    %v1850 = vpack.c.bf16 %v1758, %v1757
    %v1851 = vpack.c.bf16 %v1760, %v1759
    %v1852 = vpack.c.bf16 %v1762, %v1761
    %v1853 = vpack.c.bf16 %v1764, %v1763
    %v1854 = vpack.c.bf16 %v1766, %v1765
    %v1855 = vpack.c.bf16 %v1768, %v1767
    %v1856 = vpack.c.bf16 %v1770, %v1769
    %v1857 = vpack.c.bf16 %v1772, %v1771
    %v1858 = vpack.c.bf16 %v1774, %v1773
    %v1859 = vpack.c.bf16 %v1776, %v1775
    %v1860 = vpack.c.bf16 %v1778, %v1777
    %v1861 = vpack.c.bf16 %v1780, %v1779
    %v1862 = vpack.c.bf16 %v1782, %v1781
    %v1863 = vpack.c.bf16 %v1784, %v1783
    %v1864 = vpack.c.bf16 %v1786, %v1785
    %v1865 = vpack.c.bf16 %v1788, %v1787
    %v1866 = vpack.c.bf16 %v1790, %v1789
    %v1867 = vpack.c.bf16 %v1792, %v1791
    %v1868 = vpack.c.bf16 %v1794, %v1793
    %v1869 = vpack.c.bf16 %v1796, %v1795
    %v1870 = vpack.c.bf16 %v1798, %v1797
    %v1871 = vpack.c.bf16 %v1800, %v1799
    %v1872 = vpack.c.bf16 %v1802, %v1801
    %v1873 = vpack.c.bf16 %v1804, %v1803
    %v1874 = vpack.c.bf16 %v1806, %v1805
    %v1875 = vpack.c.bf16 %v1808, %v1807
    %v1876 = vpack.c.bf16 %v1810, %v1809
    %v1877 = vpack.c.bf16 %v1812, %v1811
    %v1878 = vpack.c.bf16 %v1814, %v1813
    %1879 = vst [vmem:[#allocation14 + $0x18] sm:$0xff] %v1815
    %1880 = vst [vmem:[#allocation14 + $0x40] sm:$0xff] %v1816
    %1881 = vst [vmem:[#allocation14 + $0x68] sm:$0xff] %v1817
    %1882 = vst [vmem:[#allocation14 + $0x90] sm:$0xff] %v1818
    %1883 = vst [vmem:[#allocation14 + $0xb8] sm:$0xff] %v1819
    %1884 = vst [vmem:[#allocation14 + $0xe0] sm:$0xff] %v1820
    %1885 = vst [vmem:[#allocation14 + $0x108] sm:$0xff] %v1821
    %1886 = vst [vmem:[#allocation14 + $0x130] sm:$0xff] %v1822
    %1887 = vst [vmem:[#allocation14 + $0x158] sm:$0xff] %v1823
    %1888 = vst [vmem:[#allocation14 + $0x180] sm:$0xff] %v1824
    %1889 = vst [vmem:[#allocation14 + $0x1a8] sm:$0xff] %v1825
    %1890 = vst [vmem:[#allocation14 + $0x1d0] sm:$0xff] %v1826
    %1891 = vst [vmem:[#allocation14 + $0x1f8] sm:$0xff] %v1827
    %1892 = vst [vmem:[#allocation14 + $0x220] sm:$0xff] %v1828
    %1893 = vst [vmem:[#allocation14 + $0x248] sm:$0xff] %v1829
    %1894 = vst [vmem:[#allocation14 + $0x270] sm:$0xff] %v1830
    %1895 = vst [vmem:[#allocation14 + $0x298] sm:$0xff] %v1831
    %1896 = vst [vmem:[#allocation14 + $0x2c0] sm:$0xff] %v1832
    %1897 = vst [vmem:[#allocation14 + $0x2e8] sm:$0xff] %v1833
    %1898 = vst [vmem:[#allocation14 + $0x310] sm:$0xff] %v1834
    %1899 = vst [vmem:[#allocation14 + $0x338] sm:$0xff] %v1835
    %1900 = vst [vmem:[#allocation14 + $0x360] sm:$0xff] %v1836
    %1901 = vst [vmem:[#allocation14 + $0x388] sm:$0xff] %v1837
    %1902 = vst [vmem:[#allocation14 + $0x3b0] sm:$0xff] %v1838
    %1903 = vst [vmem:[#allocation14 + $0x3d8] sm:$0xff] %v1839
    %1904 = vst [vmem:[#allocation14 + $0x400] sm:$0xff] %v1840
    %1905 = vst [vmem:[#allocation14 + $0x428] sm:$0xff] %v1841
    %1906 = vst [vmem:[#allocation14 + $0x450] sm:$0xff] %v1842
    %1907 = vst [vmem:[#allocation14 + $0x478] sm:$0xff] %v1843
    %1908 = vst [vmem:[#allocation14 + $0x4a0] sm:$0xff] %v1844
    %1909 = vst [vmem:[#allocation14 + $0x4c8] sm:$0xff] %v1845
    %1910 = vst [vmem:[#allocation14 + $0x4f0] sm:$0xff] %v1846
    %1911 = vst [vmem:[#allocation14 + $0x518] sm:$0xff] %v1847
    %1912 = vst [vmem:[#allocation14 + $0x540] sm:$0xff] %v1848
    %1913 = vst [vmem:[#allocation14 + $0x568] sm:$0xff] %v1849
    %1914 = vst [vmem:[#allocation14 + $0x590] sm:$0xff] %v1850
    %1915 = vst [vmem:[#allocation14 + $0x5b8] sm:$0xff] %v1851
    %1916 = vst [vmem:[#allocation14 + $0x5e0] sm:$0xff] %v1852
    %1917 = vst [vmem:[#allocation14 + $0x608] sm:$0xff] %v1853
    %1918 = vst [vmem:[#allocation14 + $0x630] sm:$0xff] %v1854
    %1919 = vst [vmem:[#allocation14 + $0x658] sm:$0xff] %v1855
    %1920 = vst [vmem:[#allocation14 + $0x680] sm:$0xff] %v1856
    %1921 = vst [vmem:[#allocation14 + $0x6a8] sm:$0xff] %v1857
    %1922 = vst [vmem:[#allocation14 + $0x6d0] sm:$0xff] %v1858
    %1923 = vst [vmem:[#allocation14 + $0x6f8] sm:$0xff] %v1859
    %1924 = vst [vmem:[#allocation14 + $0x720] sm:$0xff] %v1860
    %1925 = vst [vmem:[#allocation14 + $0x748] sm:$0xff] %v1861
    %1926 = vst [vmem:[#allocation14 + $0x770] sm:$0xff] %v1862
    %1927 = vst [vmem:[#allocation14 + $0x798] sm:$0xff] %v1863
    %1928 = vst [vmem:[#allocation14 + $0x7c0] sm:$0xff] %v1864
    %1929 = vst [vmem:[#allocation14 + $0x7e8] sm:$0xff] %v1865
    %1930 = vst [vmem:[#allocation14 + $0x810] sm:$0xff] %v1866
    %1931 = vst [vmem:[#allocation14 + $0x838] sm:$0xff] %v1867
    %1932 = vst [vmem:[#allocation14 + $0x860] sm:$0xff] %v1868
    %1933 = vst [vmem:[#allocation14 + $0x888] sm:$0xff] %v1869
    %1934 = vst [vmem:[#allocation14 + $0x8b0] sm:$0xff] %v1870
    %1935 = vst [vmem:[#allocation14 + $0x8d8] sm:$0xff] %v1871
    %1936 = vst [vmem:[#allocation14 + $0x900] sm:$0xff] %v1872
    %1937 = vst [vmem:[#allocation14 + $0x928] sm:$0xff] %v1873
    %1938 = vst [vmem:[#allocation14 + $0x950] sm:$0xff] %v1874
    %1939 = vst [vmem:[#allocation14 + $0x978] sm:$0xff] %v1875
    %1940 = vst [vmem:[#allocation14 + $0x9a0] sm:$0xff] %v1876
    %1941 = vst [vmem:[#allocation14 + $0x9c8] sm:$0xff] %v1877
    %1942 = vst [vmem:[#allocation14 + $0x9f0] sm:$0xff] %v1878
    %1943 = vst [vmem:[#allocation2] sm:$0xff] 0
    %vm1944 = vcmask 257024
    %1945 = vst.msk [vmem:[#allocation2 + $0x8] sm:$0xf] %vm1944, 0
    %1946 = vst [vmem:[#allocation2 + $0xc] sm:$0xff] 0
    %1947 = vst.msk [vmem:[#allocation2 + $0x14] sm:$0xf] %vm1944, 0
    %1948 = vst [vmem:[#allocation2 + $0x18] sm:$0xff] 0
    %1949 = vst.msk [vmem:[#allocation2 + $0x20] sm:$0xf] %vm1944, 0
    %1950 = vst [vmem:[#allocation2 + $0x24] sm:$0xff] 0
    %1951 = vst.msk [vmem:[#allocation2 + $0x2c] sm:$0xf] %vm1944, 0
    %1952 = vst [vmem:[#allocation2 + $0x30] sm:$0xff] 0
    %1953 = vst.msk [vmem:[#allocation2 + $0x38] sm:$0xf] %vm1944, 0
    %1954 = vst [vmem:[#allocation2 + $0x3c] sm:$0xff] 0
    %1955 = vst.msk [vmem:[#allocation2 + $0x44] sm:$0xf] %vm1944, 0
    %1956 = vst [vmem:[#allocation2 + $0x48] sm:$0xff] 0
    %1957 = vst.msk [vmem:[#allocation2 + $0x50] sm:$0xf] %vm1944, 0
    %1958 = vst [vmem:[#allocation2 + $0x54] sm:$0xff] 0
    %1959 = vst.msk [vmem:[#allocation2 + $0x5c] sm:$0xf] %vm1944, 0
    %1960 = vst [vmem:[#allocation2 + $0x60] sm:$0xff] 0
    %1961 = vst.msk [vmem:[#allocation2 + $0x68] sm:$0xf] %vm1944, 0
    %1962 = vst [vmem:[#allocation2 + $0x6c] sm:$0xff] 0
    %1963 = vst.msk [vmem:[#allocation2 + $0x74] sm:$0xf] %vm1944, 0
    %1964 = vst [vmem:[#allocation2 + $0x78] sm:$0xff] 0
    %1965 = vst.msk [vmem:[#allocation2 + $0x80] sm:$0xf] %vm1944, 0
    %1966 = vst [vmem:[#allocation2 + $0x84] sm:$0xff] 0
    %1967 = vst.msk [vmem:[#allocation2 + $0x8c] sm:$0xf] %vm1944, 0
    %1968 = vst [vmem:[#allocation2 + $0x90] sm:$0xff] 0
    %1969 = vst.msk [vmem:[#allocation2 + $0x98] sm:$0xf] %vm1944, 0
    %1970 = vst [vmem:[#allocation2 + $0x9c] sm:$0xff] 0
    %1971 = vst.msk [vmem:[#allocation2 + $0xa4] sm:$0xf] %vm1944, 0
    %1972 = vst [vmem:[#allocation2 + $0xa8] sm:$0xff] 0
    %1973 = vst.msk [vmem:[#allocation2 + $0xb0] sm:$0xf] %vm1944, 0
    %1974 = vst [vmem:[#allocation2 + $0xb4] sm:$0xff] 0
    %1975 = vst.msk [vmem:[#allocation2 + $0xbc] sm:$0xf] %vm1944, 0
    %1976 = vst [vmem:[#allocation2 + $0xc0] sm:$0xff] 0
    %1977 = vst.msk [vmem:[#allocation2 + $0xc8] sm:$0xf] %vm1944, 0
    %1978 = vst [vmem:[#allocation2 + $0xcc] sm:$0xff] 0
    %1979 = vst.msk [vmem:[#allocation2 + $0xd4] sm:$0xf] %vm1944, 0
    %1980 = vst [vmem:[#allocation2 + $0xd8] sm:$0xff] 0
    %1981 = vst.msk [vmem:[#allocation2 + $0xe0] sm:$0xf] %vm1944, 0
    %1982 = vst [vmem:[#allocation2 + $0xe4] sm:$0xff] 0
    %1983 = vst.msk [vmem:[#allocation2 + $0xec] sm:$0xf] %vm1944, 0
    %1984 = vst [vmem:[#allocation2 + $0xf0] sm:$0xff] 0
    %1985 = vst.msk [vmem:[#allocation2 + $0xf8] sm:$0xf] %vm1944, 0
    %1986 = vst [vmem:[#allocation2 + $0xfc] sm:$0xff] 0
    %1987 = vst.msk [vmem:[#allocation2 + $0x104] sm:$0xf] %vm1944, 0
    %1988 = vst [vmem:[#allocation2 + $0x108] sm:$0xff] 0
    %1989 = vst.msk [vmem:[#allocation2 + $0x110] sm:$0xf] %vm1944, 0
    %1990 = vst [vmem:[#allocation2 + $0x114] sm:$0xff] 0
    %1991 = vst.msk [vmem:[#allocation2 + $0x11c] sm:$0xf] %vm1944, 0
    %1992 = vst [vmem:[#allocation2 + $0x120] sm:$0xff] 0
    %1993 = vst.msk [vmem:[#allocation2 + $0x128] sm:$0xf] %vm1944, 0
    %1994 = vst [vmem:[#allocation2 + $0x12c] sm:$0xff] 0
    %1995 = vst.msk [vmem:[#allocation2 + $0x134] sm:$0xf] %vm1944, 0
    %1996 = vst [vmem:[#allocation2 + $0x138] sm:$0xff] 0
    %1997 = vst.msk [vmem:[#allocation2 + $0x140] sm:$0xf] %vm1944, 0
    %1998 = vst [vmem:[#allocation2 + $0x144] sm:$0xff] 0
    %1999 = vst.msk [vmem:[#allocation2 + $0x14c] sm:$0xf] %vm1944, 0
    %2000 = vst [vmem:[#allocation2 + $0x150] sm:$0xff] 0
    %2001 = vst.msk [vmem:[#allocation2 + $0x158] sm:$0xf] %vm1944, 0
    %2002 = vst [vmem:[#allocation2 + $0x15c] sm:$0xff] 0
    %2003 = vst.msk [vmem:[#allocation2 + $0x164] sm:$0xf] %vm1944, 0
    %2004 = vst [vmem:[#allocation2 + $0x168] sm:$0xff] 0
    %2005 = vst.msk [vmem:[#allocation2 + $0x170] sm:$0xf] %vm1944, 0
    %2006 = vst [vmem:[#allocation2 + $0x174] sm:$0xff] 0
    %2007 = vst.msk [vmem:[#allocation2 + $0x17c] sm:$0xf] %vm1944, 0
    %2008 = vst [vmem:[#allocation2 + $0x180] sm:$0xff] 0
    %2009 = vst.msk [vmem:[#allocation2 + $0x188] sm:$0xf] %vm1944, 0
    %2010 = vst [vmem:[#allocation2 + $0x18c] sm:$0xff] 0
    %2011 = vst.msk [vmem:[#allocation2 + $0x194] sm:$0xf] %vm1944, 0
    %2012 = vst [vmem:[#allocation2 + $0x198] sm:$0xff] 0
    %2013 = vst.msk [vmem:[#allocation2 + $0x1a0] sm:$0xf] %vm1944, 0
    %2014 = vst [vmem:[#allocation2 + $0x1a4] sm:$0xff] 0
    %2015 = vst.msk [vmem:[#allocation2 + $0x1ac] sm:$0xf] %vm1944, 0
    %2016 = vst [vmem:[#allocation2 + $0x1b0] sm:$0xff] 0
    %2017 = vst.msk [vmem:[#allocation2 + $0x1b8] sm:$0xf] %vm1944, 0
    %2018 = vst [vmem:[#allocation2 + $0x1bc] sm:$0xff] 0
    %2019 = vst.msk [vmem:[#allocation2 + $0x1c4] sm:$0xf] %vm1944, 0
    %2020 = vst [vmem:[#allocation2 + $0x1c8] sm:$0xff] 0
    %2021 = vst.msk [vmem:[#allocation2 + $0x1d0] sm:$0xf] %vm1944, 0
    %2022 = vst [vmem:[#allocation2 + $0x1d4] sm:$0xff] 0
    %2023 = vst.msk [vmem:[#allocation2 + $0x1dc] sm:$0xf] %vm1944, 0
    %2024 = vst [vmem:[#allocation2 + $0x1e0] sm:$0xff] 0
    %2025 = vst.msk [vmem:[#allocation2 + $0x1e8] sm:$0xf] %vm1944, 0
    %2026 = vst [vmem:[#allocation2 + $0x1ec] sm:$0xff] 0
    %2027 = vst.msk [vmem:[#allocation2 + $0x1f4] sm:$0xf] %vm1944, 0
    %2028 = vst [vmem:[#allocation2 + $0x1f8] sm:$0xff] 0
    %2029 = vst.msk [vmem:[#allocation2 + $0x200] sm:$0xf] %vm1944, 0
    %2030 = vst [vmem:[#allocation2 + $0x204] sm:$0xff] 0
    %2031 = vst.msk [vmem:[#allocation2 + $0x20c] sm:$0xf] %vm1944, 0
    %2032 = vst [vmem:[#allocation2 + $0x210] sm:$0xff] 0
    %2033 = vst.msk [vmem:[#allocation2 + $0x218] sm:$0xf] %vm1944, 0
    %2034 = vst [vmem:[#allocation2 + $0x21c] sm:$0xff] 0
    %2035 = vst.msk [vmem:[#allocation2 + $0x224] sm:$0xf] %vm1944, 0
    %2036 = vst [vmem:[#allocation2 + $0x228] sm:$0xff] 0
    %2037 = vst.msk [vmem:[#allocation2 + $0x230] sm:$0xf] %vm1944, 0
    %2038 = vst [vmem:[#allocation2 + $0x234] sm:$0xff] 0
    %2039 = vst.msk [vmem:[#allocation2 + $0x23c] sm:$0xf] %vm1944, 0
    %2040 = vst [vmem:[#allocation2 + $0x240] sm:$0xff] 0
    %2041 = vst.msk [vmem:[#allocation2 + $0x248] sm:$0xf] %vm1944, 0
    %2042 = vst [vmem:[#allocation2 + $0x24c] sm:$0xff] 0
    %2043 = vst.msk [vmem:[#allocation2 + $0x254] sm:$0xf] %vm1944, 0
    %2044 = vst [vmem:[#allocation2 + $0x258] sm:$0xff] 0
    %2045 = vst.msk [vmem:[#allocation2 + $0x260] sm:$0xf] %vm1944, 0
    %2046 = vst [vmem:[#allocation2 + $0x264] sm:$0xff] 0
    %2047 = vst.msk [vmem:[#allocation2 + $0x26c] sm:$0xf] %vm1944, 0
    %2048 = vst [vmem:[#allocation2 + $0x270] sm:$0xff] 0
    %2049 = vst.msk [vmem:[#allocation2 + $0x278] sm:$0xf] %vm1944, 0
    %2050 = vst [vmem:[#allocation2 + $0x27c] sm:$0xff] 0
    %2051 = vst.msk [vmem:[#allocation2 + $0x284] sm:$0xf] %vm1944, 0
    %2052 = vst [vmem:[#allocation2 + $0x288] sm:$0xff] 0
    %2053 = vst.msk [vmem:[#allocation2 + $0x290] sm:$0xf] %vm1944, 0
    %2054 = vst [vmem:[#allocation2 + $0x294] sm:$0xff] 0
    %2055 = vst.msk [vmem:[#allocation2 + $0x29c] sm:$0xf] %vm1944, 0
    %2056 = vst [vmem:[#allocation2 + $0x2a0] sm:$0xff] 0
    %2057 = vst.msk [vmem:[#allocation2 + $0x2a8] sm:$0xf] %vm1944, 0
    %2058 = vst [vmem:[#allocation2 + $0x2ac] sm:$0xff] 0
    %2059 = vst.msk [vmem:[#allocation2 + $0x2b4] sm:$0xf] %vm1944, 0
    %2060 = vst [vmem:[#allocation2 + $0x2b8] sm:$0xff] 0
    %2061 = vst.msk [vmem:[#allocation2 + $0x2c0] sm:$0xf] %vm1944, 0
    %2062 = vst [vmem:[#allocation2 + $0x2c4] sm:$0xff] 0
    %2063 = vst.msk [vmem:[#allocation2 + $0x2cc] sm:$0xf] %vm1944, 0
    %2064 = vst [vmem:[#allocation2 + $0x2d0] sm:$0xff] 0
    %2065 = vst.msk [vmem:[#allocation2 + $0x2d8] sm:$0xf] %vm1944, 0
    %2066 = vst [vmem:[#allocation2 + $0x2dc] sm:$0xff] 0
    %2067 = vst.msk [vmem:[#allocation2 + $0x2e4] sm:$0xf] %vm1944, 0
    %2068 = vst [vmem:[#allocation2 + $0x2e8] sm:$0xff] 0
    %2069 = vst.msk [vmem:[#allocation2 + $0x2f0] sm:$0xf] %vm1944, 0
    %2070 = vst [vmem:[#allocation2 + $0x2f4] sm:$0xff] 0
    %2071 = vst.msk [vmem:[#allocation2 + $0x2fc] sm:$0xf] %vm1944, 0
    %v2072 = vld [vmem:[#allocation3] sm:$0x3]
    %v2073 = vld [vmem:[#allocation3 + $0x8] sm:$0x3]
    %v2074 = vld [vmem:[#allocation3 + $0x10] sm:$0x3]
    %v2075 = vld [vmem:[#allocation3 + $0x18] sm:$0x3]
    %v2080 = vrot.slane %v2072, 6
    %v2081 = vrot.slane %v2073, 6
    %v2082 = vrot.slane %v2074, 6
    %v2083 = vrot.slane %v2075, 6
    %s2088 = scalar_lea.vmem [#allocation2], 288
    %vm2089 = vcmask 257026
    %2090 = vst.msk [vmem:[%s2088 + $0xc] sm:$0xc] %vm2089, %v2080
    %2091 = vst.msk [vmem:[%s2088 + $0x24] sm:$0xc] %vm2089, %v2081
    %2092 = vst.msk [vmem:[%s2088 + $0x3c] sm:$0xc] %vm2089, %v2082
    %2093 = vst.msk [vmem:[%s2088 + $0x54] sm:$0xc] %vm2089, %v2083
    %v2094 = vld [vmem:[#allocation3] sm:$0xf]
    %v2095 = vld [vmem:[#allocation3 + $0x4] sm:$0xf]
    %v2096 = vld [vmem:[#allocation3 + $0x8] sm:$0xf]
    %v2097 = vld [vmem:[#allocation3 + $0xc] sm:$0xf]
    %v2098 = vld [vmem:[#allocation3 + $0x10] sm:$0xf]
    %v2099 = vld [vmem:[#allocation3 + $0x14] sm:$0xf]
    %v2100 = vld [vmem:[#allocation3 + $0x18] sm:$0xf]
    %v2101 = vld [vmem:[#allocation3 + $0x1c] sm:$0xf]
    %2110 = vrot.lane.b32.xlu0 %v2094, 32
    %v2111 = vpop.permute.xlu0 %2110
    %2112 = vrot.lane.b32.xlu0 %v2095, 32
    %v2113 = vpop.permute.xlu0 %2112
    %2114 = vrot.lane.b32.xlu0 %v2096, 32
    %v2115 = vpop.permute.xlu0 %2114
    %2116 = vrot.lane.b32.xlu0 %v2097, 32
    %v2117 = vpop.permute.xlu0 %2116
    %2118 = vrot.lane.b32.xlu0 %v2098, 32
    %v2119 = vpop.permute.xlu0 %2118
    %2120 = vrot.lane.b32.xlu0 %v2099, 32
    %v2121 = vpop.permute.xlu0 %2120
    %2122 = vrot.lane.b32.xlu0 %v2100, 32
    %v2123 = vpop.permute.xlu0 %2122
    %2124 = vrot.lane.b32.xlu0 %v2101, 32
    %v2125 = vpop.permute.xlu0 %2124
    %vm2134 = vcmask 519424
    %2135 = vst.msk [vmem:[%s2088] sm:$0xf] %vm2134, %v2111
    %2136 = vst.msk [vmem:[%s2088 + $0xc] sm:$0xf] %vm2134, %v2113
    %2137 = vst.msk [vmem:[%s2088 + $0x18] sm:$0xf] %vm2134, %v2115
    %2138 = vst.msk [vmem:[%s2088 + $0x24] sm:$0xf] %vm2134, %v2117
    %2139 = vst.msk [vmem:[%s2088 + $0x30] sm:$0xf] %vm2134, %v2119
    %2140 = vst.msk [vmem:[%s2088 + $0x3c] sm:$0xf] %vm2134, %v2121
    %2141 = vst.msk [vmem:[%s2088 + $0x48] sm:$0xf] %vm2134, %v2123
    %2142 = vst.msk [vmem:[%s2088 + $0x54] sm:$0xf] %vm2134, %v2125
    %v2143 = vld [vmem:[#allocation3 + $0x4] sm:$0xc]
    %v2144 = vld [vmem:[#allocation3 + $0xc] sm:$0xc]
    %v2145 = vld [vmem:[#allocation3 + $0x14] sm:$0xc]
    %v2146 = vld [vmem:[#allocation3 + $0x1c] sm:$0xc]
    %v2151 = vrot.slane %v2143, 6
    %v2152 = vrot.slane %v2151, 4
    %v2153 = vrot.slane %v2144, 6
    %v2154 = vrot.slane %v2153, 4
    %v2155 = vrot.slane %v2145, 6
    %v2156 = vrot.slane %v2155, 4
    %v2157 = vrot.slane %v2146, 6
    %v2158 = vrot.slane %v2157, 4
    %2159 = vrot.lane.b32.xlu0 %v2152, 64
    %v2160 = vpop.permute.xlu0 %2159
    %2161 = vrot.lane.b32.xlu0 %v2154, 64
    %v2162 = vpop.permute.xlu0 %2161
    %2163 = vrot.lane.b32.xlu0 %v2156, 64
    %v2164 = vpop.permute.xlu0 %2163
    %2165 = vrot.lane.b32.xlu0 %v2158, 64
    %v2166 = vpop.permute.xlu0 %2165
    %vm2171 = vcmask 779776
    %2172 = vst.msk [vmem:[%s2088] sm:$0x3] %vm2171, %v2160
    %2173 = vst.msk [vmem:[%s2088 + $0x18] sm:$0x3] %vm2171, %v2162
    %2174 = vst.msk [vmem:[%s2088 + $0x30] sm:$0x3] %vm2171, %v2164
    %2175 = vst.msk [vmem:[%s2088 + $0x48] sm:$0x3] %vm2171, %v2166
    %v2176 = vld [vmem:[#allocation3] sm:$0x3]
    %v2177 = vld [vmem:[#allocation3 + $0x8] sm:$0x3]
    %v2178 = vld [vmem:[#allocation3 + $0x10] sm:$0x3]
    %v2179 = vld [vmem:[#allocation3 + $0x18] sm:$0x3]
    %v2180 = vld [vmem:[#allocation3 + $0x20] sm:$0x3]
    %v2181 = vld [vmem:[#allocation3 + $0x28] sm:$0x3]
    %v2182 = vld [vmem:[#allocation3 + $0x30] sm:$0x3]
    %v2183 = vld [vmem:[#allocation3 + $0x38] sm:$0x3]
    %v2184 = vld [vmem:[#allocation3 + $0x40] sm:$0x3]
    %v2185 = vld [vmem:[#allocation3 + $0x48] sm:$0x3]
    %v2186 = vld [vmem:[#allocation3 + $0x50] sm:$0x3]
    %v2187 = vld [vmem:[#allocation3 + $0x58] sm:$0x3]
    %v2188 = vld [vmem:[#allocation3 + $0x60] sm:$0x3]
    %v2189 = vld [vmem:[#allocation3 + $0x68] sm:$0x3]
    %v2190 = vld [vmem:[#allocation3 + $0x70] sm:$0x3]
    %v2191 = vld [vmem:[#allocation3 + $0x78] sm:$0x3]
    %v2208 = vrot.slane %v2176, 6
    %v2209 = vrot.slane %v2177, 6
    %v2210 = vrot.slane %v2178, 6
    %v2211 = vrot.slane %v2179, 6
    %v2212 = vrot.slane %v2180, 6
    %v2213 = vrot.slane %v2181, 6
    %v2214 = vrot.slane %v2182, 6
    %v2215 = vrot.slane %v2183, 6
    %v2216 = vrot.slane %v2184, 6
    %v2217 = vrot.slane %v2185, 6
    %v2218 = vrot.slane %v2186, 6
    %v2219 = vrot.slane %v2187, 6
    %v2220 = vrot.slane %v2188, 6
    %v2221 = vrot.slane %v2189, 6
    %v2222 = vrot.slane %v2190, 6
    %v2223 = vrot.slane %v2191, 6
    %2224 = vrot.lane.b32.xlu0 %v2208, 96
    %v2225 = vpop.permute.xlu0 %2224
    %2226 = vrot.lane.b32.xlu0 %v2209, 96
    %v2227 = vpop.permute.xlu0 %2226
    %2228 = vrot.lane.b32.xlu0 %v2210, 96
    %v2229 = vpop.permute.xlu0 %2228
    %2230 = vrot.lane.b32.xlu0 %v2211, 96
    %v2231 = vpop.permute.xlu0 %2230
    %2232 = vrot.lane.b32.xlu0 %v2212, 96
    %v2233 = vpop.permute.xlu0 %2232
    %2234 = vrot.lane.b32.xlu0 %v2213, 96
    %v2235 = vpop.permute.xlu0 %2234
    %2236 = vrot.lane.b32.xlu0 %v2214, 96
    %v2237 = vpop.permute.xlu0 %2236
    %2238 = vrot.lane.b32.xlu0 %v2215, 96
    %v2239 = vpop.permute.xlu0 %2238
    %2240 = vrot.lane.b32.xlu0 %v2216, 96
    %v2241 = vpop.permute.xlu0 %2240
    %2242 = vrot.lane.b32.xlu0 %v2217, 96
    %v2243 = vpop.permute.xlu0 %2242
    %2244 = vrot.lane.b32.xlu0 %v2218, 96
    %v2245 = vpop.permute.xlu0 %2244
    %2246 = vrot.lane.b32.xlu0 %v2219, 96
    %v2247 = vpop.permute.xlu0 %2246
    %2248 = vrot.lane.b32.xlu0 %v2220, 96
    %v2249 = vpop.permute.xlu0 %2248
    %2250 = vrot.lane.b32.xlu0 %v2221, 96
    %v2251 = vpop.permute.xlu0 %2250
    %2252 = vrot.lane.b32.xlu0 %v2222, 96
    %v2253 = vpop.permute.xlu0 %2252
    %2254 = vrot.lane.b32.xlu0 %v2223, 96
    %v2255 = vpop.permute.xlu0 %2254
    %vm2272 = vcmask 1044226
    %2273 = vst.msk [vmem:[#allocation2 + $0xc] sm:$0xc] %vm2272, %v2225
    %2274 = vst.msk [vmem:[#allocation2 + $0x24] sm:$0xc] %vm2272, %v2227
    %2275 = vst.msk [vmem:[#allocation2 + $0x3c] sm:$0xc] %vm2272, %v2229
    %2276 = vst.msk [vmem:[#allocation2 + $0x54] sm:$0xc] %vm2272, %v2231
    %2277 = vst.msk [vmem:[#allocation2 + $0x6c] sm:$0xc] %vm2272, %v2233
    %2278 = vst.msk [vmem:[#allocation2 + $0x84] sm:$0xc] %vm2272, %v2235
    %2279 = vst.msk [vmem:[#allocation2 + $0x9c] sm:$0xc] %vm2272, %v2237
    %2280 = vst.msk [vmem:[#allocation2 + $0xb4] sm:$0xc] %vm2272, %v2239
    %2281 = vst.msk [vmem:[#allocation2 + $0xcc] sm:$0xc] %vm2272, %v2241
    %2282 = vst.msk [vmem:[#allocation2 + $0xe4] sm:$0xc] %vm2272, %v2243
    %2283 = vst.msk [vmem:[#allocation2 + $0xfc] sm:$0xc] %vm2272, %v2245
    %2284 = vst.msk [vmem:[#allocation2 + $0x114] sm:$0xc] %vm2272, %v2247
    %2285 = vst.msk [vmem:[#allocation2 + $0x12c] sm:$0xc] %vm2272, %v2249
    %2286 = vst.msk [vmem:[#allocation2 + $0x144] sm:$0xc] %vm2272, %v2251
    %2287 = vst.msk [vmem:[#allocation2 + $0x15c] sm:$0xc] %vm2272, %v2253
    %2288 = vst.msk [vmem:[#allocation2 + $0x174] sm:$0xc] %vm2272, %v2255
    %v2289 = vld [vmem:[#allocation3] sm:$0xf]
    %v2290 = vld [vmem:[#allocation3 + $0x4] sm:$0xf]
    %v2291 = vld [vmem:[#allocation3 + $0x8] sm:$0xf]
    %v2292 = vld [vmem:[#allocation3 + $0xc] sm:$0xf]
    %v2293 = vld [vmem:[#allocation3 + $0x10] sm:$0xf]
    %v2294 = vld [vmem:[#allocation3 + $0x14] sm:$0xf]
    %v2295 = vld [vmem:[#allocation3 + $0x18] sm:$0xf]
    %v2296 = vld [vmem:[#allocation3 + $0x1c] sm:$0xf]
    %v2297 = vld [vmem:[#allocation3 + $0x20] sm:$0xf]
    %v2298 = vld [vmem:[#allocation3 + $0x24] sm:$0xf]
    %v2299 = vld [vmem:[#allocation3 + $0x28] sm:$0xf]
    %v2300 = vld [vmem:[#allocation3 + $0x2c] sm:$0xf]
    %v2301 = vld [vmem:[#allocation3 + $0x30] sm:$0xf]
    %v2302 = vld [vmem:[#allocation3 + $0x34] sm:$0xf]
    %v2303 = vld [vmem:[#allocation3 + $0x38] sm:$0xf]
    %v2304 = vld [vmem:[#allocation3 + $0x3c] sm:$0xf]
    %v2305 = vld [vmem:[#allocation3 + $0x40] sm:$0xf]
    %v2306 = vld [vmem:[#allocation3 + $0x44] sm:$0xf]
    %v2307 = vld [vmem:[#allocation3 + $0x48] sm:$0xf]
    %v2308 = vld [vmem:[#allocation3 + $0x4c] sm:$0xf]
    %v2309 = vld [vmem:[#allocation3 + $0x50] sm:$0xf]
    %v2310 = vld [vmem:[#allocation3 + $0x54] sm:$0xf]
    %v2311 = vld [vmem:[#allocation3 + $0x58] sm:$0xf]
    %v2312 = vld [vmem:[#allocation3 + $0x5c] sm:$0xf]
    %v2313 = vld [vmem:[#allocation3 + $0x60] sm:$0xf]
    %v2314 = vld [vmem:[#allocation3 + $0x64] sm:$0xf]
    %v2315 = vld [vmem:[#allocation3 + $0x68] sm:$0xf]
    %v2316 = vld [vmem:[#allocation3 + $0x6c] sm:$0xf]
    %v2317 = vld [vmem:[#allocation3 + $0x70] sm:$0xf]
    %v2318 = vld [vmem:[#allocation3 + $0x74] sm:$0xf]
    %v2319 = vld [vmem:[#allocation3 + $0x78] sm:$0xf]
    %v2320 = vld [vmem:[#allocation3 + $0x7c] sm:$0xf]
    %2321 = vst.msk [vmem:[#allocation2 + $0x4] sm:$0xf] %vm1944, %v2289
    %2322 = vst.msk [vmem:[#allocation2 + $0x10] sm:$0xf] %vm1944, %v2290
    %2323 = vst.msk [vmem:[#allocation2 + $0x1c] sm:$0xf] %vm1944, %v2291
    %2324 = vst.msk [vmem:[#allocation2 + $0x28] sm:$0xf] %vm1944, %v2292
    %2325 = vst.msk [vmem:[#allocation2 + $0x34] sm:$0xf] %vm1944, %v2293
    %2326 = vst.msk [vmem:[#allocation2 + $0x40] sm:$0xf] %vm1944, %v2294
    %2327 = vst.msk [vmem:[#allocation2 + $0x4c] sm:$0xf] %vm1944, %v2295
    %2328 = vst.msk [vmem:[#allocation2 + $0x58] sm:$0xf] %vm1944, %v2296
    %2329 = vst.msk [vmem:[#allocation2 + $0x64] sm:$0xf] %vm1944, %v2297
    %2330 = vst.msk [vmem:[#allocation2 + $0x70] sm:$0xf] %vm1944, %v2298
    %2331 = vst.msk [vmem:[#allocation2 + $0x7c] sm:$0xf] %vm1944, %v2299
    %2332 = vst.msk [vmem:[#allocation2 + $0x88] sm:$0xf] %vm1944, %v2300
    %2333 = vst.msk [vmem:[#allocation2 + $0x94] sm:$0xf] %vm1944, %v2301
    %2334 = vst.msk [vmem:[#allocation2 + $0xa0] sm:$0xf] %vm1944, %v2302
    %2335 = vst.msk [vmem:[#allocation2 + $0xac] sm:$0xf] %vm1944, %v2303
    %2336 = vst.msk [vmem:[#allocation2 + $0xb8] sm:$0xf] %vm1944, %v2304
    %2337 = vst.msk [vmem:[#allocation2 + $0xc4] sm:$0xf] %vm1944, %v2305
    %2338 = vst.msk [vmem:[#allocation2 + $0xd0] sm:$0xf] %vm1944, %v2306
    %2339 = vst.msk [vmem:[#allocation2 + $0xdc] sm:$0xf] %vm1944, %v2307
    %2340 = vst.msk [vmem:[#allocation2 + $0xe8] sm:$0xf] %vm1944, %v2308
    %2341 = vst.msk [vmem:[#allocation2 + $0xf4] sm:$0xf] %vm1944, %v2309
    %2342 = vst.msk [vmem:[#allocation2 + $0x100] sm:$0xf] %vm1944, %v2310
    %2343 = vst.msk [vmem:[#allocation2 + $0x10c] sm:$0xf] %vm1944, %v2311
    %2344 = vst.msk [vmem:[#allocation2 + $0x118] sm:$0xf] %vm1944, %v2312
    %2345 = vst.msk [vmem:[#allocation2 + $0x124] sm:$0xf] %vm1944, %v2313
    %2346 = vst.msk [vmem:[#allocation2 + $0x130] sm:$0xf] %vm1944, %v2314
    %2347 = vst.msk [vmem:[#allocation2 + $0x13c] sm:$0xf] %vm1944, %v2315
    %2348 = vst.msk [vmem:[#allocation2 + $0x148] sm:$0xf] %vm1944, %v2316
    %2349 = vst.msk [vmem:[#allocation2 + $0x154] sm:$0xf] %vm1944, %v2317
    %2350 = vst.msk [vmem:[#allocation2 + $0x160] sm:$0xf] %vm1944, %v2318
    %2351 = vst.msk [vmem:[#allocation2 + $0x16c] sm:$0xf] %vm1944, %v2319
    %2352 = vst.msk [vmem:[#allocation2 + $0x178] sm:$0xf] %vm1944, %v2320
    %v2353 = vld [vmem:[#allocation3 + $0x4] sm:$0xc]
    %v2354 = vld [vmem:[#allocation3 + $0xc] sm:$0xc]
    %v2355 = vld [vmem:[#allocation3 + $0x14] sm:$0xc]
    %v2356 = vld [vmem:[#allocation3 + $0x1c] sm:$0xc]
    %v2357 = vld [vmem:[#allocation3 + $0x24] sm:$0xc]
    %v2358 = vld [vmem:[#allocation3 + $0x2c] sm:$0xc]
    %v2359 = vld [vmem:[#allocation3 + $0x34] sm:$0xc]
    %v2360 = vld [vmem:[#allocation3 + $0x3c] sm:$0xc]
    %v2361 = vld [vmem:[#allocation3 + $0x44] sm:$0xc]
    %v2362 = vld [vmem:[#allocation3 + $0x4c] sm:$0xc]
    %v2363 = vld [vmem:[#allocation3 + $0x54] sm:$0xc]
    %v2364 = vld [vmem:[#allocation3 + $0x5c] sm:$0xc]
    %v2365 = vld [vmem:[#allocation3 + $0x64] sm:$0xc]
    %v2366 = vld [vmem:[#allocation3 + $0x6c] sm:$0xc]
    %v2367 = vld [vmem:[#allocation3 + $0x74] sm:$0xc]
    %v2368 = vld [vmem:[#allocation3 + $0x7c] sm:$0xc]
    %v2385 = vrot.slane %v2353, 6
    %v2386 = vrot.slane %v2385, 4
    %v2387 = vrot.slane %v2354, 6
    %v2388 = vrot.slane %v2387, 4
    %v2389 = vrot.slane %v2355, 6
    %v2390 = vrot.slane %v2389, 4
    %v2391 = vrot.slane %v2356, 6
    %v2392 = vrot.slane %v2391, 4
    %v2393 = vrot.slane %v2357, 6
    %v2394 = vrot.slane %v2393, 4
    %v2395 = vrot.slane %v2358, 6
    %v2396 = vrot.slane %v2395, 4
    %v2397 = vrot.slane %v2359, 6
    %v2398 = vrot.slane %v2397, 4
    %v2399 = vrot.slane %v2360, 6
    %v2400 = vrot.slane %v2399, 4
    %v2401 = vrot.slane %v2361, 6
    %v2402 = vrot.slane %v2401, 4
    %v2403 = vrot.slane %v2362, 6
    %v2404 = vrot.slane %v2403, 4
    %v2405 = vrot.slane %v2363, 6
    %v2406 = vrot.slane %v2405, 4
    %v2407 = vrot.slane %v2364, 6
    %v2408 = vrot.slane %v2407, 4
    %v2409 = vrot.slane %v2365, 6
    %v2410 = vrot.slane %v2409, 4
    %v2411 = vrot.slane %v2366, 6
    %v2412 = vrot.slane %v2411, 4
    %v2413 = vrot.slane %v2367, 6
    %v2414 = vrot.slane %v2413, 4
    %v2415 = vrot.slane %v2368, 6
    %v2416 = vrot.slane %v2415, 4
    %2417 = vrot.lane.b32.xlu0 %v2386, 32
    %v2418 = vpop.permute.xlu0 %2417
    %2419 = vrot.lane.b32.xlu0 %v2388, 32
    %v2420 = vpop.permute.xlu0 %2419
    %2421 = vrot.lane.b32.xlu0 %v2390, 32
    %v2422 = vpop.permute.xlu0 %2421
    %2423 = vrot.lane.b32.xlu0 %v2392, 32
    %v2424 = vpop.permute.xlu0 %2423
    %2425 = vrot.lane.b32.xlu0 %v2394, 32
    %v2426 = vpop.permute.xlu0 %2425
    %2427 = vrot.lane.b32.xlu0 %v2396, 32
    %v2428 = vpop.permute.xlu0 %2427
    %2429 = vrot.lane.b32.xlu0 %v2398, 32
    %v2430 = vpop.permute.xlu0 %2429
    %2431 = vrot.lane.b32.xlu0 %v2400, 32
    %v2432 = vpop.permute.xlu0 %2431
    %2433 = vrot.lane.b32.xlu0 %v2402, 32
    %v2434 = vpop.permute.xlu0 %2433
    %2435 = vrot.lane.b32.xlu0 %v2404, 32
    %v2436 = vpop.permute.xlu0 %2435
    %2437 = vrot.lane.b32.xlu0 %v2406, 32
    %v2438 = vpop.permute.xlu0 %2437
    %2439 = vrot.lane.b32.xlu0 %v2408, 32
    %v2440 = vpop.permute.xlu0 %2439
    %2441 = vrot.lane.b32.xlu0 %v2410, 32
    %v2442 = vpop.permute.xlu0 %2441
    %2443 = vrot.lane.b32.xlu0 %v2412, 32
    %v2444 = vpop.permute.xlu0 %2443
    %2445 = vrot.lane.b32.xlu0 %v2414, 32
    %v2446 = vpop.permute.xlu0 %2445
    %2447 = vrot.lane.b32.xlu0 %v2416, 32
    %v2448 = vpop.permute.xlu0 %2447
    %vm2465 = vcmask 517376
    %2466 = vst.msk [vmem:[#allocation2 + $0x4] sm:$0x3] %vm2465, %v2418
    %2467 = vst.msk [vmem:[#allocation2 + $0x1c] sm:$0x3] %vm2465, %v2420
    %2468 = vst.msk [vmem:[#allocation2 + $0x34] sm:$0x3] %vm2465, %v2422
    %2469 = vst.msk [vmem:[#allocation2 + $0x4c] sm:$0x3] %vm2465, %v2424
    %2470 = vst.msk [vmem:[#allocation2 + $0x64] sm:$0x3] %vm2465, %v2426
    %2471 = vst.msk [vmem:[#allocation2 + $0x7c] sm:$0x3] %vm2465, %v2428
    %2472 = vst.msk [vmem:[#allocation2 + $0x94] sm:$0x3] %vm2465, %v2430
    %2473 = vst.msk [vmem:[#allocation2 + $0xac] sm:$0x3] %vm2465, %v2432
    %2474 = vst.msk [vmem:[#allocation2 + $0xc4] sm:$0x3] %vm2465, %v2434
    %2475 = vst.msk [vmem:[#allocation2 + $0xdc] sm:$0x3] %vm2465, %v2436
    %2476 = vst.msk [vmem:[#allocation2 + $0xf4] sm:$0x3] %vm2465, %v2438
    %2477 = vst.msk [vmem:[#allocation2 + $0x10c] sm:$0x3] %vm2465, %v2440
    %2478 = vst.msk [vmem:[#allocation2 + $0x124] sm:$0x3] %vm2465, %v2442
    %2479 = vst.msk [vmem:[#allocation2 + $0x13c] sm:$0x3] %vm2465, %v2444
    %2480 = vst.msk [vmem:[#allocation2 + $0x154] sm:$0x3] %vm2465, %v2446
    %2481 = vst.msk [vmem:[#allocation2 + $0x16c] sm:$0x3] %vm2465, %v2448
    %s2482 = scalar_lea.vmem [#allocation3], 96
    %v2483 = vld [vmem:[%s2482] sm:$0x3]
    %v2484 = vld [vmem:[%s2482 + $0x8] sm:$0x3]
    %v2485 = vld [vmem:[%s2482 + $0x10] sm:$0x3]
    %v2486 = vld [vmem:[%s2482 + $0x18] sm:$0x3]
    %v2491 = vrot.slane %v2483, 6
    %v2492 = vrot.slane %v2484, 6
    %v2493 = vrot.slane %v2485, 6
    %v2494 = vrot.slane %v2486, 6
    %2495 = vrot.lane.b32.xlu0 %v2491, 64
    %v2496 = vpop.permute.xlu0 %2495
    %2497 = vrot.lane.b32.xlu0 %v2492, 64
    %v2498 = vpop.permute.xlu0 %2497
    %2499 = vrot.lane.b32.xlu0 %v2493, 64
    %v2500 = vpop.permute.xlu0 %2499
    %2501 = vrot.lane.b32.xlu0 %v2494, 64
    %v2502 = vpop.permute.xlu0 %2501
    %vm2507 = vcmask 781826
    %2508 = vst.msk [vmem:[#allocation2 + $0x10] sm:$0xc] %vm2507, %v2496
    %2509 = vst.msk [vmem:[#allocation2 + $0x28] sm:$0xc] %vm2507, %v2498
    %2510 = vst.msk [vmem:[#allocation2 + $0x40] sm:$0xc] %vm2507, %v2500
    %2511 = vst.msk [vmem:[#allocation2 + $0x58] sm:$0xc] %vm2507, %v2502
    %v2512 = vld [vmem:[%s2482] sm:$0xf]
    %v2513 = vld [vmem:[%s2482 + $0x4] sm:$0xf]
    %v2514 = vld [vmem:[%s2482 + $0x8] sm:$0xf]
    %v2515 = vld [vmem:[%s2482 + $0xc] sm:$0xf]
    %v2516 = vld [vmem:[%s2482 + $0x10] sm:$0xf]
    %v2517 = vld [vmem:[%s2482 + $0x14] sm:$0xf]
    %v2518 = vld [vmem:[%s2482 + $0x18] sm:$0xf]
    %v2519 = vld [vmem:[%s2482 + $0x1c] sm:$0xf]
    %2528 = vrot.lane.b32.xlu0 %v2512, 96
    %v2529 = vpop.permute.xlu0 %2528
    %2530 = vrot.lane.b32.xlu0 %v2513, 96
    %v2531 = vpop.permute.xlu0 %2530
    %2532 = vrot.lane.b32.xlu0 %v2514, 96
    %v2533 = vpop.permute.xlu0 %2532
    %2534 = vrot.lane.b32.xlu0 %v2515, 96
    %v2535 = vpop.permute.xlu0 %2534
    %2536 = vrot.lane.b32.xlu0 %v2516, 96
    %v2537 = vpop.permute.xlu0 %2536
    %2538 = vrot.lane.b32.xlu0 %v2517, 96
    %v2539 = vpop.permute.xlu0 %2538
    %2540 = vrot.lane.b32.xlu0 %v2518, 96
    %v2541 = vpop.permute.xlu0 %2540
    %2542 = vrot.lane.b32.xlu0 %v2519, 96
    %v2543 = vpop.permute.xlu0 %2542
    %vm2552 = vcmask 1044224
    %2553 = vst.msk [vmem:[#allocation2 + $0x4] sm:$0xf] %vm2552, %v2529
    %2554 = vst.msk [vmem:[#allocation2 + $0x10] sm:$0xf] %vm2552, %v2531
    %2555 = vst.msk [vmem:[#allocation2 + $0x1c] sm:$0xf] %vm2552, %v2533
    %2556 = vst.msk [vmem:[#allocation2 + $0x28] sm:$0xf] %vm2552, %v2535
    %2557 = vst.msk [vmem:[#allocation2 + $0x34] sm:$0xf] %vm2552, %v2537
    %2558 = vst.msk [vmem:[#allocation2 + $0x40] sm:$0xf] %vm2552, %v2539
    %2559 = vst.msk [vmem:[#allocation2 + $0x4c] sm:$0xf] %vm2552, %v2541
    %2560 = vst.msk [vmem:[#allocation2 + $0x58] sm:$0xf] %vm2552, %v2543
    %v2561 = vld [vmem:[%s2482 + $0x4] sm:$0xc]
    %v2562 = vld [vmem:[%s2482 + $0xc] sm:$0xc]
    %v2563 = vld [vmem:[%s2482 + $0x14] sm:$0xc]
    %v2564 = vld [vmem:[%s2482 + $0x1c] sm:$0xc]
    %v2569 = vrot.slane %v2561, 6
    %v2570 = vrot.slane %v2569, 4
    %v2571 = vrot.slane %v2562, 6
    %v2572 = vrot.slane %v2571, 4
    %v2573 = vrot.slane %v2563, 6
    %v2574 = vrot.slane %v2573, 4
    %v2575 = vrot.slane %v2564, 6
    %v2576 = vrot.slane %v2575, 4
    %vm2581 = vcmask 254976
    %2582 = vst.msk [vmem:[#allocation2 + $0x8] sm:$0x3] %vm2581, %v2570
    %2583 = vst.msk [vmem:[#allocation2 + $0x20] sm:$0x3] %vm2581, %v2572
    %2584 = vst.msk [vmem:[#allocation2 + $0x38] sm:$0x3] %vm2581, %v2574
    %2585 = vst.msk [vmem:[#allocation2 + $0x50] sm:$0x3] %vm2581, %v2576
    %s2586 = scalar_lea.vmem [#allocation3], 128
    %v2587 = vld [vmem:[%s2586] sm:$0x3]
    %v2588 = vld [vmem:[%s2586 + $0x8] sm:$0x3]
    %v2589 = vld [vmem:[%s2586 + $0x10] sm:$0x3]
    %v2590 = vld [vmem:[%s2586 + $0x18] sm:$0x3]
    %v2595 = vrot.slane %v2587, 6
    %v2596 = vrot.slane %v2588, 6
    %v2597 = vrot.slane %v2589, 6
    %v2598 = vrot.slane %v2590, 6
    %s2603 = scalar_lea.vmem [#allocation2], 672
    %2604 = vst.msk [vmem:[%s2603 + $0xc] sm:$0xc] %vm2089, %v2595
    %2605 = vst.msk [vmem:[%s2603 + $0x24] sm:$0xc] %vm2089, %v2596
    %2606 = vst.msk [vmem:[%s2603 + $0x3c] sm:$0xc] %vm2089, %v2597
    %2607 = vst.msk [vmem:[%s2603 + $0x54] sm:$0xc] %vm2089, %v2598
    %v2608 = vld [vmem:[%s2586] sm:$0xf]
    %v2609 = vld [vmem:[%s2586 + $0x4] sm:$0xf]
    %v2610 = vld [vmem:[%s2586 + $0x8] sm:$0xf]
    %v2611 = vld [vmem:[%s2586 + $0xc] sm:$0xf]
    %v2612 = vld [vmem:[%s2586 + $0x10] sm:$0xf]
    %v2613 = vld [vmem:[%s2586 + $0x14] sm:$0xf]
    %v2614 = vld [vmem:[%s2586 + $0x18] sm:$0xf]
    %v2615 = vld [vmem:[%s2586 + $0x1c] sm:$0xf]
    %2624 = vrot.lane.b32.xlu0 %v2608, 32
    %v2625 = vpop.permute.xlu0 %2624
    %2626 = vrot.lane.b32.xlu0 %v2609, 32
    %v2627 = vpop.permute.xlu0 %2626
    %2628 = vrot.lane.b32.xlu0 %v2610, 32
    %v2629 = vpop.permute.xlu0 %2628
    %2630 = vrot.lane.b32.xlu0 %v2611, 32
    %v2631 = vpop.permute.xlu0 %2630
    %2632 = vrot.lane.b32.xlu0 %v2612, 32
    %v2633 = vpop.permute.xlu0 %2632
    %2634 = vrot.lane.b32.xlu0 %v2613, 32
    %v2635 = vpop.permute.xlu0 %2634
    %2636 = vrot.lane.b32.xlu0 %v2614, 32
    %v2637 = vpop.permute.xlu0 %2636
    %2638 = vrot.lane.b32.xlu0 %v2615, 32
    %v2639 = vpop.permute.xlu0 %2638
    %2648 = vst.msk [vmem:[%s2603] sm:$0xf] %vm2134, %v2625
    %2649 = vst.msk [vmem:[%s2603 + $0xc] sm:$0xf] %vm2134, %v2627
    %2650 = vst.msk [vmem:[%s2603 + $0x18] sm:$0xf] %vm2134, %v2629
    %2651 = vst.msk [vmem:[%s2603 + $0x24] sm:$0xf] %vm2134, %v2631
    %2652 = vst.msk [vmem:[%s2603 + $0x30] sm:$0xf] %vm2134, %v2633
    %2653 = vst.msk [vmem:[%s2603 + $0x3c] sm:$0xf] %vm2134, %v2635
    %2654 = vst.msk [vmem:[%s2603 + $0x48] sm:$0xf] %vm2134, %v2637
    %2655 = vst.msk [vmem:[%s2603 + $0x54] sm:$0xf] %vm2134, %v2639
    %v2656 = vld [vmem:[%s2586 + $0x4] sm:$0xc]
    %v2657 = vld [vmem:[%s2586 + $0xc] sm:$0xc]
    %v2658 = vld [vmem:[%s2586 + $0x14] sm:$0xc]
    %v2659 = vld [vmem:[%s2586 + $0x1c] sm:$0xc]
    %v2664 = vrot.slane %v2656, 6
    %v2665 = vrot.slane %v2664, 4
    %v2666 = vrot.slane %v2657, 6
    %v2667 = vrot.slane %v2666, 4
    %v2668 = vrot.slane %v2658, 6
    %v2669 = vrot.slane %v2668, 4
    %v2670 = vrot.slane %v2659, 6
    %v2671 = vrot.slane %v2670, 4
    %2672 = vrot.lane.b32.xlu0 %v2665, 64
    %v2673 = vpop.permute.xlu0 %2672
    %2674 = vrot.lane.b32.xlu0 %v2667, 64
    %v2675 = vpop.permute.xlu0 %2674
    %2676 = vrot.lane.b32.xlu0 %v2669, 64
    %v2677 = vpop.permute.xlu0 %2676
    %2678 = vrot.lane.b32.xlu0 %v2671, 64
    %v2679 = vpop.permute.xlu0 %2678
    %2684 = vst.msk [vmem:[%s2603] sm:$0x3] %vm2171, %v2673
    %2685 = vst.msk [vmem:[%s2603 + $0x18] sm:$0x3] %vm2171, %v2675
    %2686 = vst.msk [vmem:[%s2603 + $0x30] sm:$0x3] %vm2171, %v2677
    %2687 = vst.msk [vmem:[%s2603 + $0x48] sm:$0x3] %vm2171, %v2679
    %v2688 = vld [vmem:[%s2586] sm:$0x3]
    %v2689 = vld [vmem:[%s2586 + $0x8] sm:$0x3]
    %v2690 = vld [vmem:[%s2586 + $0x10] sm:$0x3]
    %v2691 = vld [vmem:[%s2586 + $0x18] sm:$0x3]
    %v2692 = vld [vmem:[%s2586 + $0x20] sm:$0x3]
    %v2693 = vld [vmem:[%s2586 + $0x28] sm:$0x3]
    %v2694 = vld [vmem:[%s2586 + $0x30] sm:$0x3]
    %v2695 = vld [vmem:[%s2586 + $0x38] sm:$0x3]
    %v2696 = vld [vmem:[%s2586 + $0x40] sm:$0x3]
    %v2697 = vld [vmem:[%s2586 + $0x48] sm:$0x3]
    %v2698 = vld [vmem:[%s2586 + $0x50] sm:$0x3]
    %v2699 = vld [vmem:[%s2586 + $0x58] sm:$0x3]
    %v2700 = vld [vmem:[%s2586 + $0x60] sm:$0x3]
    %v2701 = vld [vmem:[%s2586 + $0x68] sm:$0x3]
    %v2702 = vld [vmem:[%s2586 + $0x70] sm:$0x3]
    %v2703 = vld [vmem:[%s2586 + $0x78] sm:$0x3]
    %v2720 = vrot.slane %v2688, 6
    %v2721 = vrot.slane %v2689, 6
    %v2722 = vrot.slane %v2690, 6
    %v2723 = vrot.slane %v2691, 6
    %v2724 = vrot.slane %v2692, 6
    %v2725 = vrot.slane %v2693, 6
    %v2726 = vrot.slane %v2694, 6
    %v2727 = vrot.slane %v2695, 6
    %v2728 = vrot.slane %v2696, 6
    %v2729 = vrot.slane %v2697, 6
    %v2730 = vrot.slane %v2698, 6
    %v2731 = vrot.slane %v2699, 6
    %v2732 = vrot.slane %v2700, 6
    %v2733 = vrot.slane %v2701, 6
    %v2734 = vrot.slane %v2702, 6
    %v2735 = vrot.slane %v2703, 6
    %2736 = vrot.lane.b32.xlu0 %v2720, 96
    %v2737 = vpop.permute.xlu0 %2736
    %2738 = vrot.lane.b32.xlu0 %v2721, 96
    %v2739 = vpop.permute.xlu0 %2738
    %2740 = vrot.lane.b32.xlu0 %v2722, 96
    %v2741 = vpop.permute.xlu0 %2740
    %2742 = vrot.lane.b32.xlu0 %v2723, 96
    %v2743 = vpop.permute.xlu0 %2742
    %2744 = vrot.lane.b32.xlu0 %v2724, 96
    %v2745 = vpop.permute.xlu0 %2744
    %2746 = vrot.lane.b32.xlu0 %v2725, 96
    %v2747 = vpop.permute.xlu0 %2746
    %2748 = vrot.lane.b32.xlu0 %v2726, 96
    %v2749 = vpop.permute.xlu0 %2748
    %2750 = vrot.lane.b32.xlu0 %v2727, 96
    %v2751 = vpop.permute.xlu0 %2750
    %2752 = vrot.lane.b32.xlu0 %v2728, 96
    %v2753 = vpop.permute.xlu0 %2752
    %2754 = vrot.lane.b32.xlu0 %v2729, 96
    %v2755 = vpop.permute.xlu0 %2754
    %2756 = vrot.lane.b32.xlu0 %v2730, 96
    %v2757 = vpop.permute.xlu0 %2756
    %2758 = vrot.lane.b32.xlu0 %v2731, 96
    %v2759 = vpop.permute.xlu0 %2758
    %2760 = vrot.lane.b32.xlu0 %v2732, 96
    %v2761 = vpop.permute.xlu0 %2760
    %2762 = vrot.lane.b32.xlu0 %v2733, 96
    %v2763 = vpop.permute.xlu0 %2762
    %2764 = vrot.lane.b32.xlu0 %v2734, 96
    %v2765 = vpop.permute.xlu0 %2764
    %2766 = vrot.lane.b32.xlu0 %v2735, 96
    %v2767 = vpop.permute.xlu0 %2766
    %s2784 = scalar_lea.vmem [#allocation2], 384
    %2785 = vst.msk [vmem:[%s2784 + $0xc] sm:$0xc] %vm2272, %v2737
    %2786 = vst.msk [vmem:[%s2784 + $0x24] sm:$0xc] %vm2272, %v2739
    %2787 = vst.msk [vmem:[%s2784 + $0x3c] sm:$0xc] %vm2272, %v2741
    %2788 = vst.msk [vmem:[%s2784 + $0x54] sm:$0xc] %vm2272, %v2743
    %2789 = vst.msk [vmem:[%s2784 + $0x6c] sm:$0xc] %vm2272, %v2745
    %2790 = vst.msk [vmem:[%s2784 + $0x84] sm:$0xc] %vm2272, %v2747
    %2791 = vst.msk [vmem:[%s2784 + $0x9c] sm:$0xc] %vm2272, %v2749
    %2792 = vst.msk [vmem:[%s2784 + $0xb4] sm:$0xc] %vm2272, %v2751
    %2793 = vst.msk [vmem:[%s2784 + $0xcc] sm:$0xc] %vm2272, %v2753
    %2794 = vst.msk [vmem:[%s2784 + $0xe4] sm:$0xc] %vm2272, %v2755
    %2795 = vst.msk [vmem:[%s2784 + $0xfc] sm:$0xc] %vm2272, %v2757
    %2796 = vst.msk [vmem:[%s2784 + $0x114] sm:$0xc] %vm2272, %v2759
    %2797 = vst.msk [vmem:[%s2784 + $0x12c] sm:$0xc] %vm2272, %v2761
    %2798 = vst.msk [vmem:[%s2784 + $0x144] sm:$0xc] %vm2272, %v2763
    %2799 = vst.msk [vmem:[%s2784 + $0x15c] sm:$0xc] %vm2272, %v2765
    %2800 = vst.msk [vmem:[%s2784 + $0x174] sm:$0xc] %vm2272, %v2767
    %v2801 = vld [vmem:[%s2586] sm:$0xf]
    %v2802 = vld [vmem:[%s2586 + $0x4] sm:$0xf]
    %v2803 = vld [vmem:[%s2586 + $0x8] sm:$0xf]
    %v2804 = vld [vmem:[%s2586 + $0xc] sm:$0xf]
    %v2805 = vld [vmem:[%s2586 + $0x10] sm:$0xf]
    %v2806 = vld [vmem:[%s2586 + $0x14] sm:$0xf]
    %v2807 = vld [vmem:[%s2586 + $0x18] sm:$0xf]
    %v2808 = vld [vmem:[%s2586 + $0x1c] sm:$0xf]
    %v2809 = vld [vmem:[%s2586 + $0x20] sm:$0xf]
    %v2810 = vld [vmem:[%s2586 + $0x24] sm:$0xf]
    %v2811 = vld [vmem:[%s2586 + $0x28] sm:$0xf]
    %v2812 = vld [vmem:[%s2586 + $0x2c] sm:$0xf]
    %v2813 = vld [vmem:[%s2586 + $0x30] sm:$0xf]
    %v2814 = vld [vmem:[%s2586 + $0x34] sm:$0xf]
    %v2815 = vld [vmem:[%s2586 + $0x38] sm:$0xf]
    %v2816 = vld [vmem:[%s2586 + $0x3c] sm:$0xf]
    %v2817 = vld [vmem:[%s2586 + $0x40] sm:$0xf]
    %v2818 = vld [vmem:[%s2586 + $0x44] sm:$0xf]
    %v2819 = vld [vmem:[%s2586 + $0x48] sm:$0xf]
    %v2820 = vld [vmem:[%s2586 + $0x4c] sm:$0xf]
    %v2821 = vld [vmem:[%s2586 + $0x50] sm:$0xf]
    %v2822 = vld [vmem:[%s2586 + $0x54] sm:$0xf]
    %v2823 = vld [vmem:[%s2586 + $0x58] sm:$0xf]
    %v2824 = vld [vmem:[%s2586 + $0x5c] sm:$0xf]
    %v2825 = vld [vmem:[%s2586 + $0x60] sm:$0xf]
    %v2826 = vld [vmem:[%s2586 + $0x64] sm:$0xf]
    %v2827 = vld [vmem:[%s2586 + $0x68] sm:$0xf]
    %v2828 = vld [vmem:[%s2586 + $0x6c] sm:$0xf]
    %v2829 = vld [vmem:[%s2586 + $0x70] sm:$0xf]
    %v2830 = vld [vmem:[%s2586 + $0x74] sm:$0xf]
    %v2831 = vld [vmem:[%s2586 + $0x78] sm:$0xf]
    %v2832 = vld [vmem:[%s2586 + $0x7c] sm:$0xf]
    %2833 = vst.msk [vmem:[%s2784 + $0x4] sm:$0xf] %vm1944, %v2801
    %2834 = vst.msk [vmem:[%s2784 + $0x10] sm:$0xf] %vm1944, %v2802
    %2835 = vst.msk [vmem:[%s2784 + $0x1c] sm:$0xf] %vm1944, %v2803
    %2836 = vst.msk [vmem:[%s2784 + $0x28] sm:$0xf] %vm1944, %v2804
    %2837 = vst.msk [vmem:[%s2784 + $0x34] sm:$0xf] %vm1944, %v2805
    %2838 = vst.msk [vmem:[%s2784 + $0x40] sm:$0xf] %vm1944, %v2806
    %2839 = vst.msk [vmem:[%s2784 + $0x4c] sm:$0xf] %vm1944, %v2807
    %2840 = vst.msk [vmem:[%s2784 + $0x58] sm:$0xf] %vm1944, %v2808
    %2841 = vst.msk [vmem:[%s2784 + $0x64] sm:$0xf] %vm1944, %v2809
    %2842 = vst.msk [vmem:[%s2784 + $0x70] sm:$0xf] %vm1944, %v2810
    %2843 = vst.msk [vmem:[%s2784 + $0x7c] sm:$0xf] %vm1944, %v2811
    %2844 = vst.msk [vmem:[%s2784 + $0x88] sm:$0xf] %vm1944, %v2812
    %2845 = vst.msk [vmem:[%s2784 + $0x94] sm:$0xf] %vm1944, %v2813
    %2846 = vst.msk [vmem:[%s2784 + $0xa0] sm:$0xf] %vm1944, %v2814
    %2847 = vst.msk [vmem:[%s2784 + $0xac] sm:$0xf] %vm1944, %v2815
    %2848 = vst.msk [vmem:[%s2784 + $0xb8] sm:$0xf] %vm1944, %v2816
    %2849 = vst.msk [vmem:[%s2784 + $0xc4] sm:$0xf] %vm1944, %v2817
    %2850 = vst.msk [vmem:[%s2784 + $0xd0] sm:$0xf] %vm1944, %v2818
    %2851 = vst.msk [vmem:[%s2784 + $0xdc] sm:$0xf] %vm1944, %v2819
    %2852 = vst.msk [vmem:[%s2784 + $0xe8] sm:$0xf] %vm1944, %v2820
    %2853 = vst.msk [vmem:[%s2784 + $0xf4] sm:$0xf] %vm1944, %v2821
    %2854 = vst.msk [vmem:[%s2784 + $0x100] sm:$0xf] %vm1944, %v2822
    %2855 = vst.msk [vmem:[%s2784 + $0x10c] sm:$0xf] %vm1944, %v2823
    %2856 = vst.msk [vmem:[%s2784 + $0x118] sm:$0xf] %vm1944, %v2824
    %2857 = vst.msk [vmem:[%s2784 + $0x124] sm:$0xf] %vm1944, %v2825
    %2858 = vst.msk [vmem:[%s2784 + $0x130] sm:$0xf] %vm1944, %v2826
    %2859 = vst.msk [vmem:[%s2784 + $0x13c] sm:$0xf] %vm1944, %v2827
    %2860 = vst.msk [vmem:[%s2784 + $0x148] sm:$0xf] %vm1944, %v2828
    %2861 = vst.msk [vmem:[%s2784 + $0x154] sm:$0xf] %vm1944, %v2829
    %2862 = vst.msk [vmem:[%s2784 + $0x160] sm:$0xf] %vm1944, %v2830
    %2863 = vst.msk [vmem:[%s2784 + $0x16c] sm:$0xf] %vm1944, %v2831
    %2864 = vst.msk [vmem:[%s2784 + $0x178] sm:$0xf] %vm1944, %v2832
    %v2865 = vld [vmem:[%s2586 + $0x4] sm:$0xc]
    %v2866 = vld [vmem:[%s2586 + $0xc] sm:$0xc]
    %v2867 = vld [vmem:[%s2586 + $0x14] sm:$0xc]
    %v2868 = vld [vmem:[%s2586 + $0x1c] sm:$0xc]
    %v2869 = vld [vmem:[%s2586 + $0x24] sm:$0xc]
    %v2870 = vld [vmem:[%s2586 + $0x2c] sm:$0xc]
    %v2871 = vld [vmem:[%s2586 + $0x34] sm:$0xc]
    %v2872 = vld [vmem:[%s2586 + $0x3c] sm:$0xc]
    %v2873 = vld [vmem:[%s2586 + $0x44] sm:$0xc]
    %v2874 = vld [vmem:[%s2586 + $0x4c] sm:$0xc]
    %v2875 = vld [vmem:[%s2586 + $0x54] sm:$0xc]
    %v2876 = vld [vmem:[%s2586 + $0x5c] sm:$0xc]
    %v2877 = vld [vmem:[%s2586 + $0x64] sm:$0xc]
    %v2878 = vld [vmem:[%s2586 + $0x6c] sm:$0xc]
    %v2879 = vld [vmem:[%s2586 + $0x74] sm:$0xc]
    %v2880 = vld [vmem:[%s2586 + $0x7c] sm:$0xc]
    %v2897 = vrot.slane %v2865, 6
    %v2898 = vrot.slane %v2897, 4
    %v2899 = vrot.slane %v2866, 6
    %v2900 = vrot.slane %v2899, 4
    %v2901 = vrot.slane %v2867, 6
    %v2902 = vrot.slane %v2901, 4
    %v2903 = vrot.slane %v2868, 6
    %v2904 = vrot.slane %v2903, 4
    %v2905 = vrot.slane %v2869, 6
    %v2906 = vrot.slane %v2905, 4
    %v2907 = vrot.slane %v2870, 6
    %v2908 = vrot.slane %v2907, 4
    %v2909 = vrot.slane %v2871, 6
    %v2910 = vrot.slane %v2909, 4
    %v2911 = vrot.slane %v2872, 6
    %v2912 = vrot.slane %v2911, 4
    %v2913 = vrot.slane %v2873, 6
    %v2914 = vrot.slane %v2913, 4
    %v2915 = vrot.slane %v2874, 6
    %v2916 = vrot.slane %v2915, 4
    %v2917 = vrot.slane %v2875, 6
    %v2918 = vrot.slane %v2917, 4
    %v2919 = vrot.slane %v2876, 6
    %v2920 = vrot.slane %v2919, 4
    %v2921 = vrot.slane %v2877, 6
    %v2922 = vrot.slane %v2921, 4
    %v2923 = vrot.slane %v2878, 6
    %v2924 = vrot.slane %v2923, 4
    %v2925 = vrot.slane %v2879, 6
    %v2926 = vrot.slane %v2925, 4
    %v2927 = vrot.slane %v2880, 6
    %v2928 = vrot.slane %v2927, 4
    %2929 = vrot.lane.b32.xlu0 %v2898, 32
    %v2930 = vpop.permute.xlu0 %2929
    %2931 = vrot.lane.b32.xlu0 %v2900, 32
    %v2932 = vpop.permute.xlu0 %2931
    %2933 = vrot.lane.b32.xlu0 %v2902, 32
    %v2934 = vpop.permute.xlu0 %2933
    %2935 = vrot.lane.b32.xlu0 %v2904, 32
    %v2936 = vpop.permute.xlu0 %2935
    %2937 = vrot.lane.b32.xlu0 %v2906, 32
    %v2938 = vpop.permute.xlu0 %2937
    %2939 = vrot.lane.b32.xlu0 %v2908, 32
    %v2940 = vpop.permute.xlu0 %2939
    %2941 = vrot.lane.b32.xlu0 %v2910, 32
    %v2942 = vpop.permute.xlu0 %2941
    %2943 = vrot.lane.b32.xlu0 %v2912, 32
    %v2944 = vpop.permute.xlu0 %2943
    %2945 = vrot.lane.b32.xlu0 %v2914, 32
    %v2946 = vpop.permute.xlu0 %2945
    %2947 = vrot.lane.b32.xlu0 %v2916, 32
    %v2948 = vpop.permute.xlu0 %2947
    %2949 = vrot.lane.b32.xlu0 %v2918, 32
    %v2950 = vpop.permute.xlu0 %2949
    %2951 = vrot.lane.b32.xlu0 %v2920, 32
    %v2952 = vpop.permute.xlu0 %2951
    %2953 = vrot.lane.b32.xlu0 %v2922, 32
    %v2954 = vpop.permute.xlu0 %2953
    %2955 = vrot.lane.b32.xlu0 %v2924, 32
    %v2956 = vpop.permute.xlu0 %2955
    %2957 = vrot.lane.b32.xlu0 %v2926, 32
    %v2958 = vpop.permute.xlu0 %2957
    %2959 = vrot.lane.b32.xlu0 %v2928, 32
    %v2960 = vpop.permute.xlu0 %2959
    %2977 = vst.msk [vmem:[%s2784 + $0x4] sm:$0x3] %vm2465, %v2930
    %2978 = vst.msk [vmem:[%s2784 + $0x1c] sm:$0x3] %vm2465, %v2932
    %2979 = vst.msk [vmem:[%s2784 + $0x34] sm:$0x3] %vm2465, %v2934
    %2980 = vst.msk [vmem:[%s2784 + $0x4c] sm:$0x3] %vm2465, %v2936
    %2981 = vst.msk [vmem:[%s2784 + $0x64] sm:$0x3] %vm2465, %v2938
    %2982 = vst.msk [vmem:[%s2784 + $0x7c] sm:$0x3] %vm2465, %v2940
    %2983 = vst.msk [vmem:[%s2784 + $0x94] sm:$0x3] %vm2465, %v2942
    %2984 = vst.msk [vmem:[%s2784 + $0xac] sm:$0x3] %vm2465, %v2944
    %2985 = vst.msk [vmem:[%s2784 + $0xc4] sm:$0x3] %vm2465, %v2946
    %2986 = vst.msk [vmem:[%s2784 + $0xdc] sm:$0x3] %vm2465, %v2948
    %2987 = vst.msk [vmem:[%s2784 + $0xf4] sm:$0x3] %vm2465, %v2950
    %2988 = vst.msk [vmem:[%s2784 + $0x10c] sm:$0x3] %vm2465, %v2952
    %2989 = vst.msk [vmem:[%s2784 + $0x124] sm:$0x3] %vm2465, %v2954
    %2990 = vst.msk [vmem:[%s2784 + $0x13c] sm:$0x3] %vm2465, %v2956
    %2991 = vst.msk [vmem:[%s2784 + $0x154] sm:$0x3] %vm2465, %v2958
    %2992 = vst.msk [vmem:[%s2784 + $0x16c] sm:$0x3] %vm2465, %v2960
    %s2993 = scalar_lea.vmem [#allocation3], 224
    %v2994 = vld [vmem:[%s2993] sm:$0x3]
    %v2995 = vld [vmem:[%s2993 + $0x8] sm:$0x3]
    %v2996 = vld [vmem:[%s2993 + $0x10] sm:$0x3]
    %v2997 = vld [vmem:[%s2993 + $0x18] sm:$0x3]
    %v3002 = vrot.slane %v2994, 6
    %v3003 = vrot.slane %v2995, 6
    %v3004 = vrot.slane %v2996, 6
    %v3005 = vrot.slane %v2997, 6
    %3006 = vrot.lane.b32.xlu0 %v3002, 64
    %v3007 = vpop.permute.xlu0 %3006
    %3008 = vrot.lane.b32.xlu0 %v3003, 64
    %v3009 = vpop.permute.xlu0 %3008
    %3010 = vrot.lane.b32.xlu0 %v3004, 64
    %v3011 = vpop.permute.xlu0 %3010
    %3012 = vrot.lane.b32.xlu0 %v3005, 64
    %v3013 = vpop.permute.xlu0 %3012
    %3018 = vst.msk [vmem:[%s2784 + $0x10] sm:$0xc] %vm2507, %v3007
    %3019 = vst.msk [vmem:[%s2784 + $0x28] sm:$0xc] %vm2507, %v3009
    %3020 = vst.msk [vmem:[%s2784 + $0x40] sm:$0xc] %vm2507, %v3011
    %3021 = vst.msk [vmem:[%s2784 + $0x58] sm:$0xc] %vm2507, %v3013
    %v3022 = vld [vmem:[%s2993] sm:$0xf]
    %v3023 = vld [vmem:[%s2993 + $0x4] sm:$0xf]
    %v3024 = vld [vmem:[%s2993 + $0x8] sm:$0xf]
    %v3025 = vld [vmem:[%s2993 + $0xc] sm:$0xf]
    %v3026 = vld [vmem:[%s2993 + $0x10] sm:$0xf]
    %v3027 = vld [vmem:[%s2993 + $0x14] sm:$0xf]
    %v3028 = vld [vmem:[%s2993 + $0x18] sm:$0xf]
    %v3029 = vld [vmem:[%s2993 + $0x1c] sm:$0xf]
    %3038 = vrot.lane.b32.xlu0 %v3022, 96
    %v3039 = vpop.permute.xlu0 %3038
    %3040 = vrot.lane.b32.xlu0 %v3023, 96
    %v3041 = vpop.permute.xlu0 %3040
    %3042 = vrot.lane.b32.xlu0 %v3024, 96
    %v3043 = vpop.permute.xlu0 %3042
    %3044 = vrot.lane.b32.xlu0 %v3025, 96
    %v3045 = vpop.permute.xlu0 %3044
    %3046 = vrot.lane.b32.xlu0 %v3026, 96
    %v3047 = vpop.permute.xlu0 %3046
    %3048 = vrot.lane.b32.xlu0 %v3027, 96
    %v3049 = vpop.permute.xlu0 %3048
    %3050 = vrot.lane.b32.xlu0 %v3028, 96
    %v3051 = vpop.permute.xlu0 %3050
    %3052 = vrot.lane.b32.xlu0 %v3029, 96
    %v3053 = vpop.permute.xlu0 %3052
    %3062 = vst.msk [vmem:[%s2784 + $0x4] sm:$0xf] %vm2552, %v3039
    %3063 = vst.msk [vmem:[%s2784 + $0x10] sm:$0xf] %vm2552, %v3041
    %3064 = vst.msk [vmem:[%s2784 + $0x1c] sm:$0xf] %vm2552, %v3043
    %3065 = vst.msk [vmem:[%s2784 + $0x28] sm:$0xf] %vm2552, %v3045
    %3066 = vst.msk [vmem:[%s2784 + $0x34] sm:$0xf] %vm2552, %v3047
    %3067 = vst.msk [vmem:[%s2784 + $0x40] sm:$0xf] %vm2552, %v3049
    %3068 = vst.msk [vmem:[%s2784 + $0x4c] sm:$0xf] %vm2552, %v3051
    %3069 = vst.msk [vmem:[%s2784 + $0x58] sm:$0xf] %vm2552, %v3053
    %v3070 = vld [vmem:[%s2993 + $0x4] sm:$0xc]
    %v3071 = vld [vmem:[%s2993 + $0xc] sm:$0xc]
    %v3072 = vld [vmem:[%s2993 + $0x14] sm:$0xc]
    %v3073 = vld [vmem:[%s2993 + $0x1c] sm:$0xc]
    %v3078 = vrot.slane %v3070, 6
    %v3079 = vrot.slane %v3078, 4
    %v3080 = vrot.slane %v3071, 6
    %v3081 = vrot.slane %v3080, 4
    %v3082 = vrot.slane %v3072, 6
    %v3083 = vrot.slane %v3082, 4
    %v3084 = vrot.slane %v3073, 6
    %v3085 = vrot.slane %v3084, 4
    %3090 = vst.msk [vmem:[%s2784 + $0x8] sm:$0x3] %vm2581, %v3079
    %3091 = vst.msk [vmem:[%s2784 + $0x20] sm:$0x3] %vm2581, %v3081
    %3092 = vst.msk [vmem:[%s2784 + $0x38] sm:$0x3] %vm2581, %v3083
    %3093 = vst.msk [vmem:[%s2784 + $0x50] sm:$0x3] %vm2581, %v3085
    %v3094 = vld [vmem:[#allocation2] sm:$0xff]
    %v3095 = vld [vmem:[#allocation2 + $0x8] sm:$0xf]
    %v3096 = vld [vmem:[#allocation2 + $0xc] sm:$0xff]
    %v3097 = vld [vmem:[#allocation2 + $0x14] sm:$0xf]
    %v3098 = vld [vmem:[#allocation2 + $0x18] sm:$0xff]
    %v3099 = vld [vmem:[#allocation2 + $0x20] sm:$0xf]
    %v3100 = vld [vmem:[#allocation2 + $0x24] sm:$0xff]
    %v3101 = vld [vmem:[#allocation2 + $0x2c] sm:$0xf]
    %v3102 = vld [vmem:[#allocation2 + $0x30] sm:$0xff]
    %v3103 = vld [vmem:[#allocation2 + $0x38] sm:$0xf]
    %v3104 = vld [vmem:[#allocation2 + $0x3c] sm:$0xff]
    %v3105 = vld [vmem:[#allocation2 + $0x44] sm:$0xf]
    %v3106 = vld [vmem:[#allocation2 + $0x48] sm:$0xff]
    %v3107 = vld [vmem:[#allocation2 + $0x50] sm:$0xf]
    %v3108 = vld [vmem:[#allocation2 + $0x54] sm:$0xff]
    %v3109 = vld [vmem:[#allocation2 + $0x5c] sm:$0xf]
    %v3110 = vld [vmem:[#allocation2 + $0x60] sm:$0xff]
    %v3111 = vld [vmem:[#allocation2 + $0x68] sm:$0xf]
    %v3112 = vld [vmem:[#allocation2 + $0x6c] sm:$0xff]
    %v3113 = vld [vmem:[#allocation2 + $0x74] sm:$0xf]
    %v3114 = vld [vmem:[#allocation2 + $0x78] sm:$0xff]
    %v3115 = vld [vmem:[#allocation2 + $0x80] sm:$0xf]
    %v3116 = vld [vmem:[#allocation2 + $0x84] sm:$0xff]
    %v3117 = vld [vmem:[#allocation2 + $0x8c] sm:$0xf]
    %v3118 = vld [vmem:[#allocation2 + $0x90] sm:$0xff]
    %v3119 = vld [vmem:[#allocation2 + $0x98] sm:$0xf]
    %v3120 = vld [vmem:[#allocation2 + $0x9c] sm:$0xff]
    %v3121 = vld [vmem:[#allocation2 + $0xa4] sm:$0xf]
    %v3122 = vld [vmem:[#allocation2 + $0xa8] sm:$0xff]
    %v3123 = vld [vmem:[#allocation2 + $0xb0] sm:$0xf]
    %v3124 = vld [vmem:[#allocation2 + $0xb4] sm:$0xff]
    %v3125 = vld [vmem:[#allocation2 + $0xbc] sm:$0xf]
    %v3126 = vld [vmem:[#allocation2 + $0xc0] sm:$0xff]
    %v3127 = vld [vmem:[#allocation2 + $0xc8] sm:$0xf]
    %v3128 = vld [vmem:[#allocation2 + $0xcc] sm:$0xff]
    %v3129 = vld [vmem:[#allocation2 + $0xd4] sm:$0xf]
    %v3130 = vld [vmem:[#allocation2 + $0xd8] sm:$0xff]
    %v3131 = vld [vmem:[#allocation2 + $0xe0] sm:$0xf]
    %v3132 = vld [vmem:[#allocation2 + $0xe4] sm:$0xff]
    %v3133 = vld [vmem:[#allocation2 + $0xec] sm:$0xf]
    %v3134 = vld [vmem:[#allocation2 + $0xf0] sm:$0xff]
    %v3135 = vld [vmem:[#allocation2 + $0xf8] sm:$0xf]
    %v3136 = vld [vmem:[#allocation2 + $0xfc] sm:$0xff]
    %v3137 = vld [vmem:[#allocation2 + $0x104] sm:$0xf]
    %v3138 = vld [vmem:[#allocation2 + $0x108] sm:$0xff]
    %v3139 = vld [vmem:[#allocation2 + $0x110] sm:$0xf]
    %v3140 = vld [vmem:[#allocation2 + $0x114] sm:$0xff]
    %v3141 = vld [vmem:[#allocation2 + $0x11c] sm:$0xf]
    %v3142 = vld [vmem:[#allocation2 + $0x120] sm:$0xff]
    %v3143 = vld [vmem:[#allocation2 + $0x128] sm:$0xf]
    %v3144 = vld [vmem:[#allocation2 + $0x12c] sm:$0xff]
    %v3145 = vld [vmem:[#allocation2 + $0x134] sm:$0xf]
    %v3146 = vld [vmem:[#allocation2 + $0x138] sm:$0xff]
    %v3147 = vld [vmem:[#allocation2 + $0x140] sm:$0xf]
    %v3148 = vld [vmem:[#allocation2 + $0x144] sm:$0xff]
    %v3149 = vld [vmem:[#allocation2 + $0x14c] sm:$0xf]
    %v3150 = vld [vmem:[#allocation2 + $0x150] sm:$0xff]
    %v3151 = vld [vmem:[#allocation2 + $0x158] sm:$0xf]
    %v3152 = vld [vmem:[#allocation2 + $0x15c] sm:$0xff]
    %v3153 = vld [vmem:[#allocation2 + $0x164] sm:$0xf]
    %v3154 = vld [vmem:[#allocation2 + $0x168] sm:$0xff]
    %v3155 = vld [vmem:[#allocation2 + $0x170] sm:$0xf]
    %v3156 = vld [vmem:[#allocation2 + $0x174] sm:$0xff]
    %v3157 = vld [vmem:[#allocation2 + $0x17c] sm:$0xf]
    %v3158 = vld [vmem:[#allocation2 + $0x180] sm:$0xff]
    %v3159 = vld [vmem:[#allocation2 + $0x188] sm:$0xf]
    %v3160 = vld [vmem:[#allocation2 + $0x18c] sm:$0xff]
    %v3161 = vld [vmem:[#allocation2 + $0x194] sm:$0xf]
    %v3162 = vld [vmem:[#allocation2 + $0x198] sm:$0xff]
    %v3163 = vld [vmem:[#allocation2 + $0x1a0] sm:$0xf]
    %v3164 = vld [vmem:[#allocation2 + $0x1a4] sm:$0xff]
    %v3165 = vld [vmem:[#allocation2 + $0x1ac] sm:$0xf]
    %v3166 = vld [vmem:[#allocation2 + $0x1b0] sm:$0xff]
    %v3167 = vld [vmem:[#allocation2 + $0x1b8] sm:$0xf]
    %v3168 = vld [vmem:[#allocation2 + $0x1bc] sm:$0xff]
    %v3169 = vld [vmem:[#allocation2 + $0x1c4] sm:$0xf]
    %v3170 = vld [vmem:[#allocation2 + $0x1c8] sm:$0xff]
    %v3171 = vld [vmem:[#allocation2 + $0x1d0] sm:$0xf]
    %v3172 = vld [vmem:[#allocation2 + $0x1d4] sm:$0xff]
    %v3173 = vld [vmem:[#allocation2 + $0x1dc] sm:$0xf]
    %v3174 = vld [vmem:[#allocation2 + $0x1e0] sm:$0xff]
    %v3175 = vld [vmem:[#allocation2 + $0x1e8] sm:$0xf]
    %v3176 = vld [vmem:[#allocation2 + $0x1ec] sm:$0xff]
    %v3177 = vld [vmem:[#allocation2 + $0x1f4] sm:$0xf]
    %v3178 = vld [vmem:[#allocation2 + $0x1f8] sm:$0xff]
    %v3179 = vld [vmem:[#allocation2 + $0x200] sm:$0xf]
    %v3180 = vld [vmem:[#allocation2 + $0x204] sm:$0xff]
    %v3181 = vld [vmem:[#allocation2 + $0x20c] sm:$0xf]
    %v3182 = vld [vmem:[#allocation2 + $0x210] sm:$0xff]
    %v3183 = vld [vmem:[#allocation2 + $0x218] sm:$0xf]
    %v3184 = vld [vmem:[#allocation2 + $0x21c] sm:$0xff]
    %v3185 = vld [vmem:[#allocation2 + $0x224] sm:$0xf]
    %v3186 = vld [vmem:[#allocation2 + $0x228] sm:$0xff]
    %v3187 = vld [vmem:[#allocation2 + $0x230] sm:$0xf]
    %v3188 = vld [vmem:[#allocation2 + $0x234] sm:$0xff]
    %v3189 = vld [vmem:[#allocation2 + $0x23c] sm:$0xf]
    %v3190 = vld [vmem:[#allocation2 + $0x240] sm:$0xff]
    %v3191 = vld [vmem:[#allocation2 + $0x248] sm:$0xf]
    %v3192 = vld [vmem:[#allocation2 + $0x24c] sm:$0xff]
    %v3193 = vld [vmem:[#allocation2 + $0x254] sm:$0xf]
    %v3194 = vld [vmem:[#allocation2 + $0x258] sm:$0xff]
    %v3195 = vld [vmem:[#allocation2 + $0x260] sm:$0xf]
    %v3196 = vld [vmem:[#allocation2 + $0x264] sm:$0xff]
    %v3197 = vld [vmem:[#allocation2 + $0x26c] sm:$0xf]
    %v3198 = vld [vmem:[#allocation2 + $0x270] sm:$0xff]
    %v3199 = vld [vmem:[#allocation2 + $0x278] sm:$0xf]
    %v3200 = vld [vmem:[#allocation2 + $0x27c] sm:$0xff]
    %v3201 = vld [vmem:[#allocation2 + $0x284] sm:$0xf]
    %v3202 = vld [vmem:[#allocation2 + $0x288] sm:$0xff]
    %v3203 = vld [vmem:[#allocation2 + $0x290] sm:$0xf]
    %v3204 = vld [vmem:[#allocation2 + $0x294] sm:$0xff]
    %v3205 = vld [vmem:[#allocation2 + $0x29c] sm:$0xf]
    %v3206 = vld [vmem:[#allocation2 + $0x2a0] sm:$0xff]
    %v3207 = vld [vmem:[#allocation2 + $0x2a8] sm:$0xf]
    %v3208 = vld [vmem:[#allocation2 + $0x2ac] sm:$0xff]
    %v3209 = vld [vmem:[#allocation2 + $0x2b4] sm:$0xf]
    %v3210 = vld [vmem:[#allocation2 + $0x2b8] sm:$0xff]
    %v3211 = vld [vmem:[#allocation2 + $0x2c0] sm:$0xf]
    %v3212 = vld [vmem:[#allocation2 + $0x2c4] sm:$0xff]
    %v3213 = vld [vmem:[#allocation2 + $0x2cc] sm:$0xf]
    %v3214 = vld [vmem:[#allocation2 + $0x2d0] sm:$0xff]
    %v3215 = vld [vmem:[#allocation2 + $0x2d8] sm:$0xf]
    %v3216 = vld [vmem:[#allocation2 + $0x2dc] sm:$0xff]
    %v3217 = vld [vmem:[#allocation2 + $0x2e4] sm:$0xf]
    %v3218 = vld [vmem:[#allocation2 + $0x2e8] sm:$0xff]
    %v3219 = vld [vmem:[#allocation2 + $0x2f0] sm:$0xf]
    %v3220 = vld [vmem:[#allocation2 + $0x2f4] sm:$0xff]
    %v3221 = vld [vmem:[#allocation2 + $0x2fc] sm:$0xf]
    %v3222 = vld [vmem:[#allocation8] sm:$0xff]
    %v3223 = vld [vmem:[#allocation8 + $0x8] sm:$0xff]
    %v3224 = vld [vmem:[#allocation8 + $0x10] sm:$0xff]
    %v3225 = vld [vmem:[#allocation8 + $0x18] sm:$0xff]
    %v3226 = vld [vmem:[#allocation8 + $0x20] sm:$0xff]
    %v3227 = vld [vmem:[#allocation8 + $0x28] sm:$0xff]
    %v3228 = vld [vmem:[#allocation8 + $0x30] sm:$0xff]
    %v3229 = vld [vmem:[#allocation8 + $0x38] sm:$0xff]
    %v3230 = vld [vmem:[#allocation8 + $0x40] sm:$0xff]
    %v3231 = vld [vmem:[#allocation8 + $0x48] sm:$0xff]
    %v3232 = vld [vmem:[#allocation8 + $0x50] sm:$0xff]
    %v3233 = vld [vmem:[#allocation8 + $0x58] sm:$0xff]
    %v3234 = vld [vmem:[#allocation8 + $0x60] sm:$0xff]
    %v3235 = vld [vmem:[#allocation8 + $0x68] sm:$0xff]
    %v3236 = vld [vmem:[#allocation8 + $0x70] sm:$0xff]
    %v3237 = vld [vmem:[#allocation8 + $0x78] sm:$0xff]
    %v3238 = vld [vmem:[#allocation8 + $0x80] sm:$0xff]
    %v3239 = vld [vmem:[#allocation8 + $0x88] sm:$0xff]
    %v3240 = vld [vmem:[#allocation8 + $0x90] sm:$0xff]
    %v3241 = vld [vmem:[#allocation8 + $0x98] sm:$0xff]
    %v3242 = vld [vmem:[#allocation8 + $0xa0] sm:$0xff]
    %v3243 = vld [vmem:[#allocation8 + $0xa8] sm:$0xff]
    %v3244 = vld [vmem:[#allocation8 + $0xb0] sm:$0xff]
    %v3245 = vld [vmem:[#allocation8 + $0xb8] sm:$0xff]
    %v3246 = vld [vmem:[#allocation8 + $0xc0] sm:$0xff]
    %v3247 = vld [vmem:[#allocation8 + $0xc8] sm:$0xff]
    %v3248 = vld [vmem:[#allocation8 + $0xd0] sm:$0xff]
    %v3249 = vld [vmem:[#allocation8 + $0xd8] sm:$0xff]
    %v3250 = vld [vmem:[#allocation8 + $0xe0] sm:$0xff]
    %v3251 = vld [vmem:[#allocation8 + $0xe8] sm:$0xff]
    %v3252 = vld [vmem:[#allocation8 + $0xf0] sm:$0xff]
    %v3253 = vld [vmem:[#allocation8 + $0xf8] sm:$0xff]
    %v3254 = vld [vmem:[#allocation8 + $0x100] sm:$0xff]
    %v3255 = vld [vmem:[#allocation8 + $0x108] sm:$0xff]
    %v3256 = vld [vmem:[#allocation8 + $0x110] sm:$0xff]
    %v3257 = vld [vmem:[#allocation8 + $0x118] sm:$0xff]
    %s3258 = scalar_lea.vmem [#allocation12], 2
    %v3259 = vld [vmem:[%s3258] ss:$8 sm:$0x3]
    %v3261 = vperm.slane %v3259, 0
    %v3262 = vperm.slane %v3259, 1
    %v3393 = vunpack.c.l.b16 %v3094
    %v3394 = vunpack.c.h.b16 %v3094
    %v3395 = vunpack.c.l.b16 %v3095
    %v3396 = vunpack.c.l.b16 %v3096
    %v3397 = vunpack.c.h.b16 %v3096
    %v3398 = vunpack.c.l.b16 %v3097
    %v3399 = vunpack.c.l.b16 %v3098
    %v3400 = vunpack.c.h.b16 %v3098
    %v3401 = vunpack.c.l.b16 %v3099
    %v3402 = vunpack.c.l.b16 %v3100
    %v3403 = vunpack.c.h.b16 %v3100
    %v3404 = vunpack.c.l.b16 %v3101
    %v3405 = vunpack.c.l.b16 %v3102
    %v3406 = vunpack.c.h.b16 %v3102
    %v3407 = vunpack.c.l.b16 %v3103
    %v3408 = vunpack.c.l.b16 %v3104
    %v3409 = vunpack.c.h.b16 %v3104
    %v3410 = vunpack.c.l.b16 %v3105
    %v3411 = vunpack.c.l.b16 %v3106
    %v3412 = vunpack.c.h.b16 %v3106
    %v3413 = vunpack.c.l.b16 %v3107
    %v3414 = vunpack.c.l.b16 %v3108
    %v3415 = vunpack.c.h.b16 %v3108
    %v3416 = vunpack.c.l.b16 %v3109
    %v3417 = vunpack.c.l.b16 %v3110
    %v3418 = vunpack.c.h.b16 %v3110
    %v3419 = vunpack.c.l.b16 %v3111
    %v3420 = vunpack.c.l.b16 %v3112
    %v3421 = vunpack.c.h.b16 %v3112
    %v3422 = vunpack.c.l.b16 %v3113
    %v3423 = vunpack.c.l.b16 %v3114
    %v3424 = vunpack.c.h.b16 %v3114
    %v3425 = vunpack.c.l.b16 %v3115
    %v3426 = vunpack.c.l.b16 %v3116
    %v3427 = vunpack.c.h.b16 %v3116
    %v3428 = vunpack.c.l.b16 %v3117
    %v3429 = vunpack.c.l.b16 %v3118
    %v3430 = vunpack.c.h.b16 %v3118
    %v3431 = vunpack.c.l.b16 %v3119
    %v3432 = vunpack.c.l.b16 %v3120
    %v3433 = vunpack.c.h.b16 %v3120
    %v3434 = vunpack.c.l.b16 %v3121
    %v3435 = vunpack.c.l.b16 %v3122
    %v3436 = vunpack.c.h.b16 %v3122
    %v3437 = vunpack.c.l.b16 %v3123
    %v3438 = vunpack.c.l.b16 %v3124
    %v3439 = vunpack.c.h.b16 %v3124
    %v3440 = vunpack.c.l.b16 %v3125
    %v3441 = vunpack.c.l.b16 %v3126
    %v3442 = vunpack.c.h.b16 %v3126
    %v3443 = vunpack.c.l.b16 %v3127
    %v3444 = vunpack.c.l.b16 %v3128
    %v3445 = vunpack.c.h.b16 %v3128
    %v3446 = vunpack.c.l.b16 %v3129
    %v3447 = vunpack.c.l.b16 %v3130
    %v3448 = vunpack.c.h.b16 %v3130
    %v3449 = vunpack.c.l.b16 %v3131
    %v3450 = vunpack.c.l.b16 %v3132
    %v3451 = vunpack.c.h.b16 %v3132
    %v3452 = vunpack.c.l.b16 %v3133
    %v3453 = vunpack.c.l.b16 %v3134
    %v3454 = vunpack.c.h.b16 %v3134
    %v3455 = vunpack.c.l.b16 %v3135
    %v3456 = vunpack.c.l.b16 %v3136
    %v3457 = vunpack.c.h.b16 %v3136
    %v3458 = vunpack.c.l.b16 %v3137
    %v3459 = vunpack.c.l.b16 %v3138
    %v3460 = vunpack.c.h.b16 %v3138
    %v3461 = vunpack.c.l.b16 %v3139
    %v3462 = vunpack.c.l.b16 %v3140
    %v3463 = vunpack.c.h.b16 %v3140
    %v3464 = vunpack.c.l.b16 %v3141
    %v3465 = vunpack.c.l.b16 %v3142
    %v3466 = vunpack.c.h.b16 %v3142
    %v3467 = vunpack.c.l.b16 %v3143
    %v3468 = vunpack.c.l.b16 %v3144
    %v3469 = vunpack.c.h.b16 %v3144
    %v3470 = vunpack.c.l.b16 %v3145
    %v3471 = vunpack.c.l.b16 %v3146
    %v3472 = vunpack.c.h.b16 %v3146
    %v3473 = vunpack.c.l.b16 %v3147
    %v3474 = vunpack.c.l.b16 %v3148
    %v3475 = vunpack.c.h.b16 %v3148
    %v3476 = vunpack.c.l.b16 %v3149
    %v3477 = vunpack.c.l.b16 %v3150
    %v3478 = vunpack.c.h.b16 %v3150
    %v3479 = vunpack.c.l.b16 %v3151
    %v3480 = vunpack.c.l.b16 %v3152
    %v3481 = vunpack.c.h.b16 %v3152
    %v3482 = vunpack.c.l.b16 %v3153
    %v3483 = vunpack.c.l.b16 %v3154
    %v3484 = vunpack.c.h.b16 %v3154
    %v3485 = vunpack.c.l.b16 %v3155
    %v3486 = vunpack.c.l.b16 %v3156
    %v3487 = vunpack.c.h.b16 %v3156
    %v3488 = vunpack.c.l.b16 %v3157
    %v3489 = vunpack.c.l.b16 %v3158
    %v3490 = vunpack.c.h.b16 %v3158
    %v3491 = vunpack.c.l.b16 %v3159
    %v3492 = vunpack.c.l.b16 %v3160
    %v3493 = vunpack.c.h.b16 %v3160
    %v3494 = vunpack.c.l.b16 %v3161
    %v3495 = vunpack.c.l.b16 %v3162
    %v3496 = vunpack.c.h.b16 %v3162
    %v3497 = vunpack.c.l.b16 %v3163
    %v3498 = vunpack.c.l.b16 %v3164
    %v3499 = vunpack.c.h.b16 %v3164
    %v3500 = vunpack.c.l.b16 %v3165
    %v3501 = vunpack.c.l.b16 %v3166
    %v3502 = vunpack.c.h.b16 %v3166
    %v3503 = vunpack.c.l.b16 %v3167
    %v3504 = vunpack.c.l.b16 %v3168
    %v3505 = vunpack.c.h.b16 %v3168
    %v3506 = vunpack.c.l.b16 %v3169
    %v3507 = vunpack.c.l.b16 %v3170
    %v3508 = vunpack.c.h.b16 %v3170
    %v3509 = vunpack.c.l.b16 %v3171
    %v3510 = vunpack.c.l.b16 %v3172
    %v3511 = vunpack.c.h.b16 %v3172
    %v3512 = vunpack.c.l.b16 %v3173
    %v3513 = vunpack.c.l.b16 %v3174
    %v3514 = vunpack.c.h.b16 %v3174
    %v3515 = vunpack.c.l.b16 %v3175
    %v3516 = vunpack.c.l.b16 %v3176
    %v3517 = vunpack.c.h.b16 %v3176
    %v3518 = vunpack.c.l.b16 %v3177
    %v3519 = vunpack.c.l.b16 %v3178
    %v3520 = vunpack.c.h.b16 %v3178
    %v3521 = vunpack.c.l.b16 %v3179
    %v3522 = vunpack.c.l.b16 %v3180
    %v3523 = vunpack.c.h.b16 %v3180
    %v3524 = vunpack.c.l.b16 %v3181
    %v3525 = vunpack.c.l.b16 %v3182
    %v3526 = vunpack.c.h.b16 %v3182
    %v3527 = vunpack.c.l.b16 %v3183
    %v3528 = vunpack.c.l.b16 %v3184
    %v3529 = vunpack.c.h.b16 %v3184
    %v3530 = vunpack.c.l.b16 %v3185
    %v3531 = vunpack.c.l.b16 %v3186
    %v3532 = vunpack.c.h.b16 %v3186
    %v3533 = vunpack.c.l.b16 %v3187
    %v3534 = vunpack.c.l.b16 %v3188
    %v3535 = vunpack.c.h.b16 %v3188
    %v3536 = vunpack.c.l.b16 %v3189
    %v3537 = vunpack.c.l.b16 %v3190
    %v3538 = vunpack.c.h.b16 %v3190
    %v3539 = vunpack.c.l.b16 %v3191
    %v3540 = vunpack.c.l.b16 %v3192
    %v3541 = vunpack.c.h.b16 %v3192
    %v3542 = vunpack.c.l.b16 %v3193
    %v3543 = vunpack.c.l.b16 %v3194
    %v3544 = vunpack.c.h.b16 %v3194
    %v3545 = vunpack.c.l.b16 %v3195
    %v3546 = vunpack.c.l.b16 %v3196
    %v3547 = vunpack.c.h.b16 %v3196
    %v3548 = vunpack.c.l.b16 %v3197
    %v3549 = vunpack.c.l.b16 %v3198
    %v3550 = vunpack.c.h.b16 %v3198
    %v3551 = vunpack.c.l.b16 %v3199
    %v3552 = vunpack.c.l.b16 %v3200
    %v3553 = vunpack.c.h.b16 %v3200
    %v3554 = vunpack.c.l.b16 %v3201
    %v3555 = vunpack.c.l.b16 %v3202
    %v3556 = vunpack.c.h.b16 %v3202
    %v3557 = vunpack.c.l.b16 %v3203
    %v3558 = vunpack.c.l.b16 %v3204
    %v3559 = vunpack.c.h.b16 %v3204
    %v3560 = vunpack.c.l.b16 %v3205
    %v3561 = vunpack.c.l.b16 %v3206
    %v3562 = vunpack.c.h.b16 %v3206
    %v3563 = vunpack.c.l.b16 %v3207
    %v3564 = vunpack.c.l.b16 %v3208
    %v3565 = vunpack.c.h.b16 %v3208
    %v3566 = vunpack.c.l.b16 %v3209
    %v3567 = vunpack.c.l.b16 %v3210
    %v3568 = vunpack.c.h.b16 %v3210
    %v3569 = vunpack.c.l.b16 %v3211
    %v3570 = vunpack.c.l.b16 %v3212
    %v3571 = vunpack.c.h.b16 %v3212
    %v3572 = vunpack.c.l.b16 %v3213
    %v3573 = vunpack.c.l.b16 %v3214
    %v3574 = vunpack.c.h.b16 %v3214
    %v3575 = vunpack.c.l.b16 %v3215
    %v3576 = vunpack.c.l.b16 %v3216
    %v3577 = vunpack.c.h.b16 %v3216
    %v3578 = vunpack.c.l.b16 %v3217
    %v3579 = vunpack.c.l.b16 %v3218
    %v3580 = vunpack.c.h.b16 %v3218
    %v3581 = vunpack.c.l.b16 %v3219
    %v3582 = vunpack.c.l.b16 %v3220
    %v3583 = vunpack.c.h.b16 %v3220
    %v3584 = vunpack.c.l.b16 %v3221
    %v3585 = vpack.c.b16 %v3396, %v3393
    %v3586 = vpack.c.b16 %v3397, %v3394
    %v3587 = vpack.c.b16 %v3398, %v3395
    %v3588 = vpack.c.b16 %v3402, %v3399
    %v3589 = vpack.c.b16 %v3403, %v3400
    %v3590 = vpack.c.b16 %v3404, %v3401
    %v3591 = vpack.c.b16 %v3408, %v3405
    %v3592 = vpack.c.b16 %v3409, %v3406
    %v3593 = vpack.c.b16 %v3410, %v3407
    %v3594 = vpack.c.b16 %v3414, %v3411
    %v3595 = vpack.c.b16 %v3415, %v3412
    %v3596 = vpack.c.b16 %v3416, %v3413
    %v3597 = vpack.c.b16 %v3420, %v3417
    %v3598 = vpack.c.b16 %v3421, %v3418
    %v3599 = vpack.c.b16 %v3422, %v3419
    %v3600 = vpack.c.b16 %v3426, %v3423
    %v3601 = vpack.c.b16 %v3427, %v3424
    %v3602 = vpack.c.b16 %v3428, %v3425
    %v3603 = vpack.c.b16 %v3432, %v3429
    %v3604 = vpack.c.b16 %v3433, %v3430
    %v3605 = vpack.c.b16 %v3434, %v3431
    %v3606 = vpack.c.b16 %v3438, %v3435
    %v3607 = vpack.c.b16 %v3439, %v3436
    %v3608 = vpack.c.b16 %v3440, %v3437
    %v3609 = vpack.c.b16 %v3444, %v3441
    %v3610 = vpack.c.b16 %v3445, %v3442
    %v3611 = vpack.c.b16 %v3446, %v3443
    %v3612 = vpack.c.b16 %v3450, %v3447
    %v3613 = vpack.c.b16 %v3451, %v3448
    %v3614 = vpack.c.b16 %v3452, %v3449
    %v3615 = vpack.c.b16 %v3456, %v3453
    %v3616 = vpack.c.b16 %v3457, %v3454
    %v3617 = vpack.c.b16 %v3458, %v3455
    %v3618 = vpack.c.b16 %v3462, %v3459
    %v3619 = vpack.c.b16 %v3463, %v3460
    %v3620 = vpack.c.b16 %v3464, %v3461
    %v3621 = vpack.c.b16 %v3468, %v3465
    %v3622 = vpack.c.b16 %v3469, %v3466
    %v3623 = vpack.c.b16 %v3470, %v3467
    %v3624 = vpack.c.b16 %v3474, %v3471
    %v3625 = vpack.c.b16 %v3475, %v3472
    %v3626 = vpack.c.b16 %v3476, %v3473
    %v3627 = vpack.c.b16 %v3480, %v3477
    %v3628 = vpack.c.b16 %v3481, %v3478
    %v3629 = vpack.c.b16 %v3482, %v3479
    %v3630 = vpack.c.b16 %v3486, %v3483
    %v3631 = vpack.c.b16 %v3487, %v3484
    %v3632 = vpack.c.b16 %v3488, %v3485
    %v3633 = vpack.c.b16 %v3492, %v3489
    %v3634 = vpack.c.b16 %v3493, %v3490
    %v3635 = vpack.c.b16 %v3494, %v3491
    %v3636 = vpack.c.b16 %v3498, %v3495
    %v3637 = vpack.c.b16 %v3499, %v3496
    %v3638 = vpack.c.b16 %v3500, %v3497
    %v3639 = vpack.c.b16 %v3504, %v3501
    %v3640 = vpack.c.b16 %v3505, %v3502
    %v3641 = vpack.c.b16 %v3506, %v3503
    %v3642 = vpack.c.b16 %v3510, %v3507
    %v3643 = vpack.c.b16 %v3511, %v3508
    %v3644 = vpack.c.b16 %v3512, %v3509
    %v3645 = vpack.c.b16 %v3516, %v3513
    %v3646 = vpack.c.b16 %v3517, %v3514
    %v3647 = vpack.c.b16 %v3518, %v3515
    %v3648 = vpack.c.b16 %v3522, %v3519
    %v3649 = vpack.c.b16 %v3523, %v3520
    %v3650 = vpack.c.b16 %v3524, %v3521
    %v3651 = vpack.c.b16 %v3528, %v3525
    %v3652 = vpack.c.b16 %v3529, %v3526
    %v3653 = vpack.c.b16 %v3530, %v3527
    %v3654 = vpack.c.b16 %v3534, %v3531
    %v3655 = vpack.c.b16 %v3535, %v3532
    %v3656 = vpack.c.b16 %v3536, %v3533
    %v3657 = vpack.c.b16 %v3540, %v3537
    %v3658 = vpack.c.b16 %v3541, %v3538
    %v3659 = vpack.c.b16 %v3542, %v3539
    %v3660 = vpack.c.b16 %v3546, %v3543
    %v3661 = vpack.c.b16 %v3547, %v3544
    %v3662 = vpack.c.b16 %v3548, %v3545
    %v3663 = vpack.c.b16 %v3552, %v3549
    %v3664 = vpack.c.b16 %v3553, %v3550
    %v3665 = vpack.c.b16 %v3554, %v3551
    %v3666 = vpack.c.b16 %v3558, %v3555
    %v3667 = vpack.c.b16 %v3559, %v3556
    %v3668 = vpack.c.b16 %v3560, %v3557
    %v3669 = vpack.c.b16 %v3564, %v3561
    %v3670 = vpack.c.b16 %v3565, %v3562
    %v3671 = vpack.c.b16 %v3566, %v3563
    %v3672 = vpack.c.b16 %v3570, %v3567
    %v3673 = vpack.c.b16 %v3571, %v3568
    %v3674 = vpack.c.b16 %v3572, %v3569
    %v3675 = vpack.c.b16 %v3576, %v3573
    %v3676 = vpack.c.b16 %v3577, %v3574
    %v3677 = vpack.c.b16 %v3578, %v3575
    %v3678 = vpack.c.b16 %v3582, %v3579
    %v3679 = vpack.c.b16 %v3583, %v3580
    %v3680 = vpack.c.b16 %v3584, %v3581
    %v3781 = vunpack.c.l.b16 %v3222
    %v3782 = vunpack.c.h.b16 %v3222
    %v3783 = vunpack.c.l.b16 %v3223
    %v3784 = vunpack.c.h.b16 %v3223
    %v3785 = vunpack.c.l.b16 %v3224
    %v3786 = vunpack.c.h.b16 %v3224
    %v3787 = vunpack.c.l.b16 %v3225
    %v3788 = vunpack.c.h.b16 %v3225
    %v3789 = vunpack.c.l.b16 %v3226
    %v3790 = vunpack.c.h.b16 %v3226
    %v3791 = vunpack.c.l.b16 %v3227
    %v3792 = vunpack.c.h.b16 %v3227
    %v3793 = vunpack.c.l.b16 %v3228
    %v3794 = vunpack.c.h.b16 %v3228
    %v3795 = vunpack.c.l.b16 %v3229
    %v3796 = vunpack.c.h.b16 %v3229
    %v3797 = vunpack.c.l.b16 %v3230
    %v3798 = vunpack.c.h.b16 %v3230
    %v3799 = vunpack.c.l.b16 %v3231
    %v3800 = vunpack.c.h.b16 %v3231
    %v3801 = vunpack.c.l.b16 %v3232
    %v3802 = vunpack.c.h.b16 %v3232
    %v3803 = vunpack.c.l.b16 %v3233
    %v3804 = vunpack.c.h.b16 %v3233
    %v3805 = vunpack.c.l.b16 %v3234
    %v3806 = vunpack.c.h.b16 %v3234
    %v3807 = vunpack.c.l.b16 %v3235
    %v3808 = vunpack.c.h.b16 %v3235
    %v3809 = vunpack.c.l.b16 %v3236
    %v3810 = vunpack.c.h.b16 %v3236
    %v3811 = vunpack.c.l.b16 %v3237
    %v3812 = vunpack.c.h.b16 %v3237
    %v3813 = vunpack.c.l.b16 %v3238
    %v3814 = vunpack.c.h.b16 %v3238
    %v3815 = vunpack.c.l.b16 %v3239
    %v3816 = vunpack.c.h.b16 %v3239
    %v3817 = vunpack.c.l.b16 %v3240
    %v3818 = vunpack.c.h.b16 %v3240
    %v3819 = vunpack.c.l.b16 %v3241
    %v3820 = vunpack.c.h.b16 %v3241
    %v3821 = vunpack.c.l.b16 %v3242
    %v3822 = vunpack.c.h.b16 %v3242
    %v3823 = vunpack.c.l.b16 %v3243
    %v3824 = vunpack.c.h.b16 %v3243
    %v3825 = vunpack.c.l.b16 %v3244
    %v3826 = vunpack.c.h.b16 %v3244
    %v3827 = vunpack.c.l.b16 %v3245
    %v3828 = vunpack.c.h.b16 %v3245
    %v3829 = vunpack.c.l.b16 %v3246
    %v3830 = vunpack.c.h.b16 %v3246
    %v3831 = vunpack.c.l.b16 %v3247
    %v3832 = vunpack.c.h.b16 %v3247
    %v3833 = vunpack.c.l.b16 %v3248
    %v3834 = vunpack.c.h.b16 %v3248
    %v3835 = vunpack.c.l.b16 %v3249
    %v3836 = vunpack.c.h.b16 %v3249
    %v3837 = vunpack.c.l.b16 %v3250
    %v3838 = vunpack.c.h.b16 %v3250
    %v3839 = vunpack.c.l.b16 %v3251
    %v3840 = vunpack.c.h.b16 %v3251
    %v3841 = vunpack.c.l.b16 %v3252
    %v3842 = vunpack.c.h.b16 %v3252
    %v3843 = vunpack.c.l.b16 %v3253
    %v3844 = vunpack.c.h.b16 %v3253
    %v3845 = vunpack.c.l.b16 %v3254
    %v3846 = vunpack.c.h.b16 %v3254
    %v3847 = vunpack.c.l.b16 %v3255
    %v3848 = vunpack.c.h.b16 %v3255
    %v3849 = vunpack.c.l.b16 %v3256
    %v3850 = vunpack.c.h.b16 %v3256
    %v3851 = vunpack.c.l.b16 %v3257
    %v3852 = vunpack.c.h.b16 %v3257
    %v3853 = vpack.c.b16 %v3783, %v3781
    %v3854 = vpack.c.b16 %v3784, %v3782
    %v3855 = vpack.c.b16 %v3787, %v3785
    %v3856 = vpack.c.b16 %v3788, %v3786
    %v3857 = vpack.c.b16 %v3791, %v3789
    %v3858 = vpack.c.b16 %v3792, %v3790
    %v3859 = vpack.c.b16 %v3795, %v3793
    %v3860 = vpack.c.b16 %v3796, %v3794
    %v3861 = vpack.c.b16 %v3799, %v3797
    %v3862 = vpack.c.b16 %v3800, %v3798
    %v3863 = vpack.c.b16 %v3803, %v3801
    %v3864 = vpack.c.b16 %v3804, %v3802
    %v3865 = vpack.c.b16 %v3807, %v3805
    %v3866 = vpack.c.b16 %v3808, %v3806
    %v3867 = vpack.c.b16 %v3811, %v3809
    %v3868 = vpack.c.b16 %v3812, %v3810
    %v3869 = vpack.c.b16 %v3815, %v3813
    %v3870 = vpack.c.b16 %v3816, %v3814
    %v3871 = vpack.c.b16 %v3819, %v3817
    %v3872 = vpack.c.b16 %v3820, %v3818
    %v3873 = vpack.c.b16 %v3823, %v3821
    %v3874 = vpack.c.b16 %v3824, %v3822
    %v3875 = vpack.c.b16 %v3827, %v3825
    %v3876 = vpack.c.b16 %v3828, %v3826
    %v3877 = vpack.c.b16 %v3831, %v3829
    %v3878 = vpack.c.b16 %v3832, %v3830
    %v3879 = vpack.c.b16 %v3835, %v3833
    %v3880 = vpack.c.b16 %v3836, %v3834
    %v3881 = vpack.c.b16 %v3839, %v3837
    %v3882 = vpack.c.b16 %v3840, %v3838
    %v3883 = vpack.c.b16 %v3843, %v3841
    %v3884 = vpack.c.b16 %v3844, %v3842
    %v3885 = vpack.c.b16 %v3847, %v3845
    %v3886 = vpack.c.b16 %v3848, %v3846
    %v3887 = vpack.c.b16 %v3851, %v3849
    %v3888 = vpack.c.b16 %v3852, %v3850
    %v3926 = vsel %vm389, %v3587, 0
    %v3929 = vsel %vm389, %v3590, 0
    %v3932 = vsel %vm389, %v3593, 0
    %v3935 = vsel %vm389, %v3596, 0
    %v3938 = vsel %vm389, %v3599, 0
    %v3941 = vsel %vm389, %v3602, 0
    %v3944 = vsel %vm389, %v3605, 0
    %v3947 = vsel %vm389, %v3608, 0
    %v3950 = vsel %vm389, %v3611, 0
    %v3953 = vsel %vm389, %v3614, 0
    %v3956 = vsel %vm389, %v3617, 0
    %v3959 = vsel %vm389, %v3620, 0
    %v3962 = vsel %vm389, %v3623, 0
    %v3965 = vsel %vm389, %v3626, 0
    %v3968 = vsel %vm389, %v3629, 0
    %v3971 = vsel %vm389, %v3632, 0
    %v3974 = vsel %vm389, %v3635, 0
    %v3977 = vsel %vm389, %v3638, 0
    %v3980 = vsel %vm389, %v3641, 0
    %v3983 = vsel %vm389, %v3644, 0
    %v3986 = vsel %vm389, %v3647, 0
    %v3989 = vsel %vm389, %v3650, 0
    %v3992 = vsel %vm389, %v3653, 0
    %v3995 = vsel %vm389, %v3656, 0
    %v3998 = vsel %vm389, %v3659, 0
    %v4001 = vsel %vm389, %v3662, 0
    %v4004 = vsel %vm389, %v3665, 0
    %v4007 = vsel %vm389, %v3668, 0
    %v4010 = vsel %vm389, %v3671, 0
    %v4013 = vsel %vm389, %v3674, 0
    %v4016 = vsel %vm389, %v3677, 0
    %v4019 = vsel %vm389, %v3680, 0
    %4021 = vmatpush.bf16.msra.mxu0 %v3867
    %4022 = vmatpush.bf16.msra.mxu0 %v3865
    %4023 = vmatpush.bf16.msra.mxu0 %v3863
    %4024 = vmatpush.bf16.msra.mxu0 %v3861
    %4025 = vmatpush.bf16.msra.mxu0 %v3859
    %4026 = vmatpush.bf16.msra.mxu0 %v3857
    %4027 = vmatpush.bf16.msra.mxu0 %v3855
    %4028 = vmatpush.bf16.msra.mxu0 %v3853
    %4029 = vmatmul.bf16.gmra.mxu0 %v3585
    %v4030 = vpop.f32.mrf.mxu0
    %v4031 = vadd.f32 %v3261, %v4030
    %v4032 = vpop.f32.mrf.mxu0
    %v4033 = vadd.f32 %v3261, %v4032
    %4034 = vmatmul.bf16.gmra.mxu0 %v3588
    %v4035 = vpop.f32.mrf.mxu0
    %v4036 = vadd.f32 %v3261, %v4035
    %v4037 = vpop.f32.mrf.mxu0
    %v4038 = vadd.f32 %v3261, %v4037
    %4039 = vmatmul.bf16.gmra.mxu0 %v3591
    %v4040 = vpop.f32.mrf.mxu0
    %v4041 = vadd.f32 %v3261, %v4040
    %v4042 = vpop.f32.mrf.mxu0
    %v4043 = vadd.f32 %v3261, %v4042
    %4044 = vmatmul.bf16.gmra.mxu0 %v3594
    %v4045 = vpop.f32.mrf.mxu0
    %v4046 = vadd.f32 %v3261, %v4045
    %v4047 = vpop.f32.mrf.mxu0
    %v4048 = vadd.f32 %v3261, %v4047
    %4049 = vmatmul.bf16.gmra.mxu0 %v3597
    %v4050 = vpop.f32.mrf.mxu0
    %v4051 = vadd.f32 %v3261, %v4050
    %v4052 = vpop.f32.mrf.mxu0
    %v4053 = vadd.f32 %v3261, %v4052
    %4054 = vmatmul.bf16.gmra.mxu0 %v3600
    %v4055 = vpop.f32.mrf.mxu0
    %v4056 = vadd.f32 %v3261, %v4055
    %v4057 = vpop.f32.mrf.mxu0
    %v4058 = vadd.f32 %v3261, %v4057
    %4059 = vmatmul.bf16.gmra.mxu0 %v3603
    %v4060 = vpop.f32.mrf.mxu0
    %v4061 = vadd.f32 %v3261, %v4060
    %v4062 = vpop.f32.mrf.mxu0
    %v4063 = vadd.f32 %v3261, %v4062
    %4064 = vmatmul.bf16.gmra.mxu0 %v3606
    %v4065 = vpop.f32.mrf.mxu0
    %v4066 = vadd.f32 %v3261, %v4065
    %v4067 = vpop.f32.mrf.mxu0
    %v4068 = vadd.f32 %v3261, %v4067
    %4069 = vmatmul.bf16.gmra.mxu0 %v3609
    %v4070 = vpop.f32.mrf.mxu0
    %v4071 = vadd.f32 %v3261, %v4070
    %v4072 = vpop.f32.mrf.mxu0
    %v4073 = vadd.f32 %v3261, %v4072
    %4074 = vmatmul.bf16.gmra.mxu0 %v3612
    %v4075 = vpop.f32.mrf.mxu0
    %v4076 = vadd.f32 %v3261, %v4075
    %v4077 = vpop.f32.mrf.mxu0
    %v4078 = vadd.f32 %v3261, %v4077
    %4079 = vmatmul.bf16.gmra.mxu0 %v3615
    %v4080 = vpop.f32.mrf.mxu0
    %v4081 = vadd.f32 %v3261, %v4080
    %v4082 = vpop.f32.mrf.mxu0
    %v4083 = vadd.f32 %v3261, %v4082
    %4084 = vmatmul.bf16.gmra.mxu0 %v3618
    %v4085 = vpop.f32.mrf.mxu0
    %v4086 = vadd.f32 %v3261, %v4085
    %v4087 = vpop.f32.mrf.mxu0
    %v4088 = vadd.f32 %v3261, %v4087
    %4089 = vmatmul.bf16.gmra.mxu0 %v3621
    %v4090 = vpop.f32.mrf.mxu0
    %v4091 = vadd.f32 %v3261, %v4090
    %v4092 = vpop.f32.mrf.mxu0
    %v4093 = vadd.f32 %v3261, %v4092
    %4094 = vmatmul.bf16.gmra.mxu0 %v3624
    %v4095 = vpop.f32.mrf.mxu0
    %v4096 = vadd.f32 %v3261, %v4095
    %v4097 = vpop.f32.mrf.mxu0
    %v4098 = vadd.f32 %v3261, %v4097
    %4099 = vmatmul.bf16.gmra.mxu0 %v3627
    %v4100 = vpop.f32.mrf.mxu0
    %v4101 = vadd.f32 %v3261, %v4100
    %v4102 = vpop.f32.mrf.mxu0
    %v4103 = vadd.f32 %v3261, %v4102
    %4104 = vmatmul.bf16.gmra.mxu0 %v3630
    %v4105 = vpop.f32.mrf.mxu0
    %v4106 = vadd.f32 %v3261, %v4105
    %v4107 = vpop.f32.mrf.mxu0
    %v4108 = vadd.f32 %v3261, %v4107
    %4109 = vmatmul.bf16.gmra.mxu0 %v3633
    %v4110 = vpop.f32.mrf.mxu0
    %v4111 = vadd.f32 %v3261, %v4110
    %v4112 = vpop.f32.mrf.mxu0
    %v4113 = vadd.f32 %v3261, %v4112
    %4114 = vmatmul.bf16.gmra.mxu0 %v3636
    %v4115 = vpop.f32.mrf.mxu0
    %v4116 = vadd.f32 %v3261, %v4115
    %v4117 = vpop.f32.mrf.mxu0
    %v4118 = vadd.f32 %v3261, %v4117
    %4119 = vmatmul.bf16.gmra.mxu0 %v3639
    %v4120 = vpop.f32.mrf.mxu0
    %v4121 = vadd.f32 %v3261, %v4120
    %v4122 = vpop.f32.mrf.mxu0
    %v4123 = vadd.f32 %v3261, %v4122
    %4124 = vmatmul.bf16.gmra.mxu0 %v3642
    %v4125 = vpop.f32.mrf.mxu0
    %v4126 = vadd.f32 %v3261, %v4125
    %v4127 = vpop.f32.mrf.mxu0
    %v4128 = vadd.f32 %v3261, %v4127
    %4129 = vmatmul.bf16.gmra.mxu0 %v3645
    %v4130 = vpop.f32.mrf.mxu0
    %v4131 = vadd.f32 %v3261, %v4130
    %v4132 = vpop.f32.mrf.mxu0
    %v4133 = vadd.f32 %v3261, %v4132
    %4134 = vmatmul.bf16.gmra.mxu0 %v3648
    %v4135 = vpop.f32.mrf.mxu0
    %v4136 = vadd.f32 %v3261, %v4135
    %v4137 = vpop.f32.mrf.mxu0
    %v4138 = vadd.f32 %v3261, %v4137
    %4139 = vmatmul.bf16.gmra.mxu0 %v3651
    %v4140 = vpop.f32.mrf.mxu0
    %v4141 = vadd.f32 %v3261, %v4140
    %v4142 = vpop.f32.mrf.mxu0
    %v4143 = vadd.f32 %v3261, %v4142
    %4144 = vmatmul.bf16.gmra.mxu0 %v3654
    %v4145 = vpop.f32.mrf.mxu0
    %v4146 = vadd.f32 %v3261, %v4145
    %v4147 = vpop.f32.mrf.mxu0
    %v4148 = vadd.f32 %v3261, %v4147
    %4149 = vmatmul.bf16.gmra.mxu0 %v3657
    %v4150 = vpop.f32.mrf.mxu0
    %v4151 = vadd.f32 %v3261, %v4150
    %v4152 = vpop.f32.mrf.mxu0
    %v4153 = vadd.f32 %v3261, %v4152
    %4154 = vmatmul.bf16.gmra.mxu0 %v3660
    %v4155 = vpop.f32.mrf.mxu0
    %v4156 = vadd.f32 %v3261, %v4155
    %v4157 = vpop.f32.mrf.mxu0
    %v4158 = vadd.f32 %v3261, %v4157
    %4159 = vmatmul.bf16.gmra.mxu0 %v3663
    %v4160 = vpop.f32.mrf.mxu0
    %v4161 = vadd.f32 %v3261, %v4160
    %v4162 = vpop.f32.mrf.mxu0
    %v4163 = vadd.f32 %v3261, %v4162
    %4164 = vmatmul.bf16.gmra.mxu0 %v3666
    %v4165 = vpop.f32.mrf.mxu0
    %v4166 = vadd.f32 %v3261, %v4165
    %v4167 = vpop.f32.mrf.mxu0
    %v4168 = vadd.f32 %v3261, %v4167
    %4169 = vmatmul.bf16.gmra.mxu0 %v3669
    %v4170 = vpop.f32.mrf.mxu0
    %v4171 = vadd.f32 %v3261, %v4170
    %v4172 = vpop.f32.mrf.mxu0
    %v4173 = vadd.f32 %v3261, %v4172
    %4174 = vmatmul.bf16.gmra.mxu0 %v3672
    %v4175 = vpop.f32.mrf.mxu0
    %v4176 = vadd.f32 %v3261, %v4175
    %v4177 = vpop.f32.mrf.mxu0
    %v4178 = vadd.f32 %v3261, %v4177
    %4179 = vmatmul.bf16.gmra.mxu0 %v3675
    %v4180 = vpop.f32.mrf.mxu0
    %v4181 = vadd.f32 %v3261, %v4180
    %v4182 = vpop.f32.mrf.mxu0
    %v4183 = vadd.f32 %v3261, %v4182
    %4184 = vmatmul.bf16.gmra.mxu0 %v3678
    %v4185 = vpop.f32.mrf.mxu0
    %v4186 = vadd.f32 %v3261, %v4185
    %v4187 = vpop.f32.mrf.mxu0
    %v4188 = vadd.f32 %v3261, %v4187
    %4189 = vdwg.mxu0
    %4190 = vmatpush.bf16.msra.mxu0 %v3883
    %4191 = vmatpush.bf16.msra.mxu0 %v3881
    %4192 = vmatpush.bf16.msra.mxu0 %v3879
    %4193 = vmatpush.bf16.msra.mxu0 %v3877
    %4194 = vmatpush.bf16.msra.mxu0 %v3875
    %4195 = vmatpush.bf16.msra.mxu0 %v3873
    %4196 = vmatpush.bf16.msra.mxu0 %v3871
    %4197 = vmatpush.bf16.msra.mxu0 %v3869
    %4198 = vmatmul.bf16.gmra.mxu0 %v3586
    %v4199 = vpop.f32.mrf.mxu0
    %v4200 = vadd.f32 %v4031, %v4199
    %v4201 = vpop.f32.mrf.mxu0
    %v4202 = vadd.f32 %v4033, %v4201
    %4203 = vmatmul.bf16.gmra.mxu0 %v3589
    %v4204 = vpop.f32.mrf.mxu0
    %v4205 = vadd.f32 %v4036, %v4204
    %v4206 = vpop.f32.mrf.mxu0
    %v4207 = vadd.f32 %v4038, %v4206
    %4208 = vmatmul.bf16.gmra.mxu0 %v3592
    %v4209 = vpop.f32.mrf.mxu0
    %v4210 = vadd.f32 %v4041, %v4209
    %v4211 = vpop.f32.mrf.mxu0
    %v4212 = vadd.f32 %v4043, %v4211
    %4213 = vmatmul.bf16.gmra.mxu0 %v3595
    %v4214 = vpop.f32.mrf.mxu0
    %v4215 = vadd.f32 %v4046, %v4214
    %v4216 = vpop.f32.mrf.mxu0
    %v4217 = vadd.f32 %v4048, %v4216
    %4218 = vmatmul.bf16.gmra.mxu0 %v3598
    %v4219 = vpop.f32.mrf.mxu0
    %v4220 = vadd.f32 %v4051, %v4219
    %v4221 = vpop.f32.mrf.mxu0
    %v4222 = vadd.f32 %v4053, %v4221
    %4223 = vmatmul.bf16.gmra.mxu0 %v3601
    %v4224 = vpop.f32.mrf.mxu0
    %v4225 = vadd.f32 %v4056, %v4224
    %v4226 = vpop.f32.mrf.mxu0
    %v4227 = vadd.f32 %v4058, %v4226
    %4228 = vmatmul.bf16.gmra.mxu0 %v3604
    %v4229 = vpop.f32.mrf.mxu0
    %v4230 = vadd.f32 %v4061, %v4229
    %v4231 = vpop.f32.mrf.mxu0
    %v4232 = vadd.f32 %v4063, %v4231
    %4233 = vmatmul.bf16.gmra.mxu0 %v3607
    %v4234 = vpop.f32.mrf.mxu0
    %v4235 = vadd.f32 %v4066, %v4234
    %v4236 = vpop.f32.mrf.mxu0
    %v4237 = vadd.f32 %v4068, %v4236
    %4238 = vmatmul.bf16.gmra.mxu0 %v3610
    %v4239 = vpop.f32.mrf.mxu0
    %v4240 = vadd.f32 %v4071, %v4239
    %v4241 = vpop.f32.mrf.mxu0
    %v4242 = vadd.f32 %v4073, %v4241
    %4243 = vmatmul.bf16.gmra.mxu0 %v3613
    %v4244 = vpop.f32.mrf.mxu0
    %v4245 = vadd.f32 %v4076, %v4244
    %v4246 = vpop.f32.mrf.mxu0
    %v4247 = vadd.f32 %v4078, %v4246
    %4248 = vmatmul.bf16.gmra.mxu0 %v3616
    %v4249 = vpop.f32.mrf.mxu0
    %v4250 = vadd.f32 %v4081, %v4249
    %v4251 = vpop.f32.mrf.mxu0
    %v4252 = vadd.f32 %v4083, %v4251
    %4253 = vmatmul.bf16.gmra.mxu0 %v3619
    %v4254 = vpop.f32.mrf.mxu0
    %v4255 = vadd.f32 %v4086, %v4254
    %v4256 = vpop.f32.mrf.mxu0
    %v4257 = vadd.f32 %v4088, %v4256
    %4258 = vmatmul.bf16.gmra.mxu0 %v3622
    %v4259 = vpop.f32.mrf.mxu0
    %v4260 = vadd.f32 %v4091, %v4259
    %v4261 = vpop.f32.mrf.mxu0
    %v4262 = vadd.f32 %v4093, %v4261
    %4263 = vmatmul.bf16.gmra.mxu0 %v3625
    %v4264 = vpop.f32.mrf.mxu0
    %v4265 = vadd.f32 %v4096, %v4264
    %v4266 = vpop.f32.mrf.mxu0
    %v4267 = vadd.f32 %v4098, %v4266
    %4268 = vmatmul.bf16.gmra.mxu0 %v3628
    %v4269 = vpop.f32.mrf.mxu0
    %v4270 = vadd.f32 %v4101, %v4269
    %v4271 = vpop.f32.mrf.mxu0
    %v4272 = vadd.f32 %v4103, %v4271
    %4273 = vmatmul.bf16.gmra.mxu0 %v3631
    %v4274 = vpop.f32.mrf.mxu0
    %v4275 = vadd.f32 %v4106, %v4274
    %v4276 = vpop.f32.mrf.mxu0
    %v4277 = vadd.f32 %v4108, %v4276
    %4278 = vmatmul.bf16.gmra.mxu0 %v3634
    %v4279 = vpop.f32.mrf.mxu0
    %v4280 = vadd.f32 %v4111, %v4279
    %v4281 = vpop.f32.mrf.mxu0
    %v4282 = vadd.f32 %v4113, %v4281
    %4283 = vmatmul.bf16.gmra.mxu0 %v3637
    %v4284 = vpop.f32.mrf.mxu0
    %v4285 = vadd.f32 %v4116, %v4284
    %v4286 = vpop.f32.mrf.mxu0
    %v4287 = vadd.f32 %v4118, %v4286
    %4288 = vmatmul.bf16.gmra.mxu0 %v3640
    %v4289 = vpop.f32.mrf.mxu0
    %v4290 = vadd.f32 %v4121, %v4289
    %v4291 = vpop.f32.mrf.mxu0
    %v4292 = vadd.f32 %v4123, %v4291
    %4293 = vmatmul.bf16.gmra.mxu0 %v3643
    %v4294 = vpop.f32.mrf.mxu0
    %v4295 = vadd.f32 %v4126, %v4294
    %v4296 = vpop.f32.mrf.mxu0
    %v4297 = vadd.f32 %v4128, %v4296
    %4298 = vmatmul.bf16.gmra.mxu0 %v3646
    %v4299 = vpop.f32.mrf.mxu0
    %v4300 = vadd.f32 %v4131, %v4299
    %v4301 = vpop.f32.mrf.mxu0
    %v4302 = vadd.f32 %v4133, %v4301
    %4303 = vmatmul.bf16.gmra.mxu0 %v3649
    %v4304 = vpop.f32.mrf.mxu0
    %v4305 = vadd.f32 %v4136, %v4304
    %v4306 = vpop.f32.mrf.mxu0
    %v4307 = vadd.f32 %v4138, %v4306
    %4308 = vmatmul.bf16.gmra.mxu0 %v3652
    %v4309 = vpop.f32.mrf.mxu0
    %v4310 = vadd.f32 %v4141, %v4309
    %v4311 = vpop.f32.mrf.mxu0
    %v4312 = vadd.f32 %v4143, %v4311
    %4313 = vmatmul.bf16.gmra.mxu0 %v3655
    %v4314 = vpop.f32.mrf.mxu0
    %v4315 = vadd.f32 %v4146, %v4314
    %v4316 = vpop.f32.mrf.mxu0
    %v4317 = vadd.f32 %v4148, %v4316
    %4318 = vmatmul.bf16.gmra.mxu0 %v3658
    %v4319 = vpop.f32.mrf.mxu0
    %v4320 = vadd.f32 %v4151, %v4319
    %v4321 = vpop.f32.mrf.mxu0
    %v4322 = vadd.f32 %v4153, %v4321
    %4323 = vmatmul.bf16.gmra.mxu0 %v3661
    %v4324 = vpop.f32.mrf.mxu0
    %v4325 = vadd.f32 %v4156, %v4324
    %v4326 = vpop.f32.mrf.mxu0
    %v4327 = vadd.f32 %v4158, %v4326
    %4328 = vmatmul.bf16.gmra.mxu0 %v3664
    %v4329 = vpop.f32.mrf.mxu0
    %v4330 = vadd.f32 %v4161, %v4329
    %v4331 = vpop.f32.mrf.mxu0
    %v4332 = vadd.f32 %v4163, %v4331
    %4333 = vmatmul.bf16.gmra.mxu0 %v3667
    %v4334 = vpop.f32.mrf.mxu0
    %v4335 = vadd.f32 %v4166, %v4334
    %v4336 = vpop.f32.mrf.mxu0
    %v4337 = vadd.f32 %v4168, %v4336
    %4338 = vmatmul.bf16.gmra.mxu0 %v3670
    %v4339 = vpop.f32.mrf.mxu0
    %v4340 = vadd.f32 %v4171, %v4339
    %v4341 = vpop.f32.mrf.mxu0
    %v4342 = vadd.f32 %v4173, %v4341
    %4343 = vmatmul.bf16.gmra.mxu0 %v3673
    %v4344 = vpop.f32.mrf.mxu0
    %v4345 = vadd.f32 %v4176, %v4344
    %v4346 = vpop.f32.mrf.mxu0
    %v4347 = vadd.f32 %v4178, %v4346
    %4348 = vmatmul.bf16.gmra.mxu0 %v3676
    %v4349 = vpop.f32.mrf.mxu0
    %v4350 = vadd.f32 %v4181, %v4349
    %v4351 = vpop.f32.mrf.mxu0
    %v4352 = vadd.f32 %v4183, %v4351
    %4353 = vmatmul.bf16.gmra.mxu0 %v3679
    %v4354 = vpop.f32.mrf.mxu0
    %v4355 = vadd.f32 %v4186, %v4354
    %v4356 = vpop.f32.mrf.mxu0
    %v4357 = vadd.f32 %v4188, %v4356
    %4358 = vdwg.mxu0
    %4359 = vmatpush.bf16.msra.mxu0 0
    %4360 = vmatpush.bf16.msra.mxu0 0
    %4361 = vmatpush.bf16.msra.mxu0 0
    %4362 = vmatpush.bf16.msra.mxu0 0
    %4363 = vmatpush.bf16.msra.mxu0 0
    %4364 = vmatpush.bf16.msra.mxu0 0
    %4365 = vmatpush.bf16.msra.mxu0 %v3887
    %4366 = vmatpush.bf16.msra.mxu0 %v3885
    %4367 = vmatmul.bf16.gmra.mxu0 %v3926
    %v4368 = vpop.f32.mrf.mxu0
    %v4369 = vadd.f32 %v4200, %v4368
    %v4370 = vpop.f32.mrf.mxu0
    %v4371 = vadd.f32 %v4202, %v4370
    %4372 = vmatmul.bf16.gmra.mxu0 %v3929
    %v4373 = vpop.f32.mrf.mxu0
    %v4374 = vadd.f32 %v4205, %v4373
    %v4375 = vpop.f32.mrf.mxu0
    %v4376 = vadd.f32 %v4207, %v4375
    %4377 = vmatmul.bf16.gmra.mxu0 %v3932
    %v4378 = vpop.f32.mrf.mxu0
    %v4379 = vadd.f32 %v4210, %v4378
    %v4380 = vpop.f32.mrf.mxu0
    %v4381 = vadd.f32 %v4212, %v4380
    %4382 = vmatmul.bf16.gmra.mxu0 %v3935
    %v4383 = vpop.f32.mrf.mxu0
    %v4384 = vadd.f32 %v4215, %v4383
    %v4385 = vpop.f32.mrf.mxu0
    %v4386 = vadd.f32 %v4217, %v4385
    %4387 = vmatmul.bf16.gmra.mxu0 %v3938
    %v4388 = vpop.f32.mrf.mxu0
    %v4389 = vadd.f32 %v4220, %v4388
    %v4390 = vpop.f32.mrf.mxu0
    %v4391 = vadd.f32 %v4222, %v4390
    %4392 = vmatmul.bf16.gmra.mxu0 %v3941
    %v4393 = vpop.f32.mrf.mxu0
    %v4394 = vadd.f32 %v4225, %v4393
    %v4395 = vpop.f32.mrf.mxu0
    %v4396 = vadd.f32 %v4227, %v4395
    %4397 = vmatmul.bf16.gmra.mxu0 %v3944
    %v4398 = vpop.f32.mrf.mxu0
    %v4399 = vadd.f32 %v4230, %v4398
    %v4400 = vpop.f32.mrf.mxu0
    %v4401 = vadd.f32 %v4232, %v4400
    %4402 = vmatmul.bf16.gmra.mxu0 %v3947
    %v4403 = vpop.f32.mrf.mxu0
    %v4404 = vadd.f32 %v4235, %v4403
    %v4405 = vpop.f32.mrf.mxu0
    %v4406 = vadd.f32 %v4237, %v4405
    %4407 = vmatmul.bf16.gmra.mxu0 %v3950
    %v4408 = vpop.f32.mrf.mxu0
    %v4409 = vadd.f32 %v4240, %v4408
    %v4410 = vpop.f32.mrf.mxu0
    %v4411 = vadd.f32 %v4242, %v4410
    %4412 = vmatmul.bf16.gmra.mxu0 %v3953
    %v4413 = vpop.f32.mrf.mxu0
    %v4414 = vadd.f32 %v4245, %v4413
    %v4415 = vpop.f32.mrf.mxu0
    %v4416 = vadd.f32 %v4247, %v4415
    %4417 = vmatmul.bf16.gmra.mxu0 %v3956
    %v4418 = vpop.f32.mrf.mxu0
    %v4419 = vadd.f32 %v4250, %v4418
    %v4420 = vpop.f32.mrf.mxu0
    %v4421 = vadd.f32 %v4252, %v4420
    %4422 = vmatmul.bf16.gmra.mxu0 %v3959
    %v4423 = vpop.f32.mrf.mxu0
    %v4424 = vadd.f32 %v4255, %v4423
    %v4425 = vpop.f32.mrf.mxu0
    %v4426 = vadd.f32 %v4257, %v4425
    %4427 = vmatmul.bf16.gmra.mxu0 %v3962
    %v4428 = vpop.f32.mrf.mxu0
    %v4429 = vadd.f32 %v4260, %v4428
    %v4430 = vpop.f32.mrf.mxu0
    %v4431 = vadd.f32 %v4262, %v4430
    %4432 = vmatmul.bf16.gmra.mxu0 %v3965
    %v4433 = vpop.f32.mrf.mxu0
    %v4434 = vadd.f32 %v4265, %v4433
    %v4435 = vpop.f32.mrf.mxu0
    %v4436 = vadd.f32 %v4267, %v4435
    %4437 = vmatmul.bf16.gmra.mxu0 %v3968
    %v4438 = vpop.f32.mrf.mxu0
    %v4439 = vadd.f32 %v4270, %v4438
    %v4440 = vpop.f32.mrf.mxu0
    %v4441 = vadd.f32 %v4272, %v4440
    %4442 = vmatmul.bf16.gmra.mxu0 %v3971
    %v4443 = vpop.f32.mrf.mxu0
    %v4444 = vadd.f32 %v4275, %v4443
    %v4445 = vpop.f32.mrf.mxu0
    %v4446 = vadd.f32 %v4277, %v4445
    %4447 = vmatmul.bf16.gmra.mxu0 %v3974
    %v4448 = vpop.f32.mrf.mxu0
    %v4449 = vadd.f32 %v4280, %v4448
    %v4450 = vpop.f32.mrf.mxu0
    %v4451 = vadd.f32 %v4282, %v4450
    %4452 = vmatmul.bf16.gmra.mxu0 %v3977
    %v4453 = vpop.f32.mrf.mxu0
    %v4454 = vadd.f32 %v4285, %v4453
    %v4455 = vpop.f32.mrf.mxu0
    %v4456 = vadd.f32 %v4287, %v4455
    %4457 = vmatmul.bf16.gmra.mxu0 %v3980
    %v4458 = vpop.f32.mrf.mxu0
    %v4459 = vadd.f32 %v4290, %v4458
    %v4460 = vpop.f32.mrf.mxu0
    %v4461 = vadd.f32 %v4292, %v4460
    %4462 = vmatmul.bf16.gmra.mxu0 %v3983
    %v4463 = vpop.f32.mrf.mxu0
    %v4464 = vadd.f32 %v4295, %v4463
    %v4465 = vpop.f32.mrf.mxu0
    %v4466 = vadd.f32 %v4297, %v4465
    %4467 = vmatmul.bf16.gmra.mxu0 %v3986
    %v4468 = vpop.f32.mrf.mxu0
    %v4469 = vadd.f32 %v4300, %v4468
    %v4470 = vpop.f32.mrf.mxu0
    %v4471 = vadd.f32 %v4302, %v4470
    %4472 = vmatmul.bf16.gmra.mxu0 %v3989
    %v4473 = vpop.f32.mrf.mxu0
    %v4474 = vadd.f32 %v4305, %v4473
    %v4475 = vpop.f32.mrf.mxu0
    %v4476 = vadd.f32 %v4307, %v4475
    %4477 = vmatmul.bf16.gmra.mxu0 %v3992
    %v4478 = vpop.f32.mrf.mxu0
    %v4479 = vadd.f32 %v4310, %v4478
    %v4480 = vpop.f32.mrf.mxu0
    %v4481 = vadd.f32 %v4312, %v4480
    %4482 = vmatmul.bf16.gmra.mxu0 %v3995
    %v4483 = vpop.f32.mrf.mxu0
    %v4484 = vadd.f32 %v4315, %v4483
    %v4485 = vpop.f32.mrf.mxu0
    %v4486 = vadd.f32 %v4317, %v4485
    %4487 = vmatmul.bf16.gmra.mxu0 %v3998
    %v4488 = vpop.f32.mrf.mxu0
    %v4489 = vadd.f32 %v4320, %v4488
    %v4490 = vpop.f32.mrf.mxu0
    %v4491 = vadd.f32 %v4322, %v4490
    %4492 = vmatmul.bf16.gmra.mxu0 %v4001
    %v4493 = vpop.f32.mrf.mxu0
    %v4494 = vadd.f32 %v4325, %v4493
    %v4495 = vpop.f32.mrf.mxu0
    %v4496 = vadd.f32 %v4327, %v4495
    %4497 = vmatmul.bf16.gmra.mxu0 %v4004
    %v4498 = vpop.f32.mrf.mxu0
    %v4499 = vadd.f32 %v4330, %v4498
    %v4500 = vpop.f32.mrf.mxu0
    %v4501 = vadd.f32 %v4332, %v4500
    %4502 = vmatmul.bf16.gmra.mxu0 %v4007
    %v4503 = vpop.f32.mrf.mxu0
    %v4504 = vadd.f32 %v4335, %v4503
    %v4505 = vpop.f32.mrf.mxu0
    %v4506 = vadd.f32 %v4337, %v4505
    %4507 = vmatmul.bf16.gmra.mxu0 %v4010
    %v4508 = vpop.f32.mrf.mxu0
    %v4509 = vadd.f32 %v4340, %v4508
    %v4510 = vpop.f32.mrf.mxu0
    %v4511 = vadd.f32 %v4342, %v4510
    %4512 = vmatmul.bf16.gmra.mxu0 %v4013
    %v4513 = vpop.f32.mrf.mxu0
    %v4514 = vadd.f32 %v4345, %v4513
    %v4515 = vpop.f32.mrf.mxu0
    %v4516 = vadd.f32 %v4347, %v4515
    %4517 = vmatmul.bf16.gmra.mxu0 %v4016
    %v4518 = vpop.f32.mrf.mxu0
    %v4519 = vadd.f32 %v4350, %v4518
    %v4520 = vpop.f32.mrf.mxu0
    %v4521 = vadd.f32 %v4352, %v4520
    %4522 = vmatmul.bf16.gmra.mxu0 %v4019
    %v4523 = vpop.f32.mrf.mxu0
    %v4524 = vadd.f32 %v4355, %v4523
    %v4525 = vpop.f32.mrf.mxu0
    %v4526 = vadd.f32 %v4357, %v4525
    %4527 = vdwg.mxu0
    %4528 = vmatpush.bf16.msra.mxu0 %v3868
    %4529 = vmatpush.bf16.msra.mxu0 %v3866
    %4530 = vmatpush.bf16.msra.mxu0 %v3864
    %4531 = vmatpush.bf16.msra.mxu0 %v3862
    %4532 = vmatpush.bf16.msra.mxu0 %v3860
    %4533 = vmatpush.bf16.msra.mxu0 %v3858
    %4534 = vmatpush.bf16.msra.mxu0 %v3856
    %4535 = vmatpush.bf16.msra.mxu0 %v3854
    %4536 = vmatmul.bf16.gmra.mxu0 %v3585
    %v4537 = vpop.f32.mrf.mxu0
    %v4538 = vadd.f32 %v3262, %v4537
    %v4539 = vpop.f32.mrf.mxu0
    %v4540 = vadd.f32 %v3262, %v4539
    %4541 = vmatmul.bf16.gmra.mxu0 %v3588
    %v4542 = vpop.f32.mrf.mxu0
    %v4543 = vadd.f32 %v3262, %v4542
    %v4544 = vpop.f32.mrf.mxu0
    %v4545 = vadd.f32 %v3262, %v4544
    %4546 = vmatmul.bf16.gmra.mxu0 %v3591
    %v4547 = vpop.f32.mrf.mxu0
    %v4548 = vadd.f32 %v3262, %v4547
    %v4549 = vpop.f32.mrf.mxu0
    %v4550 = vadd.f32 %v3262, %v4549
    %4551 = vmatmul.bf16.gmra.mxu0 %v3594
    %v4552 = vpop.f32.mrf.mxu0
    %v4553 = vadd.f32 %v3262, %v4552
    %v4554 = vpop.f32.mrf.mxu0
    %v4555 = vadd.f32 %v3262, %v4554
    %4556 = vmatmul.bf16.gmra.mxu0 %v3597
    %v4557 = vpop.f32.mrf.mxu0
    %v4558 = vadd.f32 %v3262, %v4557
    %v4559 = vpop.f32.mrf.mxu0
    %v4560 = vadd.f32 %v3262, %v4559
    %4561 = vmatmul.bf16.gmra.mxu0 %v3600
    %v4562 = vpop.f32.mrf.mxu0
    %v4563 = vadd.f32 %v3262, %v4562
    %v4564 = vpop.f32.mrf.mxu0
    %v4565 = vadd.f32 %v3262, %v4564
    %4566 = vmatmul.bf16.gmra.mxu0 %v3603
    %v4567 = vpop.f32.mrf.mxu0
    %v4568 = vadd.f32 %v3262, %v4567
    %v4569 = vpop.f32.mrf.mxu0
    %v4570 = vadd.f32 %v3262, %v4569
    %4571 = vmatmul.bf16.gmra.mxu0 %v3606
    %v4572 = vpop.f32.mrf.mxu0
    %v4573 = vadd.f32 %v3262, %v4572
    %v4574 = vpop.f32.mrf.mxu0
    %v4575 = vadd.f32 %v3262, %v4574
    %4576 = vmatmul.bf16.gmra.mxu0 %v3609
    %v4577 = vpop.f32.mrf.mxu0
    %v4578 = vadd.f32 %v3262, %v4577
    %v4579 = vpop.f32.mrf.mxu0
    %v4580 = vadd.f32 %v3262, %v4579
    %4581 = vmatmul.bf16.gmra.mxu0 %v3612
    %v4582 = vpop.f32.mrf.mxu0
    %v4583 = vadd.f32 %v3262, %v4582
    %v4584 = vpop.f32.mrf.mxu0
    %v4585 = vadd.f32 %v3262, %v4584
    %4586 = vmatmul.bf16.gmra.mxu0 %v3615
    %v4587 = vpop.f32.mrf.mxu0
    %v4588 = vadd.f32 %v3262, %v4587
    %v4589 = vpop.f32.mrf.mxu0
    %v4590 = vadd.f32 %v3262, %v4589
    %4591 = vmatmul.bf16.gmra.mxu0 %v3618
    %v4592 = vpop.f32.mrf.mxu0
    %v4593 = vadd.f32 %v3262, %v4592
    %v4594 = vpop.f32.mrf.mxu0
    %v4595 = vadd.f32 %v3262, %v4594
    %4596 = vmatmul.bf16.gmra.mxu0 %v3621
    %v4597 = vpop.f32.mrf.mxu0
    %v4598 = vadd.f32 %v3262, %v4597
    %v4599 = vpop.f32.mrf.mxu0
    %v4600 = vadd.f32 %v3262, %v4599
    %4601 = vmatmul.bf16.gmra.mxu0 %v3624
    %v4602 = vpop.f32.mrf.mxu0
    %v4603 = vadd.f32 %v3262, %v4602
    %v4604 = vpop.f32.mrf.mxu0
    %v4605 = vadd.f32 %v3262, %v4604
    %4606 = vmatmul.bf16.gmra.mxu0 %v3627
    %v4607 = vpop.f32.mrf.mxu0
    %v4608 = vadd.f32 %v3262, %v4607
    %v4609 = vpop.f32.mrf.mxu0
    %v4610 = vadd.f32 %v3262, %v4609
    %4611 = vmatmul.bf16.gmra.mxu0 %v3630
    %v4612 = vpop.f32.mrf.mxu0
    %v4613 = vadd.f32 %v3262, %v4612
    %v4614 = vpop.f32.mrf.mxu0
    %v4615 = vadd.f32 %v3262, %v4614
    %4616 = vmatmul.bf16.gmra.mxu0 %v3633
    %v4617 = vpop.f32.mrf.mxu0
    %v4618 = vadd.f32 %v3262, %v4617
    %v4619 = vpop.f32.mrf.mxu0
    %v4620 = vadd.f32 %v3262, %v4619
    %4621 = vmatmul.bf16.gmra.mxu0 %v3636
    %v4622 = vpop.f32.mrf.mxu0
    %v4623 = vadd.f32 %v3262, %v4622
    %v4624 = vpop.f32.mrf.mxu0
    %v4625 = vadd.f32 %v3262, %v4624
    %4626 = vmatmul.bf16.gmra.mxu0 %v3639
    %v4627 = vpop.f32.mrf.mxu0
    %v4628 = vadd.f32 %v3262, %v4627
    %v4629 = vpop.f32.mrf.mxu0
    %v4630 = vadd.f32 %v3262, %v4629
    %4631 = vmatmul.bf16.gmra.mxu0 %v3642
    %v4632 = vpop.f32.mrf.mxu0
    %v4633 = vadd.f32 %v3262, %v4632
    %v4634 = vpop.f32.mrf.mxu0
    %v4635 = vadd.f32 %v3262, %v4634
    %4636 = vmatmul.bf16.gmra.mxu0 %v3645
    %v4637 = vpop.f32.mrf.mxu0
    %v4638 = vadd.f32 %v3262, %v4637
    %v4639 = vpop.f32.mrf.mxu0
    %v4640 = vadd.f32 %v3262, %v4639
    %4641 = vmatmul.bf16.gmra.mxu0 %v3648
    %v4642 = vpop.f32.mrf.mxu0
    %v4643 = vadd.f32 %v3262, %v4642
    %v4644 = vpop.f32.mrf.mxu0
    %v4645 = vadd.f32 %v3262, %v4644
    %4646 = vmatmul.bf16.gmra.mxu0 %v3651
    %v4647 = vpop.f32.mrf.mxu0
    %v4648 = vadd.f32 %v3262, %v4647
    %v4649 = vpop.f32.mrf.mxu0
    %v4650 = vadd.f32 %v3262, %v4649
    %4651 = vmatmul.bf16.gmra.mxu0 %v3654
    %v4652 = vpop.f32.mrf.mxu0
    %v4653 = vadd.f32 %v3262, %v4652
    %v4654 = vpop.f32.mrf.mxu0
    %v4655 = vadd.f32 %v3262, %v4654
    %4656 = vmatmul.bf16.gmra.mxu0 %v3657
    %v4657 = vpop.f32.mrf.mxu0
    %v4658 = vadd.f32 %v3262, %v4657
    %v4659 = vpop.f32.mrf.mxu0
    %v4660 = vadd.f32 %v3262, %v4659
    %4661 = vmatmul.bf16.gmra.mxu0 %v3660
    %v4662 = vpop.f32.mrf.mxu0
    %v4663 = vadd.f32 %v3262, %v4662
    %v4664 = vpop.f32.mrf.mxu0
    %v4665 = vadd.f32 %v3262, %v4664
    %4666 = vmatmul.bf16.gmra.mxu0 %v3663
    %v4667 = vpop.f32.mrf.mxu0
    %v4668 = vadd.f32 %v3262, %v4667
    %v4669 = vpop.f32.mrf.mxu0
    %v4670 = vadd.f32 %v3262, %v4669
    %4671 = vmatmul.bf16.gmra.mxu0 %v3666
    %v4672 = vpop.f32.mrf.mxu0
    %v4673 = vadd.f32 %v3262, %v4672
    %v4674 = vpop.f32.mrf.mxu0
    %v4675 = vadd.f32 %v3262, %v4674
    %4676 = vmatmul.bf16.gmra.mxu0 %v3669
    %v4677 = vpop.f32.mrf.mxu0
    %v4678 = vadd.f32 %v3262, %v4677
    %v4679 = vpop.f32.mrf.mxu0
    %v4680 = vadd.f32 %v3262, %v4679
    %4681 = vmatmul.bf16.gmra.mxu0 %v3672
    %v4682 = vpop.f32.mrf.mxu0
    %v4683 = vadd.f32 %v3262, %v4682
    %v4684 = vpop.f32.mrf.mxu0
    %v4685 = vadd.f32 %v3262, %v4684
    %4686 = vmatmul.bf16.gmra.mxu0 %v3675
    %v4687 = vpop.f32.mrf.mxu0
    %v4688 = vadd.f32 %v3262, %v4687
    %v4689 = vpop.f32.mrf.mxu0
    %v4690 = vadd.f32 %v3262, %v4689
    %4691 = vmatmul.bf16.gmra.mxu0 %v3678
    %v4692 = vpop.f32.mrf.mxu0
    %v4693 = vadd.f32 %v3262, %v4692
    %v4694 = vpop.f32.mrf.mxu0
    %v4695 = vadd.f32 %v3262, %v4694
    %4696 = vdwg.mxu0
    %4697 = vmatpush.bf16.msra.mxu0 %v3884
    %4698 = vmatpush.bf16.msra.mxu0 %v3882
    %4699 = vmatpush.bf16.msra.mxu0 %v3880
    %4700 = vmatpush.bf16.msra.mxu0 %v3878
    %4701 = vmatpush.bf16.msra.mxu0 %v3876
    %4702 = vmatpush.bf16.msra.mxu0 %v3874
    %4703 = vmatpush.bf16.msra.mxu0 %v3872
    %4704 = vmatpush.bf16.msra.mxu0 %v3870
    %4705 = vmatmul.bf16.gmra.mxu0 %v3586
    %v4706 = vpop.f32.mrf.mxu0
    %v4707 = vadd.f32 %v4538, %v4706
    %v4708 = vpop.f32.mrf.mxu0
    %v4709 = vadd.f32 %v4540, %v4708
    %4710 = vmatmul.bf16.gmra.mxu0 %v3589
    %v4711 = vpop.f32.mrf.mxu0
    %v4712 = vadd.f32 %v4543, %v4711
    %v4713 = vpop.f32.mrf.mxu0
    %v4714 = vadd.f32 %v4545, %v4713
    %4715 = vmatmul.bf16.gmra.mxu0 %v3592
    %v4716 = vpop.f32.mrf.mxu0
    %v4717 = vadd.f32 %v4548, %v4716
    %v4718 = vpop.f32.mrf.mxu0
    %v4719 = vadd.f32 %v4550, %v4718
    %4720 = vmatmul.bf16.gmra.mxu0 %v3595
    %v4721 = vpop.f32.mrf.mxu0
    %v4722 = vadd.f32 %v4553, %v4721
    %v4723 = vpop.f32.mrf.mxu0
    %v4724 = vadd.f32 %v4555, %v4723
    %4725 = vmatmul.bf16.gmra.mxu0 %v3598
    %v4726 = vpop.f32.mrf.mxu0
    %v4727 = vadd.f32 %v4558, %v4726
    %v4728 = vpop.f32.mrf.mxu0
    %v4729 = vadd.f32 %v4560, %v4728
    %4730 = vmatmul.bf16.gmra.mxu0 %v3601
    %v4731 = vpop.f32.mrf.mxu0
    %v4732 = vadd.f32 %v4563, %v4731
    %v4733 = vpop.f32.mrf.mxu0
    %v4734 = vadd.f32 %v4565, %v4733
    %4735 = vmatmul.bf16.gmra.mxu0 %v3604
    %v4736 = vpop.f32.mrf.mxu0
    %v4737 = vadd.f32 %v4568, %v4736
    %v4738 = vpop.f32.mrf.mxu0
    %v4739 = vadd.f32 %v4570, %v4738
    %4740 = vmatmul.bf16.gmra.mxu0 %v3607
    %v4741 = vpop.f32.mrf.mxu0
    %v4742 = vadd.f32 %v4573, %v4741
    %v4743 = vpop.f32.mrf.mxu0
    %v4744 = vadd.f32 %v4575, %v4743
    %4745 = vmatmul.bf16.gmra.mxu0 %v3610
    %v4746 = vpop.f32.mrf.mxu0
    %v4747 = vadd.f32 %v4578, %v4746
    %v4748 = vpop.f32.mrf.mxu0
    %v4749 = vadd.f32 %v4580, %v4748
    %4750 = vmatmul.bf16.gmra.mxu0 %v3613
    %v4751 = vpop.f32.mrf.mxu0
    %v4752 = vadd.f32 %v4583, %v4751
    %v4753 = vpop.f32.mrf.mxu0
    %v4754 = vadd.f32 %v4585, %v4753
    %4755 = vmatmul.bf16.gmra.mxu0 %v3616
    %v4756 = vpop.f32.mrf.mxu0
    %v4757 = vadd.f32 %v4588, %v4756
    %v4758 = vpop.f32.mrf.mxu0
    %v4759 = vadd.f32 %v4590, %v4758
    %4760 = vmatmul.bf16.gmra.mxu0 %v3619
    %v4761 = vpop.f32.mrf.mxu0
    %v4762 = vadd.f32 %v4593, %v4761
    %v4763 = vpop.f32.mrf.mxu0
    %v4764 = vadd.f32 %v4595, %v4763
    %4765 = vmatmul.bf16.gmra.mxu0 %v3622
    %v4766 = vpop.f32.mrf.mxu0
    %v4767 = vadd.f32 %v4598, %v4766
    %v4768 = vpop.f32.mrf.mxu0
    %v4769 = vadd.f32 %v4600, %v4768
    %4770 = vmatmul.bf16.gmra.mxu0 %v3625
    %v4771 = vpop.f32.mrf.mxu0
    %v4772 = vadd.f32 %v4603, %v4771
    %v4773 = vpop.f32.mrf.mxu0
    %v4774 = vadd.f32 %v4605, %v4773
    %4775 = vmatmul.bf16.gmra.mxu0 %v3628
    %v4776 = vpop.f32.mrf.mxu0
    %v4777 = vadd.f32 %v4608, %v4776
    %v4778 = vpop.f32.mrf.mxu0
    %v4779 = vadd.f32 %v4610, %v4778
    %4780 = vmatmul.bf16.gmra.mxu0 %v3631
    %v4781 = vpop.f32.mrf.mxu0
    %v4782 = vadd.f32 %v4613, %v4781
    %v4783 = vpop.f32.mrf.mxu0
    %v4784 = vadd.f32 %v4615, %v4783
    %4785 = vmatmul.bf16.gmra.mxu0 %v3634
    %v4786 = vpop.f32.mrf.mxu0
    %v4787 = vadd.f32 %v4618, %v4786
    %v4788 = vpop.f32.mrf.mxu0
    %v4789 = vadd.f32 %v4620, %v4788
    %4790 = vmatmul.bf16.gmra.mxu0 %v3637
    %v4791 = vpop.f32.mrf.mxu0
    %v4792 = vadd.f32 %v4623, %v4791
    %v4793 = vpop.f32.mrf.mxu0
    %v4794 = vadd.f32 %v4625, %v4793
    %4795 = vmatmul.bf16.gmra.mxu0 %v3640
    %v4796 = vpop.f32.mrf.mxu0
    %v4797 = vadd.f32 %v4628, %v4796
    %v4798 = vpop.f32.mrf.mxu0
    %v4799 = vadd.f32 %v4630, %v4798
    %4800 = vmatmul.bf16.gmra.mxu0 %v3643
    %v4801 = vpop.f32.mrf.mxu0
    %v4802 = vadd.f32 %v4633, %v4801
    %v4803 = vpop.f32.mrf.mxu0
    %v4804 = vadd.f32 %v4635, %v4803
    %4805 = vmatmul.bf16.gmra.mxu0 %v3646
    %v4806 = vpop.f32.mrf.mxu0
    %v4807 = vadd.f32 %v4638, %v4806
    %v4808 = vpop.f32.mrf.mxu0
    %v4809 = vadd.f32 %v4640, %v4808
    %4810 = vmatmul.bf16.gmra.mxu0 %v3649
    %v4811 = vpop.f32.mrf.mxu0
    %v4812 = vadd.f32 %v4643, %v4811
    %v4813 = vpop.f32.mrf.mxu0
    %v4814 = vadd.f32 %v4645, %v4813
    %4815 = vmatmul.bf16.gmra.mxu0 %v3652
    %v4816 = vpop.f32.mrf.mxu0
    %v4817 = vadd.f32 %v4648, %v4816
    %v4818 = vpop.f32.mrf.mxu0
    %v4819 = vadd.f32 %v4650, %v4818
    %4820 = vmatmul.bf16.gmra.mxu0 %v3655
    %v4821 = vpop.f32.mrf.mxu0
    %v4822 = vadd.f32 %v4653, %v4821
    %v4823 = vpop.f32.mrf.mxu0
    %v4824 = vadd.f32 %v4655, %v4823
    %4825 = vmatmul.bf16.gmra.mxu0 %v3658
    %v4826 = vpop.f32.mrf.mxu0
    %v4827 = vadd.f32 %v4658, %v4826
    %v4828 = vpop.f32.mrf.mxu0
    %v4829 = vadd.f32 %v4660, %v4828
    %4830 = vmatmul.bf16.gmra.mxu0 %v3661
    %v4831 = vpop.f32.mrf.mxu0
    %v4832 = vadd.f32 %v4663, %v4831
    %v4833 = vpop.f32.mrf.mxu0
    %v4834 = vadd.f32 %v4665, %v4833
    %4835 = vmatmul.bf16.gmra.mxu0 %v3664
    %v4836 = vpop.f32.mrf.mxu0
    %v4837 = vadd.f32 %v4668, %v4836
    %v4838 = vpop.f32.mrf.mxu0
    %v4839 = vadd.f32 %v4670, %v4838
    %4840 = vmatmul.bf16.gmra.mxu0 %v3667
    %v4841 = vpop.f32.mrf.mxu0
    %v4842 = vadd.f32 %v4673, %v4841
    %v4843 = vpop.f32.mrf.mxu0
    %v4844 = vadd.f32 %v4675, %v4843
    %4845 = vmatmul.bf16.gmra.mxu0 %v3670
    %v4846 = vpop.f32.mrf.mxu0
    %v4847 = vadd.f32 %v4678, %v4846
    %v4848 = vpop.f32.mrf.mxu0
    %v4849 = vadd.f32 %v4680, %v4848
    %4850 = vmatmul.bf16.gmra.mxu0 %v3673
    %v4851 = vpop.f32.mrf.mxu0
    %v4852 = vadd.f32 %v4683, %v4851
    %v4853 = vpop.f32.mrf.mxu0
    %v4854 = vadd.f32 %v4685, %v4853
    %4855 = vmatmul.bf16.gmra.mxu0 %v3676
    %v4856 = vpop.f32.mrf.mxu0
    %v4857 = vadd.f32 %v4688, %v4856
    %v4858 = vpop.f32.mrf.mxu0
    %v4859 = vadd.f32 %v4690, %v4858
    %4860 = vmatmul.bf16.gmra.mxu0 %v3679
    %v4861 = vpop.f32.mrf.mxu0
    %v4862 = vadd.f32 %v4693, %v4861
    %v4863 = vpop.f32.mrf.mxu0
    %v4864 = vadd.f32 %v4695, %v4863
    %4865 = vdwg.mxu0
    %4866 = vmatpush.bf16.msra.mxu0 0
    %4867 = vmatpush.bf16.msra.mxu0 0
    %4868 = vmatpush.bf16.msra.mxu0 0
    %4869 = vmatpush.bf16.msra.mxu0 0
    %4870 = vmatpush.bf16.msra.mxu0 0
    %4871 = vmatpush.bf16.msra.mxu0 0
    %4872 = vmatpush.bf16.msra.mxu0 %v3888
    %4873 = vmatpush.bf16.msra.mxu0 %v3886
    %4874 = vmatmul.bf16.gmra.mxu0 %v3926
    %v4875 = vpop.f32.mrf.mxu0
    %v4876 = vadd.f32 %v4707, %v4875
    %v4877 = vpop.f32.mrf.mxu0
    %v4878 = vadd.f32 %v4709, %v4877
    %4879 = vmatmul.bf16.gmra.mxu0 %v3929
    %v4880 = vpop.f32.mrf.mxu0
    %v4881 = vadd.f32 %v4712, %v4880
    %v4882 = vpop.f32.mrf.mxu0
    %v4883 = vadd.f32 %v4714, %v4882
    %4884 = vmatmul.bf16.gmra.mxu0 %v3932
    %v4885 = vpop.f32.mrf.mxu0
    %v4886 = vadd.f32 %v4717, %v4885
    %v4887 = vpop.f32.mrf.mxu0
    %v4888 = vadd.f32 %v4719, %v4887
    %4889 = vmatmul.bf16.gmra.mxu0 %v3935
    %v4890 = vpop.f32.mrf.mxu0
    %v4891 = vadd.f32 %v4722, %v4890
    %v4892 = vpop.f32.mrf.mxu0
    %v4893 = vadd.f32 %v4724, %v4892
    %4894 = vmatmul.bf16.gmra.mxu0 %v3938
    %v4895 = vpop.f32.mrf.mxu0
    %v4896 = vadd.f32 %v4727, %v4895
    %v4897 = vpop.f32.mrf.mxu0
    %v4898 = vadd.f32 %v4729, %v4897
    %4899 = vmatmul.bf16.gmra.mxu0 %v3941
    %v4900 = vpop.f32.mrf.mxu0
    %v4901 = vadd.f32 %v4732, %v4900
    %v4902 = vpop.f32.mrf.mxu0
    %v4903 = vadd.f32 %v4734, %v4902
    %4904 = vmatmul.bf16.gmra.mxu0 %v3944
    %v4905 = vpop.f32.mrf.mxu0
    %v4906 = vadd.f32 %v4737, %v4905
    %v4907 = vpop.f32.mrf.mxu0
    %v4908 = vadd.f32 %v4739, %v4907
    %4909 = vmatmul.bf16.gmra.mxu0 %v3947
    %v4910 = vpop.f32.mrf.mxu0
    %v4911 = vadd.f32 %v4742, %v4910
    %v4912 = vpop.f32.mrf.mxu0
    %v4913 = vadd.f32 %v4744, %v4912
    %4914 = vmatmul.bf16.gmra.mxu0 %v3950
    %v4915 = vpop.f32.mrf.mxu0
    %v4916 = vadd.f32 %v4747, %v4915
    %v4917 = vpop.f32.mrf.mxu0
    %v4918 = vadd.f32 %v4749, %v4917
    %4919 = vmatmul.bf16.gmra.mxu0 %v3953
    %v4920 = vpop.f32.mrf.mxu0
    %v4921 = vadd.f32 %v4752, %v4920
    %v4922 = vpop.f32.mrf.mxu0
    %v4923 = vadd.f32 %v4754, %v4922
    %4924 = vmatmul.bf16.gmra.mxu0 %v3956
    %v4925 = vpop.f32.mrf.mxu0
    %v4926 = vadd.f32 %v4757, %v4925
    %v4927 = vpop.f32.mrf.mxu0
    %v4928 = vadd.f32 %v4759, %v4927
    %4929 = vmatmul.bf16.gmra.mxu0 %v3959
    %v4930 = vpop.f32.mrf.mxu0
    %v4931 = vadd.f32 %v4762, %v4930
    %v4932 = vpop.f32.mrf.mxu0
    %v4933 = vadd.f32 %v4764, %v4932
    %4934 = vmatmul.bf16.gmra.mxu0 %v3962
    %v4935 = vpop.f32.mrf.mxu0
    %v4936 = vadd.f32 %v4767, %v4935
    %v4937 = vpop.f32.mrf.mxu0
    %v4938 = vadd.f32 %v4769, %v4937
    %4939 = vmatmul.bf16.gmra.mxu0 %v3965
    %v4940 = vpop.f32.mrf.mxu0
    %v4941 = vadd.f32 %v4772, %v4940
    %v4942 = vpop.f32.mrf.mxu0
    %v4943 = vadd.f32 %v4774, %v4942
    %4944 = vmatmul.bf16.gmra.mxu0 %v3968
    %v4945 = vpop.f32.mrf.mxu0
    %v4946 = vadd.f32 %v4777, %v4945
    %v4947 = vpop.f32.mrf.mxu0
    %v4948 = vadd.f32 %v4779, %v4947
    %4949 = vmatmul.bf16.gmra.mxu0 %v3971
    %v4950 = vpop.f32.mrf.mxu0
    %v4951 = vadd.f32 %v4782, %v4950
    %v4952 = vpop.f32.mrf.mxu0
    %v4953 = vadd.f32 %v4784, %v4952
    %4954 = vmatmul.bf16.gmra.mxu0 %v3974
    %v4955 = vpop.f32.mrf.mxu0
    %v4956 = vadd.f32 %v4787, %v4955
    %v4957 = vpop.f32.mrf.mxu0
    %v4958 = vadd.f32 %v4789, %v4957
    %4959 = vmatmul.bf16.gmra.mxu0 %v3977
    %v4960 = vpop.f32.mrf.mxu0
    %v4961 = vadd.f32 %v4792, %v4960
    %v4962 = vpop.f32.mrf.mxu0
    %v4963 = vadd.f32 %v4794, %v4962
    %4964 = vmatmul.bf16.gmra.mxu0 %v3980
    %v4965 = vpop.f32.mrf.mxu0
    %v4966 = vadd.f32 %v4797, %v4965
    %v4967 = vpop.f32.mrf.mxu0
    %v4968 = vadd.f32 %v4799, %v4967
    %4969 = vmatmul.bf16.gmra.mxu0 %v3983
    %v4970 = vpop.f32.mrf.mxu0
    %v4971 = vadd.f32 %v4802, %v4970
    %v4972 = vpop.f32.mrf.mxu0
    %v4973 = vadd.f32 %v4804, %v4972
    %4974 = vmatmul.bf16.gmra.mxu0 %v3986
    %v4975 = vpop.f32.mrf.mxu0
    %v4976 = vadd.f32 %v4807, %v4975
    %v4977 = vpop.f32.mrf.mxu0
    %v4978 = vadd.f32 %v4809, %v4977
    %4979 = vmatmul.bf16.gmra.mxu0 %v3989
    %v4980 = vpop.f32.mrf.mxu0
    %v4981 = vadd.f32 %v4812, %v4980
    %v4982 = vpop.f32.mrf.mxu0
    %v4983 = vadd.f32 %v4814, %v4982
    %4984 = vmatmul.bf16.gmra.mxu0 %v3992
    %v4985 = vpop.f32.mrf.mxu0
    %v4986 = vadd.f32 %v4817, %v4985
    %v4987 = vpop.f32.mrf.mxu0
    %v4988 = vadd.f32 %v4819, %v4987
    %4989 = vmatmul.bf16.gmra.mxu0 %v3995
    %v4990 = vpop.f32.mrf.mxu0
    %v4991 = vadd.f32 %v4822, %v4990
    %v4992 = vpop.f32.mrf.mxu0
    %v4993 = vadd.f32 %v4824, %v4992
    %4994 = vmatmul.bf16.gmra.mxu0 %v3998
    %v4995 = vpop.f32.mrf.mxu0
    %v4996 = vadd.f32 %v4827, %v4995
    %v4997 = vpop.f32.mrf.mxu0
    %v4998 = vadd.f32 %v4829, %v4997
    %4999 = vmatmul.bf16.gmra.mxu0 %v4001
    %v5000 = vpop.f32.mrf.mxu0
    %v5001 = vadd.f32 %v4832, %v5000
    %v5002 = vpop.f32.mrf.mxu0
    %v5003 = vadd.f32 %v4834, %v5002
    %5004 = vmatmul.bf16.gmra.mxu0 %v4004
    %v5005 = vpop.f32.mrf.mxu0
    %v5006 = vadd.f32 %v4837, %v5005
    %v5007 = vpop.f32.mrf.mxu0
    %v5008 = vadd.f32 %v4839, %v5007
    %5009 = vmatmul.bf16.gmra.mxu0 %v4007
    %v5010 = vpop.f32.mrf.mxu0
    %v5011 = vadd.f32 %v4842, %v5010
    %v5012 = vpop.f32.mrf.mxu0
    %v5013 = vadd.f32 %v4844, %v5012
    %5014 = vmatmul.bf16.gmra.mxu0 %v4010
    %v5015 = vpop.f32.mrf.mxu0
    %v5016 = vadd.f32 %v4847, %v5015
    %v5017 = vpop.f32.mrf.mxu0
    %v5018 = vadd.f32 %v4849, %v5017
    %5019 = vmatmul.bf16.gmra.mxu0 %v4013
    %v5020 = vpop.f32.mrf.mxu0
    %v5021 = vadd.f32 %v4852, %v5020
    %v5022 = vpop.f32.mrf.mxu0
    %v5023 = vadd.f32 %v4854, %v5022
    %5024 = vmatmul.bf16.gmra.mxu0 %v4016
    %v5025 = vpop.f32.mrf.mxu0
    %v5026 = vadd.f32 %v4857, %v5025
    %v5027 = vpop.f32.mrf.mxu0
    %v5028 = vadd.f32 %v4859, %v5027
    %5029 = vmatmul.bf16.gmra.mxu0 %v4019
    %v5030 = vpop.f32.mrf.mxu0
    %v5031 = vadd.f32 %v4862, %v5030
    %v5032 = vpop.f32.mrf.mxu0
    %v5033 = vadd.f32 %v4864, %v5032
    %5034 = vdwg.mxu0
    %v5035 = vmax.f32 %v4369, 0.0
    %v5036 = vmax.f32 %v4876, 0.0
    %v5037 = vmax.f32 %v4371, 0.0
    %v5038 = vmax.f32 %v4878, 0.0
    %v5039 = vmax.f32 %v4374, 0.0
    %v5040 = vmax.f32 %v4881, 0.0
    %v5041 = vmax.f32 %v4376, 0.0
    %v5042 = vmax.f32 %v4883, 0.0
    %v5043 = vmax.f32 %v4379, 0.0
    %v5044 = vmax.f32 %v4886, 0.0
    %v5045 = vmax.f32 %v4381, 0.0
    %v5046 = vmax.f32 %v4888, 0.0
    %v5047 = vmax.f32 %v4384, 0.0
    %v5048 = vmax.f32 %v4891, 0.0
    %v5049 = vmax.f32 %v4386, 0.0
    %v5050 = vmax.f32 %v4893, 0.0
    %v5051 = vmax.f32 %v4389, 0.0
    %v5052 = vmax.f32 %v4896, 0.0
    %v5053 = vmax.f32 %v4391, 0.0
    %v5054 = vmax.f32 %v4898, 0.0
    %v5055 = vmax.f32 %v4394, 0.0
    %v5056 = vmax.f32 %v4901, 0.0
    %v5057 = vmax.f32 %v4396, 0.0
    %v5058 = vmax.f32 %v4903, 0.0
    %v5059 = vmax.f32 %v4399, 0.0
    %v5060 = vmax.f32 %v4906, 0.0
    %v5061 = vmax.f32 %v4401, 0.0
    %v5062 = vmax.f32 %v4908, 0.0
    %v5063 = vmax.f32 %v4404, 0.0
    %v5064 = vmax.f32 %v4911, 0.0
    %v5065 = vmax.f32 %v4406, 0.0
    %v5066 = vmax.f32 %v4913, 0.0
    %v5067 = vmax.f32 %v4409, 0.0
    %v5068 = vmax.f32 %v4916, 0.0
    %v5069 = vmax.f32 %v4411, 0.0
    %v5070 = vmax.f32 %v4918, 0.0
    %v5071 = vmax.f32 %v4414, 0.0
    %v5072 = vmax.f32 %v4921, 0.0
    %v5073 = vmax.f32 %v4416, 0.0
    %v5074 = vmax.f32 %v4923, 0.0
    %v5075 = vmax.f32 %v4419, 0.0
    %v5076 = vmax.f32 %v4926, 0.0
    %v5077 = vmax.f32 %v4421, 0.0
    %v5078 = vmax.f32 %v4928, 0.0
    %v5079 = vmax.f32 %v4424, 0.0
    %v5080 = vmax.f32 %v4931, 0.0
    %v5081 = vmax.f32 %v4426, 0.0
    %v5082 = vmax.f32 %v4933, 0.0
    %v5083 = vmax.f32 %v4429, 0.0
    %v5084 = vmax.f32 %v4936, 0.0
    %v5085 = vmax.f32 %v4431, 0.0
    %v5086 = vmax.f32 %v4938, 0.0
    %v5087 = vmax.f32 %v4434, 0.0
    %v5088 = vmax.f32 %v4941, 0.0
    %v5089 = vmax.f32 %v4436, 0.0
    %v5090 = vmax.f32 %v4943, 0.0
    %v5091 = vmax.f32 %v4439, 0.0
    %v5092 = vmax.f32 %v4946, 0.0
    %v5093 = vmax.f32 %v4441, 0.0
    %v5094 = vmax.f32 %v4948, 0.0
    %v5095 = vmax.f32 %v4444, 0.0
    %v5096 = vmax.f32 %v4951, 0.0
    %v5097 = vmax.f32 %v4446, 0.0
    %v5098 = vmax.f32 %v4953, 0.0
    %v5099 = vmax.f32 %v4449, 0.0
    %v5100 = vmax.f32 %v4956, 0.0
    %v5101 = vmax.f32 %v4451, 0.0
    %v5102 = vmax.f32 %v4958, 0.0
    %v5103 = vmax.f32 %v4454, 0.0
    %v5104 = vmax.f32 %v4961, 0.0
    %v5105 = vmax.f32 %v4456, 0.0
    %v5106 = vmax.f32 %v4963, 0.0
    %v5107 = vmax.f32 %v4459, 0.0
    %v5108 = vmax.f32 %v4966, 0.0
    %v5109 = vmax.f32 %v4461, 0.0
    %v5110 = vmax.f32 %v4968, 0.0
    %v5111 = vmax.f32 %v4464, 0.0
    %v5112 = vmax.f32 %v4971, 0.0
    %v5113 = vmax.f32 %v4466, 0.0
    %v5114 = vmax.f32 %v4973, 0.0
    %v5115 = vmax.f32 %v4469, 0.0
    %v5116 = vmax.f32 %v4976, 0.0
    %v5117 = vmax.f32 %v4471, 0.0
    %v5118 = vmax.f32 %v4978, 0.0
    %v5119 = vmax.f32 %v4474, 0.0
    %v5120 = vmax.f32 %v4981, 0.0
    %v5121 = vmax.f32 %v4476, 0.0
    %v5122 = vmax.f32 %v4983, 0.0
    %v5123 = vmax.f32 %v4479, 0.0
    %v5124 = vmax.f32 %v4986, 0.0
    %v5125 = vmax.f32 %v4481, 0.0
    %v5126 = vmax.f32 %v4988, 0.0
    %v5127 = vmax.f32 %v4484, 0.0
    %v5128 = vmax.f32 %v4991, 0.0
    %v5129 = vmax.f32 %v4486, 0.0
    %v5130 = vmax.f32 %v4993, 0.0
    %v5131 = vmax.f32 %v4489, 0.0
    %v5132 = vmax.f32 %v4996, 0.0
    %v5133 = vmax.f32 %v4491, 0.0
    %v5134 = vmax.f32 %v4998, 0.0
    %v5135 = vmax.f32 %v4494, 0.0
    %v5136 = vmax.f32 %v5001, 0.0
    %v5137 = vmax.f32 %v4496, 0.0
    %v5138 = vmax.f32 %v5003, 0.0
    %v5139 = vmax.f32 %v4499, 0.0
    %v5140 = vmax.f32 %v5006, 0.0
    %v5141 = vmax.f32 %v4501, 0.0
    %v5142 = vmax.f32 %v5008, 0.0
    %v5143 = vmax.f32 %v4504, 0.0
    %v5144 = vmax.f32 %v5011, 0.0
    %v5145 = vmax.f32 %v4506, 0.0
    %v5146 = vmax.f32 %v5013, 0.0
    %v5147 = vmax.f32 %v4509, 0.0
    %v5148 = vmax.f32 %v5016, 0.0
    %v5149 = vmax.f32 %v4511, 0.0
    %v5150 = vmax.f32 %v5018, 0.0
    %v5151 = vmax.f32 %v4514, 0.0
    %v5152 = vmax.f32 %v5021, 0.0
    %v5153 = vmax.f32 %v4516, 0.0
    %v5154 = vmax.f32 %v5023, 0.0
    %v5155 = vmax.f32 %v4519, 0.0
    %v5156 = vmax.f32 %v5026, 0.0
    %v5157 = vmax.f32 %v4521, 0.0
    %v5158 = vmax.f32 %v5028, 0.0
    %v5159 = vmax.f32 %v4524, 0.0
    %v5160 = vmax.f32 %v5031, 0.0
    %v5161 = vmax.f32 %v4526, 0.0
    %v5162 = vmax.f32 %v5033, 0.0
    %v5163 = vpack.c.bf16 %v5036, %v5035
    %v5164 = vpack.c.bf16 %v5038, %v5037
    %v5165 = vpack.c.bf16 %v5040, %v5039
    %v5166 = vpack.c.bf16 %v5042, %v5041
    %v5167 = vpack.c.bf16 %v5044, %v5043
    %v5168 = vpack.c.bf16 %v5046, %v5045
    %v5169 = vpack.c.bf16 %v5048, %v5047
    %v5170 = vpack.c.bf16 %v5050, %v5049
    %v5171 = vpack.c.bf16 %v5052, %v5051
    %v5172 = vpack.c.bf16 %v5054, %v5053
    %v5173 = vpack.c.bf16 %v5056, %v5055
    %v5174 = vpack.c.bf16 %v5058, %v5057
    %v5175 = vpack.c.bf16 %v5060, %v5059
    %v5176 = vpack.c.bf16 %v5062, %v5061
    %v5177 = vpack.c.bf16 %v5064, %v5063
    %v5178 = vpack.c.bf16 %v5066, %v5065
    %v5179 = vpack.c.bf16 %v5068, %v5067
    %v5180 = vpack.c.bf16 %v5070, %v5069
    %v5181 = vpack.c.bf16 %v5072, %v5071
    %v5182 = vpack.c.bf16 %v5074, %v5073
    %v5183 = vpack.c.bf16 %v5076, %v5075
    %v5184 = vpack.c.bf16 %v5078, %v5077
    %v5185 = vpack.c.bf16 %v5080, %v5079
    %v5186 = vpack.c.bf16 %v5082, %v5081
    %v5187 = vpack.c.bf16 %v5084, %v5083
    %v5188 = vpack.c.bf16 %v5086, %v5085
    %v5189 = vpack.c.bf16 %v5088, %v5087
    %v5190 = vpack.c.bf16 %v5090, %v5089
    %v5191 = vpack.c.bf16 %v5092, %v5091
    %v5192 = vpack.c.bf16 %v5094, %v5093
    %v5193 = vpack.c.bf16 %v5096, %v5095
    %v5194 = vpack.c.bf16 %v5098, %v5097
    %v5195 = vpack.c.bf16 %v5100, %v5099
    %v5196 = vpack.c.bf16 %v5102, %v5101
    %v5197 = vpack.c.bf16 %v5104, %v5103
    %v5198 = vpack.c.bf16 %v5106, %v5105
    %v5199 = vpack.c.bf16 %v5108, %v5107
    %v5200 = vpack.c.bf16 %v5110, %v5109
    %v5201 = vpack.c.bf16 %v5112, %v5111
    %v5202 = vpack.c.bf16 %v5114, %v5113
    %v5203 = vpack.c.bf16 %v5116, %v5115
    %v5204 = vpack.c.bf16 %v5118, %v5117
    %v5205 = vpack.c.bf16 %v5120, %v5119
    %v5206 = vpack.c.bf16 %v5122, %v5121
    %v5207 = vpack.c.bf16 %v5124, %v5123
    %v5208 = vpack.c.bf16 %v5126, %v5125
    %v5209 = vpack.c.bf16 %v5128, %v5127
    %v5210 = vpack.c.bf16 %v5130, %v5129
    %v5211 = vpack.c.bf16 %v5132, %v5131
    %v5212 = vpack.c.bf16 %v5134, %v5133
    %v5213 = vpack.c.bf16 %v5136, %v5135
    %v5214 = vpack.c.bf16 %v5138, %v5137
    %v5215 = vpack.c.bf16 %v5140, %v5139
    %v5216 = vpack.c.bf16 %v5142, %v5141
    %v5217 = vpack.c.bf16 %v5144, %v5143
    %v5218 = vpack.c.bf16 %v5146, %v5145
    %v5219 = vpack.c.bf16 %v5148, %v5147
    %v5220 = vpack.c.bf16 %v5150, %v5149
    %v5221 = vpack.c.bf16 %v5152, %v5151
    %v5222 = vpack.c.bf16 %v5154, %v5153
    %v5223 = vpack.c.bf16 %v5156, %v5155
    %v5224 = vpack.c.bf16 %v5158, %v5157
    %v5225 = vpack.c.bf16 %v5160, %v5159
    %v5226 = vpack.c.bf16 %v5162, %v5161
    %5227 = vst [vmem:[#allocation14 + $0x10] sm:$0xff] %v5163
    %5228 = vst [vmem:[#allocation14 + $0x38] sm:$0xff] %v5164
    %5229 = vst [vmem:[#allocation14 + $0x60] sm:$0xff] %v5165
    %5230 = vst [vmem:[#allocation14 + $0x88] sm:$0xff] %v5166
    %5231 = vst [vmem:[#allocation14 + $0xb0] sm:$0xff] %v5167
    %5232 = vst [vmem:[#allocation14 + $0xd8] sm:$0xff] %v5168
    %5233 = vst [vmem:[#allocation14 + $0x100] sm:$0xff] %v5169
    %5234 = vst [vmem:[#allocation14 + $0x128] sm:$0xff] %v5170
    %5235 = vst [vmem:[#allocation14 + $0x150] sm:$0xff] %v5171
    %5236 = vst [vmem:[#allocation14 + $0x178] sm:$0xff] %v5172
    %5237 = vst [vmem:[#allocation14 + $0x1a0] sm:$0xff] %v5173
    %5238 = vst [vmem:[#allocation14 + $0x1c8] sm:$0xff] %v5174
    %5239 = vst [vmem:[#allocation14 + $0x1f0] sm:$0xff] %v5175
    %5240 = vst [vmem:[#allocation14 + $0x218] sm:$0xff] %v5176
    %5241 = vst [vmem:[#allocation14 + $0x240] sm:$0xff] %v5177
    %5242 = vst [vmem:[#allocation14 + $0x268] sm:$0xff] %v5178
    %5243 = vst [vmem:[#allocation14 + $0x290] sm:$0xff] %v5179
    %5244 = vst [vmem:[#allocation14 + $0x2b8] sm:$0xff] %v5180
    %5245 = vst [vmem:[#allocation14 + $0x2e0] sm:$0xff] %v5181
    %5246 = vst [vmem:[#allocation14 + $0x308] sm:$0xff] %v5182
    %5247 = vst [vmem:[#allocation14 + $0x330] sm:$0xff] %v5183
    %5248 = vst [vmem:[#allocation14 + $0x358] sm:$0xff] %v5184
    %5249 = vst [vmem:[#allocation14 + $0x380] sm:$0xff] %v5185
    %5250 = vst [vmem:[#allocation14 + $0x3a8] sm:$0xff] %v5186
    %5251 = vst [vmem:[#allocation14 + $0x3d0] sm:$0xff] %v5187
    %5252 = vst [vmem:[#allocation14 + $0x3f8] sm:$0xff] %v5188
    %5253 = vst [vmem:[#allocation14 + $0x420] sm:$0xff] %v5189
    %5254 = vst [vmem:[#allocation14 + $0x448] sm:$0xff] %v5190
    %5255 = vst [vmem:[#allocation14 + $0x470] sm:$0xff] %v5191
    %5256 = vst [vmem:[#allocation14 + $0x498] sm:$0xff] %v5192
    %5257 = vst [vmem:[#allocation14 + $0x4c0] sm:$0xff] %v5193
    %5258 = vst [vmem:[#allocation14 + $0x4e8] sm:$0xff] %v5194
    %5259 = vst [vmem:[#allocation14 + $0x510] sm:$0xff] %v5195
    %5260 = vst [vmem:[#allocation14 + $0x538] sm:$0xff] %v5196
    %5261 = vst [vmem:[#allocation14 + $0x560] sm:$0xff] %v5197
    %5262 = vst [vmem:[#allocation14 + $0x588] sm:$0xff] %v5198
    %5263 = vst [vmem:[#allocation14 + $0x5b0] sm:$0xff] %v5199
    %5264 = vst [vmem:[#allocation14 + $0x5d8] sm:$0xff] %v5200
    %5265 = vst [vmem:[#allocation14 + $0x600] sm:$0xff] %v5201
    %5266 = vst [vmem:[#allocation14 + $0x628] sm:$0xff] %v5202
    %5267 = vst [vmem:[#allocation14 + $0x650] sm:$0xff] %v5203
    %5268 = vst [vmem:[#allocation14 + $0x678] sm:$0xff] %v5204
    %5269 = vst [vmem:[#allocation14 + $0x6a0] sm:$0xff] %v5205
    %5270 = vst [vmem:[#allocation14 + $0x6c8] sm:$0xff] %v5206
    %5271 = vst [vmem:[#allocation14 + $0x6f0] sm:$0xff] %v5207
    %5272 = vst [vmem:[#allocation14 + $0x718] sm:$0xff] %v5208
    %5273 = vst [vmem:[#allocation14 + $0x740] sm:$0xff] %v5209
    %5274 = vst [vmem:[#allocation14 + $0x768] sm:$0xff] %v5210
    %5275 = vst [vmem:[#allocation14 + $0x790] sm:$0xff] %v5211
    %5276 = vst [vmem:[#allocation14 + $0x7b8] sm:$0xff] %v5212
    %5277 = vst [vmem:[#allocation14 + $0x7e0] sm:$0xff] %v5213
    %5278 = vst [vmem:[#allocation14 + $0x808] sm:$0xff] %v5214
    %5279 = vst [vmem:[#allocation14 + $0x830] sm:$0xff] %v5215
    %5280 = vst [vmem:[#allocation14 + $0x858] sm:$0xff] %v5216
    %5281 = vst [vmem:[#allocation14 + $0x880] sm:$0xff] %v5217
    %5282 = vst [vmem:[#allocation14 + $0x8a8] sm:$0xff] %v5218
    %5283 = vst [vmem:[#allocation14 + $0x8d0] sm:$0xff] %v5219
    %5284 = vst [vmem:[#allocation14 + $0x8f8] sm:$0xff] %v5220
    %5285 = vst [vmem:[#allocation14 + $0x920] sm:$0xff] %v5221
    %5286 = vst [vmem:[#allocation14 + $0x948] sm:$0xff] %v5222
    %5287 = vst [vmem:[#allocation14 + $0x970] sm:$0xff] %v5223
    %5288 = vst [vmem:[#allocation14 + $0x998] sm:$0xff] %v5224
    %5289 = vst [vmem:[#allocation14 + $0x9c0] sm:$0xff] %v5225
    %5290 = vst [vmem:[#allocation14 + $0x9e8] sm:$0xff] %v5226
    %v5291 = vld [vmem:[#allocation3] sm:$0xf]
    %v5292 = vld [vmem:[#allocation3 + $0x4] sm:$0x1]
    %v5293 = vld [vmem:[#allocation3 + $0x8] sm:$0xf]
    %v5294 = vld [vmem:[#allocation3 + $0xc] sm:$0x1]
    %v5295 = vld [vmem:[#allocation3 + $0x10] sm:$0xf]
    %v5296 = vld [vmem:[#allocation3 + $0x14] sm:$0x1]
    %v5297 = vld [vmem:[#allocation3 + $0x18] sm:$0xf]
    %v5298 = vld [vmem:[#allocation3 + $0x1c] sm:$0x1]
    %v5299 = vld [vmem:[#allocation3 + $0x20] sm:$0xf]
    %v5300 = vld [vmem:[#allocation3 + $0x24] sm:$0x1]
    %v5301 = vld [vmem:[#allocation3 + $0x28] sm:$0xf]
    %v5302 = vld [vmem:[#allocation3 + $0x2c] sm:$0x1]
    %v5303 = vld [vmem:[#allocation3 + $0x30] sm:$0xf]
    %v5304 = vld [vmem:[#allocation3 + $0x34] sm:$0x1]
    %v5305 = vld [vmem:[#allocation3 + $0x38] sm:$0xf]
    %v5306 = vld [vmem:[#allocation3 + $0x3c] sm:$0x1]
    %v5307 = vld [vmem:[#allocation3 + $0x40] sm:$0xf]
    %v5308 = vld [vmem:[#allocation3 + $0x44] sm:$0x1]
    %v5309 = vld [vmem:[#allocation3 + $0x48] sm:$0xf]
    %v5310 = vld [vmem:[#allocation3 + $0x4c] sm:$0x1]
    %vm5331 = vcmask 1042432
    %vm5332 = vcmask 1046532
    %vm5333 = vmor %vm5331, %vm5332
    %v5334 = vrot.slane %v5291, 5
    %v5335 = vrot.slane %v5334, 4
    %v5336 = vrot.slane %v5292, 5
    %v5337 = vsel %vm5333, %v5335, %v5336
    %v5338 = vrot.slane %v5293, 5
    %v5339 = vrot.slane %v5338, 4
    %v5340 = vrot.slane %v5294, 5
    %v5341 = vsel %vm5333, %v5339, %v5340
    %v5342 = vrot.slane %v5295, 5
    %v5343 = vrot.slane %v5342, 4
    %v5344 = vrot.slane %v5296, 5
    %v5345 = vsel %vm5333, %v5343, %v5344
    %v5346 = vrot.slane %v5297, 5
    %v5347 = vrot.slane %v5346, 4
    %v5348 = vrot.slane %v5298, 5
    %v5349 = vsel %vm5333, %v5347, %v5348
    %v5350 = vrot.slane %v5299, 5
    %v5351 = vrot.slane %v5350, 4
    %v5352 = vrot.slane %v5300, 5
    %v5353 = vsel %vm5333, %v5351, %v5352
    %v5354 = vrot.slane %v5301, 5
    %v5355 = vrot.slane %v5354, 4
    %v5356 = vrot.slane %v5302, 5
    %v5357 = vsel %vm5333, %v5355, %v5356
    %v5358 = vrot.slane %v5303, 5
    %v5359 = vrot.slane %v5358, 4
    %v5360 = vrot.slane %v5304, 5
    %v5361 = vsel %vm5333, %v5359, %v5360
    %v5362 = vrot.slane %v5305, 5
    %v5363 = vrot.slane %v5362, 4
    %v5364 = vrot.slane %v5306, 5
    %v5365 = vsel %vm5333, %v5363, %v5364
    %v5366 = vrot.slane %v5307, 5
    %v5367 = vrot.slane %v5366, 4
    %v5368 = vrot.slane %v5308, 5
    %v5369 = vsel %vm5333, %v5367, %v5368
    %v5370 = vrot.slane %v5309, 5
    %v5371 = vrot.slane %v5370, 4
    %v5372 = vrot.slane %v5310, 5
    %v5373 = vsel %vm5333, %v5371, %v5372
    %s5394 = scalar_lea.vmem [#allocation2], 144
    %vm5395 = vcmask 257027
    %5396 = vst.msk [vmem:[%s5394] sm:$0x8] %vm5395, %v5334
    %5397 = vst.msk [vmem:[%s5394 + $0xc] sm:$0xf] %vm1944, %v5337
    %5398 = vst.msk [vmem:[%s5394 + $0x18] sm:$0x8] %vm5395, %v5338
    %5399 = vst.msk [vmem:[%s5394 + $0x24] sm:$0xf] %vm1944, %v5341
    %5400 = vst.msk [vmem:[%s5394 + $0x30] sm:$0x8] %vm5395, %v5342
    %5401 = vst.msk [vmem:[%s5394 + $0x3c] sm:$0xf] %vm1944, %v5345
    %5402 = vst.msk [vmem:[%s5394 + $0x48] sm:$0x8] %vm5395, %v5346
    %5403 = vst.msk [vmem:[%s5394 + $0x54] sm:$0xf] %vm1944, %v5349
    %5404 = vst.msk [vmem:[%s5394 + $0x60] sm:$0x8] %vm5395, %v5350
    %5405 = vst.msk [vmem:[%s5394 + $0x6c] sm:$0xf] %vm1944, %v5353
    %5406 = vst.msk [vmem:[%s5394 + $0x78] sm:$0x8] %vm5395, %v5354
    %5407 = vst.msk [vmem:[%s5394 + $0x84] sm:$0xf] %vm1944, %v5357
    %5408 = vst.msk [vmem:[%s5394 + $0x90] sm:$0x8] %vm5395, %v5358
    %5409 = vst.msk [vmem:[%s5394 + $0x9c] sm:$0xf] %vm1944, %v5361
    %5410 = vst.msk [vmem:[%s5394 + $0xa8] sm:$0x8] %vm5395, %v5362
    %5411 = vst.msk [vmem:[%s5394 + $0xb4] sm:$0xf] %vm1944, %v5365
    %5412 = vst.msk [vmem:[%s5394 + $0xc0] sm:$0x8] %vm5395, %v5366
    %5413 = vst.msk [vmem:[%s5394 + $0xcc] sm:$0xf] %vm1944, %v5369
    %5414 = vst.msk [vmem:[%s5394 + $0xd8] sm:$0x8] %vm5395, %v5370
    %5415 = vst.msk [vmem:[%s5394 + $0xe4] sm:$0xf] %vm1944, %v5373
    %v5416 = vld [vmem:[#allocation3] sm:$0xf]
    %v5417 = vld [vmem:[#allocation3 + $0x4] sm:$0xf]
    %v5418 = vld [vmem:[#allocation3 + $0x8] sm:$0xf]
    %v5419 = vld [vmem:[#allocation3 + $0xc] sm:$0xf]
    %v5420 = vld [vmem:[#allocation3 + $0x10] sm:$0xf]
    %v5421 = vld [vmem:[#allocation3 + $0x14] sm:$0xf]
    %v5422 = vld [vmem:[#allocation3 + $0x18] sm:$0xf]
    %v5423 = vld [vmem:[#allocation3 + $0x1c] sm:$0xf]
    %v5424 = vld [vmem:[#allocation3 + $0x20] sm:$0xf]
    %v5425 = vld [vmem:[#allocation3 + $0x24] sm:$0xf]
    %v5426 = vld [vmem:[#allocation3 + $0x28] sm:$0xf]
    %v5427 = vld [vmem:[#allocation3 + $0x2c] sm:$0xf]
    %v5428 = vld [vmem:[#allocation3 + $0x30] sm:$0xf]
    %v5429 = vld [vmem:[#allocation3 + $0x34] sm:$0xf]
    %v5430 = vld [vmem:[#allocation3 + $0x38] sm:$0xf]
    %v5431 = vld [vmem:[#allocation3 + $0x3c] sm:$0xf]
    %v5432 = vld [vmem:[#allocation3 + $0x40] sm:$0xf]
    %v5433 = vld [vmem:[#allocation3 + $0x44] sm:$0xf]
    %v5434 = vld [vmem:[#allocation3 + $0x48] sm:$0xf]
    %v5435 = vld [vmem:[#allocation3 + $0x4c] sm:$0xf]
    %5456 = vrot.lane.b32.xlu0 %v5416, 32
    %v5457 = vpop.permute.xlu0 %5456
    %5458 = vrot.lane.b32.xlu0 %v5417, 32
    %v5459 = vpop.permute.xlu0 %5458
    %5460 = vrot.lane.b32.xlu0 %v5418, 32
    %v5461 = vpop.permute.xlu0 %5460
    %5462 = vrot.lane.b32.xlu0 %v5419, 32
    %v5463 = vpop.permute.xlu0 %5462
    %5464 = vrot.lane.b32.xlu0 %v5420, 32
    %v5465 = vpop.permute.xlu0 %5464
    %5466 = vrot.lane.b32.xlu0 %v5421, 32
    %v5467 = vpop.permute.xlu0 %5466
    %5468 = vrot.lane.b32.xlu0 %v5422, 32
    %v5469 = vpop.permute.xlu0 %5468
    %5470 = vrot.lane.b32.xlu0 %v5423, 32
    %v5471 = vpop.permute.xlu0 %5470
    %5472 = vrot.lane.b32.xlu0 %v5424, 32
    %v5473 = vpop.permute.xlu0 %5472
    %5474 = vrot.lane.b32.xlu0 %v5425, 32
    %v5475 = vpop.permute.xlu0 %5474
    %5476 = vrot.lane.b32.xlu0 %v5426, 32
    %v5477 = vpop.permute.xlu0 %5476
    %5478 = vrot.lane.b32.xlu0 %v5427, 32
    %v5479 = vpop.permute.xlu0 %5478
    %5480 = vrot.lane.b32.xlu0 %v5428, 32
    %v5481 = vpop.permute.xlu0 %5480
    %5482 = vrot.lane.b32.xlu0 %v5429, 32
    %v5483 = vpop.permute.xlu0 %5482
    %5484 = vrot.lane.b32.xlu0 %v5430, 32
    %v5485 = vpop.permute.xlu0 %5484
    %5486 = vrot.lane.b32.xlu0 %v5431, 32
    %v5487 = vpop.permute.xlu0 %5486
    %5488 = vrot.lane.b32.xlu0 %v5432, 32
    %v5489 = vpop.permute.xlu0 %5488
    %5490 = vrot.lane.b32.xlu0 %v5433, 32
    %v5491 = vpop.permute.xlu0 %5490
    %5492 = vrot.lane.b32.xlu0 %v5434, 32
    %v5493 = vpop.permute.xlu0 %5492
    %5494 = vrot.lane.b32.xlu0 %v5435, 32
    %v5495 = vpop.permute.xlu0 %5494
    %5516 = vst.msk [vmem:[%s5394] sm:$0xf] %vm2134, %v5457
    %5517 = vst.msk [vmem:[%s5394 + $0xc] sm:$0xf] %vm2134, %v5459
    %5518 = vst.msk [vmem:[%s5394 + $0x18] sm:$0xf] %vm2134, %v5461
    %5519 = vst.msk [vmem:[%s5394 + $0x24] sm:$0xf] %vm2134, %v5463
    %5520 = vst.msk [vmem:[%s5394 + $0x30] sm:$0xf] %vm2134, %v5465
    %5521 = vst.msk [vmem:[%s5394 + $0x3c] sm:$0xf] %vm2134, %v5467
    %5522 = vst.msk [vmem:[%s5394 + $0x48] sm:$0xf] %vm2134, %v5469
    %5523 = vst.msk [vmem:[%s5394 + $0x54] sm:$0xf] %vm2134, %v5471
    %5524 = vst.msk [vmem:[%s5394 + $0x60] sm:$0xf] %vm2134, %v5473
    %5525 = vst.msk [vmem:[%s5394 + $0x6c] sm:$0xf] %vm2134, %v5475
    %5526 = vst.msk [vmem:[%s5394 + $0x78] sm:$0xf] %vm2134, %v5477
    %5527 = vst.msk [vmem:[%s5394 + $0x84] sm:$0xf] %vm2134, %v5479
    %5528 = vst.msk [vmem:[%s5394 + $0x90] sm:$0xf] %vm2134, %v5481
    %5529 = vst.msk [vmem:[%s5394 + $0x9c] sm:$0xf] %vm2134, %v5483
    %5530 = vst.msk [vmem:[%s5394 + $0xa8] sm:$0xf] %vm2134, %v5485
    %5531 = vst.msk [vmem:[%s5394 + $0xb4] sm:$0xf] %vm2134, %v5487
    %5532 = vst.msk [vmem:[%s5394 + $0xc0] sm:$0xf] %vm2134, %v5489
    %5533 = vst.msk [vmem:[%s5394 + $0xcc] sm:$0xf] %vm2134, %v5491
    %5534 = vst.msk [vmem:[%s5394 + $0xd8] sm:$0xf] %vm2134, %v5493
    %5535 = vst.msk [vmem:[%s5394 + $0xe4] sm:$0xf] %vm2134, %v5495
    %v5536 = vld [vmem:[#allocation3] sm:$0x8]
    %v5537 = vld [vmem:[#allocation3 + $0x4] sm:$0xf]
    %v5538 = vld [vmem:[#allocation3 + $0x8] sm:$0x8]
    %v5539 = vld [vmem:[#allocation3 + $0xc] sm:$0xf]
    %v5540 = vld [vmem:[#allocation3 + $0x10] sm:$0x8]
    %v5541 = vld [vmem:[#allocation3 + $0x14] sm:$0xf]
    %v5542 = vld [vmem:[#allocation3 + $0x18] sm:$0x8]
    %v5543 = vld [vmem:[#allocation3 + $0x1c] sm:$0xf]
    %v5544 = vld [vmem:[#allocation3 + $0x20] sm:$0x8]
    %v5545 = vld [vmem:[#allocation3 + $0x24] sm:$0xf]
    %v5546 = vld [vmem:[#allocation3 + $0x28] sm:$0x8]
    %v5547 = vld [vmem:[#allocation3 + $0x2c] sm:$0xf]
    %v5548 = vld [vmem:[#allocation3 + $0x30] sm:$0x8]
    %v5549 = vld [vmem:[#allocation3 + $0x34] sm:$0xf]
    %v5550 = vld [vmem:[#allocation3 + $0x38] sm:$0x8]
    %v5551 = vld [vmem:[#allocation3 + $0x3c] sm:$0xf]
    %v5552 = vld [vmem:[#allocation3 + $0x40] sm:$0x8]
    %v5553 = vld [vmem:[#allocation3 + $0x44] sm:$0xf]
    %v5554 = vld [vmem:[#allocation3 + $0x48] sm:$0x8]
    %v5555 = vld [vmem:[#allocation3 + $0x4c] sm:$0xf]
    %vm5576 = vcmask 1040384
    %vm5577 = vcmask 1044484
    %vm5578 = vmor %vm5576, %vm5577
    %v5579 = vrot.slane %v5536, 7
    %v5580 = vrot.slane %v5579, 4
    %v5581 = vrot.slane %v5537, 7
    %v5582 = vsel %vm5578, %v5580, %v5581
    %v5583 = vrot.slane %v5581, 4
    %v5584 = vrot.slane %v5538, 7
    %v5585 = vrot.slane %v5584, 4
    %v5586 = vrot.slane %v5539, 7
    %v5587 = vsel %vm5578, %v5585, %v5586
    %v5588 = vrot.slane %v5586, 4
    %v5589 = vrot.slane %v5540, 7
    %v5590 = vrot.slane %v5589, 4
    %v5591 = vrot.slane %v5541, 7
    %v5592 = vsel %vm5578, %v5590, %v5591
    %v5593 = vrot.slane %v5591, 4
    %v5594 = vrot.slane %v5542, 7
    %v5595 = vrot.slane %v5594, 4
    %v5596 = vrot.slane %v5543, 7
    %v5597 = vsel %vm5578, %v5595, %v5596
    %v5598 = vrot.slane %v5596, 4
    %v5599 = vrot.slane %v5544, 7
    %v5600 = vrot.slane %v5599, 4
    %v5601 = vrot.slane %v5545, 7
    %v5602 = vsel %vm5578, %v5600, %v5601
    %v5603 = vrot.slane %v5601, 4
    %v5604 = vrot.slane %v5546, 7
    %v5605 = vrot.slane %v5604, 4
    %v5606 = vrot.slane %v5547, 7
    %v5607 = vsel %vm5578, %v5605, %v5606
    %v5608 = vrot.slane %v5606, 4
    %v5609 = vrot.slane %v5548, 7
    %v5610 = vrot.slane %v5609, 4
    %v5611 = vrot.slane %v5549, 7
    %v5612 = vsel %vm5578, %v5610, %v5611
    %v5613 = vrot.slane %v5611, 4
    %v5614 = vrot.slane %v5550, 7
    %v5615 = vrot.slane %v5614, 4
    %v5616 = vrot.slane %v5551, 7
    %v5617 = vsel %vm5578, %v5615, %v5616
    %v5618 = vrot.slane %v5616, 4
    %v5619 = vrot.slane %v5552, 7
    %v5620 = vrot.slane %v5619, 4
    %v5621 = vrot.slane %v5553, 7
    %v5622 = vsel %vm5578, %v5620, %v5621
    %v5623 = vrot.slane %v5621, 4
    %v5624 = vrot.slane %v5554, 7
    %v5625 = vrot.slane %v5624, 4
    %v5626 = vrot.slane %v5555, 7
    %v5627 = vsel %vm5578, %v5625, %v5626
    %v5628 = vrot.slane %v5626, 4
    %5629 = vrot.lane.b32.xlu0 %v5582, 64
    %v5630 = vpop.permute.xlu0 %5629
    %5631 = vrot.lane.b32.xlu0 %v5583, 64
    %v5632 = vpop.permute.xlu0 %5631
    %5633 = vrot.lane.b32.xlu0 %v5587, 64
    %v5634 = vpop.permute.xlu0 %5633
    %5635 = vrot.lane.b32.xlu0 %v5588, 64
    %v5636 = vpop.permute.xlu0 %5635
    %5637 = vrot.lane.b32.xlu0 %v5592, 64
    %v5638 = vpop.permute.xlu0 %5637
    %5639 = vrot.lane.b32.xlu0 %v5593, 64
    %v5640 = vpop.permute.xlu0 %5639
    %5641 = vrot.lane.b32.xlu0 %v5597, 64
    %v5642 = vpop.permute.xlu0 %5641
    %5643 = vrot.lane.b32.xlu0 %v5598, 64
    %v5644 = vpop.permute.xlu0 %5643
    %5645 = vrot.lane.b32.xlu0 %v5602, 64
    %v5646 = vpop.permute.xlu0 %5645
    %5647 = vrot.lane.b32.xlu0 %v5603, 64
    %v5648 = vpop.permute.xlu0 %5647
    %5649 = vrot.lane.b32.xlu0 %v5607, 64
    %v5650 = vpop.permute.xlu0 %5649
    %5651 = vrot.lane.b32.xlu0 %v5608, 64
    %v5652 = vpop.permute.xlu0 %5651
    %5653 = vrot.lane.b32.xlu0 %v5612, 64
    %v5654 = vpop.permute.xlu0 %5653
    %5655 = vrot.lane.b32.xlu0 %v5613, 64
    %v5656 = vpop.permute.xlu0 %5655
    %5657 = vrot.lane.b32.xlu0 %v5617, 64
    %v5658 = vpop.permute.xlu0 %5657
    %5659 = vrot.lane.b32.xlu0 %v5618, 64
    %v5660 = vpop.permute.xlu0 %5659
    %5661 = vrot.lane.b32.xlu0 %v5622, 64
    %v5662 = vpop.permute.xlu0 %5661
    %5663 = vrot.lane.b32.xlu0 %v5623, 64
    %v5664 = vpop.permute.xlu0 %5663
    %5665 = vrot.lane.b32.xlu0 %v5627, 64
    %v5666 = vpop.permute.xlu0 %5665
    %5667 = vrot.lane.b32.xlu0 %v5628, 64
    %v5668 = vpop.permute.xlu0 %5667
    %vm5689 = vcmask 781824
    %5690 = vst.msk [vmem:[%s5394] sm:$0xf] %vm5689, %v5630
    %vm5691 = vcmask 778752
    %5692 = vst.msk [vmem:[%s5394 + $0xc] sm:$0x1] %vm5691, %v5632
    %5693 = vst.msk [vmem:[%s5394 + $0x18] sm:$0xf] %vm5689, %v5634
    %5694 = vst.msk [vmem:[%s5394 + $0x24] sm:$0x1] %vm5691, %v5636
    %5695 = vst.msk [vmem:[%s5394 + $0x30] sm:$0xf] %vm5689, %v5638
    %5696 = vst.msk [vmem:[%s5394 + $0x3c] sm:$0x1] %vm5691, %v5640
    %5697 = vst.msk [vmem:[%s5394 + $0x48] sm:$0xf] %vm5689, %v5642
    %5698 = vst.msk [vmem:[%s5394 + $0x54] sm:$0x1] %vm5691, %v5644
    %5699 = vst.msk [vmem:[%s5394 + $0x60] sm:$0xf] %vm5689, %v5646
    %5700 = vst.msk [vmem:[%s5394 + $0x6c] sm:$0x1] %vm5691, %v5648
    %5701 = vst.msk [vmem:[%s5394 + $0x78] sm:$0xf] %vm5689, %v5650
    %5702 = vst.msk [vmem:[%s5394 + $0x84] sm:$0x1] %vm5691, %v5652
    %5703 = vst.msk [vmem:[%s5394 + $0x90] sm:$0xf] %vm5689, %v5654
    %5704 = vst.msk [vmem:[%s5394 + $0x9c] sm:$0x1] %vm5691, %v5656
    %5705 = vst.msk [vmem:[%s5394 + $0xa8] sm:$0xf] %vm5689, %v5658
    %5706 = vst.msk [vmem:[%s5394 + $0xb4] sm:$0x1] %vm5691, %v5660
    %5707 = vst.msk [vmem:[%s5394 + $0xc0] sm:$0xf] %vm5689, %v5662
    %5708 = vst.msk [vmem:[%s5394 + $0xcc] sm:$0x1] %vm5691, %v5664
    %5709 = vst.msk [vmem:[%s5394 + $0xd8] sm:$0xf] %vm5689, %v5666
    %5710 = vst.msk [vmem:[%s5394 + $0xe4] sm:$0x1] %vm5691, %v5668
    %v5711 = vld [vmem:[#allocation3] sm:$0xf]
    %v5712 = vld [vmem:[#allocation3 + $0x4] sm:$0x1]
    %v5713 = vld [vmem:[#allocation3 + $0x8] sm:$0xf]
    %v5714 = vld [vmem:[#allocation3 + $0xc] sm:$0x1]
    %v5715 = vld [vmem:[#allocation3 + $0x10] sm:$0xf]
    %v5716 = vld [vmem:[#allocation3 + $0x14] sm:$0x1]
    %v5717 = vld [vmem:[#allocation3 + $0x18] sm:$0xf]
    %v5718 = vld [vmem:[#allocation3 + $0x1c] sm:$0x1]
    %v5719 = vld [vmem:[#allocation3 + $0x20] sm:$0xf]
    %v5720 = vld [vmem:[#allocation3 + $0x24] sm:$0x1]
    %v5721 = vld [vmem:[#allocation3 + $0x28] sm:$0xf]
    %v5722 = vld [vmem:[#allocation3 + $0x2c] sm:$0x1]
    %v5723 = vld [vmem:[#allocation3 + $0x30] sm:$0xf]
    %v5724 = vld [vmem:[#allocation3 + $0x34] sm:$0x1]
    %v5725 = vld [vmem:[#allocation3 + $0x38] sm:$0xf]
    %v5726 = vld [vmem:[#allocation3 + $0x3c] sm:$0x1]
    %v5727 = vld [vmem:[#allocation3 + $0x40] sm:$0xf]
    %v5728 = vld [vmem:[#allocation3 + $0x44] sm:$0x1]
    %v5729 = vld [vmem:[#allocation3 + $0x48] sm:$0xf]
    %v5730 = vld [vmem:[#allocation3 + $0x4c] sm:$0x1]
    %v5731 = vld [vmem:[#allocation3 + $0x50] sm:$0xf]
    %v5732 = vld [vmem:[#allocation3 + $0x54] sm:$0x1]
    %v5733 = vld [vmem:[#allocation3 + $0x58] sm:$0xf]
    %v5734 = vld [vmem:[#allocation3 + $0x5c] sm:$0x1]
    %v5735 = vld [vmem:[#allocation3 + $0x60] sm:$0xf]
    %v5736 = vld [vmem:[#allocation3 + $0x64] sm:$0x1]
    %v5737 = vld [vmem:[#allocation3 + $0x68] sm:$0xf]
    %v5738 = vld [vmem:[#allocation3 + $0x6c] sm:$0x1]
    %v5739 = vld [vmem:[#allocation3 + $0x70] sm:$0xf]
    %v5740 = vld [vmem:[#allocation3 + $0x74] sm:$0x1]
    %v5741 = vld [vmem:[#allocation3 + $0x78] sm:$0xf]
    %v5742 = vld [vmem:[#allocation3 + $0x7c] sm:$0x1]
    %v5775 = vrot.slane %v5711, 5
    %v5776 = vrot.slane %v5775, 4
    %v5777 = vrot.slane %v5712, 5
    %v5778 = vsel %vm5333, %v5776, %v5777
    %v5779 = vrot.slane %v5713, 5
    %v5780 = vrot.slane %v5779, 4
    %v5781 = vrot.slane %v5714, 5
    %v5782 = vsel %vm5333, %v5780, %v5781
    %v5783 = vrot.slane %v5715, 5
    %v5784 = vrot.slane %v5783, 4
    %v5785 = vrot.slane %v5716, 5
    %v5786 = vsel %vm5333, %v5784, %v5785
    %v5787 = vrot.slane %v5717, 5
    %v5788 = vrot.slane %v5787, 4
    %v5789 = vrot.slane %v5718, 5
    %v5790 = vsel %vm5333, %v5788, %v5789
    %v5791 = vrot.slane %v5719, 5
    %v5792 = vrot.slane %v5791, 4
    %v5793 = vrot.slane %v5720, 5
    %v5794 = vsel %vm5333, %v5792, %v5793
    %v5795 = vrot.slane %v5721, 5
    %v5796 = vrot.slane %v5795, 4
    %v5797 = vrot.slane %v5722, 5
    %v5798 = vsel %vm5333, %v5796, %v5797
    %v5799 = vrot.slane %v5723, 5
    %v5800 = vrot.slane %v5799, 4
    %v5801 = vrot.slane %v5724, 5
    %v5802 = vsel %vm5333, %v5800, %v5801
    %v5803 = vrot.slane %v5725, 5
    %v5804 = vrot.slane %v5803, 4
    %v5805 = vrot.slane %v5726, 5
    %v5806 = vsel %vm5333, %v5804, %v5805
    %v5807 = vrot.slane %v5727, 5
    %v5808 = vrot.slane %v5807, 4
    %v5809 = vrot.slane %v5728, 5
    %v5810 = vsel %vm5333, %v5808, %v5809
    %v5811 = vrot.slane %v5729, 5
    %v5812 = vrot.slane %v5811, 4
    %v5813 = vrot.slane %v5730, 5
    %v5814 = vsel %vm5333, %v5812, %v5813
    %v5815 = vrot.slane %v5731, 5
    %v5816 = vrot.slane %v5815, 4
    %v5817 = vrot.slane %v5732, 5
    %v5818 = vsel %vm5333, %v5816, %v5817
    %v5819 = vrot.slane %v5733, 5
    %v5820 = vrot.slane %v5819, 4
    %v5821 = vrot.slane %v5734, 5
    %v5822 = vsel %vm5333, %v5820, %v5821
    %v5823 = vrot.slane %v5735, 5
    %v5824 = vrot.slane %v5823, 4
    %v5825 = vrot.slane %v5736, 5
    %v5826 = vsel %vm5333, %v5824, %v5825
    %v5827 = vrot.slane %v5737, 5
    %v5828 = vrot.slane %v5827, 4
    %v5829 = vrot.slane %v5738, 5
    %v5830 = vsel %vm5333, %v5828, %v5829
    %v5831 = vrot.slane %v5739, 5
    %v5832 = vrot.slane %v5831, 4
    %v5833 = vrot.slane %v5740, 5
    %v5834 = vsel %vm5333, %v5832, %v5833
    %v5835 = vrot.slane %v5741, 5
    %v5836 = vrot.slane %v5835, 4
    %v5837 = vrot.slane %v5742, 5
    %v5838 = vsel %vm5333, %v5836, %v5837
    %5839 = vrot.lane.b32.xlu0 %v5775, 96
    %v5840 = vpop.permute.xlu0 %5839
    %5841 = vrot.lane.b32.xlu0 %v5778, 96
    %v5842 = vpop.permute.xlu0 %5841
    %5843 = vrot.lane.b32.xlu0 %v5779, 96
    %v5844 = vpop.permute.xlu0 %5843
    %5845 = vrot.lane.b32.xlu0 %v5782, 96
    %v5846 = vpop.permute.xlu0 %5845
    %5847 = vrot.lane.b32.xlu0 %v5783, 96
    %v5848 = vpop.permute.xlu0 %5847
    %5849 = vrot.lane.b32.xlu0 %v5786, 96
    %v5850 = vpop.permute.xlu0 %5849
    %5851 = vrot.lane.b32.xlu0 %v5787, 96
    %v5852 = vpop.permute.xlu0 %5851
    %5853 = vrot.lane.b32.xlu0 %v5790, 96
    %v5854 = vpop.permute.xlu0 %5853
    %5855 = vrot.lane.b32.xlu0 %v5791, 96
    %v5856 = vpop.permute.xlu0 %5855
    %5857 = vrot.lane.b32.xlu0 %v5794, 96
    %v5858 = vpop.permute.xlu0 %5857
    %5859 = vrot.lane.b32.xlu0 %v5795, 96
    %v5860 = vpop.permute.xlu0 %5859
    %5861 = vrot.lane.b32.xlu0 %v5798, 96
    %v5862 = vpop.permute.xlu0 %5861
    %5863 = vrot.lane.b32.xlu0 %v5799, 96
    %v5864 = vpop.permute.xlu0 %5863
    %5865 = vrot.lane.b32.xlu0 %v5802, 96
    %v5866 = vpop.permute.xlu0 %5865
    %5867 = vrot.lane.b32.xlu0 %v5803, 96
    %v5868 = vpop.permute.xlu0 %5867
    %5869 = vrot.lane.b32.xlu0 %v5806, 96
    %v5870 = vpop.permute.xlu0 %5869
    %5871 = vrot.lane.b32.xlu0 %v5807, 96
    %v5872 = vpop.permute.xlu0 %5871
    %5873 = vrot.lane.b32.xlu0 %v5810, 96
    %v5874 = vpop.permute.xlu0 %5873
    %5875 = vrot.lane.b32.xlu0 %v5811, 96
    %v5876 = vpop.permute.xlu0 %5875
    %5877 = vrot.lane.b32.xlu0 %v5814, 96
    %v5878 = vpop.permute.xlu0 %5877
    %5879 = vrot.lane.b32.xlu0 %v5815, 96
    %v5880 = vpop.permute.xlu0 %5879
    %5881 = vrot.lane.b32.xlu0 %v5818, 96
    %v5882 = vpop.permute.xlu0 %5881
    %5883 = vrot.lane.b32.xlu0 %v5819, 96
    %v5884 = vpop.permute.xlu0 %5883
    %5885 = vrot.lane.b32.xlu0 %v5822, 96
    %v5886 = vpop.permute.xlu0 %5885
    %5887 = vrot.lane.b32.xlu0 %v5823, 96
    %v5888 = vpop.permute.xlu0 %5887
    %5889 = vrot.lane.b32.xlu0 %v5826, 96
    %v5890 = vpop.permute.xlu0 %5889
    %5891 = vrot.lane.b32.xlu0 %v5827, 96
    %v5892 = vpop.permute.xlu0 %5891
    %5893 = vrot.lane.b32.xlu0 %v5830, 96
    %v5894 = vpop.permute.xlu0 %5893
    %5895 = vrot.lane.b32.xlu0 %v5831, 96
    %v5896 = vpop.permute.xlu0 %5895
    %5897 = vrot.lane.b32.xlu0 %v5834, 96
    %v5898 = vpop.permute.xlu0 %5897
    %5899 = vrot.lane.b32.xlu0 %v5835, 96
    %v5900 = vpop.permute.xlu0 %5899
    %5901 = vrot.lane.b32.xlu0 %v5838, 96
    %v5902 = vpop.permute.xlu0 %5901
    %vm5935 = vcmask 1044227
    %5936 = vst.msk [vmem:[#allocation2] sm:$0x8] %vm5935, %v5840
    %5937 = vst.msk [vmem:[#allocation2 + $0xc] sm:$0xf] %vm2552, %v5842
    %5938 = vst.msk [vmem:[#allocation2 + $0x18] sm:$0x8] %vm5935, %v5844
    %5939 = vst.msk [vmem:[#allocation2 + $0x24] sm:$0xf] %vm2552, %v5846
    %5940 = vst.msk [vmem:[#allocation2 + $0x30] sm:$0x8] %vm5935, %v5848
    %5941 = vst.msk [vmem:[#allocation2 + $0x3c] sm:$0xf] %vm2552, %v5850
    %5942 = vst.msk [vmem:[#allocation2 + $0x48] sm:$0x8] %vm5935, %v5852
    %5943 = vst.msk [vmem:[#allocation2 + $0x54] sm:$0xf] %vm2552, %v5854
    %5944 = vst.msk [vmem:[#allocation2 + $0x60] sm:$0x8] %vm5935, %v5856
    %5945 = vst.msk [vmem:[#allocation2 + $0x6c] sm:$0xf] %vm2552, %v5858
    %5946 = vst.msk [vmem:[#allocation2 + $0x78] sm:$0x8] %vm5935, %v5860
    %5947 = vst.msk [vmem:[#allocation2 + $0x84] sm:$0xf] %vm2552, %v5862
    %5948 = vst.msk [vmem:[#allocation2 + $0x90] sm:$0x8] %vm5935, %v5864
    %5949 = vst.msk [vmem:[#allocation2 + $0x9c] sm:$0xf] %vm2552, %v5866
    %5950 = vst.msk [vmem:[#allocation2 + $0xa8] sm:$0x8] %vm5935, %v5868
    %5951 = vst.msk [vmem:[#allocation2 + $0xb4] sm:$0xf] %vm2552, %v5870
    %5952 = vst.msk [vmem:[#allocation2 + $0xc0] sm:$0x8] %vm5935, %v5872
    %5953 = vst.msk [vmem:[#allocation2 + $0xcc] sm:$0xf] %vm2552, %v5874
    %5954 = vst.msk [vmem:[#allocation2 + $0xd8] sm:$0x8] %vm5935, %v5876
    %5955 = vst.msk [vmem:[#allocation2 + $0xe4] sm:$0xf] %vm2552, %v5878
    %5956 = vst.msk [vmem:[#allocation2 + $0xf0] sm:$0x8] %vm5935, %v5880
    %5957 = vst.msk [vmem:[#allocation2 + $0xfc] sm:$0xf] %vm2552, %v5882
    %5958 = vst.msk [vmem:[#allocation2 + $0x108] sm:$0x8] %vm5935, %v5884
    %5959 = vst.msk [vmem:[#allocation2 + $0x114] sm:$0xf] %vm2552, %v5886
    %5960 = vst.msk [vmem:[#allocation2 + $0x120] sm:$0x8] %vm5935, %v5888
    %5961 = vst.msk [vmem:[#allocation2 + $0x12c] sm:$0xf] %vm2552, %v5890
    %5962 = vst.msk [vmem:[#allocation2 + $0x138] sm:$0x8] %vm5935, %v5892
    %5963 = vst.msk [vmem:[#allocation2 + $0x144] sm:$0xf] %vm2552, %v5894
    %5964 = vst.msk [vmem:[#allocation2 + $0x150] sm:$0x8] %vm5935, %v5896
    %5965 = vst.msk [vmem:[#allocation2 + $0x15c] sm:$0xf] %vm2552, %v5898
    %5966 = vst.msk [vmem:[#allocation2 + $0x168] sm:$0x8] %vm5935, %v5900
    %5967 = vst.msk [vmem:[#allocation2 + $0x174] sm:$0xf] %vm2552, %v5902
    %v5968 = vld [vmem:[#allocation3] sm:$0xf]
    %v5969 = vld [vmem:[#allocation3 + $0x4] sm:$0xf]
    %v5970 = vld [vmem:[#allocation3 + $0x8] sm:$0xf]
    %v5971 = vld [vmem:[#allocation3 + $0xc] sm:$0xf]
    %v5972 = vld [vmem:[#allocation3 + $0x10] sm:$0xf]
    %v5973 = vld [vmem:[#allocation3 + $0x14] sm:$0xf]
    %v5974 = vld [vmem:[#allocation3 + $0x18] sm:$0xf]
    %v5975 = vld [vmem:[#allocation3 + $0x1c] sm:$0xf]
    %v5976 = vld [vmem:[#allocation3 + $0x20] sm:$0xf]
    %v5977 = vld [vmem:[#allocation3 + $0x24] sm:$0xf]
    %v5978 = vld [vmem:[#allocation3 + $0x28] sm:$0xf]
    %v5979 = vld [vmem:[#allocation3 + $0x2c] sm:$0xf]
    %v5980 = vld [vmem:[#allocation3 + $0x30] sm:$0xf]
    %v5981 = vld [vmem:[#allocation3 + $0x34] sm:$0xf]
    %v5982 = vld [vmem:[#allocation3 + $0x38] sm:$0xf]
    %v5983 = vld [vmem:[#allocation3 + $0x3c] sm:$0xf]
    %v5984 = vld [vmem:[#allocation3 + $0x40] sm:$0xf]
    %v5985 = vld [vmem:[#allocation3 + $0x44] sm:$0xf]
    %v5986 = vld [vmem:[#allocation3 + $0x48] sm:$0xf]
    %v5987 = vld [vmem:[#allocation3 + $0x4c] sm:$0xf]
    %v5988 = vld [vmem:[#allocation3 + $0x50] sm:$0xf]
    %v5989 = vld [vmem:[#allocation3 + $0x54] sm:$0xf]
    %v5990 = vld [vmem:[#allocation3 + $0x58] sm:$0xf]
    %v5991 = vld [vmem:[#allocation3 + $0x5c] sm:$0xf]
    %v5992 = vld [vmem:[#allocation3 + $0x60] sm:$0xf]
    %v5993 = vld [vmem:[#allocation3 + $0x64] sm:$0xf]
    %v5994 = vld [vmem:[#allocation3 + $0x68] sm:$0xf]
    %v5995 = vld [vmem:[#allocation3 + $0x6c] sm:$0xf]
    %v5996 = vld [vmem:[#allocation3 + $0x70] sm:$0xf]
    %v5997 = vld [vmem:[#allocation3 + $0x74] sm:$0xf]
    %v5998 = vld [vmem:[#allocation3 + $0x78] sm:$0xf]
    %v5999 = vld [vmem:[#allocation3 + $0x7c] sm:$0xf]
    %6000 = vst.msk [vmem:[#allocation2 + $0x4] sm:$0xf] %vm1944, %v5968
    %6001 = vst.msk [vmem:[#allocation2 + $0x10] sm:$0xf] %vm1944, %v5969
    %6002 = vst.msk [vmem:[#allocation2 + $0x1c] sm:$0xf] %vm1944, %v5970
    %6003 = vst.msk [vmem:[#allocation2 + $0x28] sm:$0xf] %vm1944, %v5971
    %6004 = vst.msk [vmem:[#allocation2 + $0x34] sm:$0xf] %vm1944, %v5972
    %6005 = vst.msk [vmem:[#allocation2 + $0x40] sm:$0xf] %vm1944, %v5973
    %6006 = vst.msk [vmem:[#allocation2 + $0x4c] sm:$0xf] %vm1944, %v5974
    %6007 = vst.msk [vmem:[#allocation2 + $0x58] sm:$0xf] %vm1944, %v5975
    %6008 = vst.msk [vmem:[#allocation2 + $0x64] sm:$0xf] %vm1944, %v5976
    %6009 = vst.msk [vmem:[#allocation2 + $0x70] sm:$0xf] %vm1944, %v5977
    %6010 = vst.msk [vmem:[#allocation2 + $0x7c] sm:$0xf] %vm1944, %v5978
    %6011 = vst.msk [vmem:[#allocation2 + $0x88] sm:$0xf] %vm1944, %v5979
    %6012 = vst.msk [vmem:[#allocation2 + $0x94] sm:$0xf] %vm1944, %v5980
    %6013 = vst.msk [vmem:[#allocation2 + $0xa0] sm:$0xf] %vm1944, %v5981
    %6014 = vst.msk [vmem:[#allocation2 + $0xac] sm:$0xf] %vm1944, %v5982
    %6015 = vst.msk [vmem:[#allocation2 + $0xb8] sm:$0xf] %vm1944, %v5983
    %6016 = vst.msk [vmem:[#allocation2 + $0xc4] sm:$0xf] %vm1944, %v5984
    %6017 = vst.msk [vmem:[#allocation2 + $0xd0] sm:$0xf] %vm1944, %v5985
    %6018 = vst.msk [vmem:[#allocation2 + $0xdc] sm:$0xf] %vm1944, %v5986
    %6019 = vst.msk [vmem:[#allocation2 + $0xe8] sm:$0xf] %vm1944, %v5987
    %6020 = vst.msk [vmem:[#allocation2 + $0xf4] sm:$0xf] %vm1944, %v5988
    %6021 = vst.msk [vmem:[#allocation2 + $0x100] sm:$0xf] %vm1944, %v5989
    %6022 = vst.msk [vmem:[#allocation2 + $0x10c] sm:$0xf] %vm1944, %v5990
    %6023 = vst.msk [vmem:[#allocation2 + $0x118] sm:$0xf] %vm1944, %v5991
    %6024 = vst.msk [vmem:[#allocation2 + $0x124] sm:$0xf] %vm1944, %v5992
    %6025 = vst.msk [vmem:[#allocation2 + $0x130] sm:$0xf] %vm1944, %v5993
    %6026 = vst.msk [vmem:[#allocation2 + $0x13c] sm:$0xf] %vm1944, %v5994
    %6027 = vst.msk [vmem:[#allocation2 + $0x148] sm:$0xf] %vm1944, %v5995
    %6028 = vst.msk [vmem:[#allocation2 + $0x154] sm:$0xf] %vm1944, %v5996
    %6029 = vst.msk [vmem:[#allocation2 + $0x160] sm:$0xf] %vm1944, %v5997
    %6030 = vst.msk [vmem:[#allocation2 + $0x16c] sm:$0xf] %vm1944, %v5998
    %6031 = vst.msk [vmem:[#allocation2 + $0x178] sm:$0xf] %vm1944, %v5999
    %v6032 = vld [vmem:[#allocation3] sm:$0x8]
    %v6033 = vld [vmem:[#allocation3 + $0x4] sm:$0xf]
    %v6034 = vld [vmem:[#allocation3 + $0x8] sm:$0x8]
    %v6035 = vld [vmem:[#allocation3 + $0xc] sm:$0xf]
    %v6036 = vld [vmem:[#allocation3 + $0x10] sm:$0x8]
    %v6037 = vld [vmem:[#allocation3 + $0x14] sm:$0xf]
    %v6038 = vld [vmem:[#allocation3 + $0x18] sm:$0x8]
    %v6039 = vld [vmem:[#allocation3 + $0x1c] sm:$0xf]
    %v6040 = vld [vmem:[#allocation3 + $0x20] sm:$0x8]
    %v6041 = vld [vmem:[#allocation3 + $0x24] sm:$0xf]
    %v6042 = vld [vmem:[#allocation3 + $0x28] sm:$0x8]
    %v6043 = vld [vmem:[#allocation3 + $0x2c] sm:$0xf]
    %v6044 = vld [vmem:[#allocation3 + $0x30] sm:$0x8]
    %v6045 = vld [vmem:[#allocation3 + $0x34] sm:$0xf]
    %v6046 = vld [vmem:[#allocation3 + $0x38] sm:$0x8]
    %v6047 = vld [vmem:[#allocation3 + $0x3c] sm:$0xf]
    %v6048 = vld [vmem:[#allocation3 + $0x40] sm:$0x8]
    %v6049 = vld [vmem:[#allocation3 + $0x44] sm:$0xf]
    %v6050 = vld [vmem:[#allocation3 + $0x48] sm:$0x8]
    %v6051 = vld [vmem:[#allocation3 + $0x4c] sm:$0xf]
    %v6052 = vld [vmem:[#allocation3 + $0x50] sm:$0x8]
    %v6053 = vld [vmem:[#allocation3 + $0x54] sm:$0xf]
    %v6054 = vld [vmem:[#allocation3 + $0x58] sm:$0x8]
    %v6055 = vld [vmem:[#allocation3 + $0x5c] sm:$0xf]
    %v6056 = vld [vmem:[#allocation3 + $0x60] sm:$0x8]
    %v6057 = vld [vmem:[#allocation3 + $0x64] sm:$0xf]
    %v6058 = vld [vmem:[#allocation3 + $0x68] sm:$0x8]
    %v6059 = vld [vmem:[#allocation3 + $0x6c] sm:$0xf]
    %v6060 = vld [vmem:[#allocation3 + $0x70] sm:$0x8]
    %v6061 = vld [vmem:[#allocation3 + $0x74] sm:$0xf]
    %v6062 = vld [vmem:[#allocation3 + $0x78] sm:$0x8]
    %v6063 = vld [vmem:[#allocation3 + $0x7c] sm:$0xf]
    %v6096 = vrot.slane %v6032, 7
    %v6097 = vrot.slane %v6096, 4
    %v6098 = vrot.slane %v6033, 7
    %v6099 = vsel %vm5578, %v6097, %v6098
    %v6100 = vrot.slane %v6098, 4
    %v6101 = vrot.slane %v6034, 7
    %v6102 = vrot.slane %v6101, 4
    %v6103 = vrot.slane %v6035, 7
    %v6104 = vsel %vm5578, %v6102, %v6103
    %v6105 = vrot.slane %v6103, 4
    %v6106 = vrot.slane %v6036, 7
    %v6107 = vrot.slane %v6106, 4
    %v6108 = vrot.slane %v6037, 7
    %v6109 = vsel %vm5578, %v6107, %v6108
    %v6110 = vrot.slane %v6108, 4
    %v6111 = vrot.slane %v6038, 7
    %v6112 = vrot.slane %v6111, 4
    %v6113 = vrot.slane %v6039, 7
    %v6114 = vsel %vm5578, %v6112, %v6113
    %v6115 = vrot.slane %v6113, 4
    %v6116 = vrot.slane %v6040, 7
    %v6117 = vrot.slane %v6116, 4
    %v6118 = vrot.slane %v6041, 7
    %v6119 = vsel %vm5578, %v6117, %v6118
    %v6120 = vrot.slane %v6118, 4
    %v6121 = vrot.slane %v6042, 7
    %v6122 = vrot.slane %v6121, 4
    %v6123 = vrot.slane %v6043, 7
    %v6124 = vsel %vm5578, %v6122, %v6123
    %v6125 = vrot.slane %v6123, 4
    %v6126 = vrot.slane %v6044, 7
    %v6127 = vrot.slane %v6126, 4
    %v6128 = vrot.slane %v6045, 7
    %v6129 = vsel %vm5578, %v6127, %v6128
    %v6130 = vrot.slane %v6128, 4
    %v6131 = vrot.slane %v6046, 7
    %v6132 = vrot.slane %v6131, 4
    %v6133 = vrot.slane %v6047, 7
    %v6134 = vsel %vm5578, %v6132, %v6133
    %v6135 = vrot.slane %v6133, 4
    %v6136 = vrot.slane %v6048, 7
    %v6137 = vrot.slane %v6136, 4
    %v6138 = vrot.slane %v6049, 7
    %v6139 = vsel %vm5578, %v6137, %v6138
    %v6140 = vrot.slane %v6138, 4
    %v6141 = vrot.slane %v6050, 7
    %v6142 = vrot.slane %v6141, 4
    %v6143 = vrot.slane %v6051, 7
    %v6144 = vsel %vm5578, %v6142, %v6143
    %v6145 = vrot.slane %v6143, 4
    %v6146 = vrot.slane %v6052, 7
    %v6147 = vrot.slane %v6146, 4
    %v6148 = vrot.slane %v6053, 7
    %v6149 = vsel %vm5578, %v6147, %v6148
    %v6150 = vrot.slane %v6148, 4
    %v6151 = vrot.slane %v6054, 7
    %v6152 = vrot.slane %v6151, 4
    %v6153 = vrot.slane %v6055, 7
    %v6154 = vsel %vm5578, %v6152, %v6153
    %v6155 = vrot.slane %v6153, 4
    %v6156 = vrot.slane %v6056, 7
    %v6157 = vrot.slane %v6156, 4
    %v6158 = vrot.slane %v6057, 7
    %v6159 = vsel %vm5578, %v6157, %v6158
    %v6160 = vrot.slane %v6158, 4
    %v6161 = vrot.slane %v6058, 7
    %v6162 = vrot.slane %v6161, 4
    %v6163 = vrot.slane %v6059, 7
    %v6164 = vsel %vm5578, %v6162, %v6163
    %v6165 = vrot.slane %v6163, 4
    %v6166 = vrot.slane %v6060, 7
    %v6167 = vrot.slane %v6166, 4
    %v6168 = vrot.slane %v6061, 7
    %v6169 = vsel %vm5578, %v6167, %v6168
    %v6170 = vrot.slane %v6168, 4
    %v6171 = vrot.slane %v6062, 7
    %v6172 = vrot.slane %v6171, 4
    %v6173 = vrot.slane %v6063, 7
    %v6174 = vsel %vm5578, %v6172, %v6173
    %v6175 = vrot.slane %v6173, 4
    %6176 = vrot.lane.b32.xlu0 %v6099, 32
    %v6177 = vpop.permute.xlu0 %6176
    %6178 = vrot.lane.b32.xlu0 %v6100, 32
    %v6179 = vpop.permute.xlu0 %6178
    %6180 = vrot.lane.b32.xlu0 %v6104, 32
    %v6181 = vpop.permute.xlu0 %6180
    %6182 = vrot.lane.b32.xlu0 %v6105, 32
    %v6183 = vpop.permute.xlu0 %6182
    %6184 = vrot.lane.b32.xlu0 %v6109, 32
    %v6185 = vpop.permute.xlu0 %6184
    %6186 = vrot.lane.b32.xlu0 %v6110, 32
    %v6187 = vpop.permute.xlu0 %6186
    %6188 = vrot.lane.b32.xlu0 %v6114, 32
    %v6189 = vpop.permute.xlu0 %6188
    %6190 = vrot.lane.b32.xlu0 %v6115, 32
    %v6191 = vpop.permute.xlu0 %6190
    %6192 = vrot.lane.b32.xlu0 %v6119, 32
    %v6193 = vpop.permute.xlu0 %6192
    %6194 = vrot.lane.b32.xlu0 %v6120, 32
    %v6195 = vpop.permute.xlu0 %6194
    %6196 = vrot.lane.b32.xlu0 %v6124, 32
    %v6197 = vpop.permute.xlu0 %6196
    %6198 = vrot.lane.b32.xlu0 %v6125, 32
    %v6199 = vpop.permute.xlu0 %6198
    %6200 = vrot.lane.b32.xlu0 %v6129, 32
    %v6201 = vpop.permute.xlu0 %6200
    %6202 = vrot.lane.b32.xlu0 %v6130, 32
    %v6203 = vpop.permute.xlu0 %6202
    %6204 = vrot.lane.b32.xlu0 %v6134, 32
    %v6205 = vpop.permute.xlu0 %6204
    %6206 = vrot.lane.b32.xlu0 %v6135, 32
    %v6207 = vpop.permute.xlu0 %6206
    %6208 = vrot.lane.b32.xlu0 %v6139, 32
    %v6209 = vpop.permute.xlu0 %6208
    %6210 = vrot.lane.b32.xlu0 %v6140, 32
    %v6211 = vpop.permute.xlu0 %6210
    %6212 = vrot.lane.b32.xlu0 %v6144, 32
    %v6213 = vpop.permute.xlu0 %6212
    %6214 = vrot.lane.b32.xlu0 %v6145, 32
    %v6215 = vpop.permute.xlu0 %6214
    %6216 = vrot.lane.b32.xlu0 %v6149, 32
    %v6217 = vpop.permute.xlu0 %6216
    %6218 = vrot.lane.b32.xlu0 %v6150, 32
    %v6219 = vpop.permute.xlu0 %6218
    %6220 = vrot.lane.b32.xlu0 %v6154, 32
    %v6221 = vpop.permute.xlu0 %6220
    %6222 = vrot.lane.b32.xlu0 %v6155, 32
    %v6223 = vpop.permute.xlu0 %6222
    %6224 = vrot.lane.b32.xlu0 %v6159, 32
    %v6225 = vpop.permute.xlu0 %6224
    %6226 = vrot.lane.b32.xlu0 %v6160, 32
    %v6227 = vpop.permute.xlu0 %6226
    %6228 = vrot.lane.b32.xlu0 %v6164, 32
    %v6229 = vpop.permute.xlu0 %6228
    %6230 = vrot.lane.b32.xlu0 %v6165, 32
    %v6231 = vpop.permute.xlu0 %6230
    %6232 = vrot.lane.b32.xlu0 %v6169, 32
    %v6233 = vpop.permute.xlu0 %6232
    %6234 = vrot.lane.b32.xlu0 %v6170, 32
    %v6235 = vpop.permute.xlu0 %6234
    %6236 = vrot.lane.b32.xlu0 %v6174, 32
    %v6237 = vpop.permute.xlu0 %6236
    %6238 = vrot.lane.b32.xlu0 %v6175, 32
    %v6239 = vpop.permute.xlu0 %6238
    %6272 = vst.msk [vmem:[#allocation2 + $0x4] sm:$0xf] %vm2134, %v6177
    %vm6273 = vcmask 516352
    %6274 = vst.msk [vmem:[#allocation2 + $0x10] sm:$0x1] %vm6273, %v6179
    %6275 = vst.msk [vmem:[#allocation2 + $0x1c] sm:$0xf] %vm2134, %v6181
    %6276 = vst.msk [vmem:[#allocation2 + $0x28] sm:$0x1] %vm6273, %v6183
    %6277 = vst.msk [vmem:[#allocation2 + $0x34] sm:$0xf] %vm2134, %v6185
    %6278 = vst.msk [vmem:[#allocation2 + $0x40] sm:$0x1] %vm6273, %v6187
    %6279 = vst.msk [vmem:[#allocation2 + $0x4c] sm:$0xf] %vm2134, %v6189
    %6280 = vst.msk [vmem:[#allocation2 + $0x58] sm:$0x1] %vm6273, %v6191
    %6281 = vst.msk [vmem:[#allocation2 + $0x64] sm:$0xf] %vm2134, %v6193
    %6282 = vst.msk [vmem:[#allocation2 + $0x70] sm:$0x1] %vm6273, %v6195
    %6283 = vst.msk [vmem:[#allocation2 + $0x7c] sm:$0xf] %vm2134, %v6197
    %6284 = vst.msk [vmem:[#allocation2 + $0x88] sm:$0x1] %vm6273, %v6199
    %6285 = vst.msk [vmem:[#allocation2 + $0x94] sm:$0xf] %vm2134, %v6201
    %6286 = vst.msk [vmem:[#allocation2 + $0xa0] sm:$0x1] %vm6273, %v6203
    %6287 = vst.msk [vmem:[#allocation2 + $0xac] sm:$0xf] %vm2134, %v6205
    %6288 = vst.msk [vmem:[#allocation2 + $0xb8] sm:$0x1] %vm6273, %v6207
    %6289 = vst.msk [vmem:[#allocation2 + $0xc4] sm:$0xf] %vm2134, %v6209
    %6290 = vst.msk [vmem:[#allocation2 + $0xd0] sm:$0x1] %vm6273, %v6211
    %6291 = vst.msk [vmem:[#allocation2 + $0xdc] sm:$0xf] %vm2134, %v6213
    %6292 = vst.msk [vmem:[#allocation2 + $0xe8] sm:$0x1] %vm6273, %v6215
    %6293 = vst.msk [vmem:[#allocation2 + $0xf4] sm:$0xf] %vm2134, %v6217
    %6294 = vst.msk [vmem:[#allocation2 + $0x100] sm:$0x1] %vm6273, %v6219
    %6295 = vst.msk [vmem:[#allocation2 + $0x10c] sm:$0xf] %vm2134, %v6221
    %6296 = vst.msk [vmem:[#allocation2 + $0x118] sm:$0x1] %vm6273, %v6223
    %6297 = vst.msk [vmem:[#allocation2 + $0x124] sm:$0xf] %vm2134, %v6225
    %6298 = vst.msk [vmem:[#allocation2 + $0x130] sm:$0x1] %vm6273, %v6227
    %6299 = vst.msk [vmem:[#allocation2 + $0x13c] sm:$0xf] %vm2134, %v6229
    %6300 = vst.msk [vmem:[#allocation2 + $0x148] sm:$0x1] %vm6273, %v6231
    %6301 = vst.msk [vmem:[#allocation2 + $0x154] sm:$0xf] %vm2134, %v6233
    %6302 = vst.msk [vmem:[#allocation2 + $0x160] sm:$0x1] %vm6273, %v6235
    %6303 = vst.msk [vmem:[#allocation2 + $0x16c] sm:$0xf] %vm2134, %v6237
    %6304 = vst.msk [vmem:[#allocation2 + $0x178] sm:$0x1] %vm6273, %v6239
    %s6305 = scalar_lea.vmem [#allocation3], 48
    %v6306 = vld [vmem:[%s6305] sm:$0xf]
    %v6307 = vld [vmem:[%s6305 + $0x4] sm:$0x1]
    %v6308 = vld [vmem:[%s6305 + $0x8] sm:$0xf]
    %v6309 = vld [vmem:[%s6305 + $0xc] sm:$0x1]
    %v6310 = vld [vmem:[%s6305 + $0x10] sm:$0xf]
    %v6311 = vld [vmem:[%s6305 + $0x14] sm:$0x1]
    %v6312 = vld [vmem:[%s6305 + $0x18] sm:$0xf]
    %v6313 = vld [vmem:[%s6305 + $0x1c] sm:$0x1]
    %v6314 = vld [vmem:[%s6305 + $0x20] sm:$0xf]
    %v6315 = vld [vmem:[%s6305 + $0x24] sm:$0x1]
    %v6316 = vld [vmem:[%s6305 + $0x28] sm:$0xf]
    %v6317 = vld [vmem:[%s6305 + $0x2c] sm:$0x1]
    %v6318 = vld [vmem:[%s6305 + $0x30] sm:$0xf]
    %v6319 = vld [vmem:[%s6305 + $0x34] sm:$0x1]
    %v6320 = vld [vmem:[%s6305 + $0x38] sm:$0xf]
    %v6321 = vld [vmem:[%s6305 + $0x3c] sm:$0x1]
    %v6322 = vld [vmem:[%s6305 + $0x40] sm:$0xf]
    %v6323 = vld [vmem:[%s6305 + $0x44] sm:$0x1]
    %v6324 = vld [vmem:[%s6305 + $0x48] sm:$0xf]
    %v6325 = vld [vmem:[%s6305 + $0x4c] sm:$0x1]
    %v6346 = vrot.slane %v6306, 5
    %v6347 = vrot.slane %v6346, 4
    %v6348 = vrot.slane %v6307, 5
    %v6349 = vsel %vm5333, %v6347, %v6348
    %v6350 = vrot.slane %v6308, 5
    %v6351 = vrot.slane %v6350, 4
    %v6352 = vrot.slane %v6309, 5
    %v6353 = vsel %vm5333, %v6351, %v6352
    %v6354 = vrot.slane %v6310, 5
    %v6355 = vrot.slane %v6354, 4
    %v6356 = vrot.slane %v6311, 5
    %v6357 = vsel %vm5333, %v6355, %v6356
    %v6358 = vrot.slane %v6312, 5
    %v6359 = vrot.slane %v6358, 4
    %v6360 = vrot.slane %v6313, 5
    %v6361 = vsel %vm5333, %v6359, %v6360
    %v6362 = vrot.slane %v6314, 5
    %v6363 = vrot.slane %v6362, 4
    %v6364 = vrot.slane %v6315, 5
    %v6365 = vsel %vm5333, %v6363, %v6364
    %v6366 = vrot.slane %v6316, 5
    %v6367 = vrot.slane %v6366, 4
    %v6368 = vrot.slane %v6317, 5
    %v6369 = vsel %vm5333, %v6367, %v6368
    %v6370 = vrot.slane %v6318, 5
    %v6371 = vrot.slane %v6370, 4
    %v6372 = vrot.slane %v6319, 5
    %v6373 = vsel %vm5333, %v6371, %v6372
    %v6374 = vrot.slane %v6320, 5
    %v6375 = vrot.slane %v6374, 4
    %v6376 = vrot.slane %v6321, 5
    %v6377 = vsel %vm5333, %v6375, %v6376
    %v6378 = vrot.slane %v6322, 5
    %v6379 = vrot.slane %v6378, 4
    %v6380 = vrot.slane %v6323, 5
    %v6381 = vsel %vm5333, %v6379, %v6380
    %v6382 = vrot.slane %v6324, 5
    %v6383 = vrot.slane %v6382, 4
    %v6384 = vrot.slane %v6325, 5
    %v6385 = vsel %vm5333, %v6383, %v6384
    %6386 = vrot.lane.b32.xlu0 %v6346, 64
    %v6387 = vpop.permute.xlu0 %6386
    %6388 = vrot.lane.b32.xlu0 %v6349, 64
    %v6389 = vpop.permute.xlu0 %6388
    %6390 = vrot.lane.b32.xlu0 %v6350, 64
    %v6391 = vpop.permute.xlu0 %6390
    %6392 = vrot.lane.b32.xlu0 %v6353, 64
    %v6393 = vpop.permute.xlu0 %6392
    %6394 = vrot.lane.b32.xlu0 %v6354, 64
    %v6395 = vpop.permute.xlu0 %6394
    %6396 = vrot.lane.b32.xlu0 %v6357, 64
    %v6397 = vpop.permute.xlu0 %6396
    %6398 = vrot.lane.b32.xlu0 %v6358, 64
    %v6399 = vpop.permute.xlu0 %6398
    %6400 = vrot.lane.b32.xlu0 %v6361, 64
    %v6401 = vpop.permute.xlu0 %6400
    %6402 = vrot.lane.b32.xlu0 %v6362, 64
    %v6403 = vpop.permute.xlu0 %6402
    %6404 = vrot.lane.b32.xlu0 %v6365, 64
    %v6405 = vpop.permute.xlu0 %6404
    %6406 = vrot.lane.b32.xlu0 %v6366, 64
    %v6407 = vpop.permute.xlu0 %6406
    %6408 = vrot.lane.b32.xlu0 %v6369, 64
    %v6409 = vpop.permute.xlu0 %6408
    %6410 = vrot.lane.b32.xlu0 %v6370, 64
    %v6411 = vpop.permute.xlu0 %6410
    %6412 = vrot.lane.b32.xlu0 %v6373, 64
    %v6413 = vpop.permute.xlu0 %6412
    %6414 = vrot.lane.b32.xlu0 %v6374, 64
    %v6415 = vpop.permute.xlu0 %6414
    %6416 = vrot.lane.b32.xlu0 %v6377, 64
    %v6417 = vpop.permute.xlu0 %6416
    %6418 = vrot.lane.b32.xlu0 %v6378, 64
    %v6419 = vpop.permute.xlu0 %6418
    %6420 = vrot.lane.b32.xlu0 %v6381, 64
    %v6421 = vpop.permute.xlu0 %6420
    %6422 = vrot.lane.b32.xlu0 %v6382, 64
    %v6423 = vpop.permute.xlu0 %6422
    %6424 = vrot.lane.b32.xlu0 %v6385, 64
    %v6425 = vpop.permute.xlu0 %6424
    %vm6446 = vcmask 781827
    %6447 = vst.msk [vmem:[#allocation2 + $0x4] sm:$0x8] %vm6446, %v6387
    %6448 = vst.msk [vmem:[#allocation2 + $0x10] sm:$0xf] %vm5689, %v6389
    %6449 = vst.msk [vmem:[#allocation2 + $0x1c] sm:$0x8] %vm6446, %v6391
    %6450 = vst.msk [vmem:[#allocation2 + $0x28] sm:$0xf] %vm5689, %v6393
    %6451 = vst.msk [vmem:[#allocation2 + $0x34] sm:$0x8] %vm6446, %v6395
    %6452 = vst.msk [vmem:[#allocation2 + $0x40] sm:$0xf] %vm5689, %v6397
    %6453 = vst.msk [vmem:[#allocation2 + $0x4c] sm:$0x8] %vm6446, %v6399
    %6454 = vst.msk [vmem:[#allocation2 + $0x58] sm:$0xf] %vm5689, %v6401
    %6455 = vst.msk [vmem:[#allocation2 + $0x64] sm:$0x8] %vm6446, %v6403
    %6456 = vst.msk [vmem:[#allocation2 + $0x70] sm:$0xf] %vm5689, %v6405
    %6457 = vst.msk [vmem:[#allocation2 + $0x7c] sm:$0x8] %vm6446, %v6407
    %6458 = vst.msk [vmem:[#allocation2 + $0x88] sm:$0xf] %vm5689, %v6409
    %6459 = vst.msk [vmem:[#allocation2 + $0x94] sm:$0x8] %vm6446, %v6411
    %6460 = vst.msk [vmem:[#allocation2 + $0xa0] sm:$0xf] %vm5689, %v6413
    %6461 = vst.msk [vmem:[#allocation2 + $0xac] sm:$0x8] %vm6446, %v6415
    %6462 = vst.msk [vmem:[#allocation2 + $0xb8] sm:$0xf] %vm5689, %v6417
    %6463 = vst.msk [vmem:[#allocation2 + $0xc4] sm:$0x8] %vm6446, %v6419
    %6464 = vst.msk [vmem:[#allocation2 + $0xd0] sm:$0xf] %vm5689, %v6421
    %6465 = vst.msk [vmem:[#allocation2 + $0xdc] sm:$0x8] %vm6446, %v6423
    %6466 = vst.msk [vmem:[#allocation2 + $0xe8] sm:$0xf] %vm5689, %v6425
    %v6467 = vld [vmem:[%s6305] sm:$0xf]
    %v6468 = vld [vmem:[%s6305 + $0x4] sm:$0xf]
    %v6469 = vld [vmem:[%s6305 + $0x8] sm:$0xf]
    %v6470 = vld [vmem:[%s6305 + $0xc] sm:$0xf]
    %v6471 = vld [vmem:[%s6305 + $0x10] sm:$0xf]
    %v6472 = vld [vmem:[%s6305 + $0x14] sm:$0xf]
    %v6473 = vld [vmem:[%s6305 + $0x18] sm:$0xf]
    %v6474 = vld [vmem:[%s6305 + $0x1c] sm:$0xf]
    %v6475 = vld [vmem:[%s6305 + $0x20] sm:$0xf]
    %v6476 = vld [vmem:[%s6305 + $0x24] sm:$0xf]
    %v6477 = vld [vmem:[%s6305 + $0x28] sm:$0xf]
    %v6478 = vld [vmem:[%s6305 + $0x2c] sm:$0xf]
    %v6479 = vld [vmem:[%s6305 + $0x30] sm:$0xf]
    %v6480 = vld [vmem:[%s6305 + $0x34] sm:$0xf]
    %v6481 = vld [vmem:[%s6305 + $0x38] sm:$0xf]
    %v6482 = vld [vmem:[%s6305 + $0x3c] sm:$0xf]
    %v6483 = vld [vmem:[%s6305 + $0x40] sm:$0xf]
    %v6484 = vld [vmem:[%s6305 + $0x44] sm:$0xf]
    %v6485 = vld [vmem:[%s6305 + $0x48] sm:$0xf]
    %v6486 = vld [vmem:[%s6305 + $0x4c] sm:$0xf]
    %6507 = vrot.lane.b32.xlu0 %v6467, 96
    %v6508 = vpop.permute.xlu0 %6507
    %6509 = vrot.lane.b32.xlu0 %v6468, 96
    %v6510 = vpop.permute.xlu0 %6509
    %6511 = vrot.lane.b32.xlu0 %v6469, 96
    %v6512 = vpop.permute.xlu0 %6511
    %6513 = vrot.lane.b32.xlu0 %v6470, 96
    %v6514 = vpop.permute.xlu0 %6513
    %6515 = vrot.lane.b32.xlu0 %v6471, 96
    %v6516 = vpop.permute.xlu0 %6515
    %6517 = vrot.lane.b32.xlu0 %v6472, 96
    %v6518 = vpop.permute.xlu0 %6517
    %6519 = vrot.lane.b32.xlu0 %v6473, 96
    %v6520 = vpop.permute.xlu0 %6519
    %6521 = vrot.lane.b32.xlu0 %v6474, 96
    %v6522 = vpop.permute.xlu0 %6521
    %6523 = vrot.lane.b32.xlu0 %v6475, 96
    %v6524 = vpop.permute.xlu0 %6523
    %6525 = vrot.lane.b32.xlu0 %v6476, 96
    %v6526 = vpop.permute.xlu0 %6525
    %6527 = vrot.lane.b32.xlu0 %v6477, 96
    %v6528 = vpop.permute.xlu0 %6527
    %6529 = vrot.lane.b32.xlu0 %v6478, 96
    %v6530 = vpop.permute.xlu0 %6529
    %6531 = vrot.lane.b32.xlu0 %v6479, 96
    %v6532 = vpop.permute.xlu0 %6531
    %6533 = vrot.lane.b32.xlu0 %v6480, 96
    %v6534 = vpop.permute.xlu0 %6533
    %6535 = vrot.lane.b32.xlu0 %v6481, 96
    %v6536 = vpop.permute.xlu0 %6535
    %6537 = vrot.lane.b32.xlu0 %v6482, 96
    %v6538 = vpop.permute.xlu0 %6537
    %6539 = vrot.lane.b32.xlu0 %v6483, 96
    %v6540 = vpop.permute.xlu0 %6539
    %6541 = vrot.lane.b32.xlu0 %v6484, 96
    %v6542 = vpop.permute.xlu0 %6541
    %6543 = vrot.lane.b32.xlu0 %v6485, 96
    %v6544 = vpop.permute.xlu0 %6543
    %6545 = vrot.lane.b32.xlu0 %v6486, 96
    %v6546 = vpop.permute.xlu0 %6545
    %6567 = vst.msk [vmem:[#allocation2 + $0x4] sm:$0xf] %vm2552, %v6508
    %6568 = vst.msk [vmem:[#allocation2 + $0x10] sm:$0xf] %vm2552, %v6510
    %6569 = vst.msk [vmem:[#allocation2 + $0x1c] sm:$0xf] %vm2552, %v6512
    %6570 = vst.msk [vmem:[#allocation2 + $0x28] sm:$0xf] %vm2552, %v6514
    %6571 = vst.msk [vmem:[#allocation2 + $0x34] sm:$0xf] %vm2552, %v6516
    %6572 = vst.msk [vmem:[#allocation2 + $0x40] sm:$0xf] %vm2552, %v6518
    %6573 = vst.msk [vmem:[#allocation2 + $0x4c] sm:$0xf] %vm2552, %v6520
    %6574 = vst.msk [vmem:[#allocation2 + $0x58] sm:$0xf] %vm2552, %v6522
    %6575 = vst.msk [vmem:[#allocation2 + $0x64] sm:$0xf] %vm2552, %v6524
    %6576 = vst.msk [vmem:[#allocation2 + $0x70] sm:$0xf] %vm2552, %v6526
    %6577 = vst.msk [vmem:[#allocation2 + $0x7c] sm:$0xf] %vm2552, %v6528
    %6578 = vst.msk [vmem:[#allocation2 + $0x88] sm:$0xf] %vm2552, %v6530
    %6579 = vst.msk [vmem:[#allocation2 + $0x94] sm:$0xf] %vm2552, %v6532
    %6580 = vst.msk [vmem:[#allocation2 + $0xa0] sm:$0xf] %vm2552, %v6534
    %6581 = vst.msk [vmem:[#allocation2 + $0xac] sm:$0xf] %vm2552, %v6536
    %6582 = vst.msk [vmem:[#allocation2 + $0xb8] sm:$0xf] %vm2552, %v6538
    %6583 = vst.msk [vmem:[#allocation2 + $0xc4] sm:$0xf] %vm2552, %v6540
    %6584 = vst.msk [vmem:[#allocation2 + $0xd0] sm:$0xf] %vm2552, %v6542
    %6585 = vst.msk [vmem:[#allocation2 + $0xdc] sm:$0xf] %vm2552, %v6544
    %6586 = vst.msk [vmem:[#allocation2 + $0xe8] sm:$0xf] %vm2552, %v6546
    %v6587 = vld [vmem:[%s6305] sm:$0x8]
    %v6588 = vld [vmem:[%s6305 + $0x4] sm:$0xf]
    %v6589 = vld [vmem:[%s6305 + $0x8] sm:$0x8]
    %v6590 = vld [vmem:[%s6305 + $0xc] sm:$0xf]
    %v6591 = vld [vmem:[%s6305 + $0x10] sm:$0x8]
    %v6592 = vld [vmem:[%s6305 + $0x14] sm:$0xf]
    %v6593 = vld [vmem:[%s6305 + $0x18] sm:$0x8]
    %v6594 = vld [vmem:[%s6305 + $0x1c] sm:$0xf]
    %v6595 = vld [vmem:[%s6305 + $0x20] sm:$0x8]
    %v6596 = vld [vmem:[%s6305 + $0x24] sm:$0xf]
    %v6597 = vld [vmem:[%s6305 + $0x28] sm:$0x8]
    %v6598 = vld [vmem:[%s6305 + $0x2c] sm:$0xf]
    %v6599 = vld [vmem:[%s6305 + $0x30] sm:$0x8]
    %v6600 = vld [vmem:[%s6305 + $0x34] sm:$0xf]
    %v6601 = vld [vmem:[%s6305 + $0x38] sm:$0x8]
    %v6602 = vld [vmem:[%s6305 + $0x3c] sm:$0xf]
    %v6603 = vld [vmem:[%s6305 + $0x40] sm:$0x8]
    %v6604 = vld [vmem:[%s6305 + $0x44] sm:$0xf]
    %v6605 = vld [vmem:[%s6305 + $0x48] sm:$0x8]
    %v6606 = vld [vmem:[%s6305 + $0x4c] sm:$0xf]
    %v6627 = vrot.slane %v6587, 7
    %v6628 = vrot.slane %v6627, 4
    %v6629 = vrot.slane %v6588, 7
    %v6630 = vsel %vm5578, %v6628, %v6629
    %v6631 = vrot.slane %v6629, 4
    %v6632 = vrot.slane %v6589, 7
    %v6633 = vrot.slane %v6632, 4
    %v6634 = vrot.slane %v6590, 7
    %v6635 = vsel %vm5578, %v6633, %v6634
    %v6636 = vrot.slane %v6634, 4
    %v6637 = vrot.slane %v6591, 7
    %v6638 = vrot.slane %v6637, 4
    %v6639 = vrot.slane %v6592, 7
    %v6640 = vsel %vm5578, %v6638, %v6639
    %v6641 = vrot.slane %v6639, 4
    %v6642 = vrot.slane %v6593, 7
    %v6643 = vrot.slane %v6642, 4
    %v6644 = vrot.slane %v6594, 7
    %v6645 = vsel %vm5578, %v6643, %v6644
    %v6646 = vrot.slane %v6644, 4
    %v6647 = vrot.slane %v6595, 7
    %v6648 = vrot.slane %v6647, 4
    %v6649 = vrot.slane %v6596, 7
    %v6650 = vsel %vm5578, %v6648, %v6649
    %v6651 = vrot.slane %v6649, 4
    %v6652 = vrot.slane %v6597, 7
    %v6653 = vrot.slane %v6652, 4
    %v6654 = vrot.slane %v6598, 7
    %v6655 = vsel %vm5578, %v6653, %v6654
    %v6656 = vrot.slane %v6654, 4
    %v6657 = vrot.slane %v6599, 7
    %v6658 = vrot.slane %v6657, 4
    %v6659 = vrot.slane %v6600, 7
    %v6660 = vsel %vm5578, %v6658, %v6659
    %v6661 = vrot.slane %v6659, 4
    %v6662 = vrot.slane %v6601, 7
    %v6663 = vrot.slane %v6662, 4
    %v6664 = vrot.slane %v6602, 7
    %v6665 = vsel %vm5578, %v6663, %v6664
    %v6666 = vrot.slane %v6664, 4
    %v6667 = vrot.slane %v6603, 7
    %v6668 = vrot.slane %v6667, 4
    %v6669 = vrot.slane %v6604, 7
    %v6670 = vsel %vm5578, %v6668, %v6669
    %v6671 = vrot.slane %v6669, 4
    %v6672 = vrot.slane %v6605, 7
    %v6673 = vrot.slane %v6672, 4
    %v6674 = vrot.slane %v6606, 7
    %v6675 = vsel %vm5578, %v6673, %v6674
    %v6676 = vrot.slane %v6674, 4
    %6697 = vst.msk [vmem:[#allocation2 + $0x8] sm:$0xf] %vm1944, %v6630
    %vm6698 = vcmask 253952
    %6699 = vst.msk [vmem:[#allocation2 + $0x14] sm:$0x1] %vm6698, %v6631
    %6700 = vst.msk [vmem:[#allocation2 + $0x20] sm:$0xf] %vm1944, %v6635
    %6701 = vst.msk [vmem:[#allocation2 + $0x2c] sm:$0x1] %vm6698, %v6636
    %6702 = vst.msk [vmem:[#allocation2 + $0x38] sm:$0xf] %vm1944, %v6640
    %6703 = vst.msk [vmem:[#allocation2 + $0x44] sm:$0x1] %vm6698, %v6641
    %6704 = vst.msk [vmem:[#allocation2 + $0x50] sm:$0xf] %vm1944, %v6645
    %6705 = vst.msk [vmem:[#allocation2 + $0x5c] sm:$0x1] %vm6698, %v6646
    %6706 = vst.msk [vmem:[#allocation2 + $0x68] sm:$0xf] %vm1944, %v6650
    %6707 = vst.msk [vmem:[#allocation2 + $0x74] sm:$0x1] %vm6698, %v6651
    %6708 = vst.msk [vmem:[#allocation2 + $0x80] sm:$0xf] %vm1944, %v6655
    %6709 = vst.msk [vmem:[#allocation2 + $0x8c] sm:$0x1] %vm6698, %v6656
    %6710 = vst.msk [vmem:[#allocation2 + $0x98] sm:$0xf] %vm1944, %v6660
    %6711 = vst.msk [vmem:[#allocation2 + $0xa4] sm:$0x1] %vm6698, %v6661
    %6712 = vst.msk [vmem:[#allocation2 + $0xb0] sm:$0xf] %vm1944, %v6665
    %6713 = vst.msk [vmem:[#allocation2 + $0xbc] sm:$0x1] %vm6698, %v6666
    %6714 = vst.msk [vmem:[#allocation2 + $0xc8] sm:$0xf] %vm1944, %v6670
    %6715 = vst.msk [vmem:[#allocation2 + $0xd4] sm:$0x1] %vm6698, %v6671
    %6716 = vst.msk [vmem:[#allocation2 + $0xe0] sm:$0xf] %vm1944, %v6675
    %6717 = vst.msk [vmem:[#allocation2 + $0xec] sm:$0x1] %vm6698, %v6676
    %v6718 = vld [vmem:[%s2586] sm:$0xf]
    %v6719 = vld [vmem:[%s2586 + $0x4] sm:$0x1]
    %v6720 = vld [vmem:[%s2586 + $0x8] sm:$0xf]
    %v6721 = vld [vmem:[%s2586 + $0xc] sm:$0x1]
    %v6722 = vld [vmem:[%s2586 + $0x10] sm:$0xf]
    %v6723 = vld [vmem:[%s2586 + $0x14] sm:$0x1]
    %v6724 = vld [vmem:[%s2586 + $0x18] sm:$0xf]
    %v6725 = vld [vmem:[%s2586 + $0x1c] sm:$0x1]
    %v6726 = vld [vmem:[%s2586 + $0x20] sm:$0xf]
    %v6727 = vld [vmem:[%s2586 + $0x24] sm:$0x1]
    %v6728 = vld [vmem:[%s2586 + $0x28] sm:$0xf]
    %v6729 = vld [vmem:[%s2586 + $0x2c] sm:$0x1]
    %v6730 = vld [vmem:[%s2586 + $0x30] sm:$0xf]
    %v6731 = vld [vmem:[%s2586 + $0x34] sm:$0x1]
    %v6732 = vld [vmem:[%s2586 + $0x38] sm:$0xf]
    %v6733 = vld [vmem:[%s2586 + $0x3c] sm:$0x1]
    %v6734 = vld [vmem:[%s2586 + $0x40] sm:$0xf]
    %v6735 = vld [vmem:[%s2586 + $0x44] sm:$0x1]
    %v6736 = vld [vmem:[%s2586 + $0x48] sm:$0xf]
    %v6737 = vld [vmem:[%s2586 + $0x4c] sm:$0x1]
    %v6758 = vrot.slane %v6718, 5
    %v6759 = vrot.slane %v6758, 4
    %v6760 = vrot.slane %v6719, 5
    %v6761 = vsel %vm5333, %v6759, %v6760
    %v6762 = vrot.slane %v6720, 5
    %v6763 = vrot.slane %v6762, 4
    %v6764 = vrot.slane %v6721, 5
    %v6765 = vsel %vm5333, %v6763, %v6764
    %v6766 = vrot.slane %v6722, 5
    %v6767 = vrot.slane %v6766, 4
    %v6768 = vrot.slane %v6723, 5
    %v6769 = vsel %vm5333, %v6767, %v6768
    %v6770 = vrot.slane %v6724, 5
    %v6771 = vrot.slane %v6770, 4
    %v6772 = vrot.slane %v6725, 5
    %v6773 = vsel %vm5333, %v6771, %v6772
    %v6774 = vrot.slane %v6726, 5
    %v6775 = vrot.slane %v6774, 4
    %v6776 = vrot.slane %v6727, 5
    %v6777 = vsel %vm5333, %v6775, %v6776
    %v6778 = vrot.slane %v6728, 5
    %v6779 = vrot.slane %v6778, 4
    %v6780 = vrot.slane %v6729, 5
    %v6781 = vsel %vm5333, %v6779, %v6780
    %v6782 = vrot.slane %v6730, 5
    %v6783 = vrot.slane %v6782, 4
    %v6784 = vrot.slane %v6731, 5
    %v6785 = vsel %vm5333, %v6783, %v6784
    %v6786 = vrot.slane %v6732, 5
    %v6787 = vrot.slane %v6786, 4
    %v6788 = vrot.slane %v6733, 5
    %v6789 = vsel %vm5333, %v6787, %v6788
    %v6790 = vrot.slane %v6734, 5
    %v6791 = vrot.slane %v6790, 4
    %v6792 = vrot.slane %v6735, 5
    %v6793 = vsel %vm5333, %v6791, %v6792
    %v6794 = vrot.slane %v6736, 5
    %v6795 = vrot.slane %v6794, 4
    %v6796 = vrot.slane %v6737, 5
    %v6797 = vsel %vm5333, %v6795, %v6796
    %s6818 = scalar_lea.vmem [#allocation2], 528
    %6819 = vst.msk [vmem:[%s6818] sm:$0x8] %vm5395, %v6758
    %6820 = vst.msk [vmem:[%s6818 + $0xc] sm:$0xf] %vm1944, %v6761
    %6821 = vst.msk [vmem:[%s6818 + $0x18] sm:$0x8] %vm5395, %v6762
    %6822 = vst.msk [vmem:[%s6818 + $0x24] sm:$0xf] %vm1944, %v6765
    %6823 = vst.msk [vmem:[%s6818 + $0x30] sm:$0x8] %vm5395, %v6766
    %6824 = vst.msk [vmem:[%s6818 + $0x3c] sm:$0xf] %vm1944, %v6769
    %6825 = vst.msk [vmem:[%s6818 + $0x48] sm:$0x8] %vm5395, %v6770
    %6826 = vst.msk [vmem:[%s6818 + $0x54] sm:$0xf] %vm1944, %v6773
    %6827 = vst.msk [vmem:[%s6818 + $0x60] sm:$0x8] %vm5395, %v6774
    %6828 = vst.msk [vmem:[%s6818 + $0x6c] sm:$0xf] %vm1944, %v6777
    %6829 = vst.msk [vmem:[%s6818 + $0x78] sm:$0x8] %vm5395, %v6778
    %6830 = vst.msk [vmem:[%s6818 + $0x84] sm:$0xf] %vm1944, %v6781
    %6831 = vst.msk [vmem:[%s6818 + $0x90] sm:$0x8] %vm5395, %v6782
    %6832 = vst.msk [vmem:[%s6818 + $0x9c] sm:$0xf] %vm1944, %v6785
    %6833 = vst.msk [vmem:[%s6818 + $0xa8] sm:$0x8] %vm5395, %v6786
    %6834 = vst.msk [vmem:[%s6818 + $0xb4] sm:$0xf] %vm1944, %v6789
    %6835 = vst.msk [vmem:[%s6818 + $0xc0] sm:$0x8] %vm5395, %v6790
    %6836 = vst.msk [vmem:[%s6818 + $0xcc] sm:$0xf] %vm1944, %v6793
    %6837 = vst.msk [vmem:[%s6818 + $0xd8] sm:$0x8] %vm5395, %v6794
    %6838 = vst.msk [vmem:[%s6818 + $0xe4] sm:$0xf] %vm1944, %v6797
    %v6839 = vld [vmem:[%s2586] sm:$0xf]
    %v6840 = vld [vmem:[%s2586 + $0x4] sm:$0xf]
    %v6841 = vld [vmem:[%s2586 + $0x8] sm:$0xf]
    %v6842 = vld [vmem:[%s2586 + $0xc] sm:$0xf]
    %v6843 = vld [vmem:[%s2586 + $0x10] sm:$0xf]
    %v6844 = vld [vmem:[%s2586 + $0x14] sm:$0xf]
    %v6845 = vld [vmem:[%s2586 + $0x18] sm:$0xf]
    %v6846 = vld [vmem:[%s2586 + $0x1c] sm:$0xf]
    %v6847 = vld [vmem:[%s2586 + $0x20] sm:$0xf]
    %v6848 = vld [vmem:[%s2586 + $0x24] sm:$0xf]
    %v6849 = vld [vmem:[%s2586 + $0x28] sm:$0xf]
    %v6850 = vld [vmem:[%s2586 + $0x2c] sm:$0xf]
    %v6851 = vld [vmem:[%s2586 + $0x30] sm:$0xf]
    %v6852 = vld [vmem:[%s2586 + $0x34] sm:$0xf]
    %v6853 = vld [vmem:[%s2586 + $0x38] sm:$0xf]
    %v6854 = vld [vmem:[%s2586 + $0x3c] sm:$0xf]
    %v6855 = vld [vmem:[%s2586 + $0x40] sm:$0xf]
    %v6856 = vld [vmem:[%s2586 + $0x44] sm:$0xf]
    %v6857 = vld [vmem:[%s2586 + $0x48] sm:$0xf]
    %v6858 = vld [vmem:[%s2586 + $0x4c] sm:$0xf]
    %6879 = vrot.lane.b32.xlu0 %v6839, 32
    %v6880 = vpop.permute.xlu0 %6879
    %6881 = vrot.lane.b32.xlu0 %v6840, 32
    %v6882 = vpop.permute.xlu0 %6881
    %6883 = vrot.lane.b32.xlu0 %v6841, 32
    %v6884 = vpop.permute.xlu0 %6883
    %6885 = vrot.lane.b32.xlu0 %v6842, 32
    %v6886 = vpop.permute.xlu0 %6885
    %6887 = vrot.lane.b32.xlu0 %v6843, 32
    %v6888 = vpop.permute.xlu0 %6887
    %6889 = vrot.lane.b32.xlu0 %v6844, 32
    %v6890 = vpop.permute.xlu0 %6889
    %6891 = vrot.lane.b32.xlu0 %v6845, 32
    %v6892 = vpop.permute.xlu0 %6891
    %6893 = vrot.lane.b32.xlu0 %v6846, 32
    %v6894 = vpop.permute.xlu0 %6893
    %6895 = vrot.lane.b32.xlu0 %v6847, 32
    %v6896 = vpop.permute.xlu0 %6895
    %6897 = vrot.lane.b32.xlu0 %v6848, 32
    %v6898 = vpop.permute.xlu0 %6897
    %6899 = vrot.lane.b32.xlu0 %v6849, 32
    %v6900 = vpop.permute.xlu0 %6899
    %6901 = vrot.lane.b32.xlu0 %v6850, 32
    %v6902 = vpop.permute.xlu0 %6901
    %6903 = vrot.lane.b32.xlu0 %v6851, 32
    %v6904 = vpop.permute.xlu0 %6903
    %6905 = vrot.lane.b32.xlu0 %v6852, 32
    %v6906 = vpop.permute.xlu0 %6905
    %6907 = vrot.lane.b32.xlu0 %v6853, 32
    %v6908 = vpop.permute.xlu0 %6907
    %6909 = vrot.lane.b32.xlu0 %v6854, 32
    %v6910 = vpop.permute.xlu0 %6909
    %6911 = vrot.lane.b32.xlu0 %v6855, 32
    %v6912 = vpop.permute.xlu0 %6911
    %6913 = vrot.lane.b32.xlu0 %v6856, 32
    %v6914 = vpop.permute.xlu0 %6913
    %6915 = vrot.lane.b32.xlu0 %v6857, 32
    %v6916 = vpop.permute.xlu0 %6915
    %6917 = vrot.lane.b32.xlu0 %v6858, 32
    %v6918 = vpop.permute.xlu0 %6917
    %6939 = vst.msk [vmem:[%s6818] sm:$0xf] %vm2134, %v6880
    %6940 = vst.msk [vmem:[%s6818 + $0xc] sm:$0xf] %vm2134, %v6882
    %6941 = vst.msk [vmem:[%s6818 + $0x18] sm:$0xf] %vm2134, %v6884
    %6942 = vst.msk [vmem:[%s6818 + $0x24] sm:$0xf] %vm2134, %v6886
    %6943 = vst.msk [vmem:[%s6818 + $0x30] sm:$0xf] %vm2134, %v6888
    %6944 = vst.msk [vmem:[%s6818 + $0x3c] sm:$0xf] %vm2134, %v6890
    %6945 = vst.msk [vmem:[%s6818 + $0x48] sm:$0xf] %vm2134, %v6892
    %6946 = vst.msk [vmem:[%s6818 + $0x54] sm:$0xf] %vm2134, %v6894
    %6947 = vst.msk [vmem:[%s6818 + $0x60] sm:$0xf] %vm2134, %v6896
    %6948 = vst.msk [vmem:[%s6818 + $0x6c] sm:$0xf] %vm2134, %v6898
    %6949 = vst.msk [vmem:[%s6818 + $0x78] sm:$0xf] %vm2134, %v6900
    %6950 = vst.msk [vmem:[%s6818 + $0x84] sm:$0xf] %vm2134, %v6902
    %6951 = vst.msk [vmem:[%s6818 + $0x90] sm:$0xf] %vm2134, %v6904
    %6952 = vst.msk [vmem:[%s6818 + $0x9c] sm:$0xf] %vm2134, %v6906
    %6953 = vst.msk [vmem:[%s6818 + $0xa8] sm:$0xf] %vm2134, %v6908
    %6954 = vst.msk [vmem:[%s6818 + $0xb4] sm:$0xf] %vm2134, %v6910
    %6955 = vst.msk [vmem:[%s6818 + $0xc0] sm:$0xf] %vm2134, %v6912
    %6956 = vst.msk [vmem:[%s6818 + $0xcc] sm:$0xf] %vm2134, %v6914
    %6957 = vst.msk [vmem:[%s6818 + $0xd8] sm:$0xf] %vm2134, %v6916
    %6958 = vst.msk [vmem:[%s6818 + $0xe4] sm:$0xf] %vm2134, %v6918
    %v6959 = vld [vmem:[%s2586] sm:$0x8]
    %v6960 = vld [vmem:[%s2586 + $0x4] sm:$0xf]
    %v6961 = vld [vmem:[%s2586 + $0x8] sm:$0x8]
    %v6962 = vld [vmem:[%s2586 + $0xc] sm:$0xf]
    %v6963 = vld [vmem:[%s2586 + $0x10] sm:$0x8]
    %v6964 = vld [vmem:[%s2586 + $0x14] sm:$0xf]
    %v6965 = vld [vmem:[%s2586 + $0x18] sm:$0x8]
    %v6966 = vld [vmem:[%s2586 + $0x1c] sm:$0xf]
    %v6967 = vld [vmem:[%s2586 + $0x20] sm:$0x8]
    %v6968 = vld [vmem:[%s2586 + $0x24] sm:$0xf]
    %v6969 = vld [vmem:[%s2586 + $0x28] sm:$0x8]
    %v6970 = vld [vmem:[%s2586 + $0x2c] sm:$0xf]
    %v6971 = vld [vmem:[%s2586 + $0x30] sm:$0x8]
    %v6972 = vld [vmem:[%s2586 + $0x34] sm:$0xf]
    %v6973 = vld [vmem:[%s2586 + $0x38] sm:$0x8]
    %v6974 = vld [vmem:[%s2586 + $0x3c] sm:$0xf]
    %v6975 = vld [vmem:[%s2586 + $0x40] sm:$0x8]
    %v6976 = vld [vmem:[%s2586 + $0x44] sm:$0xf]
    %v6977 = vld [vmem:[%s2586 + $0x48] sm:$0x8]
    %v6978 = vld [vmem:[%s2586 + $0x4c] sm:$0xf]
    %v6999 = vrot.slane %v6959, 7
    %v7000 = vrot.slane %v6999, 4
    %v7001 = vrot.slane %v6960, 7
    %v7002 = vsel %vm5578, %v7000, %v7001
    %v7003 = vrot.slane %v7001, 4
    %v7004 = vrot.slane %v6961, 7
    %v7005 = vrot.slane %v7004, 4
    %v7006 = vrot.slane %v6962, 7
    %v7007 = vsel %vm5578, %v7005, %v7006
    %v7008 = vrot.slane %v7006, 4
    %v7009 = vrot.slane %v6963, 7
    %v7010 = vrot.slane %v7009, 4
    %v7011 = vrot.slane %v6964, 7
    %v7012 = vsel %vm5578, %v7010, %v7011
    %v7013 = vrot.slane %v7011, 4
    %v7014 = vrot.slane %v6965, 7
    %v7015 = vrot.slane %v7014, 4
    %v7016 = vrot.slane %v6966, 7
    %v7017 = vsel %vm5578, %v7015, %v7016
    %v7018 = vrot.slane %v7016, 4
    %v7019 = vrot.slane %v6967, 7
    %v7020 = vrot.slane %v7019, 4
    %v7021 = vrot.slane %v6968, 7
    %v7022 = vsel %vm5578, %v7020, %v7021
    %v7023 = vrot.slane %v7021, 4
    %v7024 = vrot.slane %v6969, 7
    %v7025 = vrot.slane %v7024, 4
    %v7026 = vrot.slane %v6970, 7
    %v7027 = vsel %vm5578, %v7025, %v7026
    %v7028 = vrot.slane %v7026, 4
    %v7029 = vrot.slane %v6971, 7
    %v7030 = vrot.slane %v7029, 4
    %v7031 = vrot.slane %v6972, 7
    %v7032 = vsel %vm5578, %v7030, %v7031
    %v7033 = vrot.slane %v7031, 4
    %v7034 = vrot.slane %v6973, 7
    %v7035 = vrot.slane %v7034, 4
    %v7036 = vrot.slane %v6974, 7
    %v7037 = vsel %vm5578, %v7035, %v7036
    %v7038 = vrot.slane %v7036, 4
    %v7039 = vrot.slane %v6975, 7
    %v7040 = vrot.slane %v7039, 4
    %v7041 = vrot.slane %v6976, 7
    %v7042 = vsel %vm5578, %v7040, %v7041
    %v7043 = vrot.slane %v7041, 4
    %v7044 = vrot.slane %v6977, 7
    %v7045 = vrot.slane %v7044, 4
    %v7046 = vrot.slane %v6978, 7
    %v7047 = vsel %vm5578, %v7045, %v7046
    %v7048 = vrot.slane %v7046, 4
    %7049 = vrot.lane.b32.xlu0 %v7002, 64
    %v7050 = vpop.permute.xlu0 %7049
    %7051 = vrot.lane.b32.xlu0 %v7003, 64
    %v7052 = vpop.permute.xlu0 %7051
    %7053 = vrot.lane.b32.xlu0 %v7007, 64
    %v7054 = vpop.permute.xlu0 %7053
    %7055 = vrot.lane.b32.xlu0 %v7008, 64
    %v7056 = vpop.permute.xlu0 %7055
    %7057 = vrot.lane.b32.xlu0 %v7012, 64
    %v7058 = vpop.permute.xlu0 %7057
    %7059 = vrot.lane.b32.xlu0 %v7013, 64
    %v7060 = vpop.permute.xlu0 %7059
    %7061 = vrot.lane.b32.xlu0 %v7017, 64
    %v7062 = vpop.permute.xlu0 %7061
    %7063 = vrot.lane.b32.xlu0 %v7018, 64
    %v7064 = vpop.permute.xlu0 %7063
    %7065 = vrot.lane.b32.xlu0 %v7022, 64
    %v7066 = vpop.permute.xlu0 %7065
    %7067 = vrot.lane.b32.xlu0 %v7023, 64
    %v7068 = vpop.permute.xlu0 %7067
    %7069 = vrot.lane.b32.xlu0 %v7027, 64
    %v7070 = vpop.permute.xlu0 %7069
    %7071 = vrot.lane.b32.xlu0 %v7028, 64
    %v7072 = vpop.permute.xlu0 %7071
    %7073 = vrot.lane.b32.xlu0 %v7032, 64
    %v7074 = vpop.permute.xlu0 %7073
    %7075 = vrot.lane.b32.xlu0 %v7033, 64
    %v7076 = vpop.permute.xlu0 %7075
    %7077 = vrot.lane.b32.xlu0 %v7037, 64
    %v7078 = vpop.permute.xlu0 %7077
    %7079 = vrot.lane.b32.xlu0 %v7038, 64
    %v7080 = vpop.permute.xlu0 %7079
    %7081 = vrot.lane.b32.xlu0 %v7042, 64
    %v7082 = vpop.permute.xlu0 %7081
    %7083 = vrot.lane.b32.xlu0 %v7043, 64
    %v7084 = vpop.permute.xlu0 %7083
    %7085 = vrot.lane.b32.xlu0 %v7047, 64
    %v7086 = vpop.permute.xlu0 %7085
    %7087 = vrot.lane.b32.xlu0 %v7048, 64
    %v7088 = vpop.permute.xlu0 %7087
    %7109 = vst.msk [vmem:[%s6818] sm:$0xf] %vm5689, %v7050
    %7110 = vst.msk [vmem:[%s6818 + $0xc] sm:$0x1] %vm5691, %v7052
    %7111 = vst.msk [vmem:[%s6818 + $0x18] sm:$0xf] %vm5689, %v7054
    %7112 = vst.msk [vmem:[%s6818 + $0x24] sm:$0x1] %vm5691, %v7056
    %7113 = vst.msk [vmem:[%s6818 + $0x30] sm:$0xf] %vm5689, %v7058
    %7114 = vst.msk [vmem:[%s6818 + $0x3c] sm:$0x1] %vm5691, %v7060
    %7115 = vst.msk [vmem:[%s6818 + $0x48] sm:$0xf] %vm5689, %v7062
    %7116 = vst.msk [vmem:[%s6818 + $0x54] sm:$0x1] %vm5691, %v7064
    %7117 = vst.msk [vmem:[%s6818 + $0x60] sm:$0xf] %vm5689, %v7066
    %7118 = vst.msk [vmem:[%s6818 + $0x6c] sm:$0x1] %vm5691, %v7068
    %7119 = vst.msk [vmem:[%s6818 + $0x78] sm:$0xf] %vm5689, %v7070
    %7120 = vst.msk [vmem:[%s6818 + $0x84] sm:$0x1] %vm5691, %v7072
    %7121 = vst.msk [vmem:[%s6818 + $0x90] sm:$0xf] %vm5689, %v7074
    %7122 = vst.msk [vmem:[%s6818 + $0x9c] sm:$0x1] %vm5691, %v7076
    %7123 = vst.msk [vmem:[%s6818 + $0xa8] sm:$0xf] %vm5689, %v7078
    %7124 = vst.msk [vmem:[%s6818 + $0xb4] sm:$0x1] %vm5691, %v7080
    %7125 = vst.msk [vmem:[%s6818 + $0xc0] sm:$0xf] %vm5689, %v7082
    %7126 = vst.msk [vmem:[%s6818 + $0xcc] sm:$0x1] %vm5691, %v7084
    %7127 = vst.msk [vmem:[%s6818 + $0xd8] sm:$0xf] %vm5689, %v7086
    %7128 = vst.msk [vmem:[%s6818 + $0xe4] sm:$0x1] %vm5691, %v7088
    %v7129 = vld [vmem:[%s2586] sm:$0xf]
    %v7130 = vld [vmem:[%s2586 + $0x4] sm:$0x1]
    %v7131 = vld [vmem:[%s2586 + $0x8] sm:$0xf]
    %v7132 = vld [vmem:[%s2586 + $0xc] sm:$0x1]
    %v7133 = vld [vmem:[%s2586 + $0x10] sm:$0xf]
    %v7134 = vld [vmem:[%s2586 + $0x14] sm:$0x1]
    %v7135 = vld [vmem:[%s2586 + $0x18] sm:$0xf]
    %v7136 = vld [vmem:[%s2586 + $0x1c] sm:$0x1]
    %v7137 = vld [vmem:[%s2586 + $0x20] sm:$0xf]
    %v7138 = vld [vmem:[%s2586 + $0x24] sm:$0x1]
    %v7139 = vld [vmem:[%s2586 + $0x28] sm:$0xf]
    %v7140 = vld [vmem:[%s2586 + $0x2c] sm:$0x1]
    %v7141 = vld [vmem:[%s2586 + $0x30] sm:$0xf]
    %v7142 = vld [vmem:[%s2586 + $0x34] sm:$0x1]
    %v7143 = vld [vmem:[%s2586 + $0x38] sm:$0xf]
    %v7144 = vld [vmem:[%s2586 + $0x3c] sm:$0x1]
    %v7145 = vld [vmem:[%s2586 + $0x40] sm:$0xf]
    %v7146 = vld [vmem:[%s2586 + $0x44] sm:$0x1]
    %v7147 = vld [vmem:[%s2586 + $0x48] sm:$0xf]
    %v7148 = vld [vmem:[%s2586 + $0x4c] sm:$0x1]
    %v7149 = vld [vmem:[%s2586 + $0x50] sm:$0xf]
    %v7150 = vld [vmem:[%s2586 + $0x54] sm:$0x1]
    %v7151 = vld [vmem:[%s2586 + $0x58] sm:$0xf]
    %v7152 = vld [vmem:[%s2586 + $0x5c] sm:$0x1]
    %v7153 = vld [vmem:[%s2586 + $0x60] sm:$0xf]
    %v7154 = vld [vmem:[%s2586 + $0x64] sm:$0x1]
    %v7155 = vld [vmem:[%s2586 + $0x68] sm:$0xf]
    %v7156 = vld [vmem:[%s2586 + $0x6c] sm:$0x1]
    %v7157 = vld [vmem:[%s2586 + $0x70] sm:$0xf]
    %v7158 = vld [vmem:[%s2586 + $0x74] sm:$0x1]
    %v7159 = vld [vmem:[%s2586 + $0x78] sm:$0xf]
    %v7160 = vld [vmem:[%s2586 + $0x7c] sm:$0x1]
    %v7193 = vrot.slane %v7129, 5
    %v7194 = vrot.slane %v7193, 4
    %v7195 = vrot.slane %v7130, 5
    %v7196 = vsel %vm5333, %v7194, %v7195
    %v7197 = vrot.slane %v7131, 5
    %v7198 = vrot.slane %v7197, 4
    %v7199 = vrot.slane %v7132, 5
    %v7200 = vsel %vm5333, %v7198, %v7199
    %v7201 = vrot.slane %v7133, 5
    %v7202 = vrot.slane %v7201, 4
    %v7203 = vrot.slane %v7134, 5
    %v7204 = vsel %vm5333, %v7202, %v7203
    %v7205 = vrot.slane %v7135, 5
    %v7206 = vrot.slane %v7205, 4
    %v7207 = vrot.slane %v7136, 5
    %v7208 = vsel %vm5333, %v7206, %v7207
    %v7209 = vrot.slane %v7137, 5
    %v7210 = vrot.slane %v7209, 4
    %v7211 = vrot.slane %v7138, 5
    %v7212 = vsel %vm5333, %v7210, %v7211
    %v7213 = vrot.slane %v7139, 5
    %v7214 = vrot.slane %v7213, 4
    %v7215 = vrot.slane %v7140, 5
    %v7216 = vsel %vm5333, %v7214, %v7215
    %v7217 = vrot.slane %v7141, 5
    %v7218 = vrot.slane %v7217, 4
    %v7219 = vrot.slane %v7142, 5
    %v7220 = vsel %vm5333, %v7218, %v7219
    %v7221 = vrot.slane %v7143, 5
    %v7222 = vrot.slane %v7221, 4
    %v7223 = vrot.slane %v7144, 5
    %v7224 = vsel %vm5333, %v7222, %v7223
    %v7225 = vrot.slane %v7145, 5
    %v7226 = vrot.slane %v7225, 4
    %v7227 = vrot.slane %v7146, 5
    %v7228 = vsel %vm5333, %v7226, %v7227
    %v7229 = vrot.slane %v7147, 5
    %v7230 = vrot.slane %v7229, 4
    %v7231 = vrot.slane %v7148, 5
    %v7232 = vsel %vm5333, %v7230, %v7231
    %v7233 = vrot.slane %v7149, 5
    %v7234 = vrot.slane %v7233, 4
    %v7235 = vrot.slane %v7150, 5
    %v7236 = vsel %vm5333, %v7234, %v7235
    %v7237 = vrot.slane %v7151, 5
    %v7238 = vrot.slane %v7237, 4
    %v7239 = vrot.slane %v7152, 5
    %v7240 = vsel %vm5333, %v7238, %v7239
    %v7241 = vrot.slane %v7153, 5
    %v7242 = vrot.slane %v7241, 4
    %v7243 = vrot.slane %v7154, 5
    %v7244 = vsel %vm5333, %v7242, %v7243
    %v7245 = vrot.slane %v7155, 5
    %v7246 = vrot.slane %v7245, 4
    %v7247 = vrot.slane %v7156, 5
    %v7248 = vsel %vm5333, %v7246, %v7247
    %v7249 = vrot.slane %v7157, 5
    %v7250 = vrot.slane %v7249, 4
    %v7251 = vrot.slane %v7158, 5
    %v7252 = vsel %vm5333, %v7250, %v7251
    %v7253 = vrot.slane %v7159, 5
    %v7254 = vrot.slane %v7253, 4
    %v7255 = vrot.slane %v7160, 5
    %v7256 = vsel %vm5333, %v7254, %v7255
    %7257 = vrot.lane.b32.xlu0 %v7193, 96
    %v7258 = vpop.permute.xlu0 %7257
    %7259 = vrot.lane.b32.xlu0 %v7196, 96
    %v7260 = vpop.permute.xlu0 %7259
    %7261 = vrot.lane.b32.xlu0 %v7197, 96
    %v7262 = vpop.permute.xlu0 %7261
    %7263 = vrot.lane.b32.xlu0 %v7200, 96
    %v7264 = vpop.permute.xlu0 %7263
    %7265 = vrot.lane.b32.xlu0 %v7201, 96
    %v7266 = vpop.permute.xlu0 %7265
    %7267 = vrot.lane.b32.xlu0 %v7204, 96
    %v7268 = vpop.permute.xlu0 %7267
    %7269 = vrot.lane.b32.xlu0 %v7205, 96
    %v7270 = vpop.permute.xlu0 %7269
    %7271 = vrot.lane.b32.xlu0 %v7208, 96
    %v7272 = vpop.permute.xlu0 %7271
    %7273 = vrot.lane.b32.xlu0 %v7209, 96
    %v7274 = vpop.permute.xlu0 %7273
    %7275 = vrot.lane.b32.xlu0 %v7212, 96
    %v7276 = vpop.permute.xlu0 %7275
    %7277 = vrot.lane.b32.xlu0 %v7213, 96
    %v7278 = vpop.permute.xlu0 %7277
    %7279 = vrot.lane.b32.xlu0 %v7216, 96
    %v7280 = vpop.permute.xlu0 %7279
    %7281 = vrot.lane.b32.xlu0 %v7217, 96
    %v7282 = vpop.permute.xlu0 %7281
    %7283 = vrot.lane.b32.xlu0 %v7220, 96
    %v7284 = vpop.permute.xlu0 %7283
    %7285 = vrot.lane.b32.xlu0 %v7221, 96
    %v7286 = vpop.permute.xlu0 %7285
    %7287 = vrot.lane.b32.xlu0 %v7224, 96
    %v7288 = vpop.permute.xlu0 %7287
    %7289 = vrot.lane.b32.xlu0 %v7225, 96
    %v7290 = vpop.permute.xlu0 %7289
    %7291 = vrot.lane.b32.xlu0 %v7228, 96
    %v7292 = vpop.permute.xlu0 %7291
    %7293 = vrot.lane.b32.xlu0 %v7229, 96
    %v7294 = vpop.permute.xlu0 %7293
    %7295 = vrot.lane.b32.xlu0 %v7232, 96
    %v7296 = vpop.permute.xlu0 %7295
    %7297 = vrot.lane.b32.xlu0 %v7233, 96
    %v7298 = vpop.permute.xlu0 %7297
    %7299 = vrot.lane.b32.xlu0 %v7236, 96
    %v7300 = vpop.permute.xlu0 %7299
    %7301 = vrot.lane.b32.xlu0 %v7237, 96
    %v7302 = vpop.permute.xlu0 %7301
    %7303 = vrot.lane.b32.xlu0 %v7240, 96
    %v7304 = vpop.permute.xlu0 %7303
    %7305 = vrot.lane.b32.xlu0 %v7241, 96
    %v7306 = vpop.permute.xlu0 %7305
    %7307 = vrot.lane.b32.xlu0 %v7244, 96
    %v7308 = vpop.permute.xlu0 %7307
    %7309 = vrot.lane.b32.xlu0 %v7245, 96
    %v7310 = vpop.permute.xlu0 %7309
    %7311 = vrot.lane.b32.xlu0 %v7248, 96
    %v7312 = vpop.permute.xlu0 %7311
    %7313 = vrot.lane.b32.xlu0 %v7249, 96
    %v7314 = vpop.permute.xlu0 %7313
    %7315 = vrot.lane.b32.xlu0 %v7252, 96
    %v7316 = vpop.permute.xlu0 %7315
    %7317 = vrot.lane.b32.xlu0 %v7253, 96
    %v7318 = vpop.permute.xlu0 %7317
    %7319 = vrot.lane.b32.xlu0 %v7256, 96
    %v7320 = vpop.permute.xlu0 %7319
    %7353 = vst.msk [vmem:[%s2784] sm:$0x8] %vm5935, %v7258
    %7354 = vst.msk [vmem:[%s2784 + $0xc] sm:$0xf] %vm2552, %v7260
    %7355 = vst.msk [vmem:[%s2784 + $0x18] sm:$0x8] %vm5935, %v7262
    %7356 = vst.msk [vmem:[%s2784 + $0x24] sm:$0xf] %vm2552, %v7264
    %7357 = vst.msk [vmem:[%s2784 + $0x30] sm:$0x8] %vm5935, %v7266
    %7358 = vst.msk [vmem:[%s2784 + $0x3c] sm:$0xf] %vm2552, %v7268
    %7359 = vst.msk [vmem:[%s2784 + $0x48] sm:$0x8] %vm5935, %v7270
    %7360 = vst.msk [vmem:[%s2784 + $0x54] sm:$0xf] %vm2552, %v7272
    %7361 = vst.msk [vmem:[%s2784 + $0x60] sm:$0x8] %vm5935, %v7274
    %7362 = vst.msk [vmem:[%s2784 + $0x6c] sm:$0xf] %vm2552, %v7276
    %7363 = vst.msk [vmem:[%s2784 + $0x78] sm:$0x8] %vm5935, %v7278
    %7364 = vst.msk [vmem:[%s2784 + $0x84] sm:$0xf] %vm2552, %v7280
    %7365 = vst.msk [vmem:[%s2784 + $0x90] sm:$0x8] %vm5935, %v7282
    %7366 = vst.msk [vmem:[%s2784 + $0x9c] sm:$0xf] %vm2552, %v7284
    %7367 = vst.msk [vmem:[%s2784 + $0xa8] sm:$0x8] %vm5935, %v7286
    %7368 = vst.msk [vmem:[%s2784 + $0xb4] sm:$0xf] %vm2552, %v7288
    %7369 = vst.msk [vmem:[%s2784 + $0xc0] sm:$0x8] %vm5935, %v7290
    %7370 = vst.msk [vmem:[%s2784 + $0xcc] sm:$0xf] %vm2552, %v7292
    %7371 = vst.msk [vmem:[%s2784 + $0xd8] sm:$0x8] %vm5935, %v7294
    %7372 = vst.msk [vmem:[%s2784 + $0xe4] sm:$0xf] %vm2552, %v7296
    %7373 = vst.msk [vmem:[%s2784 + $0xf0] sm:$0x8] %vm5935, %v7298
    %7374 = vst.msk [vmem:[%s2784 + $0xfc] sm:$0xf] %vm2552, %v7300
    %7375 = vst.msk [vmem:[%s2784 + $0x108] sm:$0x8] %vm5935, %v7302
    %7376 = vst.msk [vmem:[%s2784 + $0x114] sm:$0xf] %vm2552, %v7304
    %7377 = vst.msk [vmem:[%s2784 + $0x120] sm:$0x8] %vm5935, %v7306
    %7378 = vst.msk [vmem:[%s2784 + $0x12c] sm:$0xf] %vm2552, %v7308
    %7379 = vst.msk [vmem:[%s2784 + $0x138] sm:$0x8] %vm5935, %v7310
    %7380 = vst.msk [vmem:[%s2784 + $0x144] sm:$0xf] %vm2552, %v7312
    %7381 = vst.msk [vmem:[%s2784 + $0x150] sm:$0x8] %vm5935, %v7314
    %7382 = vst.msk [vmem:[%s2784 + $0x15c] sm:$0xf] %vm2552, %v7316
    %7383 = vst.msk [vmem:[%s2784 + $0x168] sm:$0x8] %vm5935, %v7318
    %7384 = vst.msk [vmem:[%s2784 + $0x174] sm:$0xf] %vm2552, %v7320
    %v7385 = vld [vmem:[%s2586] sm:$0xf]
    %v7386 = vld [vmem:[%s2586 + $0x4] sm:$0xf]
    %v7387 = vld [vmem:[%s2586 + $0x8] sm:$0xf]
    %v7388 = vld [vmem:[%s2586 + $0xc] sm:$0xf]
    %v7389 = vld [vmem:[%s2586 + $0x10] sm:$0xf]
    %v7390 = vld [vmem:[%s2586 + $0x14] sm:$0xf]
    %v7391 = vld [vmem:[%s2586 + $0x18] sm:$0xf]
    %v7392 = vld [vmem:[%s2586 + $0x1c] sm:$0xf]
    %v7393 = vld [vmem:[%s2586 + $0x20] sm:$0xf]
    %v7394 = vld [vmem:[%s2586 + $0x24] sm:$0xf]
    %v7395 = vld [vmem:[%s2586 + $0x28] sm:$0xf]
    %v7396 = vld [vmem:[%s2586 + $0x2c] sm:$0xf]
    %v7397 = vld [vmem:[%s2586 + $0x30] sm:$0xf]
    %v7398 = vld [vmem:[%s2586 + $0x34] sm:$0xf]
    %v7399 = vld [vmem:[%s2586 + $0x38] sm:$0xf]
    %v7400 = vld [vmem:[%s2586 + $0x3c] sm:$0xf]
    %v7401 = vld [vmem:[%s2586 + $0x40] sm:$0xf]
    %v7402 = vld [vmem:[%s2586 + $0x44] sm:$0xf]
    %v7403 = vld [vmem:[%s2586 + $0x48] sm:$0xf]
    %v7404 = vld [vmem:[%s2586 + $0x4c] sm:$0xf]
    %v7405 = vld [vmem:[%s2586 + $0x50] sm:$0xf]
    %v7406 = vld [vmem:[%s2586 + $0x54] sm:$0xf]
    %v7407 = vld [vmem:[%s2586 + $0x58] sm:$0xf]
    %v7408 = vld [vmem:[%s2586 + $0x5c] sm:$0xf]
    %v7409 = vld [vmem:[%s2586 + $0x60] sm:$0xf]
    %v7410 = vld [vmem:[%s2586 + $0x64] sm:$0xf]
    %v7411 = vld [vmem:[%s2586 + $0x68] sm:$0xf]
    %v7412 = vld [vmem:[%s2586 + $0x6c] sm:$0xf]
    %v7413 = vld [vmem:[%s2586 + $0x70] sm:$0xf]
    %v7414 = vld [vmem:[%s2586 + $0x74] sm:$0xf]
    %v7415 = vld [vmem:[%s2586 + $0x78] sm:$0xf]
    %v7416 = vld [vmem:[%s2586 + $0x7c] sm:$0xf]
    %7417 = vst.msk [vmem:[%s2784 + $0x4] sm:$0xf] %vm1944, %v7385
    %7418 = vst.msk [vmem:[%s2784 + $0x10] sm:$0xf] %vm1944, %v7386
    %7419 = vst.msk [vmem:[%s2784 + $0x1c] sm:$0xf] %vm1944, %v7387
    %7420 = vst.msk [vmem:[%s2784 + $0x28] sm:$0xf] %vm1944, %v7388
    %7421 = vst.msk [vmem:[%s2784 + $0x34] sm:$0xf] %vm1944, %v7389
    %7422 = vst.msk [vmem:[%s2784 + $0x40] sm:$0xf] %vm1944, %v7390
    %7423 = vst.msk [vmem:[%s2784 + $0x4c] sm:$0xf] %vm1944, %v7391
    %7424 = vst.msk [vmem:[%s2784 + $0x58] sm:$0xf] %vm1944, %v7392
    %7425 = vst.msk [vmem:[%s2784 + $0x64] sm:$0xf] %vm1944, %v7393
    %7426 = vst.msk [vmem:[%s2784 + $0x70] sm:$0xf] %vm1944, %v7394
    %7427 = vst.msk [vmem:[%s2784 + $0x7c] sm:$0xf] %vm1944, %v7395
    %7428 = vst.msk [vmem:[%s2784 + $0x88] sm:$0xf] %vm1944, %v7396
    %7429 = vst.msk [vmem:[%s2784 + $0x94] sm:$0xf] %vm1944, %v7397
    %7430 = vst.msk [vmem:[%s2784 + $0xa0] sm:$0xf] %vm1944, %v7398
    %7431 = vst.msk [vmem:[%s2784 + $0xac] sm:$0xf] %vm1944, %v7399
    %7432 = vst.msk [vmem:[%s2784 + $0xb8] sm:$0xf] %vm1944, %v7400
    %7433 = vst.msk [vmem:[%s2784 + $0xc4] sm:$0xf] %vm1944, %v7401
    %7434 = vst.msk [vmem:[%s2784 + $0xd0] sm:$0xf] %vm1944, %v7402
    %7435 = vst.msk [vmem:[%s2784 + $0xdc] sm:$0xf] %vm1944, %v7403
    %7436 = vst.msk [vmem:[%s2784 + $0xe8] sm:$0xf] %vm1944, %v7404
    %7437 = vst.msk [vmem:[%s2784 + $0xf4] sm:$0xf] %vm1944, %v7405
    %7438 = vst.msk [vmem:[%s2784 + $0x100] sm:$0xf] %vm1944, %v7406
    %7439 = vst.msk [vmem:[%s2784 + $0x10c] sm:$0xf] %vm1944, %v7407
    %7440 = vst.msk [vmem:[%s2784 + $0x118] sm:$0xf] %vm1944, %v7408
    %7441 = vst.msk [vmem:[%s2784 + $0x124] sm:$0xf] %vm1944, %v7409
    %7442 = vst.msk [vmem:[%s2784 + $0x130] sm:$0xf] %vm1944, %v7410
    %7443 = vst.msk [vmem:[%s2784 + $0x13c] sm:$0xf] %vm1944, %v7411
    %7444 = vst.msk [vmem:[%s2784 + $0x148] sm:$0xf] %vm1944, %v7412
    %7445 = vst.msk [vmem:[%s2784 + $0x154] sm:$0xf] %vm1944, %v7413
    %7446 = vst.msk [vmem:[%s2784 + $0x160] sm:$0xf] %vm1944, %v7414
    %7447 = vst.msk [vmem:[%s2784 + $0x16c] sm:$0xf] %vm1944, %v7415
    %7448 = vst.msk [vmem:[%s2784 + $0x178] sm:$0xf] %vm1944, %v7416
    %v7449 = vld [vmem:[%s2586] sm:$0x8]
    %v7450 = vld [vmem:[%s2586 + $0x4] sm:$0xf]
    %v7451 = vld [vmem:[%s2586 + $0x8] sm:$0x8]
    %v7452 = vld [vmem:[%s2586 + $0xc] sm:$0xf]
    %v7453 = vld [vmem:[%s2586 + $0x10] sm:$0x8]
    %v7454 = vld [vmem:[%s2586 + $0x14] sm:$0xf]
    %v7455 = vld [vmem:[%s2586 + $0x18] sm:$0x8]
    %v7456 = vld [vmem:[%s2586 + $0x1c] sm:$0xf]
    %v7457 = vld [vmem:[%s2586 + $0x20] sm:$0x8]
    %v7458 = vld [vmem:[%s2586 + $0x24] sm:$0xf]
    %v7459 = vld [vmem:[%s2586 + $0x28] sm:$0x8]
    %v7460 = vld [vmem:[%s2586 + $0x2c] sm:$0xf]
    %v7461 = vld [vmem:[%s2586 + $0x30] sm:$0x8]
    %v7462 = vld [vmem:[%s2586 + $0x34] sm:$0xf]
    %v7463 = vld [vmem:[%s2586 + $0x38] sm:$0x8]
    %v7464 = vld [vmem:[%s2586 + $0x3c] sm:$0xf]
    %v7465 = vld [vmem:[%s2586 + $0x40] sm:$0x8]
    %v7466 = vld [vmem:[%s2586 + $0x44] sm:$0xf]
    %v7467 = vld [vmem:[%s2586 + $0x48] sm:$0x8]
    %v7468 = vld [vmem:[%s2586 + $0x4c] sm:$0xf]
    %v7469 = vld [vmem:[%s2586 + $0x50] sm:$0x8]
    %v7470 = vld [vmem:[%s2586 + $0x54] sm:$0xf]
    %v7471 = vld [vmem:[%s2586 + $0x58] sm:$0x8]
    %v7472 = vld [vmem:[%s2586 + $0x5c] sm:$0xf]
    %v7473 = vld [vmem:[%s2586 + $0x60] sm:$0x8]
    %v7474 = vld [vmem:[%s2586 + $0x64] sm:$0xf]
    %v7475 = vld [vmem:[%s2586 + $0x68] sm:$0x8]
    %v7476 = vld [vmem:[%s2586 + $0x6c] sm:$0xf]
    %v7477 = vld [vmem:[%s2586 + $0x70] sm:$0x8]
    %v7478 = vld [vmem:[%s2586 + $0x74] sm:$0xf]
    %v7479 = vld [vmem:[%s2586 + $0x78] sm:$0x8]
    %v7480 = vld [vmem:[%s2586 + $0x7c] sm:$0xf]
    %v7513 = vrot.slane %v7449, 7
    %v7514 = vrot.slane %v7513, 4
    %v7515 = vrot.slane %v7450, 7
    %v7516 = vsel %vm5578, %v7514, %v7515
    %v7517 = vrot.slane %v7515, 4
    %v7518 = vrot.slane %v7451, 7
    %v7519 = vrot.slane %v7518, 4
    %v7520 = vrot.slane %v7452, 7
    %v7521 = vsel %vm5578, %v7519, %v7520
    %v7522 = vrot.slane %v7520, 4
    %v7523 = vrot.slane %v7453, 7
    %v7524 = vrot.slane %v7523, 4
    %v7525 = vrot.slane %v7454, 7
    %v7526 = vsel %vm5578, %v7524, %v7525
    %v7527 = vrot.slane %v7525, 4
    %v7528 = vrot.slane %v7455, 7
    %v7529 = vrot.slane %v7528, 4
    %v7530 = vrot.slane %v7456, 7
    %v7531 = vsel %vm5578, %v7529, %v7530
    %v7532 = vrot.slane %v7530, 4
    %v7533 = vrot.slane %v7457, 7
    %v7534 = vrot.slane %v7533, 4
    %v7535 = vrot.slane %v7458, 7
    %v7536 = vsel %vm5578, %v7534, %v7535
    %v7537 = vrot.slane %v7535, 4
    %v7538 = vrot.slane %v7459, 7
    %v7539 = vrot.slane %v7538, 4
    %v7540 = vrot.slane %v7460, 7
    %v7541 = vsel %vm5578, %v7539, %v7540
    %v7542 = vrot.slane %v7540, 4
    %v7543 = vrot.slane %v7461, 7
    %v7544 = vrot.slane %v7543, 4
    %v7545 = vrot.slane %v7462, 7
    %v7546 = vsel %vm5578, %v7544, %v7545
    %v7547 = vrot.slane %v7545, 4
    %v7548 = vrot.slane %v7463, 7
    %v7549 = vrot.slane %v7548, 4
    %v7550 = vrot.slane %v7464, 7
    %v7551 = vsel %vm5578, %v7549, %v7550
    %v7552 = vrot.slane %v7550, 4
    %v7553 = vrot.slane %v7465, 7
    %v7554 = vrot.slane %v7553, 4
    %v7555 = vrot.slane %v7466, 7
    %v7556 = vsel %vm5578, %v7554, %v7555
    %v7557 = vrot.slane %v7555, 4
    %v7558 = vrot.slane %v7467, 7
    %v7559 = vrot.slane %v7558, 4
    %v7560 = vrot.slane %v7468, 7
    %v7561 = vsel %vm5578, %v7559, %v7560
    %v7562 = vrot.slane %v7560, 4
    %v7563 = vrot.slane %v7469, 7
    %v7564 = vrot.slane %v7563, 4
    %v7565 = vrot.slane %v7470, 7
    %v7566 = vsel %vm5578, %v7564, %v7565
    %v7567 = vrot.slane %v7565, 4
    %v7568 = vrot.slane %v7471, 7
    %v7569 = vrot.slane %v7568, 4
    %v7570 = vrot.slane %v7472, 7
    %v7571 = vsel %vm5578, %v7569, %v7570
    %v7572 = vrot.slane %v7570, 4
    %v7573 = vrot.slane %v7473, 7
    %v7574 = vrot.slane %v7573, 4
    %v7575 = vrot.slane %v7474, 7
    %v7576 = vsel %vm5578, %v7574, %v7575
    %v7577 = vrot.slane %v7575, 4
    %v7578 = vrot.slane %v7475, 7
    %v7579 = vrot.slane %v7578, 4
    %v7580 = vrot.slane %v7476, 7
    %v7581 = vsel %vm5578, %v7579, %v7580
    %v7582 = vrot.slane %v7580, 4
    %v7583 = vrot.slane %v7477, 7
    %v7584 = vrot.slane %v7583, 4
    %v7585 = vrot.slane %v7478, 7
    %v7586 = vsel %vm5578, %v7584, %v7585
    %v7587 = vrot.slane %v7585, 4
    %v7588 = vrot.slane %v7479, 7
    %v7589 = vrot.slane %v7588, 4
    %v7590 = vrot.slane %v7480, 7
    %v7591 = vsel %vm5578, %v7589, %v7590
    %v7592 = vrot.slane %v7590, 4
    %7593 = vrot.lane.b32.xlu0 %v7516, 32
    %v7594 = vpop.permute.xlu0 %7593
    %7595 = vrot.lane.b32.xlu0 %v7517, 32
    %v7596 = vpop.permute.xlu0 %7595
    %7597 = vrot.lane.b32.xlu0 %v7521, 32
    %v7598 = vpop.permute.xlu0 %7597
    %7599 = vrot.lane.b32.xlu0 %v7522, 32
    %v7600 = vpop.permute.xlu0 %7599
    %7601 = vrot.lane.b32.xlu0 %v7526, 32
    %v7602 = vpop.permute.xlu0 %7601
    %7603 = vrot.lane.b32.xlu0 %v7527, 32
    %v7604 = vpop.permute.xlu0 %7603
    %7605 = vrot.lane.b32.xlu0 %v7531, 32
    %v7606 = vpop.permute.xlu0 %7605
    %7607 = vrot.lane.b32.xlu0 %v7532, 32
    %v7608 = vpop.permute.xlu0 %7607
    %7609 = vrot.lane.b32.xlu0 %v7536, 32
    %v7610 = vpop.permute.xlu0 %7609
    %7611 = vrot.lane.b32.xlu0 %v7537, 32
    %v7612 = vpop.permute.xlu0 %7611
    %7613 = vrot.lane.b32.xlu0 %v7541, 32
    %v7614 = vpop.permute.xlu0 %7613
    %7615 = vrot.lane.b32.xlu0 %v7542, 32
    %v7616 = vpop.permute.xlu0 %7615
    %7617 = vrot.lane.b32.xlu0 %v7546, 32
    %v7618 = vpop.permute.xlu0 %7617
    %7619 = vrot.lane.b32.xlu0 %v7547, 32
    %v7620 = vpop.permute.xlu0 %7619
    %7621 = vrot.lane.b32.xlu0 %v7551, 32
    %v7622 = vpop.permute.xlu0 %7621
    %7623 = vrot.lane.b32.xlu0 %v7552, 32
    %v7624 = vpop.permute.xlu0 %7623
    %7625 = vrot.lane.b32.xlu0 %v7556, 32
    %v7626 = vpop.permute.xlu0 %7625
    %7627 = vrot.lane.b32.xlu0 %v7557, 32
    %v7628 = vpop.permute.xlu0 %7627
    %7629 = vrot.lane.b32.xlu0 %v7561, 32
    %v7630 = vpop.permute.xlu0 %7629
    %7631 = vrot.lane.b32.xlu0 %v7562, 32
    %v7632 = vpop.permute.xlu0 %7631
    %7633 = vrot.lane.b32.xlu0 %v7566, 32
    %v7634 = vpop.permute.xlu0 %7633
    %7635 = vrot.lane.b32.xlu0 %v7567, 32
    %v7636 = vpop.permute.xlu0 %7635
    %7637 = vrot.lane.b32.xlu0 %v7571, 32
    %v7638 = vpop.permute.xlu0 %7637
    %7639 = vrot.lane.b32.xlu0 %v7572, 32
    %v7640 = vpop.permute.xlu0 %7639
    %7641 = vrot.lane.b32.xlu0 %v7576, 32
    %v7642 = vpop.permute.xlu0 %7641
    %7643 = vrot.lane.b32.xlu0 %v7577, 32
    %v7644 = vpop.permute.xlu0 %7643
    %7645 = vrot.lane.b32.xlu0 %v7581, 32
    %v7646 = vpop.permute.xlu0 %7645
    %7647 = vrot.lane.b32.xlu0 %v7582, 32
    %v7648 = vpop.permute.xlu0 %7647
    %7649 = vrot.lane.b32.xlu0 %v7586, 32
    %v7650 = vpop.permute.xlu0 %7649
    %7651 = vrot.lane.b32.xlu0 %v7587, 32
    %v7652 = vpop.permute.xlu0 %7651
    %7653 = vrot.lane.b32.xlu0 %v7591, 32
    %v7654 = vpop.permute.xlu0 %7653
    %7655 = vrot.lane.b32.xlu0 %v7592, 32
    %v7656 = vpop.permute.xlu0 %7655
    %7689 = vst.msk [vmem:[%s2784 + $0x4] sm:$0xf] %vm2134, %v7594
    %7690 = vst.msk [vmem:[%s2784 + $0x10] sm:$0x1] %vm6273, %v7596
    %7691 = vst.msk [vmem:[%s2784 + $0x1c] sm:$0xf] %vm2134, %v7598
    %7692 = vst.msk [vmem:[%s2784 + $0x28] sm:$0x1] %vm6273, %v7600
    %7693 = vst.msk [vmem:[%s2784 + $0x34] sm:$0xf] %vm2134, %v7602
    %7694 = vst.msk [vmem:[%s2784 + $0x40] sm:$0x1] %vm6273, %v7604
    %7695 = vst.msk [vmem:[%s2784 + $0x4c] sm:$0xf] %vm2134, %v7606
    %7696 = vst.msk [vmem:[%s2784 + $0x58] sm:$0x1] %vm6273, %v7608
    %7697 = vst.msk [vmem:[%s2784 + $0x64] sm:$0xf] %vm2134, %v7610
    %7698 = vst.msk [vmem:[%s2784 + $0x70] sm:$0x1] %vm6273, %v7612
    %7699 = vst.msk [vmem:[%s2784 + $0x7c] sm:$0xf] %vm2134, %v7614
    %7700 = vst.msk [vmem:[%s2784 + $0x88] sm:$0x1] %vm6273, %v7616
    %7701 = vst.msk [vmem:[%s2784 + $0x94] sm:$0xf] %vm2134, %v7618
    %7702 = vst.msk [vmem:[%s2784 + $0xa0] sm:$0x1] %vm6273, %v7620
    %7703 = vst.msk [vmem:[%s2784 + $0xac] sm:$0xf] %vm2134, %v7622
    %7704 = vst.msk [vmem:[%s2784 + $0xb8] sm:$0x1] %vm6273, %v7624
    %7705 = vst.msk [vmem:[%s2784 + $0xc4] sm:$0xf] %vm2134, %v7626
    %7706 = vst.msk [vmem:[%s2784 + $0xd0] sm:$0x1] %vm6273, %v7628
    %7707 = vst.msk [vmem:[%s2784 + $0xdc] sm:$0xf] %vm2134, %v7630
    %7708 = vst.msk [vmem:[%s2784 + $0xe8] sm:$0x1] %vm6273, %v7632
    %7709 = vst.msk [vmem:[%s2784 + $0xf4] sm:$0xf] %vm2134, %v7634
    %7710 = vst.msk [vmem:[%s2784 + $0x100] sm:$0x1] %vm6273, %v7636
    %7711 = vst.msk [vmem:[%s2784 + $0x10c] sm:$0xf] %vm2134, %v7638
    %7712 = vst.msk [vmem:[%s2784 + $0x118] sm:$0x1] %vm6273, %v7640
    %7713 = vst.msk [vmem:[%s2784 + $0x124] sm:$0xf] %vm2134, %v7642
    %7714 = vst.msk [vmem:[%s2784 + $0x130] sm:$0x1] %vm6273, %v7644
    %7715 = vst.msk [vmem:[%s2784 + $0x13c] sm:$0xf] %vm2134, %v7646
    %7716 = vst.msk [vmem:[%s2784 + $0x148] sm:$0x1] %vm6273, %v7648
    %7717 = vst.msk [vmem:[%s2784 + $0x154] sm:$0xf] %vm2134, %v7650
    %7718 = vst.msk [vmem:[%s2784 + $0x160] sm:$0x1] %vm6273, %v7652
    %7719 = vst.msk [vmem:[%s2784 + $0x16c] sm:$0xf] %vm2134, %v7654
    %7720 = vst.msk [vmem:[%s2784 + $0x178] sm:$0x1] %vm6273, %v7656
    %s7721 = scalar_lea.vmem [#allocation3], 176
    %v7722 = vld [vmem:[%s7721] sm:$0xf]
    %v7723 = vld [vmem:[%s7721 + $0x4] sm:$0x1]
    %v7724 = vld [vmem:[%s7721 + $0x8] sm:$0xf]
    %v7725 = vld [vmem:[%s7721 + $0xc] sm:$0x1]
    %v7726 = vld [vmem:[%s7721 + $0x10] sm:$0xf]
    %v7727 = vld [vmem:[%s7721 + $0x14] sm:$0x1]
    %v7728 = vld [vmem:[%s7721 + $0x18] sm:$0xf]
    %v7729 = vld [vmem:[%s7721 + $0x1c] sm:$0x1]
    %v7730 = vld [vmem:[%s7721 + $0x20] sm:$0xf]
    %v7731 = vld [vmem:[%s7721 + $0x24] sm:$0x1]
    %v7732 = vld [vmem:[%s7721 + $0x28] sm:$0xf]
    %v7733 = vld [vmem:[%s7721 + $0x2c] sm:$0x1]
    %v7734 = vld [vmem:[%s7721 + $0x30] sm:$0xf]
    %v7735 = vld [vmem:[%s7721 + $0x34] sm:$0x1]
    %v7736 = vld [vmem:[%s7721 + $0x38] sm:$0xf]
    %v7737 = vld [vmem:[%s7721 + $0x3c] sm:$0x1]
    %v7738 = vld [vmem:[%s7721 + $0x40] sm:$0xf]
    %v7739 = vld [vmem:[%s7721 + $0x44] sm:$0x1]
    %v7740 = vld [vmem:[%s7721 + $0x48] sm:$0xf]
    %v7741 = vld [vmem:[%s7721 + $0x4c] sm:$0x1]
    %v7762 = vrot.slane %v7722, 5
    %v7763 = vrot.slane %v7762, 4
    %v7764 = vrot.slane %v7723, 5
    %v7765 = vsel %vm5333, %v7763, %v7764
    %v7766 = vrot.slane %v7724, 5
    %v7767 = vrot.slane %v7766, 4
    %v7768 = vrot.slane %v7725, 5
    %v7769 = vsel %vm5333, %v7767, %v7768
    %v7770 = vrot.slane %v7726, 5
    %v7771 = vrot.slane %v7770, 4
    %v7772 = vrot.slane %v7727, 5
    %v7773 = vsel %vm5333, %v7771, %v7772
    %v7774 = vrot.slane %v7728, 5
    %v7775 = vrot.slane %v7774, 4
    %v7776 = vrot.slane %v7729, 5
    %v7777 = vsel %vm5333, %v7775, %v7776
    %v7778 = vrot.slane %v7730, 5
    %v7779 = vrot.slane %v7778, 4
    %v7780 = vrot.slane %v7731, 5
    %v7781 = vsel %vm5333, %v7779, %v7780
    %v7782 = vrot.slane %v7732, 5
    %v7783 = vrot.slane %v7782, 4
    %v7784 = vrot.slane %v7733, 5
    %v7785 = vsel %vm5333, %v7783, %v7784
    %v7786 = vrot.slane %v7734, 5
    %v7787 = vrot.slane %v7786, 4
    %v7788 = vrot.slane %v7735, 5
    %v7789 = vsel %vm5333, %v7787, %v7788
    %v7790 = vrot.slane %v7736, 5
    %v7791 = vrot.slane %v7790, 4
    %v7792 = vrot.slane %v7737, 5
    %v7793 = vsel %vm5333, %v7791, %v7792
    %v7794 = vrot.slane %v7738, 5
    %v7795 = vrot.slane %v7794, 4
    %v7796 = vrot.slane %v7739, 5
    %v7797 = vsel %vm5333, %v7795, %v7796
    %v7798 = vrot.slane %v7740, 5
    %v7799 = vrot.slane %v7798, 4
    %v7800 = vrot.slane %v7741, 5
    %v7801 = vsel %vm5333, %v7799, %v7800
    %7802 = vrot.lane.b32.xlu0 %v7762, 64
    %v7803 = vpop.permute.xlu0 %7802
    %7804 = vrot.lane.b32.xlu0 %v7765, 64
    %v7805 = vpop.permute.xlu0 %7804
    %7806 = vrot.lane.b32.xlu0 %v7766, 64
    %v7807 = vpop.permute.xlu0 %7806
    %7808 = vrot.lane.b32.xlu0 %v7769, 64
    %v7809 = vpop.permute.xlu0 %7808
    %7810 = vrot.lane.b32.xlu0 %v7770, 64
    %v7811 = vpop.permute.xlu0 %7810
    %7812 = vrot.lane.b32.xlu0 %v7773, 64
    %v7813 = vpop.permute.xlu0 %7812
    %7814 = vrot.lane.b32.xlu0 %v7774, 64
    %v7815 = vpop.permute.xlu0 %7814
    %7816 = vrot.lane.b32.xlu0 %v7777, 64
    %v7817 = vpop.permute.xlu0 %7816
    %7818 = vrot.lane.b32.xlu0 %v7778, 64
    %v7819 = vpop.permute.xlu0 %7818
    %7820 = vrot.lane.b32.xlu0 %v7781, 64
    %v7821 = vpop.permute.xlu0 %7820
    %7822 = vrot.lane.b32.xlu0 %v7782, 64
    %v7823 = vpop.permute.xlu0 %7822
    %7824 = vrot.lane.b32.xlu0 %v7785, 64
    %v7825 = vpop.permute.xlu0 %7824
    %7826 = vrot.lane.b32.xlu0 %v7786, 64
    %v7827 = vpop.permute.xlu0 %7826
    %7828 = vrot.lane.b32.xlu0 %v7789, 64
    %v7829 = vpop.permute.xlu0 %7828
    %7830 = vrot.lane.b32.xlu0 %v7790, 64
    %v7831 = vpop.permute.xlu0 %7830
    %7832 = vrot.lane.b32.xlu0 %v7793, 64
    %v7833 = vpop.permute.xlu0 %7832
    %7834 = vrot.lane.b32.xlu0 %v7794, 64
    %v7835 = vpop.permute.xlu0 %7834
    %7836 = vrot.lane.b32.xlu0 %v7797, 64
    %v7837 = vpop.permute.xlu0 %7836
    %7838 = vrot.lane.b32.xlu0 %v7798, 64
    %v7839 = vpop.permute.xlu0 %7838
    %7840 = vrot.lane.b32.xlu0 %v7801, 64
    %v7841 = vpop.permute.xlu0 %7840
    %7862 = vst.msk [vmem:[%s2784 + $0x4] sm:$0x8] %vm6446, %v7803
    %7863 = vst.msk [vmem:[%s2784 + $0x10] sm:$0xf] %vm5689, %v7805
    %7864 = vst.msk [vmem:[%s2784 + $0x1c] sm:$0x8] %vm6446, %v7807
    %7865 = vst.msk [vmem:[%s2784 + $0x28] sm:$0xf] %vm5689, %v7809
    %7866 = vst.msk [vmem:[%s2784 + $0x34] sm:$0x8] %vm6446, %v7811
    %7867 = vst.msk [vmem:[%s2784 + $0x40] sm:$0xf] %vm5689, %v7813
    %7868 = vst.msk [vmem:[%s2784 + $0x4c] sm:$0x8] %vm6446, %v7815
    %7869 = vst.msk [vmem:[%s2784 + $0x58] sm:$0xf] %vm5689, %v7817
    %7870 = vst.msk [vmem:[%s2784 + $0x64] sm:$0x8] %vm6446, %v7819
    %7871 = vst.msk [vmem:[%s2784 + $0x70] sm:$0xf] %vm5689, %v7821
    %7872 = vst.msk [vmem:[%s2784 + $0x7c] sm:$0x8] %vm6446, %v7823
    %7873 = vst.msk [vmem:[%s2784 + $0x88] sm:$0xf] %vm5689, %v7825
    %7874 = vst.msk [vmem:[%s2784 + $0x94] sm:$0x8] %vm6446, %v7827
    %7875 = vst.msk [vmem:[%s2784 + $0xa0] sm:$0xf] %vm5689, %v7829
    %7876 = vst.msk [vmem:[%s2784 + $0xac] sm:$0x8] %vm6446, %v7831
    %7877 = vst.msk [vmem:[%s2784 + $0xb8] sm:$0xf] %vm5689, %v7833
    %7878 = vst.msk [vmem:[%s2784 + $0xc4] sm:$0x8] %vm6446, %v7835
    %7879 = vst.msk [vmem:[%s2784 + $0xd0] sm:$0xf] %vm5689, %v7837
    %7880 = vst.msk [vmem:[%s2784 + $0xdc] sm:$0x8] %vm6446, %v7839
    %7881 = vst.msk [vmem:[%s2784 + $0xe8] sm:$0xf] %vm5689, %v7841
    %v7882 = vld [vmem:[%s7721] sm:$0xf]
    %v7883 = vld [vmem:[%s7721 + $0x4] sm:$0xf]
    %v7884 = vld [vmem:[%s7721 + $0x8] sm:$0xf]
    %v7885 = vld [vmem:[%s7721 + $0xc] sm:$0xf]
    %v7886 = vld [vmem:[%s7721 + $0x10] sm:$0xf]
    %v7887 = vld [vmem:[%s7721 + $0x14] sm:$0xf]
    %v7888 = vld [vmem:[%s7721 + $0x18] sm:$0xf]
    %v7889 = vld [vmem:[%s7721 + $0x1c] sm:$0xf]
    %v7890 = vld [vmem:[%s7721 + $0x20] sm:$0xf]
    %v7891 = vld [vmem:[%s7721 + $0x24] sm:$0xf]
    %v7892 = vld [vmem:[%s7721 + $0x28] sm:$0xf]
    %v7893 = vld [vmem:[%s7721 + $0x2c] sm:$0xf]
    %v7894 = vld [vmem:[%s7721 + $0x30] sm:$0xf]
    %v7895 = vld [vmem:[%s7721 + $0x34] sm:$0xf]
    %v7896 = vld [vmem:[%s7721 + $0x38] sm:$0xf]
    %v7897 = vld [vmem:[%s7721 + $0x3c] sm:$0xf]
    %v7898 = vld [vmem:[%s7721 + $0x40] sm:$0xf]
    %v7899 = vld [vmem:[%s7721 + $0x44] sm:$0xf]
    %v7900 = vld [vmem:[%s7721 + $0x48] sm:$0xf]
    %v7901 = vld [vmem:[%s7721 + $0x4c] sm:$0xf]
    %7922 = vrot.lane.b32.xlu0 %v7882, 96
    %v7923 = vpop.permute.xlu0 %7922
    %7924 = vrot.lane.b32.xlu0 %v7883, 96
    %v7925 = vpop.permute.xlu0 %7924
    %7926 = vrot.lane.b32.xlu0 %v7884, 96
    %v7927 = vpop.permute.xlu0 %7926
    %7928 = vrot.lane.b32.xlu0 %v7885, 96
    %v7929 = vpop.permute.xlu0 %7928
    %7930 = vrot.lane.b32.xlu0 %v7886, 96
    %v7931 = vpop.permute.xlu0 %7930
    %7932 = vrot.lane.b32.xlu0 %v7887, 96
    %v7933 = vpop.permute.xlu0 %7932
    %7934 = vrot.lane.b32.xlu0 %v7888, 96
    %v7935 = vpop.permute.xlu0 %7934
    %7936 = vrot.lane.b32.xlu0 %v7889, 96
    %v7937 = vpop.permute.xlu0 %7936
    %7938 = vrot.lane.b32.xlu0 %v7890, 96
    %v7939 = vpop.permute.xlu0 %7938
    %7940 = vrot.lane.b32.xlu0 %v7891, 96
    %v7941 = vpop.permute.xlu0 %7940
    %7942 = vrot.lane.b32.xlu0 %v7892, 96
    %v7943 = vpop.permute.xlu0 %7942
    %7944 = vrot.lane.b32.xlu0 %v7893, 96
    %v7945 = vpop.permute.xlu0 %7944
    %7946 = vrot.lane.b32.xlu0 %v7894, 96
    %v7947 = vpop.permute.xlu0 %7946
    %7948 = vrot.lane.b32.xlu0 %v7895, 96
    %v7949 = vpop.permute.xlu0 %7948
    %7950 = vrot.lane.b32.xlu0 %v7896, 96
    %v7951 = vpop.permute.xlu0 %7950
    %7952 = vrot.lane.b32.xlu0 %v7897, 96
    %v7953 = vpop.permute.xlu0 %7952
    %7954 = vrot.lane.b32.xlu0 %v7898, 96
    %v7955 = vpop.permute.xlu0 %7954
    %7956 = vrot.lane.b32.xlu0 %v7899, 96
    %v7957 = vpop.permute.xlu0 %7956
    %7958 = vrot.lane.b32.xlu0 %v7900, 96
    %v7959 = vpop.permute.xlu0 %7958
    %7960 = vrot.lane.b32.xlu0 %v7901, 96
    %v7961 = vpop.permute.xlu0 %7960
    %7982 = vst.msk [vmem:[%s2784 + $0x4] sm:$0xf] %vm2552, %v7923
    %7983 = vst.msk [vmem:[%s2784 + $0x10] sm:$0xf] %vm2552, %v7925
    %7984 = vst.msk [vmem:[%s2784 + $0x1c] sm:$0xf] %vm2552, %v7927
    %7985 = vst.msk [vmem:[%s2784 + $0x28] sm:$0xf] %vm2552, %v7929
    %7986 = vst.msk [vmem:[%s2784 + $0x34] sm:$0xf] %vm2552, %v7931
    %7987 = vst.msk [vmem:[%s2784 + $0x40] sm:$0xf] %vm2552, %v7933
    %7988 = vst.msk [vmem:[%s2784 + $0x4c] sm:$0xf] %vm2552, %v7935
    %7989 = vst.msk [vmem:[%s2784 + $0x58] sm:$0xf] %vm2552, %v7937
    %7990 = vst.msk [vmem:[%s2784 + $0x64] sm:$0xf] %vm2552, %v7939
    %7991 = vst.msk [vmem:[%s2784 + $0x70] sm:$0xf] %vm2552, %v7941
    %7992 = vst.msk [vmem:[%s2784 + $0x7c] sm:$0xf] %vm2552, %v7943
    %7993 = vst.msk [vmem:[%s2784 + $0x88] sm:$0xf] %vm2552, %v7945
    %7994 = vst.msk [vmem:[%s2784 + $0x94] sm:$0xf] %vm2552, %v7947
    %7995 = vst.msk [vmem:[%s2784 + $0xa0] sm:$0xf] %vm2552, %v7949
    %7996 = vst.msk [vmem:[%s2784 + $0xac] sm:$0xf] %vm2552, %v7951
    %7997 = vst.msk [vmem:[%s2784 + $0xb8] sm:$0xf] %vm2552, %v7953
    %7998 = vst.msk [vmem:[%s2784 + $0xc4] sm:$0xf] %vm2552, %v7955
    %7999 = vst.msk [vmem:[%s2784 + $0xd0] sm:$0xf] %vm2552, %v7957
    %8000 = vst.msk [vmem:[%s2784 + $0xdc] sm:$0xf] %vm2552, %v7959
    %8001 = vst.msk [vmem:[%s2784 + $0xe8] sm:$0xf] %vm2552, %v7961
    %v8002 = vld [vmem:[%s7721] sm:$0x8]
    %v8003 = vld [vmem:[%s7721 + $0x4] sm:$0xf]
    %v8004 = vld [vmem:[%s7721 + $0x8] sm:$0x8]
    %v8005 = vld [vmem:[%s7721 + $0xc] sm:$0xf]
    %v8006 = vld [vmem:[%s7721 + $0x10] sm:$0x8]
    %v8007 = vld [vmem:[%s7721 + $0x14] sm:$0xf]
    %v8008 = vld [vmem:[%s7721 + $0x18] sm:$0x8]
    %v8009 = vld [vmem:[%s7721 + $0x1c] sm:$0xf]
    %v8010 = vld [vmem:[%s7721 + $0x20] sm:$0x8]
    %v8011 = vld [vmem:[%s7721 + $0x24] sm:$0xf]
    %v8012 = vld [vmem:[%s7721 + $0x28] sm:$0x8]
    %v8013 = vld [vmem:[%s7721 + $0x2c] sm:$0xf]
    %v8014 = vld [vmem:[%s7721 + $0x30] sm:$0x8]
    %v8015 = vld [vmem:[%s7721 + $0x34] sm:$0xf]
    %v8016 = vld [vmem:[%s7721 + $0x38] sm:$0x8]
    %v8017 = vld [vmem:[%s7721 + $0x3c] sm:$0xf]
    %v8018 = vld [vmem:[%s7721 + $0x40] sm:$0x8]
    %v8019 = vld [vmem:[%s7721 + $0x44] sm:$0xf]
    %v8020 = vld [vmem:[%s7721 + $0x48] sm:$0x8]
    %v8021 = vld [vmem:[%s7721 + $0x4c] sm:$0xf]
    %v8042 = vrot.slane %v8002, 7
    %v8043 = vrot.slane %v8042, 4
    %v8044 = vrot.slane %v8003, 7
    %v8045 = vsel %vm5578, %v8043, %v8044
    %v8046 = vrot.slane %v8044, 4
    %v8047 = vrot.slane %v8004, 7
    %v8048 = vrot.slane %v8047, 4
    %v8049 = vrot.slane %v8005, 7
    %v8050 = vsel %vm5578, %v8048, %v8049
    %v8051 = vrot.slane %v8049, 4
    %v8052 = vrot.slane %v8006, 7
    %v8053 = vrot.slane %v8052, 4
    %v8054 = vrot.slane %v8007, 7
    %v8055 = vsel %vm5578, %v8053, %v8054
    %v8056 = vrot.slane %v8054, 4
    %v8057 = vrot.slane %v8008, 7
    %v8058 = vrot.slane %v8057, 4
    %v8059 = vrot.slane %v8009, 7
    %v8060 = vsel %vm5578, %v8058, %v8059
    %v8061 = vrot.slane %v8059, 4
    %v8062 = vrot.slane %v8010, 7
    %v8063 = vrot.slane %v8062, 4
    %v8064 = vrot.slane %v8011, 7
    %v8065 = vsel %vm5578, %v8063, %v8064
    %v8066 = vrot.slane %v8064, 4
    %v8067 = vrot.slane %v8012, 7
    %v8068 = vrot.slane %v8067, 4
    %v8069 = vrot.slane %v8013, 7
    %v8070 = vsel %vm5578, %v8068, %v8069
    %v8071 = vrot.slane %v8069, 4
    %v8072 = vrot.slane %v8014, 7
    %v8073 = vrot.slane %v8072, 4
    %v8074 = vrot.slane %v8015, 7
    %v8075 = vsel %vm5578, %v8073, %v8074
    %v8076 = vrot.slane %v8074, 4
    %v8077 = vrot.slane %v8016, 7
    %v8078 = vrot.slane %v8077, 4
    %v8079 = vrot.slane %v8017, 7
    %v8080 = vsel %vm5578, %v8078, %v8079
    %v8081 = vrot.slane %v8079, 4
    %v8082 = vrot.slane %v8018, 7
    %v8083 = vrot.slane %v8082, 4
    %v8084 = vrot.slane %v8019, 7
    %v8085 = vsel %vm5578, %v8083, %v8084
    %v8086 = vrot.slane %v8084, 4
    %v8087 = vrot.slane %v8020, 7
    %v8088 = vrot.slane %v8087, 4
    %v8089 = vrot.slane %v8021, 7
    %v8090 = vsel %vm5578, %v8088, %v8089
    %v8091 = vrot.slane %v8089, 4
    %8112 = vst.msk [vmem:[%s2784 + $0x8] sm:$0xf] %vm1944, %v8045
    %8113 = vst.msk [vmem:[%s2784 + $0x14] sm:$0x1] %vm6698, %v8046
    %8114 = vst.msk [vmem:[%s2784 + $0x20] sm:$0xf] %vm1944, %v8050
    %8115 = vst.msk [vmem:[%s2784 + $0x2c] sm:$0x1] %vm6698, %v8051
    %8116 = vst.msk [vmem:[%s2784 + $0x38] sm:$0xf] %vm1944, %v8055
    %8117 = vst.msk [vmem:[%s2784 + $0x44] sm:$0x1] %vm6698, %v8056
    %8118 = vst.msk [vmem:[%s2784 + $0x50] sm:$0xf] %vm1944, %v8060
    %8119 = vst.msk [vmem:[%s2784 + $0x5c] sm:$0x1] %vm6698, %v8061
    %8120 = vst.msk [vmem:[%s2784 + $0x68] sm:$0xf] %vm1944, %v8065
    %8121 = vst.msk [vmem:[%s2784 + $0x74] sm:$0x1] %vm6698, %v8066
    %8122 = vst.msk [vmem:[%s2784 + $0x80] sm:$0xf] %vm1944, %v8070
    %8123 = vst.msk [vmem:[%s2784 + $0x8c] sm:$0x1] %vm6698, %v8071
    %8124 = vst.msk [vmem:[%s2784 + $0x98] sm:$0xf] %vm1944, %v8075
    %8125 = vst.msk [vmem:[%s2784 + $0xa4] sm:$0x1] %vm6698, %v8076
    %8126 = vst.msk [vmem:[%s2784 + $0xb0] sm:$0xf] %vm1944, %v8080
    %8127 = vst.msk [vmem:[%s2784 + $0xbc] sm:$0x1] %vm6698, %v8081
    %8128 = vst.msk [vmem:[%s2784 + $0xc8] sm:$0xf] %vm1944, %v8085
    %8129 = vst.msk [vmem:[%s2784 + $0xd4] sm:$0x1] %vm6698, %v8086
    %8130 = vst.msk [vmem:[%s2784 + $0xe0] sm:$0xf] %vm1944, %v8090
    %8131 = vst.msk [vmem:[%s2784 + $0xec] sm:$0x1] %vm6698, %v8091
    %v8132 = vld [vmem:[#allocation2] sm:$0xff]
    %v8133 = vld [vmem:[#allocation2 + $0x8] sm:$0xf]
    %v8134 = vld [vmem:[#allocation2 + $0xc] sm:$0xff]
    %v8135 = vld [vmem:[#allocation2 + $0x14] sm:$0xf]
    %v8136 = vld [vmem:[#allocation2 + $0x18] sm:$0xff]
    %v8137 = vld [vmem:[#allocation2 + $0x20] sm:$0xf]
    %v8138 = vld [vmem:[#allocation2 + $0x24] sm:$0xff]
    %v8139 = vld [vmem:[#allocation2 + $0x2c] sm:$0xf]
    %v8140 = vld [vmem:[#allocation2 + $0x30] sm:$0xff]
    %v8141 = vld [vmem:[#allocation2 + $0x38] sm:$0xf]
    %v8142 = vld [vmem:[#allocation2 + $0x3c] sm:$0xff]
    %v8143 = vld [vmem:[#allocation2 + $0x44] sm:$0xf]
    %v8144 = vld [vmem:[#allocation2 + $0x48] sm:$0xff]
    %v8145 = vld [vmem:[#allocation2 + $0x50] sm:$0xf]
    %v8146 = vld [vmem:[#allocation2 + $0x54] sm:$0xff]
    %v8147 = vld [vmem:[#allocation2 + $0x5c] sm:$0xf]
    %v8148 = vld [vmem:[#allocation2 + $0x60] sm:$0xff]
    %v8149 = vld [vmem:[#allocation2 + $0x68] sm:$0xf]
    %v8150 = vld [vmem:[#allocation2 + $0x6c] sm:$0xff]
    %v8151 = vld [vmem:[#allocation2 + $0x74] sm:$0xf]
    %v8152 = vld [vmem:[#allocation2 + $0x78] sm:$0xff]
    %v8153 = vld [vmem:[#allocation2 + $0x80] sm:$0xf]
    %v8154 = vld [vmem:[#allocation2 + $0x84] sm:$0xff]
    %v8155 = vld [vmem:[#allocation2 + $0x8c] sm:$0xf]
    %v8156 = vld [vmem:[#allocation2 + $0x90] sm:$0xff]
    %v8157 = vld [vmem:[#allocation2 + $0x98] sm:$0xf]
    %v8158 = vld [vmem:[#allocation2 + $0x9c] sm:$0xff]
    %v8159 = vld [vmem:[#allocation2 + $0xa4] sm:$0xf]
    %v8160 = vld [vmem:[#allocation2 + $0xa8] sm:$0xff]
    %v8161 = vld [vmem:[#allocation2 + $0xb0] sm:$0xf]
    %v8162 = vld [vmem:[#allocation2 + $0xb4] sm:$0xff]
    %v8163 = vld [vmem:[#allocation2 + $0xbc] sm:$0xf]
    %v8164 = vld [vmem:[#allocation2 + $0xc0] sm:$0xff]
    %v8165 = vld [vmem:[#allocation2 + $0xc8] sm:$0xf]
    %v8166 = vld [vmem:[#allocation2 + $0xcc] sm:$0xff]
    %v8167 = vld [vmem:[#allocation2 + $0xd4] sm:$0xf]
    %v8168 = vld [vmem:[#allocation2 + $0xd8] sm:$0xff]
    %v8169 = vld [vmem:[#allocation2 + $0xe0] sm:$0xf]
    %v8170 = vld [vmem:[#allocation2 + $0xe4] sm:$0xff]
    %v8171 = vld [vmem:[#allocation2 + $0xec] sm:$0xf]
    %v8172 = vld [vmem:[#allocation2 + $0xf0] sm:$0xff]
    %v8173 = vld [vmem:[#allocation2 + $0xf8] sm:$0xf]
    %v8174 = vld [vmem:[#allocation2 + $0xfc] sm:$0xff]
    %v8175 = vld [vmem:[#allocation2 + $0x104] sm:$0xf]
    %v8176 = vld [vmem:[#allocation2 + $0x108] sm:$0xff]
    %v8177 = vld [vmem:[#allocation2 + $0x110] sm:$0xf]
    %v8178 = vld [vmem:[#allocation2 + $0x114] sm:$0xff]
    %v8179 = vld [vmem:[#allocation2 + $0x11c] sm:$0xf]
    %v8180 = vld [vmem:[#allocation2 + $0x120] sm:$0xff]
    %v8181 = vld [vmem:[#allocation2 + $0x128] sm:$0xf]
    %v8182 = vld [vmem:[#allocation2 + $0x12c] sm:$0xff]
    %v8183 = vld [vmem:[#allocation2 + $0x134] sm:$0xf]
    %v8184 = vld [vmem:[#allocation2 + $0x138] sm:$0xff]
    %v8185 = vld [vmem:[#allocation2 + $0x140] sm:$0xf]
    %v8186 = vld [vmem:[#allocation2 + $0x144] sm:$0xff]
    %v8187 = vld [vmem:[#allocation2 + $0x14c] sm:$0xf]
    %v8188 = vld [vmem:[#allocation2 + $0x150] sm:$0xff]
    %v8189 = vld [vmem:[#allocation2 + $0x158] sm:$0xf]
    %v8190 = vld [vmem:[#allocation2 + $0x15c] sm:$0xff]
    %v8191 = vld [vmem:[#allocation2 + $0x164] sm:$0xf]
    %v8192 = vld [vmem:[#allocation2 + $0x168] sm:$0xff]
    %v8193 = vld [vmem:[#allocation2 + $0x170] sm:$0xf]
    %v8194 = vld [vmem:[#allocation2 + $0x174] sm:$0xff]
    %v8195 = vld [vmem:[#allocation2 + $0x17c] sm:$0xf]
    %v8196 = vld [vmem:[#allocation2 + $0x180] sm:$0xff]
    %v8197 = vld [vmem:[#allocation2 + $0x188] sm:$0xf]
    %v8198 = vld [vmem:[#allocation2 + $0x18c] sm:$0xff]
    %v8199 = vld [vmem:[#allocation2 + $0x194] sm:$0xf]
    %v8200 = vld [vmem:[#allocation2 + $0x198] sm:$0xff]
    %v8201 = vld [vmem:[#allocation2 + $0x1a0] sm:$0xf]
    %v8202 = vld [vmem:[#allocation2 + $0x1a4] sm:$0xff]
    %v8203 = vld [vmem:[#allocation2 + $0x1ac] sm:$0xf]
    %v8204 = vld [vmem:[#allocation2 + $0x1b0] sm:$0xff]
    %v8205 = vld [vmem:[#allocation2 + $0x1b8] sm:$0xf]
    %v8206 = vld [vmem:[#allocation2 + $0x1bc] sm:$0xff]
    %v8207 = vld [vmem:[#allocation2 + $0x1c4] sm:$0xf]
    %v8208 = vld [vmem:[#allocation2 + $0x1c8] sm:$0xff]
    %v8209 = vld [vmem:[#allocation2 + $0x1d0] sm:$0xf]
    %v8210 = vld [vmem:[#allocation2 + $0x1d4] sm:$0xff]
    %v8211 = vld [vmem:[#allocation2 + $0x1dc] sm:$0xf]
    %v8212 = vld [vmem:[#allocation2 + $0x1e0] sm:$0xff]
    %v8213 = vld [vmem:[#allocation2 + $0x1e8] sm:$0xf]
    %v8214 = vld [vmem:[#allocation2 + $0x1ec] sm:$0xff]
    %v8215 = vld [vmem:[#allocation2 + $0x1f4] sm:$0xf]
    %v8216 = vld [vmem:[#allocation2 + $0x1f8] sm:$0xff]
    %v8217 = vld [vmem:[#allocation2 + $0x200] sm:$0xf]
    %v8218 = vld [vmem:[#allocation2 + $0x204] sm:$0xff]
    %v8219 = vld [vmem:[#allocation2 + $0x20c] sm:$0xf]
    %v8220 = vld [vmem:[#allocation2 + $0x210] sm:$0xff]
    %v8221 = vld [vmem:[#allocation2 + $0x218] sm:$0xf]
    %v8222 = vld [vmem:[#allocation2 + $0x21c] sm:$0xff]
    %v8223 = vld [vmem:[#allocation2 + $0x224] sm:$0xf]
    %v8224 = vld [vmem:[#allocation2 + $0x228] sm:$0xff]
    %v8225 = vld [vmem:[#allocation2 + $0x230] sm:$0xf]
    %v8226 = vld [vmem:[#allocation2 + $0x234] sm:$0xff]
    %v8227 = vld [vmem:[#allocation2 + $0x23c] sm:$0xf]
    %v8228 = vld [vmem:[#allocation2 + $0x240] sm:$0xff]
    %v8229 = vld [vmem:[#allocation2 + $0x248] sm:$0xf]
    %v8230 = vld [vmem:[#allocation2 + $0x24c] sm:$0xff]
    %v8231 = vld [vmem:[#allocation2 + $0x254] sm:$0xf]
    %v8232 = vld [vmem:[#allocation2 + $0x258] sm:$0xff]
    %v8233 = vld [vmem:[#allocation2 + $0x260] sm:$0xf]
    %v8234 = vld [vmem:[#allocation2 + $0x264] sm:$0xff]
    %v8235 = vld [vmem:[#allocation2 + $0x26c] sm:$0xf]
    %v8236 = vld [vmem:[#allocation2 + $0x270] sm:$0xff]
    %v8237 = vld [vmem:[#allocation2 + $0x278] sm:$0xf]
    %v8238 = vld [vmem:[#allocation2 + $0x27c] sm:$0xff]
    %v8239 = vld [vmem:[#allocation2 + $0x284] sm:$0xf]
    %v8240 = vld [vmem:[#allocation2 + $0x288] sm:$0xff]
    %v8241 = vld [vmem:[#allocation2 + $0x290] sm:$0xf]
    %v8242 = vld [vmem:[#allocation2 + $0x294] sm:$0xff]
    %v8243 = vld [vmem:[#allocation2 + $0x29c] sm:$0xf]
    %v8244 = vld [vmem:[#allocation2 + $0x2a0] sm:$0xff]
    %v8245 = vld [vmem:[#allocation2 + $0x2a8] sm:$0xf]
    %v8246 = vld [vmem:[#allocation2 + $0x2ac] sm:$0xff]
    %v8247 = vld [vmem:[#allocation2 + $0x2b4] sm:$0xf]
    %v8248 = vld [vmem:[#allocation2 + $0x2b8] sm:$0xff]
    %v8249 = vld [vmem:[#allocation2 + $0x2c0] sm:$0xf]
    %v8250 = vld [vmem:[#allocation2 + $0x2c4] sm:$0xff]
    %v8251 = vld [vmem:[#allocation2 + $0x2cc] sm:$0xf]
    %v8252 = vld [vmem:[#allocation2 + $0x2d0] sm:$0xff]
    %v8253 = vld [vmem:[#allocation2 + $0x2d8] sm:$0xf]
    %v8254 = vld [vmem:[#allocation2 + $0x2dc] sm:$0xff]
    %v8255 = vld [vmem:[#allocation2 + $0x2e4] sm:$0xf]
    %v8256 = vld [vmem:[#allocation2 + $0x2e8] sm:$0xff]
    %v8257 = vld [vmem:[#allocation2 + $0x2f0] sm:$0xf]
    %v8258 = vld [vmem:[#allocation2 + $0x2f4] sm:$0xff]
    %v8259 = vld [vmem:[#allocation2 + $0x2fc] sm:$0xf]
    %v8260 = vld [vmem:[#allocation9] sm:$0xff]
    %v8261 = vld [vmem:[#allocation9 + $0x8] sm:$0xff]
    %v8262 = vld [vmem:[#allocation9 + $0x10] sm:$0xff]
    %v8263 = vld [vmem:[#allocation9 + $0x18] sm:$0xff]
    %v8264 = vld [vmem:[#allocation9 + $0x20] sm:$0xff]
    %v8265 = vld [vmem:[#allocation9 + $0x28] sm:$0xff]
    %v8266 = vld [vmem:[#allocation9 + $0x30] sm:$0xff]
    %v8267 = vld [vmem:[#allocation9 + $0x38] sm:$0xff]
    %v8268 = vld [vmem:[#allocation9 + $0x40] sm:$0xff]
    %v8269 = vld [vmem:[#allocation9 + $0x48] sm:$0xff]
    %v8270 = vld [vmem:[#allocation9 + $0x50] sm:$0xff]
    %v8271 = vld [vmem:[#allocation9 + $0x58] sm:$0xff]
    %v8272 = vld [vmem:[#allocation9 + $0x60] sm:$0xff]
    %v8273 = vld [vmem:[#allocation9 + $0x68] sm:$0xff]
    %v8274 = vld [vmem:[#allocation9 + $0x70] sm:$0xff]
    %v8275 = vld [vmem:[#allocation9 + $0x78] sm:$0xff]
    %v8276 = vld [vmem:[#allocation9 + $0x80] sm:$0xff]
    %v8277 = vld [vmem:[#allocation9 + $0x88] sm:$0xff]
    %v8278 = vld [vmem:[#allocation9 + $0x90] sm:$0xff]
    %v8279 = vld [vmem:[#allocation9 + $0x98] sm:$0xff]
    %v8280 = vld [vmem:[#allocation9 + $0xa0] sm:$0xff]
    %v8281 = vld [vmem:[#allocation9 + $0xa8] sm:$0xff]
    %v8282 = vld [vmem:[#allocation9 + $0xb0] sm:$0xff]
    %v8283 = vld [vmem:[#allocation9 + $0xb8] sm:$0xff]
    %v8284 = vld [vmem:[#allocation9 + $0xc0] sm:$0xff]
    %v8285 = vld [vmem:[#allocation9 + $0xc8] sm:$0xff]
    %v8286 = vld [vmem:[#allocation9 + $0xd0] sm:$0xff]
    %v8287 = vld [vmem:[#allocation9 + $0xd8] sm:$0xff]
    %v8288 = vld [vmem:[#allocation9 + $0xe0] sm:$0xff]
    %v8289 = vld [vmem:[#allocation9 + $0xe8] sm:$0xff]
    %v8290 = vld [vmem:[#allocation9 + $0xf0] sm:$0xff]
    %v8291 = vld [vmem:[#allocation9 + $0xf8] sm:$0xff]
    %v8292 = vld [vmem:[#allocation9 + $0x100] sm:$0xff]
    %v8293 = vld [vmem:[#allocation9 + $0x108] sm:$0xff]
    %v8294 = vld [vmem:[#allocation9 + $0x110] sm:$0xff]
    %v8295 = vld [vmem:[#allocation9 + $0x118] sm:$0xff]
    %s8296 = scalar_lea.vmem [#allocation12], 1
    %v8297 = vld [vmem:[%s8296] ss:$8 sm:$0x3]
    %v8299 = vperm.slane %v8297, 0
    %v8300 = vperm.slane %v8297, 1
    %v8431 = vunpack.c.l.b16 %v8132
    %v8432 = vunpack.c.h.b16 %v8132
    %v8433 = vunpack.c.l.b16 %v8133
    %v8434 = vunpack.c.l.b16 %v8134
    %v8435 = vunpack.c.h.b16 %v8134
    %v8436 = vunpack.c.l.b16 %v8135
    %v8437 = vunpack.c.l.b16 %v8136
    %v8438 = vunpack.c.h.b16 %v8136
    %v8439 = vunpack.c.l.b16 %v8137
    %v8440 = vunpack.c.l.b16 %v8138
    %v8441 = vunpack.c.h.b16 %v8138
    %v8442 = vunpack.c.l.b16 %v8139
    %v8443 = vunpack.c.l.b16 %v8140
    %v8444 = vunpack.c.h.b16 %v8140
    %v8445 = vunpack.c.l.b16 %v8141
    %v8446 = vunpack.c.l.b16 %v8142
    %v8447 = vunpack.c.h.b16 %v8142
    %v8448 = vunpack.c.l.b16 %v8143
    %v8449 = vunpack.c.l.b16 %v8144
    %v8450 = vunpack.c.h.b16 %v8144
    %v8451 = vunpack.c.l.b16 %v8145
    %v8452 = vunpack.c.l.b16 %v8146
    %v8453 = vunpack.c.h.b16 %v8146
    %v8454 = vunpack.c.l.b16 %v8147
    %v8455 = vunpack.c.l.b16 %v8148
    %v8456 = vunpack.c.h.b16 %v8148
    %v8457 = vunpack.c.l.b16 %v8149
    %v8458 = vunpack.c.l.b16 %v8150
    %v8459 = vunpack.c.h.b16 %v8150
    %v8460 = vunpack.c.l.b16 %v8151
    %v8461 = vunpack.c.l.b16 %v8152
    %v8462 = vunpack.c.h.b16 %v8152
    %v8463 = vunpack.c.l.b16 %v8153
    %v8464 = vunpack.c.l.b16 %v8154
    %v8465 = vunpack.c.h.b16 %v8154
    %v8466 = vunpack.c.l.b16 %v8155
    %v8467 = vunpack.c.l.b16 %v8156
    %v8468 = vunpack.c.h.b16 %v8156
    %v8469 = vunpack.c.l.b16 %v8157
    %v8470 = vunpack.c.l.b16 %v8158
    %v8471 = vunpack.c.h.b16 %v8158
    %v8472 = vunpack.c.l.b16 %v8159
    %v8473 = vunpack.c.l.b16 %v8160
    %v8474 = vunpack.c.h.b16 %v8160
    %v8475 = vunpack.c.l.b16 %v8161
    %v8476 = vunpack.c.l.b16 %v8162
    %v8477 = vunpack.c.h.b16 %v8162
    %v8478 = vunpack.c.l.b16 %v8163
    %v8479 = vunpack.c.l.b16 %v8164
    %v8480 = vunpack.c.h.b16 %v8164
    %v8481 = vunpack.c.l.b16 %v8165
    %v8482 = vunpack.c.l.b16 %v8166
    %v8483 = vunpack.c.h.b16 %v8166
    %v8484 = vunpack.c.l.b16 %v8167
    %v8485 = vunpack.c.l.b16 %v8168
    %v8486 = vunpack.c.h.b16 %v8168
    %v8487 = vunpack.c.l.b16 %v8169
    %v8488 = vunpack.c.l.b16 %v8170
    %v8489 = vunpack.c.h.b16 %v8170
    %v8490 = vunpack.c.l.b16 %v8171
    %v8491 = vunpack.c.l.b16 %v8172
    %v8492 = vunpack.c.h.b16 %v8172
    %v8493 = vunpack.c.l.b16 %v8173
    %v8494 = vunpack.c.l.b16 %v8174
    %v8495 = vunpack.c.h.b16 %v8174
    %v8496 = vunpack.c.l.b16 %v8175
    %v8497 = vunpack.c.l.b16 %v8176
    %v8498 = vunpack.c.h.b16 %v8176
    %v8499 = vunpack.c.l.b16 %v8177
    %v8500 = vunpack.c.l.b16 %v8178
    %v8501 = vunpack.c.h.b16 %v8178
    %v8502 = vunpack.c.l.b16 %v8179
    %v8503 = vunpack.c.l.b16 %v8180
    %v8504 = vunpack.c.h.b16 %v8180
    %v8505 = vunpack.c.l.b16 %v8181
    %v8506 = vunpack.c.l.b16 %v8182
    %v8507 = vunpack.c.h.b16 %v8182
    %v8508 = vunpack.c.l.b16 %v8183
    %v8509 = vunpack.c.l.b16 %v8184
    %v8510 = vunpack.c.h.b16 %v8184
    %v8511 = vunpack.c.l.b16 %v8185
    %v8512 = vunpack.c.l.b16 %v8186
    %v8513 = vunpack.c.h.b16 %v8186
    %v8514 = vunpack.c.l.b16 %v8187
    %v8515 = vunpack.c.l.b16 %v8188
    %v8516 = vunpack.c.h.b16 %v8188
    %v8517 = vunpack.c.l.b16 %v8189
    %v8518 = vunpack.c.l.b16 %v8190
    %v8519 = vunpack.c.h.b16 %v8190
    %v8520 = vunpack.c.l.b16 %v8191
    %v8521 = vunpack.c.l.b16 %v8192
    %v8522 = vunpack.c.h.b16 %v8192
    %v8523 = vunpack.c.l.b16 %v8193
    %v8524 = vunpack.c.l.b16 %v8194
    %v8525 = vunpack.c.h.b16 %v8194
    %v8526 = vunpack.c.l.b16 %v8195
    %v8527 = vunpack.c.l.b16 %v8196
    %v8528 = vunpack.c.h.b16 %v8196
    %v8529 = vunpack.c.l.b16 %v8197
    %v8530 = vunpack.c.l.b16 %v8198
    %v8531 = vunpack.c.h.b16 %v8198
    %v8532 = vunpack.c.l.b16 %v8199
    %v8533 = vunpack.c.l.b16 %v8200
    %v8534 = vunpack.c.h.b16 %v8200
    %v8535 = vunpack.c.l.b16 %v8201
    %v8536 = vunpack.c.l.b16 %v8202
    %v8537 = vunpack.c.h.b16 %v8202
    %v8538 = vunpack.c.l.b16 %v8203
    %v8539 = vunpack.c.l.b16 %v8204
    %v8540 = vunpack.c.h.b16 %v8204
    %v8541 = vunpack.c.l.b16 %v8205
    %v8542 = vunpack.c.l.b16 %v8206
    %v8543 = vunpack.c.h.b16 %v8206
    %v8544 = vunpack.c.l.b16 %v8207
    %v8545 = vunpack.c.l.b16 %v8208
    %v8546 = vunpack.c.h.b16 %v8208
    %v8547 = vunpack.c.l.b16 %v8209
    %v8548 = vunpack.c.l.b16 %v8210
    %v8549 = vunpack.c.h.b16 %v8210
    %v8550 = vunpack.c.l.b16 %v8211
    %v8551 = vunpack.c.l.b16 %v8212
    %v8552 = vunpack.c.h.b16 %v8212
    %v8553 = vunpack.c.l.b16 %v8213
    %v8554 = vunpack.c.l.b16 %v8214
    %v8555 = vunpack.c.h.b16 %v8214
    %v8556 = vunpack.c.l.b16 %v8215
    %v8557 = vunpack.c.l.b16 %v8216
    %v8558 = vunpack.c.h.b16 %v8216
    %v8559 = vunpack.c.l.b16 %v8217
    %v8560 = vunpack.c.l.b16 %v8218
    %v8561 = vunpack.c.h.b16 %v8218
    %v8562 = vunpack.c.l.b16 %v8219
    %v8563 = vunpack.c.l.b16 %v8220
    %v8564 = vunpack.c.h.b16 %v8220
    %v8565 = vunpack.c.l.b16 %v8221
    %v8566 = vunpack.c.l.b16 %v8222
    %v8567 = vunpack.c.h.b16 %v8222
    %v8568 = vunpack.c.l.b16 %v8223
    %v8569 = vunpack.c.l.b16 %v8224
    %v8570 = vunpack.c.h.b16 %v8224
    %v8571 = vunpack.c.l.b16 %v8225
    %v8572 = vunpack.c.l.b16 %v8226
    %v8573 = vunpack.c.h.b16 %v8226
    %v8574 = vunpack.c.l.b16 %v8227
    %v8575 = vunpack.c.l.b16 %v8228
    %v8576 = vunpack.c.h.b16 %v8228
    %v8577 = vunpack.c.l.b16 %v8229
    %v8578 = vunpack.c.l.b16 %v8230
    %v8579 = vunpack.c.h.b16 %v8230
    %v8580 = vunpack.c.l.b16 %v8231
    %v8581 = vunpack.c.l.b16 %v8232
    %v8582 = vunpack.c.h.b16 %v8232
    %v8583 = vunpack.c.l.b16 %v8233
    %v8584 = vunpack.c.l.b16 %v8234
    %v8585 = vunpack.c.h.b16 %v8234
    %v8586 = vunpack.c.l.b16 %v8235
    %v8587 = vunpack.c.l.b16 %v8236
    %v8588 = vunpack.c.h.b16 %v8236
    %v8589 = vunpack.c.l.b16 %v8237
    %v8590 = vunpack.c.l.b16 %v8238
    %v8591 = vunpack.c.h.b16 %v8238
    %v8592 = vunpack.c.l.b16 %v8239
    %v8593 = vunpack.c.l.b16 %v8240
    %v8594 = vunpack.c.h.b16 %v8240
    %v8595 = vunpack.c.l.b16 %v8241
    %v8596 = vunpack.c.l.b16 %v8242
    %v8597 = vunpack.c.h.b16 %v8242
    %v8598 = vunpack.c.l.b16 %v8243
    %v8599 = vunpack.c.l.b16 %v8244
    %v8600 = vunpack.c.h.b16 %v8244
    %v8601 = vunpack.c.l.b16 %v8245
    %v8602 = vunpack.c.l.b16 %v8246
    %v8603 = vunpack.c.h.b16 %v8246
    %v8604 = vunpack.c.l.b16 %v8247
    %v8605 = vunpack.c.l.b16 %v8248
    %v8606 = vunpack.c.h.b16 %v8248
    %v8607 = vunpack.c.l.b16 %v8249
    %v8608 = vunpack.c.l.b16 %v8250
    %v8609 = vunpack.c.h.b16 %v8250
    %v8610 = vunpack.c.l.b16 %v8251
    %v8611 = vunpack.c.l.b16 %v8252
    %v8612 = vunpack.c.h.b16 %v8252
    %v8613 = vunpack.c.l.b16 %v8253
    %v8614 = vunpack.c.l.b16 %v8254
    %v8615 = vunpack.c.h.b16 %v8254
    %v8616 = vunpack.c.l.b16 %v8255
    %v8617 = vunpack.c.l.b16 %v8256
    %v8618 = vunpack.c.h.b16 %v8256
    %v8619 = vunpack.c.l.b16 %v8257
    %v8620 = vunpack.c.l.b16 %v8258
    %v8621 = vunpack.c.h.b16 %v8258
    %v8622 = vunpack.c.l.b16 %v8259
    %v8623 = vpack.c.b16 %v8434, %v8431
    %v8624 = vpack.c.b16 %v8435, %v8432
    %v8625 = vpack.c.b16 %v8436, %v8433
    %v8626 = vpack.c.b16 %v8440, %v8437
    %v8627 = vpack.c.b16 %v8441, %v8438
    %v8628 = vpack.c.b16 %v8442, %v8439
    %v8629 = vpack.c.b16 %v8446, %v8443
    %v8630 = vpack.c.b16 %v8447, %v8444
    %v8631 = vpack.c.b16 %v8448, %v8445
    %v8632 = vpack.c.b16 %v8452, %v8449
    %v8633 = vpack.c.b16 %v8453, %v8450
    %v8634 = vpack.c.b16 %v8454, %v8451
    %v8635 = vpack.c.b16 %v8458, %v8455
    %v8636 = vpack.c.b16 %v8459, %v8456
    %v8637 = vpack.c.b16 %v8460, %v8457
    %v8638 = vpack.c.b16 %v8464, %v8461
    %v8639 = vpack.c.b16 %v8465, %v8462
    %v8640 = vpack.c.b16 %v8466, %v8463
    %v8641 = vpack.c.b16 %v8470, %v8467
    %v8642 = vpack.c.b16 %v8471, %v8468
    %v8643 = vpack.c.b16 %v8472, %v8469
    %v8644 = vpack.c.b16 %v8476, %v8473
    %v8645 = vpack.c.b16 %v8477, %v8474
    %v8646 = vpack.c.b16 %v8478, %v8475
    %v8647 = vpack.c.b16 %v8482, %v8479
    %v8648 = vpack.c.b16 %v8483, %v8480
    %v8649 = vpack.c.b16 %v8484, %v8481
    %v8650 = vpack.c.b16 %v8488, %v8485
    %v8651 = vpack.c.b16 %v8489, %v8486
    %v8652 = vpack.c.b16 %v8490, %v8487
    %v8653 = vpack.c.b16 %v8494, %v8491
    %v8654 = vpack.c.b16 %v8495, %v8492
    %v8655 = vpack.c.b16 %v8496, %v8493
    %v8656 = vpack.c.b16 %v8500, %v8497
    %v8657 = vpack.c.b16 %v8501, %v8498
    %v8658 = vpack.c.b16 %v8502, %v8499
    %v8659 = vpack.c.b16 %v8506, %v8503
    %v8660 = vpack.c.b16 %v8507, %v8504
    %v8661 = vpack.c.b16 %v8508, %v8505
    %v8662 = vpack.c.b16 %v8512, %v8509
    %v8663 = vpack.c.b16 %v8513, %v8510
    %v8664 = vpack.c.b16 %v8514, %v8511
    %v8665 = vpack.c.b16 %v8518, %v8515
    %v8666 = vpack.c.b16 %v8519, %v8516
    %v8667 = vpack.c.b16 %v8520, %v8517
    %v8668 = vpack.c.b16 %v8524, %v8521
    %v8669 = vpack.c.b16 %v8525, %v8522
    %v8670 = vpack.c.b16 %v8526, %v8523
    %v8671 = vpack.c.b16 %v8530, %v8527
    %v8672 = vpack.c.b16 %v8531, %v8528
    %v8673 = vpack.c.b16 %v8532, %v8529
    %v8674 = vpack.c.b16 %v8536, %v8533
    %v8675 = vpack.c.b16 %v8537, %v8534
    %v8676 = vpack.c.b16 %v8538, %v8535
    %v8677 = vpack.c.b16 %v8542, %v8539
    %v8678 = vpack.c.b16 %v8543, %v8540
    %v8679 = vpack.c.b16 %v8544, %v8541
    %v8680 = vpack.c.b16 %v8548, %v8545
    %v8681 = vpack.c.b16 %v8549, %v8546
    %v8682 = vpack.c.b16 %v8550, %v8547
    %v8683 = vpack.c.b16 %v8554, %v8551
    %v8684 = vpack.c.b16 %v8555, %v8552
    %v8685 = vpack.c.b16 %v8556, %v8553
    %v8686 = vpack.c.b16 %v8560, %v8557
    %v8687 = vpack.c.b16 %v8561, %v8558
    %v8688 = vpack.c.b16 %v8562, %v8559
    %v8689 = vpack.c.b16 %v8566, %v8563
    %v8690 = vpack.c.b16 %v8567, %v8564
    %v8691 = vpack.c.b16 %v8568, %v8565
    %v8692 = vpack.c.b16 %v8572, %v8569
    %v8693 = vpack.c.b16 %v8573, %v8570
    %v8694 = vpack.c.b16 %v8574, %v8571
    %v8695 = vpack.c.b16 %v8578, %v8575
    %v8696 = vpack.c.b16 %v8579, %v8576
    %v8697 = vpack.c.b16 %v8580, %v8577
    %v8698 = vpack.c.b16 %v8584, %v8581
    %v8699 = vpack.c.b16 %v8585, %v8582
    %v8700 = vpack.c.b16 %v8586, %v8583
    %v8701 = vpack.c.b16 %v8590, %v8587
    %v8702 = vpack.c.b16 %v8591, %v8588
    %v8703 = vpack.c.b16 %v8592, %v8589
    %v8704 = vpack.c.b16 %v8596, %v8593
    %v8705 = vpack.c.b16 %v8597, %v8594
    %v8706 = vpack.c.b16 %v8598, %v8595
    %v8707 = vpack.c.b16 %v8602, %v8599
    %v8708 = vpack.c.b16 %v8603, %v8600
    %v8709 = vpack.c.b16 %v8604, %v8601
    %v8710 = vpack.c.b16 %v8608, %v8605
    %v8711 = vpack.c.b16 %v8609, %v8606
    %v8712 = vpack.c.b16 %v8610, %v8607
    %v8713 = vpack.c.b16 %v8614, %v8611
    %v8714 = vpack.c.b16 %v8615, %v8612
    %v8715 = vpack.c.b16 %v8616, %v8613
    %v8716 = vpack.c.b16 %v8620, %v8617
    %v8717 = vpack.c.b16 %v8621, %v8618
    %v8718 = vpack.c.b16 %v8622, %v8619
    %v8819 = vunpack.c.l.b16 %v8260
    %v8820 = vunpack.c.h.b16 %v8260
    %v8821 = vunpack.c.l.b16 %v8261
    %v8822 = vunpack.c.h.b16 %v8261
    %v8823 = vunpack.c.l.b16 %v8262
    %v8824 = vunpack.c.h.b16 %v8262
    %v8825 = vunpack.c.l.b16 %v8263
    %v8826 = vunpack.c.h.b16 %v8263
    %v8827 = vunpack.c.l.b16 %v8264
    %v8828 = vunpack.c.h.b16 %v8264
    %v8829 = vunpack.c.l.b16 %v8265
    %v8830 = vunpack.c.h.b16 %v8265
    %v8831 = vunpack.c.l.b16 %v8266
    %v8832 = vunpack.c.h.b16 %v8266
    %v8833 = vunpack.c.l.b16 %v8267
    %v8834 = vunpack.c.h.b16 %v8267
    %v8835 = vunpack.c.l.b16 %v8268
    %v8836 = vunpack.c.h.b16 %v8268
    %v8837 = vunpack.c.l.b16 %v8269
    %v8838 = vunpack.c.h.b16 %v8269
    %v8839 = vunpack.c.l.b16 %v8270
    %v8840 = vunpack.c.h.b16 %v8270
    %v8841 = vunpack.c.l.b16 %v8271
    %v8842 = vunpack.c.h.b16 %v8271
    %v8843 = vunpack.c.l.b16 %v8272
    %v8844 = vunpack.c.h.b16 %v8272
    %v8845 = vunpack.c.l.b16 %v8273
    %v8846 = vunpack.c.h.b16 %v8273
    %v8847 = vunpack.c.l.b16 %v8274
    %v8848 = vunpack.c.h.b16 %v8274
    %v8849 = vunpack.c.l.b16 %v8275
    %v8850 = vunpack.c.h.b16 %v8275
    %v8851 = vunpack.c.l.b16 %v8276
    %v8852 = vunpack.c.h.b16 %v8276
    %v8853 = vunpack.c.l.b16 %v8277
    %v8854 = vunpack.c.h.b16 %v8277
    %v8855 = vunpack.c.l.b16 %v8278
    %v8856 = vunpack.c.h.b16 %v8278
    %v8857 = vunpack.c.l.b16 %v8279
    %v8858 = vunpack.c.h.b16 %v8279
    %v8859 = vunpack.c.l.b16 %v8280
    %v8860 = vunpack.c.h.b16 %v8280
    %v8861 = vunpack.c.l.b16 %v8281
    %v8862 = vunpack.c.h.b16 %v8281
    %v8863 = vunpack.c.l.b16 %v8282
    %v8864 = vunpack.c.h.b16 %v8282
    %v8865 = vunpack.c.l.b16 %v8283
    %v8866 = vunpack.c.h.b16 %v8283
    %v8867 = vunpack.c.l.b16 %v8284
    %v8868 = vunpack.c.h.b16 %v8284
    %v8869 = vunpack.c.l.b16 %v8285
    %v8870 = vunpack.c.h.b16 %v8285
    %v8871 = vunpack.c.l.b16 %v8286
    %v8872 = vunpack.c.h.b16 %v8286
    %v8873 = vunpack.c.l.b16 %v8287
    %v8874 = vunpack.c.h.b16 %v8287
    %v8875 = vunpack.c.l.b16 %v8288
    %v8876 = vunpack.c.h.b16 %v8288
    %v8877 = vunpack.c.l.b16 %v8289
    %v8878 = vunpack.c.h.b16 %v8289
    %v8879 = vunpack.c.l.b16 %v8290
    %v8880 = vunpack.c.h.b16 %v8290
    %v8881 = vunpack.c.l.b16 %v8291
    %v8882 = vunpack.c.h.b16 %v8291
    %v8883 = vunpack.c.l.b16 %v8292
    %v8884 = vunpack.c.h.b16 %v8292
    %v8885 = vunpack.c.l.b16 %v8293
    %v8886 = vunpack.c.h.b16 %v8293
    %v8887 = vunpack.c.l.b16 %v8294
    %v8888 = vunpack.c.h.b16 %v8294
    %v8889 = vunpack.c.l.b16 %v8295
    %v8890 = vunpack.c.h.b16 %v8295
    %v8891 = vpack.c.b16 %v8821, %v8819
    %v8892 = vpack.c.b16 %v8822, %v8820
    %v8893 = vpack.c.b16 %v8825, %v8823
    %v8894 = vpack.c.b16 %v8826, %v8824
    %v8895 = vpack.c.b16 %v8829, %v8827
    %v8896 = vpack.c.b16 %v8830, %v8828
    %v8897 = vpack.c.b16 %v8833, %v8831
    %v8898 = vpack.c.b16 %v8834, %v8832
    %v8899 = vpack.c.b16 %v8837, %v8835
    %v8900 = vpack.c.b16 %v8838, %v8836
    %v8901 = vpack.c.b16 %v8841, %v8839
    %v8902 = vpack.c.b16 %v8842, %v8840
    %v8903 = vpack.c.b16 %v8845, %v8843
    %v8904 = vpack.c.b16 %v8846, %v8844
    %v8905 = vpack.c.b16 %v8849, %v8847
    %v8906 = vpack.c.b16 %v8850, %v8848
    %v8907 = vpack.c.b16 %v8853, %v8851
    %v8908 = vpack.c.b16 %v8854, %v8852
    %v8909 = vpack.c.b16 %v8857, %v8855
    %v8910 = vpack.c.b16 %v8858, %v8856
    %v8911 = vpack.c.b16 %v8861, %v8859
    %v8912 = vpack.c.b16 %v8862, %v8860
    %v8913 = vpack.c.b16 %v8865, %v8863
    %v8914 = vpack.c.b16 %v8866, %v8864
    %v8915 = vpack.c.b16 %v8869, %v8867
    %v8916 = vpack.c.b16 %v8870, %v8868
    %v8917 = vpack.c.b16 %v8873, %v8871
    %v8918 = vpack.c.b16 %v8874, %v8872
    %v8919 = vpack.c.b16 %v8877, %v8875
    %v8920 = vpack.c.b16 %v8878, %v8876
    %v8921 = vpack.c.b16 %v8881, %v8879
    %v8922 = vpack.c.b16 %v8882, %v8880
    %v8923 = vpack.c.b16 %v8885, %v8883
    %v8924 = vpack.c.b16 %v8886, %v8884
    %v8925 = vpack.c.b16 %v8889, %v8887
    %v8926 = vpack.c.b16 %v8890, %v8888
    %v8964 = vsel %vm389, %v8625, 0
    %v8967 = vsel %vm389, %v8628, 0
    %v8970 = vsel %vm389, %v8631, 0
    %v8973 = vsel %vm389, %v8634, 0
    %v8976 = vsel %vm389, %v8637, 0
    %v8979 = vsel %vm389, %v8640, 0
    %v8982 = vsel %vm389, %v8643, 0
    %v8985 = vsel %vm389, %v8646, 0
    %v8988 = vsel %vm389, %v8649, 0
    %v8991 = vsel %vm389, %v8652, 0
    %v8994 = vsel %vm389, %v8655, 0
    %v8997 = vsel %vm389, %v8658, 0
    %v9000 = vsel %vm389, %v8661, 0
    %v9003 = vsel %vm389, %v8664, 0
    %v9006 = vsel %vm389, %v8667, 0
    %v9009 = vsel %vm389, %v8670, 0
    %v9012 = vsel %vm389, %v8673, 0
    %v9015 = vsel %vm389, %v8676, 0
    %v9018 = vsel %vm389, %v8679, 0
    %v9021 = vsel %vm389, %v8682, 0
    %v9024 = vsel %vm389, %v8685, 0
    %v9027 = vsel %vm389, %v8688, 0
    %v9030 = vsel %vm389, %v8691, 0
    %v9033 = vsel %vm389, %v8694, 0
    %v9036 = vsel %vm389, %v8697, 0
    %v9039 = vsel %vm389, %v8700, 0
    %v9042 = vsel %vm389, %v8703, 0
    %v9045 = vsel %vm389, %v8706, 0
    %v9048 = vsel %vm389, %v8709, 0
    %v9051 = vsel %vm389, %v8712, 0
    %v9054 = vsel %vm389, %v8715, 0
    %v9057 = vsel %vm389, %v8718, 0
    %9059 = vmatpush.bf16.msra.mxu0 %v8905
    %9060 = vmatpush.bf16.msra.mxu0 %v8903
    %9061 = vmatpush.bf16.msra.mxu0 %v8901
    %9062 = vmatpush.bf16.msra.mxu0 %v8899
    %9063 = vmatpush.bf16.msra.mxu0 %v8897
    %9064 = vmatpush.bf16.msra.mxu0 %v8895
    %9065 = vmatpush.bf16.msra.mxu0 %v8893
    %9066 = vmatpush.bf16.msra.mxu0 %v8891
    %9067 = vmatmul.bf16.gmra.mxu0 %v8623
    %v9068 = vpop.f32.mrf.mxu0
    %v9069 = vadd.f32 %v8299, %v9068
    %v9070 = vpop.f32.mrf.mxu0
    %v9071 = vadd.f32 %v8299, %v9070
    %9072 = vmatmul.bf16.gmra.mxu0 %v8626
    %v9073 = vpop.f32.mrf.mxu0
    %v9074 = vadd.f32 %v8299, %v9073
    %v9075 = vpop.f32.mrf.mxu0
    %v9076 = vadd.f32 %v8299, %v9075
    %9077 = vmatmul.bf16.gmra.mxu0 %v8629
    %v9078 = vpop.f32.mrf.mxu0
    %v9079 = vadd.f32 %v8299, %v9078
    %v9080 = vpop.f32.mrf.mxu0
    %v9081 = vadd.f32 %v8299, %v9080
    %9082 = vmatmul.bf16.gmra.mxu0 %v8632
    %v9083 = vpop.f32.mrf.mxu0
    %v9084 = vadd.f32 %v8299, %v9083
    %v9085 = vpop.f32.mrf.mxu0
    %v9086 = vadd.f32 %v8299, %v9085
    %9087 = vmatmul.bf16.gmra.mxu0 %v8635
    %v9088 = vpop.f32.mrf.mxu0
    %v9089 = vadd.f32 %v8299, %v9088
    %v9090 = vpop.f32.mrf.mxu0
    %v9091 = vadd.f32 %v8299, %v9090
    %9092 = vmatmul.bf16.gmra.mxu0 %v8638
    %v9093 = vpop.f32.mrf.mxu0
    %v9094 = vadd.f32 %v8299, %v9093
    %v9095 = vpop.f32.mrf.mxu0
    %v9096 = vadd.f32 %v8299, %v9095
    %9097 = vmatmul.bf16.gmra.mxu0 %v8641
    %v9098 = vpop.f32.mrf.mxu0
    %v9099 = vadd.f32 %v8299, %v9098
    %v9100 = vpop.f32.mrf.mxu0
    %v9101 = vadd.f32 %v8299, %v9100
    %9102 = vmatmul.bf16.gmra.mxu0 %v8644
    %v9103 = vpop.f32.mrf.mxu0
    %v9104 = vadd.f32 %v8299, %v9103
    %v9105 = vpop.f32.mrf.mxu0
    %v9106 = vadd.f32 %v8299, %v9105
    %9107 = vmatmul.bf16.gmra.mxu0 %v8647
    %v9108 = vpop.f32.mrf.mxu0
    %v9109 = vadd.f32 %v8299, %v9108
    %v9110 = vpop.f32.mrf.mxu0
    %v9111 = vadd.f32 %v8299, %v9110
    %9112 = vmatmul.bf16.gmra.mxu0 %v8650
    %v9113 = vpop.f32.mrf.mxu0
    %v9114 = vadd.f32 %v8299, %v9113
    %v9115 = vpop.f32.mrf.mxu0
    %v9116 = vadd.f32 %v8299, %v9115
    %9117 = vmatmul.bf16.gmra.mxu0 %v8653
    %v9118 = vpop.f32.mrf.mxu0
    %v9119 = vadd.f32 %v8299, %v9118
    %v9120 = vpop.f32.mrf.mxu0
    %v9121 = vadd.f32 %v8299, %v9120
    %9122 = vmatmul.bf16.gmra.mxu0 %v8656
    %v9123 = vpop.f32.mrf.mxu0
    %v9124 = vadd.f32 %v8299, %v9123
    %v9125 = vpop.f32.mrf.mxu0
    %v9126 = vadd.f32 %v8299, %v9125
    %9127 = vmatmul.bf16.gmra.mxu0 %v8659
    %v9128 = vpop.f32.mrf.mxu0
    %v9129 = vadd.f32 %v8299, %v9128
    %v9130 = vpop.f32.mrf.mxu0
    %v9131 = vadd.f32 %v8299, %v9130
    %9132 = vmatmul.bf16.gmra.mxu0 %v8662
    %v9133 = vpop.f32.mrf.mxu0
    %v9134 = vadd.f32 %v8299, %v9133
    %v9135 = vpop.f32.mrf.mxu0
    %v9136 = vadd.f32 %v8299, %v9135
    %9137 = vmatmul.bf16.gmra.mxu0 %v8665
    %v9138 = vpop.f32.mrf.mxu0
    %v9139 = vadd.f32 %v8299, %v9138
    %v9140 = vpop.f32.mrf.mxu0
    %v9141 = vadd.f32 %v8299, %v9140
    %9142 = vmatmul.bf16.gmra.mxu0 %v8668
    %v9143 = vpop.f32.mrf.mxu0
    %v9144 = vadd.f32 %v8299, %v9143
    %v9145 = vpop.f32.mrf.mxu0
    %v9146 = vadd.f32 %v8299, %v9145
    %9147 = vmatmul.bf16.gmra.mxu0 %v8671
    %v9148 = vpop.f32.mrf.mxu0
    %v9149 = vadd.f32 %v8299, %v9148
    %v9150 = vpop.f32.mrf.mxu0
    %v9151 = vadd.f32 %v8299, %v9150
    %9152 = vmatmul.bf16.gmra.mxu0 %v8674
    %v9153 = vpop.f32.mrf.mxu0
    %v9154 = vadd.f32 %v8299, %v9153
    %v9155 = vpop.f32.mrf.mxu0
    %v9156 = vadd.f32 %v8299, %v9155
    %9157 = vmatmul.bf16.gmra.mxu0 %v8677
    %v9158 = vpop.f32.mrf.mxu0
    %v9159 = vadd.f32 %v8299, %v9158
    %v9160 = vpop.f32.mrf.mxu0
    %v9161 = vadd.f32 %v8299, %v9160
    %9162 = vmatmul.bf16.gmra.mxu0 %v8680
    %v9163 = vpop.f32.mrf.mxu0
    %v9164 = vadd.f32 %v8299, %v9163
    %v9165 = vpop.f32.mrf.mxu0
    %v9166 = vadd.f32 %v8299, %v9165
    %9167 = vmatmul.bf16.gmra.mxu0 %v8683
    %v9168 = vpop.f32.mrf.mxu0
    %v9169 = vadd.f32 %v8299, %v9168
    %v9170 = vpop.f32.mrf.mxu0
    %v9171 = vadd.f32 %v8299, %v9170
    %9172 = vmatmul.bf16.gmra.mxu0 %v8686
    %v9173 = vpop.f32.mrf.mxu0
    %v9174 = vadd.f32 %v8299, %v9173
    %v9175 = vpop.f32.mrf.mxu0
    %v9176 = vadd.f32 %v8299, %v9175
    %9177 = vmatmul.bf16.gmra.mxu0 %v8689
    %v9178 = vpop.f32.mrf.mxu0
    %v9179 = vadd.f32 %v8299, %v9178
    %v9180 = vpop.f32.mrf.mxu0
    %v9181 = vadd.f32 %v8299, %v9180
    %9182 = vmatmul.bf16.gmra.mxu0 %v8692
    %v9183 = vpop.f32.mrf.mxu0
    %v9184 = vadd.f32 %v8299, %v9183
    %v9185 = vpop.f32.mrf.mxu0
    %v9186 = vadd.f32 %v8299, %v9185
    %9187 = vmatmul.bf16.gmra.mxu0 %v8695
    %v9188 = vpop.f32.mrf.mxu0
    %v9189 = vadd.f32 %v8299, %v9188
    %v9190 = vpop.f32.mrf.mxu0
    %v9191 = vadd.f32 %v8299, %v9190
    %9192 = vmatmul.bf16.gmra.mxu0 %v8698
    %v9193 = vpop.f32.mrf.mxu0
    %v9194 = vadd.f32 %v8299, %v9193
    %v9195 = vpop.f32.mrf.mxu0
    %v9196 = vadd.f32 %v8299, %v9195
    %9197 = vmatmul.bf16.gmra.mxu0 %v8701
    %v9198 = vpop.f32.mrf.mxu0
    %v9199 = vadd.f32 %v8299, %v9198
    %v9200 = vpop.f32.mrf.mxu0
    %v9201 = vadd.f32 %v8299, %v9200
    %9202 = vmatmul.bf16.gmra.mxu0 %v8704
    %v9203 = vpop.f32.mrf.mxu0
    %v9204 = vadd.f32 %v8299, %v9203
    %v9205 = vpop.f32.mrf.mxu0
    %v9206 = vadd.f32 %v8299, %v9205
    %9207 = vmatmul.bf16.gmra.mxu0 %v8707
    %v9208 = vpop.f32.mrf.mxu0
    %v9209 = vadd.f32 %v8299, %v9208
    %v9210 = vpop.f32.mrf.mxu0
    %v9211 = vadd.f32 %v8299, %v9210
    %9212 = vmatmul.bf16.gmra.mxu0 %v8710
    %v9213 = vpop.f32.mrf.mxu0
    %v9214 = vadd.f32 %v8299, %v9213
    %v9215 = vpop.f32.mrf.mxu0
    %v9216 = vadd.f32 %v8299, %v9215
    %9217 = vmatmul.bf16.gmra.mxu0 %v8713
    %v9218 = vpop.f32.mrf.mxu0
    %v9219 = vadd.f32 %v8299, %v9218
    %v9220 = vpop.f32.mrf.mxu0
    %v9221 = vadd.f32 %v8299, %v9220
    %9222 = vmatmul.bf16.gmra.mxu0 %v8716
    %v9223 = vpop.f32.mrf.mxu0
    %v9224 = vadd.f32 %v8299, %v9223
    %v9225 = vpop.f32.mrf.mxu0
    %v9226 = vadd.f32 %v8299, %v9225
    %9227 = vdwg.mxu0
    %9228 = vmatpush.bf16.msra.mxu0 %v8921
    %9229 = vmatpush.bf16.msra.mxu0 %v8919
    %9230 = vmatpush.bf16.msra.mxu0 %v8917
    %9231 = vmatpush.bf16.msra.mxu0 %v8915
    %9232 = vmatpush.bf16.msra.mxu0 %v8913
    %9233 = vmatpush.bf16.msra.mxu0 %v8911
    %9234 = vmatpush.bf16.msra.mxu0 %v8909
    %9235 = vmatpush.bf16.msra.mxu0 %v8907
    %9236 = vmatmul.bf16.gmra.mxu0 %v8624
    %v9237 = vpop.f32.mrf.mxu0
    %v9238 = vadd.f32 %v9069, %v9237
    %v9239 = vpop.f32.mrf.mxu0
    %v9240 = vadd.f32 %v9071, %v9239
    %9241 = vmatmul.bf16.gmra.mxu0 %v8627
    %v9242 = vpop.f32.mrf.mxu0
    %v9243 = vadd.f32 %v9074, %v9242
    %v9244 = vpop.f32.mrf.mxu0
    %v9245 = vadd.f32 %v9076, %v9244
    %9246 = vmatmul.bf16.gmra.mxu0 %v8630
    %v9247 = vpop.f32.mrf.mxu0
    %v9248 = vadd.f32 %v9079, %v9247
    %v9249 = vpop.f32.mrf.mxu0
    %v9250 = vadd.f32 %v9081, %v9249
    %9251 = vmatmul.bf16.gmra.mxu0 %v8633
    %v9252 = vpop.f32.mrf.mxu0
    %v9253 = vadd.f32 %v9084, %v9252
    %v9254 = vpop.f32.mrf.mxu0
    %v9255 = vadd.f32 %v9086, %v9254
    %9256 = vmatmul.bf16.gmra.mxu0 %v8636
    %v9257 = vpop.f32.mrf.mxu0
    %v9258 = vadd.f32 %v9089, %v9257
    %v9259 = vpop.f32.mrf.mxu0
    %v9260 = vadd.f32 %v9091, %v9259
    %9261 = vmatmul.bf16.gmra.mxu0 %v8639
    %v9262 = vpop.f32.mrf.mxu0
    %v9263 = vadd.f32 %v9094, %v9262
    %v9264 = vpop.f32.mrf.mxu0
    %v9265 = vadd.f32 %v9096, %v9264
    %9266 = vmatmul.bf16.gmra.mxu0 %v8642
    %v9267 = vpop.f32.mrf.mxu0
    %v9268 = vadd.f32 %v9099, %v9267
    %v9269 = vpop.f32.mrf.mxu0
    %v9270 = vadd.f32 %v9101, %v9269
    %9271 = vmatmul.bf16.gmra.mxu0 %v8645
    %v9272 = vpop.f32.mrf.mxu0
    %v9273 = vadd.f32 %v9104, %v9272
    %v9274 = vpop.f32.mrf.mxu0
    %v9275 = vadd.f32 %v9106, %v9274
    %9276 = vmatmul.bf16.gmra.mxu0 %v8648
    %v9277 = vpop.f32.mrf.mxu0
    %v9278 = vadd.f32 %v9109, %v9277
    %v9279 = vpop.f32.mrf.mxu0
    %v9280 = vadd.f32 %v9111, %v9279
    %9281 = vmatmul.bf16.gmra.mxu0 %v8651
    %v9282 = vpop.f32.mrf.mxu0
    %v9283 = vadd.f32 %v9114, %v9282
    %v9284 = vpop.f32.mrf.mxu0
    %v9285 = vadd.f32 %v9116, %v9284
    %9286 = vmatmul.bf16.gmra.mxu0 %v8654
    %v9287 = vpop.f32.mrf.mxu0
    %v9288 = vadd.f32 %v9119, %v9287
    %v9289 = vpop.f32.mrf.mxu0
    %v9290 = vadd.f32 %v9121, %v9289
    %9291 = vmatmul.bf16.gmra.mxu0 %v8657
    %v9292 = vpop.f32.mrf.mxu0
    %v9293 = vadd.f32 %v9124, %v9292
    %v9294 = vpop.f32.mrf.mxu0
    %v9295 = vadd.f32 %v9126, %v9294
    %9296 = vmatmul.bf16.gmra.mxu0 %v8660
    %v9297 = vpop.f32.mrf.mxu0
    %v9298 = vadd.f32 %v9129, %v9297
    %v9299 = vpop.f32.mrf.mxu0
    %v9300 = vadd.f32 %v9131, %v9299
    %9301 = vmatmul.bf16.gmra.mxu0 %v8663
    %v9302 = vpop.f32.mrf.mxu0
    %v9303 = vadd.f32 %v9134, %v9302
    %v9304 = vpop.f32.mrf.mxu0
    %v9305 = vadd.f32 %v9136, %v9304
    %9306 = vmatmul.bf16.gmra.mxu0 %v8666
    %v9307 = vpop.f32.mrf.mxu0
    %v9308 = vadd.f32 %v9139, %v9307
    %v9309 = vpop.f32.mrf.mxu0
    %v9310 = vadd.f32 %v9141, %v9309
    %9311 = vmatmul.bf16.gmra.mxu0 %v8669
    %v9312 = vpop.f32.mrf.mxu0
    %v9313 = vadd.f32 %v9144, %v9312
    %v9314 = vpop.f32.mrf.mxu0
    %v9315 = vadd.f32 %v9146, %v9314
    %9316 = vmatmul.bf16.gmra.mxu0 %v8672
    %v9317 = vpop.f32.mrf.mxu0
    %v9318 = vadd.f32 %v9149, %v9317
    %v9319 = vpop.f32.mrf.mxu0
    %v9320 = vadd.f32 %v9151, %v9319
    %9321 = vmatmul.bf16.gmra.mxu0 %v8675
    %v9322 = vpop.f32.mrf.mxu0
    %v9323 = vadd.f32 %v9154, %v9322
    %v9324 = vpop.f32.mrf.mxu0
    %v9325 = vadd.f32 %v9156, %v9324
    %9326 = vmatmul.bf16.gmra.mxu0 %v8678
    %v9327 = vpop.f32.mrf.mxu0
    %v9328 = vadd.f32 %v9159, %v9327
    %v9329 = vpop.f32.mrf.mxu0
    %v9330 = vadd.f32 %v9161, %v9329
    %9331 = vmatmul.bf16.gmra.mxu0 %v8681
    %v9332 = vpop.f32.mrf.mxu0
    %v9333 = vadd.f32 %v9164, %v9332
    %v9334 = vpop.f32.mrf.mxu0
    %v9335 = vadd.f32 %v9166, %v9334
    %9336 = vmatmul.bf16.gmra.mxu0 %v8684
    %v9337 = vpop.f32.mrf.mxu0
    %v9338 = vadd.f32 %v9169, %v9337
    %v9339 = vpop.f32.mrf.mxu0
    %v9340 = vadd.f32 %v9171, %v9339
    %9341 = vmatmul.bf16.gmra.mxu0 %v8687
    %v9342 = vpop.f32.mrf.mxu0
    %v9343 = vadd.f32 %v9174, %v9342
    %v9344 = vpop.f32.mrf.mxu0
    %v9345 = vadd.f32 %v9176, %v9344
    %9346 = vmatmul.bf16.gmra.mxu0 %v8690
    %v9347 = vpop.f32.mrf.mxu0
    %v9348 = vadd.f32 %v9179, %v9347
    %v9349 = vpop.f32.mrf.mxu0
    %v9350 = vadd.f32 %v9181, %v9349
    %9351 = vmatmul.bf16.gmra.mxu0 %v8693
    %v9352 = vpop.f32.mrf.mxu0
    %v9353 = vadd.f32 %v9184, %v9352
    %v9354 = vpop.f32.mrf.mxu0
    %v9355 = vadd.f32 %v9186, %v9354
    %9356 = vmatmul.bf16.gmra.mxu0 %v8696
    %v9357 = vpop.f32.mrf.mxu0
    %v9358 = vadd.f32 %v9189, %v9357
    %v9359 = vpop.f32.mrf.mxu0
    %v9360 = vadd.f32 %v9191, %v9359
    %9361 = vmatmul.bf16.gmra.mxu0 %v8699
    %v9362 = vpop.f32.mrf.mxu0
    %v9363 = vadd.f32 %v9194, %v9362
    %v9364 = vpop.f32.mrf.mxu0
    %v9365 = vadd.f32 %v9196, %v9364
    %9366 = vmatmul.bf16.gmra.mxu0 %v8702
    %v9367 = vpop.f32.mrf.mxu0
    %v9368 = vadd.f32 %v9199, %v9367
    %v9369 = vpop.f32.mrf.mxu0
    %v9370 = vadd.f32 %v9201, %v9369
    %9371 = vmatmul.bf16.gmra.mxu0 %v8705
    %v9372 = vpop.f32.mrf.mxu0
    %v9373 = vadd.f32 %v9204, %v9372
    %v9374 = vpop.f32.mrf.mxu0
    %v9375 = vadd.f32 %v9206, %v9374
    %9376 = vmatmul.bf16.gmra.mxu0 %v8708
    %v9377 = vpop.f32.mrf.mxu0
    %v9378 = vadd.f32 %v9209, %v9377
    %v9379 = vpop.f32.mrf.mxu0
    %v9380 = vadd.f32 %v9211, %v9379
    %9381 = vmatmul.bf16.gmra.mxu0 %v8711
    %v9382 = vpop.f32.mrf.mxu0
    %v9383 = vadd.f32 %v9214, %v9382
    %v9384 = vpop.f32.mrf.mxu0
    %v9385 = vadd.f32 %v9216, %v9384
    %9386 = vmatmul.bf16.gmra.mxu0 %v8714
    %v9387 = vpop.f32.mrf.mxu0
    %v9388 = vadd.f32 %v9219, %v9387
    %v9389 = vpop.f32.mrf.mxu0
    %v9390 = vadd.f32 %v9221, %v9389
    %9391 = vmatmul.bf16.gmra.mxu0 %v8717
    %v9392 = vpop.f32.mrf.mxu0
    %v9393 = vadd.f32 %v9224, %v9392
    %v9394 = vpop.f32.mrf.mxu0
    %v9395 = vadd.f32 %v9226, %v9394
    %9396 = vdwg.mxu0
    %9397 = vmatpush.bf16.msra.mxu0 0
    %9398 = vmatpush.bf16.msra.mxu0 0
    %9399 = vmatpush.bf16.msra.mxu0 0
    %9400 = vmatpush.bf16.msra.mxu0 0
    %9401 = vmatpush.bf16.msra.mxu0 0
    %9402 = vmatpush.bf16.msra.mxu0 0
    %9403 = vmatpush.bf16.msra.mxu0 %v8925
    %9404 = vmatpush.bf16.msra.mxu0 %v8923
    %9405 = vmatmul.bf16.gmra.mxu0 %v8964
    %v9406 = vpop.f32.mrf.mxu0
    %v9407 = vadd.f32 %v9238, %v9406
    %v9408 = vpop.f32.mrf.mxu0
    %v9409 = vadd.f32 %v9240, %v9408
    %9410 = vmatmul.bf16.gmra.mxu0 %v8967
    %v9411 = vpop.f32.mrf.mxu0
    %v9412 = vadd.f32 %v9243, %v9411
    %v9413 = vpop.f32.mrf.mxu0
    %v9414 = vadd.f32 %v9245, %v9413
    %9415 = vmatmul.bf16.gmra.mxu0 %v8970
    %v9416 = vpop.f32.mrf.mxu0
    %v9417 = vadd.f32 %v9248, %v9416
    %v9418 = vpop.f32.mrf.mxu0
    %v9419 = vadd.f32 %v9250, %v9418
    %9420 = vmatmul.bf16.gmra.mxu0 %v8973
    %v9421 = vpop.f32.mrf.mxu0
    %v9422 = vadd.f32 %v9253, %v9421
    %v9423 = vpop.f32.mrf.mxu0
    %v9424 = vadd.f32 %v9255, %v9423
    %9425 = vmatmul.bf16.gmra.mxu0 %v8976
    %v9426 = vpop.f32.mrf.mxu0
    %v9427 = vadd.f32 %v9258, %v9426
    %v9428 = vpop.f32.mrf.mxu0
    %v9429 = vadd.f32 %v9260, %v9428
    %9430 = vmatmul.bf16.gmra.mxu0 %v8979
    %v9431 = vpop.f32.mrf.mxu0
    %v9432 = vadd.f32 %v9263, %v9431
    %v9433 = vpop.f32.mrf.mxu0
    %v9434 = vadd.f32 %v9265, %v9433
    %9435 = vmatmul.bf16.gmra.mxu0 %v8982
    %v9436 = vpop.f32.mrf.mxu0
    %v9437 = vadd.f32 %v9268, %v9436
    %v9438 = vpop.f32.mrf.mxu0
    %v9439 = vadd.f32 %v9270, %v9438
    %9440 = vmatmul.bf16.gmra.mxu0 %v8985
    %v9441 = vpop.f32.mrf.mxu0
    %v9442 = vadd.f32 %v9273, %v9441
    %v9443 = vpop.f32.mrf.mxu0
    %v9444 = vadd.f32 %v9275, %v9443
    %9445 = vmatmul.bf16.gmra.mxu0 %v8988
    %v9446 = vpop.f32.mrf.mxu0
    %v9447 = vadd.f32 %v9278, %v9446
    %v9448 = vpop.f32.mrf.mxu0
    %v9449 = vadd.f32 %v9280, %v9448
    %9450 = vmatmul.bf16.gmra.mxu0 %v8991
    %v9451 = vpop.f32.mrf.mxu0
    %v9452 = vadd.f32 %v9283, %v9451
    %v9453 = vpop.f32.mrf.mxu0
    %v9454 = vadd.f32 %v9285, %v9453
    %9455 = vmatmul.bf16.gmra.mxu0 %v8994
    %v9456 = vpop.f32.mrf.mxu0
    %v9457 = vadd.f32 %v9288, %v9456
    %v9458 = vpop.f32.mrf.mxu0
    %v9459 = vadd.f32 %v9290, %v9458
    %9460 = vmatmul.bf16.gmra.mxu0 %v8997
    %v9461 = vpop.f32.mrf.mxu0
    %v9462 = vadd.f32 %v9293, %v9461
    %v9463 = vpop.f32.mrf.mxu0
    %v9464 = vadd.f32 %v9295, %v9463
    %9465 = vmatmul.bf16.gmra.mxu0 %v9000
    %v9466 = vpop.f32.mrf.mxu0
    %v9467 = vadd.f32 %v9298, %v9466
    %v9468 = vpop.f32.mrf.mxu0
    %v9469 = vadd.f32 %v9300, %v9468
    %9470 = vmatmul.bf16.gmra.mxu0 %v9003
    %v9471 = vpop.f32.mrf.mxu0
    %v9472 = vadd.f32 %v9303, %v9471
    %v9473 = vpop.f32.mrf.mxu0
    %v9474 = vadd.f32 %v9305, %v9473
    %9475 = vmatmul.bf16.gmra.mxu0 %v9006
    %v9476 = vpop.f32.mrf.mxu0
    %v9477 = vadd.f32 %v9308, %v9476
    %v9478 = vpop.f32.mrf.mxu0
    %v9479 = vadd.f32 %v9310, %v9478
    %9480 = vmatmul.bf16.gmra.mxu0 %v9009
    %v9481 = vpop.f32.mrf.mxu0
    %v9482 = vadd.f32 %v9313, %v9481
    %v9483 = vpop.f32.mrf.mxu0
    %v9484 = vadd.f32 %v9315, %v9483
    %9485 = vmatmul.bf16.gmra.mxu0 %v9012
    %v9486 = vpop.f32.mrf.mxu0
    %v9487 = vadd.f32 %v9318, %v9486
    %v9488 = vpop.f32.mrf.mxu0
    %v9489 = vadd.f32 %v9320, %v9488
    %9490 = vmatmul.bf16.gmra.mxu0 %v9015
    %v9491 = vpop.f32.mrf.mxu0
    %v9492 = vadd.f32 %v9323, %v9491
    %v9493 = vpop.f32.mrf.mxu0
    %v9494 = vadd.f32 %v9325, %v9493
    %9495 = vmatmul.bf16.gmra.mxu0 %v9018
    %v9496 = vpop.f32.mrf.mxu0
    %v9497 = vadd.f32 %v9328, %v9496
    %v9498 = vpop.f32.mrf.mxu0
    %v9499 = vadd.f32 %v9330, %v9498
    %9500 = vmatmul.bf16.gmra.mxu0 %v9021
    %v9501 = vpop.f32.mrf.mxu0
    %v9502 = vadd.f32 %v9333, %v9501
    %v9503 = vpop.f32.mrf.mxu0
    %v9504 = vadd.f32 %v9335, %v9503
    %9505 = vmatmul.bf16.gmra.mxu0 %v9024
    %v9506 = vpop.f32.mrf.mxu0
    %v9507 = vadd.f32 %v9338, %v9506
    %v9508 = vpop.f32.mrf.mxu0
    %v9509 = vadd.f32 %v9340, %v9508
    %9510 = vmatmul.bf16.gmra.mxu0 %v9027
    %v9511 = vpop.f32.mrf.mxu0
    %v9512 = vadd.f32 %v9343, %v9511
    %v9513 = vpop.f32.mrf.mxu0
    %v9514 = vadd.f32 %v9345, %v9513
    %9515 = vmatmul.bf16.gmra.mxu0 %v9030
    %v9516 = vpop.f32.mrf.mxu0
    %v9517 = vadd.f32 %v9348, %v9516
    %v9518 = vpop.f32.mrf.mxu0
    %v9519 = vadd.f32 %v9350, %v9518
    %9520 = vmatmul.bf16.gmra.mxu0 %v9033
    %v9521 = vpop.f32.mrf.mxu0
    %v9522 = vadd.f32 %v9353, %v9521
    %v9523 = vpop.f32.mrf.mxu0
    %v9524 = vadd.f32 %v9355, %v9523
    %9525 = vmatmul.bf16.gmra.mxu0 %v9036
    %v9526 = vpop.f32.mrf.mxu0
    %v9527 = vadd.f32 %v9358, %v9526
    %v9528 = vpop.f32.mrf.mxu0
    %v9529 = vadd.f32 %v9360, %v9528
    %9530 = vmatmul.bf16.gmra.mxu0 %v9039
    %v9531 = vpop.f32.mrf.mxu0
    %v9532 = vadd.f32 %v9363, %v9531
    %v9533 = vpop.f32.mrf.mxu0
    %v9534 = vadd.f32 %v9365, %v9533
    %9535 = vmatmul.bf16.gmra.mxu0 %v9042
    %v9536 = vpop.f32.mrf.mxu0
    %v9537 = vadd.f32 %v9368, %v9536
    %v9538 = vpop.f32.mrf.mxu0
    %v9539 = vadd.f32 %v9370, %v9538
    %9540 = vmatmul.bf16.gmra.mxu0 %v9045
    %v9541 = vpop.f32.mrf.mxu0
    %v9542 = vadd.f32 %v9373, %v9541
    %v9543 = vpop.f32.mrf.mxu0
    %v9544 = vadd.f32 %v9375, %v9543
    %9545 = vmatmul.bf16.gmra.mxu0 %v9048
    %v9546 = vpop.f32.mrf.mxu0
    %v9547 = vadd.f32 %v9378, %v9546
    %v9548 = vpop.f32.mrf.mxu0
    %v9549 = vadd.f32 %v9380, %v9548
    %9550 = vmatmul.bf16.gmra.mxu0 %v9051
    %v9551 = vpop.f32.mrf.mxu0
    %v9552 = vadd.f32 %v9383, %v9551
    %v9553 = vpop.f32.mrf.mxu0
    %v9554 = vadd.f32 %v9385, %v9553
    %9555 = vmatmul.bf16.gmra.mxu0 %v9054
    %v9556 = vpop.f32.mrf.mxu0
    %v9557 = vadd.f32 %v9388, %v9556
    %v9558 = vpop.f32.mrf.mxu0
    %v9559 = vadd.f32 %v9390, %v9558
    %9560 = vmatmul.bf16.gmra.mxu0 %v9057
    %v9561 = vpop.f32.mrf.mxu0
    %v9562 = vadd.f32 %v9393, %v9561
    %v9563 = vpop.f32.mrf.mxu0
    %v9564 = vadd.f32 %v9395, %v9563
    %9565 = vdwg.mxu0
    %9566 = vmatpush.bf16.msra.mxu0 %v8906
    %9567 = vmatpush.bf16.msra.mxu0 %v8904
    %9568 = vmatpush.bf16.msra.mxu0 %v8902
    %9569 = vmatpush.bf16.msra.mxu0 %v8900
    %9570 = vmatpush.bf16.msra.mxu0 %v8898
    %9571 = vmatpush.bf16.msra.mxu0 %v8896
    %9572 = vmatpush.bf16.msra.mxu0 %v8894
    %9573 = vmatpush.bf16.msra.mxu0 %v8892
    %9574 = vmatmul.bf16.gmra.mxu0 %v8623
    %v9575 = vpop.f32.mrf.mxu0
    %v9576 = vadd.f32 %v8300, %v9575
    %v9577 = vpop.f32.mrf.mxu0
    %v9578 = vadd.f32 %v8300, %v9577
    %9579 = vmatmul.bf16.gmra.mxu0 %v8626
    %v9580 = vpop.f32.mrf.mxu0
    %v9581 = vadd.f32 %v8300, %v9580
    %v9582 = vpop.f32.mrf.mxu0
    %v9583 = vadd.f32 %v8300, %v9582
    %9584 = vmatmul.bf16.gmra.mxu0 %v8629
    %v9585 = vpop.f32.mrf.mxu0
    %v9586 = vadd.f32 %v8300, %v9585
    %v9587 = vpop.f32.mrf.mxu0
    %v9588 = vadd.f32 %v8300, %v9587
    %9589 = vmatmul.bf16.gmra.mxu0 %v8632
    %v9590 = vpop.f32.mrf.mxu0
    %v9591 = vadd.f32 %v8300, %v9590
    %v9592 = vpop.f32.mrf.mxu0
    %v9593 = vadd.f32 %v8300, %v9592
    %9594 = vmatmul.bf16.gmra.mxu0 %v8635
    %v9595 = vpop.f32.mrf.mxu0
    %v9596 = vadd.f32 %v8300, %v9595
    %v9597 = vpop.f32.mrf.mxu0
    %v9598 = vadd.f32 %v8300, %v9597
    %9599 = vmatmul.bf16.gmra.mxu0 %v8638
    %v9600 = vpop.f32.mrf.mxu0
    %v9601 = vadd.f32 %v8300, %v9600
    %v9602 = vpop.f32.mrf.mxu0
    %v9603 = vadd.f32 %v8300, %v9602
    %9604 = vmatmul.bf16.gmra.mxu0 %v8641
    %v9605 = vpop.f32.mrf.mxu0
    %v9606 = vadd.f32 %v8300, %v9605
    %v9607 = vpop.f32.mrf.mxu0
    %v9608 = vadd.f32 %v8300, %v9607
    %9609 = vmatmul.bf16.gmra.mxu0 %v8644
    %v9610 = vpop.f32.mrf.mxu0
    %v9611 = vadd.f32 %v8300, %v9610
    %v9612 = vpop.f32.mrf.mxu0
    %v9613 = vadd.f32 %v8300, %v9612
    %9614 = vmatmul.bf16.gmra.mxu0 %v8647
    %v9615 = vpop.f32.mrf.mxu0
    %v9616 = vadd.f32 %v8300, %v9615
    %v9617 = vpop.f32.mrf.mxu0
    %v9618 = vadd.f32 %v8300, %v9617
    %9619 = vmatmul.bf16.gmra.mxu0 %v8650
    %v9620 = vpop.f32.mrf.mxu0
    %v9621 = vadd.f32 %v8300, %v9620
    %v9622 = vpop.f32.mrf.mxu0
    %v9623 = vadd.f32 %v8300, %v9622
    %9624 = vmatmul.bf16.gmra.mxu0 %v8653
    %v9625 = vpop.f32.mrf.mxu0
    %v9626 = vadd.f32 %v8300, %v9625
    %v9627 = vpop.f32.mrf.mxu0
    %v9628 = vadd.f32 %v8300, %v9627
    %9629 = vmatmul.bf16.gmra.mxu0 %v8656
    %v9630 = vpop.f32.mrf.mxu0
    %v9631 = vadd.f32 %v8300, %v9630
    %v9632 = vpop.f32.mrf.mxu0
    %v9633 = vadd.f32 %v8300, %v9632
    %9634 = vmatmul.bf16.gmra.mxu0 %v8659
    %v9635 = vpop.f32.mrf.mxu0
    %v9636 = vadd.f32 %v8300, %v9635
    %v9637 = vpop.f32.mrf.mxu0
    %v9638 = vadd.f32 %v8300, %v9637
    %9639 = vmatmul.bf16.gmra.mxu0 %v8662
    %v9640 = vpop.f32.mrf.mxu0
    %v9641 = vadd.f32 %v8300, %v9640
    %v9642 = vpop.f32.mrf.mxu0
    %v9643 = vadd.f32 %v8300, %v9642
    %9644 = vmatmul.bf16.gmra.mxu0 %v8665
    %v9645 = vpop.f32.mrf.mxu0
    %v9646 = vadd.f32 %v8300, %v9645
    %v9647 = vpop.f32.mrf.mxu0
    %v9648 = vadd.f32 %v8300, %v9647
    %9649 = vmatmul.bf16.gmra.mxu0 %v8668
    %v9650 = vpop.f32.mrf.mxu0
    %v9651 = vadd.f32 %v8300, %v9650
    %v9652 = vpop.f32.mrf.mxu0
    %v9653 = vadd.f32 %v8300, %v9652
    %9654 = vmatmul.bf16.gmra.mxu0 %v8671
    %v9655 = vpop.f32.mrf.mxu0
    %v9656 = vadd.f32 %v8300, %v9655
    %v9657 = vpop.f32.mrf.mxu0
    %v9658 = vadd.f32 %v8300, %v9657
    %9659 = vmatmul.bf16.gmra.mxu0 %v8674
    %v9660 = vpop.f32.mrf.mxu0
    %v9661 = vadd.f32 %v8300, %v9660
    %v9662 = vpop.f32.mrf.mxu0
    %v9663 = vadd.f32 %v8300, %v9662
    %9664 = vmatmul.bf16.gmra.mxu0 %v8677
    %v9665 = vpop.f32.mrf.mxu0
    %v9666 = vadd.f32 %v8300, %v9665
    %v9667 = vpop.f32.mrf.mxu0
    %v9668 = vadd.f32 %v8300, %v9667
    %9669 = vmatmul.bf16.gmra.mxu0 %v8680
    %v9670 = vpop.f32.mrf.mxu0
    %v9671 = vadd.f32 %v8300, %v9670
    %v9672 = vpop.f32.mrf.mxu0
    %v9673 = vadd.f32 %v8300, %v9672
    %9674 = vmatmul.bf16.gmra.mxu0 %v8683
    %v9675 = vpop.f32.mrf.mxu0
    %v9676 = vadd.f32 %v8300, %v9675
    %v9677 = vpop.f32.mrf.mxu0
    %v9678 = vadd.f32 %v8300, %v9677
    %9679 = vmatmul.bf16.gmra.mxu0 %v8686
    %v9680 = vpop.f32.mrf.mxu0
    %v9681 = vadd.f32 %v8300, %v9680
    %v9682 = vpop.f32.mrf.mxu0
    %v9683 = vadd.f32 %v8300, %v9682
    %9684 = vmatmul.bf16.gmra.mxu0 %v8689
    %v9685 = vpop.f32.mrf.mxu0
    %v9686 = vadd.f32 %v8300, %v9685
    %v9687 = vpop.f32.mrf.mxu0
    %v9688 = vadd.f32 %v8300, %v9687
    %9689 = vmatmul.bf16.gmra.mxu0 %v8692
    %v9690 = vpop.f32.mrf.mxu0
    %v9691 = vadd.f32 %v8300, %v9690
    %v9692 = vpop.f32.mrf.mxu0
    %v9693 = vadd.f32 %v8300, %v9692
    %9694 = vmatmul.bf16.gmra.mxu0 %v8695
    %v9695 = vpop.f32.mrf.mxu0
    %v9696 = vadd.f32 %v8300, %v9695
    %v9697 = vpop.f32.mrf.mxu0
    %v9698 = vadd.f32 %v8300, %v9697
    %9699 = vmatmul.bf16.gmra.mxu0 %v8698
    %v9700 = vpop.f32.mrf.mxu0
    %v9701 = vadd.f32 %v8300, %v9700
    %v9702 = vpop.f32.mrf.mxu0
    %v9703 = vadd.f32 %v8300, %v9702
    %9704 = vmatmul.bf16.gmra.mxu0 %v8701
    %v9705 = vpop.f32.mrf.mxu0
    %v9706 = vadd.f32 %v8300, %v9705
    %v9707 = vpop.f32.mrf.mxu0
    %v9708 = vadd.f32 %v8300, %v9707
    %9709 = vmatmul.bf16.gmra.mxu0 %v8704
    %v9710 = vpop.f32.mrf.mxu0
    %v9711 = vadd.f32 %v8300, %v9710
    %v9712 = vpop.f32.mrf.mxu0
    %v9713 = vadd.f32 %v8300, %v9712
    %9714 = vmatmul.bf16.gmra.mxu0 %v8707
    %v9715 = vpop.f32.mrf.mxu0
    %v9716 = vadd.f32 %v8300, %v9715
    %v9717 = vpop.f32.mrf.mxu0
    %v9718 = vadd.f32 %v8300, %v9717
    %9719 = vmatmul.bf16.gmra.mxu0 %v8710
    %v9720 = vpop.f32.mrf.mxu0
    %v9721 = vadd.f32 %v8300, %v9720
    %v9722 = vpop.f32.mrf.mxu0
    %v9723 = vadd.f32 %v8300, %v9722
    %9724 = vmatmul.bf16.gmra.mxu0 %v8713
    %v9725 = vpop.f32.mrf.mxu0
    %v9726 = vadd.f32 %v8300, %v9725
    %v9727 = vpop.f32.mrf.mxu0
    %v9728 = vadd.f32 %v8300, %v9727
    %9729 = vmatmul.bf16.gmra.mxu0 %v8716
    %v9730 = vpop.f32.mrf.mxu0
    %v9731 = vadd.f32 %v8300, %v9730
    %v9732 = vpop.f32.mrf.mxu0
    %v9733 = vadd.f32 %v8300, %v9732
    %9734 = vdwg.mxu0
    %9735 = vmatpush.bf16.msra.mxu0 %v8922
    %9736 = vmatpush.bf16.msra.mxu0 %v8920
    %9737 = vmatpush.bf16.msra.mxu0 %v8918
    %9738 = vmatpush.bf16.msra.mxu0 %v8916
    %9739 = vmatpush.bf16.msra.mxu0 %v8914
    %9740 = vmatpush.bf16.msra.mxu0 %v8912
    %9741 = vmatpush.bf16.msra.mxu0 %v8910
    %9742 = vmatpush.bf16.msra.mxu0 %v8908
    %9743 = vmatmul.bf16.gmra.mxu0 %v8624
    %v9744 = vpop.f32.mrf.mxu0
    %v9745 = vadd.f32 %v9576, %v9744
    %v9746 = vpop.f32.mrf.mxu0
    %v9747 = vadd.f32 %v9578, %v9746
    %9748 = vmatmul.bf16.gmra.mxu0 %v8627
    %v9749 = vpop.f32.mrf.mxu0
    %v9750 = vadd.f32 %v9581, %v9749
    %v9751 = vpop.f32.mrf.mxu0
    %v9752 = vadd.f32 %v9583, %v9751
    %9753 = vmatmul.bf16.gmra.mxu0 %v8630
    %v9754 = vpop.f32.mrf.mxu0
    %v9755 = vadd.f32 %v9586, %v9754
    %v9756 = vpop.f32.mrf.mxu0
    %v9757 = vadd.f32 %v9588, %v9756
    %9758 = vmatmul.bf16.gmra.mxu0 %v8633
    %v9759 = vpop.f32.mrf.mxu0
    %v9760 = vadd.f32 %v9591, %v9759
    %v9761 = vpop.f32.mrf.mxu0
    %v9762 = vadd.f32 %v9593, %v9761
    %9763 = vmatmul.bf16.gmra.mxu0 %v8636
    %v9764 = vpop.f32.mrf.mxu0
    %v9765 = vadd.f32 %v9596, %v9764
    %v9766 = vpop.f32.mrf.mxu0
    %v9767 = vadd.f32 %v9598, %v9766
    %9768 = vmatmul.bf16.gmra.mxu0 %v8639
    %v9769 = vpop.f32.mrf.mxu0
    %v9770 = vadd.f32 %v9601, %v9769
    %v9771 = vpop.f32.mrf.mxu0
    %v9772 = vadd.f32 %v9603, %v9771
    %9773 = vmatmul.bf16.gmra.mxu0 %v8642
    %v9774 = vpop.f32.mrf.mxu0
    %v9775 = vadd.f32 %v9606, %v9774
    %v9776 = vpop.f32.mrf.mxu0
    %v9777 = vadd.f32 %v9608, %v9776
    %9778 = vmatmul.bf16.gmra.mxu0 %v8645
    %v9779 = vpop.f32.mrf.mxu0
    %v9780 = vadd.f32 %v9611, %v9779
    %v9781 = vpop.f32.mrf.mxu0
    %v9782 = vadd.f32 %v9613, %v9781
    %9783 = vmatmul.bf16.gmra.mxu0 %v8648
    %v9784 = vpop.f32.mrf.mxu0
    %v9785 = vadd.f32 %v9616, %v9784
    %v9786 = vpop.f32.mrf.mxu0
    %v9787 = vadd.f32 %v9618, %v9786
    %9788 = vmatmul.bf16.gmra.mxu0 %v8651
    %v9789 = vpop.f32.mrf.mxu0
    %v9790 = vadd.f32 %v9621, %v9789
    %v9791 = vpop.f32.mrf.mxu0
    %v9792 = vadd.f32 %v9623, %v9791
    %9793 = vmatmul.bf16.gmra.mxu0 %v8654
    %v9794 = vpop.f32.mrf.mxu0
    %v9795 = vadd.f32 %v9626, %v9794
    %v9796 = vpop.f32.mrf.mxu0
    %v9797 = vadd.f32 %v9628, %v9796
    %9798 = vmatmul.bf16.gmra.mxu0 %v8657
    %v9799 = vpop.f32.mrf.mxu0
    %v9800 = vadd.f32 %v9631, %v9799
    %v9801 = vpop.f32.mrf.mxu0
    %v9802 = vadd.f32 %v9633, %v9801
    %9803 = vmatmul.bf16.gmra.mxu0 %v8660
    %v9804 = vpop.f32.mrf.mxu0
    %v9805 = vadd.f32 %v9636, %v9804
    %v9806 = vpop.f32.mrf.mxu0
    %v9807 = vadd.f32 %v9638, %v9806
    %9808 = vmatmul.bf16.gmra.mxu0 %v8663
    %v9809 = vpop.f32.mrf.mxu0
    %v9810 = vadd.f32 %v9641, %v9809
    %v9811 = vpop.f32.mrf.mxu0
    %v9812 = vadd.f32 %v9643, %v9811
    %9813 = vmatmul.bf16.gmra.mxu0 %v8666
    %v9814 = vpop.f32.mrf.mxu0
    %v9815 = vadd.f32 %v9646, %v9814
    %v9816 = vpop.f32.mrf.mxu0
    %v9817 = vadd.f32 %v9648, %v9816
    %9818 = vmatmul.bf16.gmra.mxu0 %v8669
    %v9819 = vpop.f32.mrf.mxu0
    %v9820 = vadd.f32 %v9651, %v9819
    %v9821 = vpop.f32.mrf.mxu0
    %v9822 = vadd.f32 %v9653, %v9821
    %9823 = vmatmul.bf16.gmra.mxu0 %v8672
    %v9824 = vpop.f32.mrf.mxu0
    %v9825 = vadd.f32 %v9656, %v9824
    %v9826 = vpop.f32.mrf.mxu0
    %v9827 = vadd.f32 %v9658, %v9826
    %9828 = vmatmul.bf16.gmra.mxu0 %v8675
    %v9829 = vpop.f32.mrf.mxu0
    %v9830 = vadd.f32 %v9661, %v9829
    %v9831 = vpop.f32.mrf.mxu0
    %v9832 = vadd.f32 %v9663, %v9831
    %9833 = vmatmul.bf16.gmra.mxu0 %v8678
    %v9834 = vpop.f32.mrf.mxu0
    %v9835 = vadd.f32 %v9666, %v9834
    %v9836 = vpop.f32.mrf.mxu0
    %v9837 = vadd.f32 %v9668, %v9836
    %9838 = vmatmul.bf16.gmra.mxu0 %v8681
    %v9839 = vpop.f32.mrf.mxu0
    %v9840 = vadd.f32 %v9671, %v9839
    %v9841 = vpop.f32.mrf.mxu0
    %v9842 = vadd.f32 %v9673, %v9841
    %9843 = vmatmul.bf16.gmra.mxu0 %v8684
    %v9844 = vpop.f32.mrf.mxu0
    %v9845 = vadd.f32 %v9676, %v9844
    %v9846 = vpop.f32.mrf.mxu0
    %v9847 = vadd.f32 %v9678, %v9846
    %9848 = vmatmul.bf16.gmra.mxu0 %v8687
    %v9849 = vpop.f32.mrf.mxu0
    %v9850 = vadd.f32 %v9681, %v9849
    %v9851 = vpop.f32.mrf.mxu0
    %v9852 = vadd.f32 %v9683, %v9851
    %9853 = vmatmul.bf16.gmra.mxu0 %v8690
    %v9854 = vpop.f32.mrf.mxu0
    %v9855 = vadd.f32 %v9686, %v9854
    %v9856 = vpop.f32.mrf.mxu0
    %v9857 = vadd.f32 %v9688, %v9856
    %9858 = vmatmul.bf16.gmra.mxu0 %v8693
    %v9859 = vpop.f32.mrf.mxu0
    %v9860 = vadd.f32 %v9691, %v9859
    %v9861 = vpop.f32.mrf.mxu0
    %v9862 = vadd.f32 %v9693, %v9861
    %9863 = vmatmul.bf16.gmra.mxu0 %v8696
    %v9864 = vpop.f32.mrf.mxu0
    %v9865 = vadd.f32 %v9696, %v9864
    %v9866 = vpop.f32.mrf.mxu0
    %v9867 = vadd.f32 %v9698, %v9866
    %9868 = vmatmul.bf16.gmra.mxu0 %v8699
    %v9869 = vpop.f32.mrf.mxu0
    %v9870 = vadd.f32 %v9701, %v9869
    %v9871 = vpop.f32.mrf.mxu0
    %v9872 = vadd.f32 %v9703, %v9871
    %9873 = vmatmul.bf16.gmra.mxu0 %v8702
    %v9874 = vpop.f32.mrf.mxu0
    %v9875 = vadd.f32 %v9706, %v9874
    %v9876 = vpop.f32.mrf.mxu0
    %v9877 = vadd.f32 %v9708, %v9876
    %9878 = vmatmul.bf16.gmra.mxu0 %v8705
    %v9879 = vpop.f32.mrf.mxu0
    %v9880 = vadd.f32 %v9711, %v9879
    %v9881 = vpop.f32.mrf.mxu0
    %v9882 = vadd.f32 %v9713, %v9881
    %9883 = vmatmul.bf16.gmra.mxu0 %v8708
    %v9884 = vpop.f32.mrf.mxu0
    %v9885 = vadd.f32 %v9716, %v9884
    %v9886 = vpop.f32.mrf.mxu0
    %v9887 = vadd.f32 %v9718, %v9886
    %9888 = vmatmul.bf16.gmra.mxu0 %v8711
    %v9889 = vpop.f32.mrf.mxu0
    %v9890 = vadd.f32 %v9721, %v9889
    %v9891 = vpop.f32.mrf.mxu0
    %v9892 = vadd.f32 %v9723, %v9891
    %9893 = vmatmul.bf16.gmra.mxu0 %v8714
    %v9894 = vpop.f32.mrf.mxu0
    %v9895 = vadd.f32 %v9726, %v9894
    %v9896 = vpop.f32.mrf.mxu0
    %v9897 = vadd.f32 %v9728, %v9896
    %9898 = vmatmul.bf16.gmra.mxu0 %v8717
    %v9899 = vpop.f32.mrf.mxu0
    %v9900 = vadd.f32 %v9731, %v9899
    %v9901 = vpop.f32.mrf.mxu0
    %v9902 = vadd.f32 %v9733, %v9901
    %9903 = vdwg.mxu0
    %9904 = vmatpush.bf16.msra.mxu0 0
    %9905 = vmatpush.bf16.msra.mxu0 0
    %9906 = vmatpush.bf16.msra.mxu0 0
    %9907 = vmatpush.bf16.msra.mxu0 0
    %9908 = vmatpush.bf16.msra.mxu0 0
    %9909 = vmatpush.bf16.msra.mxu0 0
    %9910 = vmatpush.bf16.msra.mxu0 %v8926
    %9911 = vmatpush.bf16.msra.mxu0 %v8924
    %9912 = vmatmul.bf16.gmra.mxu0 %v8964
    %v9913 = vpop.f32.mrf.mxu0
    %v9914 = vadd.f32 %v9745, %v9913
    %v9915 = vpop.f32.mrf.mxu0
    %v9916 = vadd.f32 %v9747, %v9915
    %9917 = vmatmul.bf16.gmra.mxu0 %v8967
    %v9918 = vpop.f32.mrf.mxu0
    %v9919 = vadd.f32 %v9750, %v9918
    %v9920 = vpop.f32.mrf.mxu0
    %v9921 = vadd.f32 %v9752, %v9920
    %9922 = vmatmul.bf16.gmra.mxu0 %v8970
    %v9923 = vpop.f32.mrf.mxu0
    %v9924 = vadd.f32 %v9755, %v9923
    %v9925 = vpop.f32.mrf.mxu0
    %v9926 = vadd.f32 %v9757, %v9925
    %9927 = vmatmul.bf16.gmra.mxu0 %v8973
    %v9928 = vpop.f32.mrf.mxu0
    %v9929 = vadd.f32 %v9760, %v9928
    %v9930 = vpop.f32.mrf.mxu0
    %v9931 = vadd.f32 %v9762, %v9930
    %9932 = vmatmul.bf16.gmra.mxu0 %v8976
    %v9933 = vpop.f32.mrf.mxu0
    %v9934 = vadd.f32 %v9765, %v9933
    %v9935 = vpop.f32.mrf.mxu0
    %v9936 = vadd.f32 %v9767, %v9935
    %9937 = vmatmul.bf16.gmra.mxu0 %v8979
    %v9938 = vpop.f32.mrf.mxu0
    %v9939 = vadd.f32 %v9770, %v9938
    %v9940 = vpop.f32.mrf.mxu0
    %v9941 = vadd.f32 %v9772, %v9940
    %9942 = vmatmul.bf16.gmra.mxu0 %v8982
    %v9943 = vpop.f32.mrf.mxu0
    %v9944 = vadd.f32 %v9775, %v9943
    %v9945 = vpop.f32.mrf.mxu0
    %v9946 = vadd.f32 %v9777, %v9945
    %9947 = vmatmul.bf16.gmra.mxu0 %v8985
    %v9948 = vpop.f32.mrf.mxu0
    %v9949 = vadd.f32 %v9780, %v9948
    %v9950 = vpop.f32.mrf.mxu0
    %v9951 = vadd.f32 %v9782, %v9950
    %9952 = vmatmul.bf16.gmra.mxu0 %v8988
    %v9953 = vpop.f32.mrf.mxu0
    %v9954 = vadd.f32 %v9785, %v9953
    %v9955 = vpop.f32.mrf.mxu0
    %v9956 = vadd.f32 %v9787, %v9955
    %9957 = vmatmul.bf16.gmra.mxu0 %v8991
    %v9958 = vpop.f32.mrf.mxu0
    %v9959 = vadd.f32 %v9790, %v9958
    %v9960 = vpop.f32.mrf.mxu0
    %v9961 = vadd.f32 %v9792, %v9960
    %9962 = vmatmul.bf16.gmra.mxu0 %v8994
    %v9963 = vpop.f32.mrf.mxu0
    %v9964 = vadd.f32 %v9795, %v9963
    %v9965 = vpop.f32.mrf.mxu0
    %v9966 = vadd.f32 %v9797, %v9965
    %9967 = vmatmul.bf16.gmra.mxu0 %v8997
    %v9968 = vpop.f32.mrf.mxu0
    %v9969 = vadd.f32 %v9800, %v9968
    %v9970 = vpop.f32.mrf.mxu0
    %v9971 = vadd.f32 %v9802, %v9970
    %9972 = vmatmul.bf16.gmra.mxu0 %v9000
    %v9973 = vpop.f32.mrf.mxu0
    %v9974 = vadd.f32 %v9805, %v9973
    %v9975 = vpop.f32.mrf.mxu0
    %v9976 = vadd.f32 %v9807, %v9975
    %9977 = vmatmul.bf16.gmra.mxu0 %v9003
    %v9978 = vpop.f32.mrf.mxu0
    %v9979 = vadd.f32 %v9810, %v9978
    %v9980 = vpop.f32.mrf.mxu0
    %v9981 = vadd.f32 %v9812, %v9980
    %9982 = vmatmul.bf16.gmra.mxu0 %v9006
    %v9983 = vpop.f32.mrf.mxu0
    %v9984 = vadd.f32 %v9815, %v9983
    %v9985 = vpop.f32.mrf.mxu0
    %v9986 = vadd.f32 %v9817, %v9985
    %9987 = vmatmul.bf16.gmra.mxu0 %v9009
    %v9988 = vpop.f32.mrf.mxu0
    %v9989 = vadd.f32 %v9820, %v9988
    %v9990 = vpop.f32.mrf.mxu0
    %v9991 = vadd.f32 %v9822, %v9990
    %9992 = vmatmul.bf16.gmra.mxu0 %v9012
    %v9993 = vpop.f32.mrf.mxu0
    %v9994 = vadd.f32 %v9825, %v9993
    %v9995 = vpop.f32.mrf.mxu0
    %v9996 = vadd.f32 %v9827, %v9995
    %9997 = vmatmul.bf16.gmra.mxu0 %v9015
    %v9998 = vpop.f32.mrf.mxu0
    %v9999 = vadd.f32 %v9830, %v9998
    %v10000 = vpop.f32.mrf.mxu0
    %v10001 = vadd.f32 %v9832, %v10000
    %10002 = vmatmul.bf16.gmra.mxu0 %v9018
    %v10003 = vpop.f32.mrf.mxu0
    %v10004 = vadd.f32 %v9835, %v10003
    %v10005 = vpop.f32.mrf.mxu0
    %v10006 = vadd.f32 %v9837, %v10005
    %10007 = vmatmul.bf16.gmra.mxu0 %v9021
    %v10008 = vpop.f32.mrf.mxu0
    %v10009 = vadd.f32 %v9840, %v10008
    %v10010 = vpop.f32.mrf.mxu0
    %v10011 = vadd.f32 %v9842, %v10010
    %10012 = vmatmul.bf16.gmra.mxu0 %v9024
    %v10013 = vpop.f32.mrf.mxu0
    %v10014 = vadd.f32 %v9845, %v10013
    %v10015 = vpop.f32.mrf.mxu0
    %v10016 = vadd.f32 %v9847, %v10015
    %10017 = vmatmul.bf16.gmra.mxu0 %v9027
    %v10018 = vpop.f32.mrf.mxu0
    %v10019 = vadd.f32 %v9850, %v10018
    %v10020 = vpop.f32.mrf.mxu0
    %v10021 = vadd.f32 %v9852, %v10020
    %10022 = vmatmul.bf16.gmra.mxu0 %v9030
    %v10023 = vpop.f32.mrf.mxu0
    %v10024 = vadd.f32 %v9855, %v10023
    %v10025 = vpop.f32.mrf.mxu0
    %v10026 = vadd.f32 %v9857, %v10025
    %10027 = vmatmul.bf16.gmra.mxu0 %v9033
    %v10028 = vpop.f32.mrf.mxu0
    %v10029 = vadd.f32 %v9860, %v10028
    %v10030 = vpop.f32.mrf.mxu0
    %v10031 = vadd.f32 %v9862, %v10030
    %10032 = vmatmul.bf16.gmra.mxu0 %v9036
    %v10033 = vpop.f32.mrf.mxu0
    %v10034 = vadd.f32 %v9865, %v10033
    %v10035 = vpop.f32.mrf.mxu0
    %v10036 = vadd.f32 %v9867, %v10035
    %10037 = vmatmul.bf16.gmra.mxu0 %v9039
    %v10038 = vpop.f32.mrf.mxu0
    %v10039 = vadd.f32 %v9870, %v10038
    %v10040 = vpop.f32.mrf.mxu0
    %v10041 = vadd.f32 %v9872, %v10040
    %10042 = vmatmul.bf16.gmra.mxu0 %v9042
    %v10043 = vpop.f32.mrf.mxu0
    %v10044 = vadd.f32 %v9875, %v10043
    %v10045 = vpop.f32.mrf.mxu0
    %v10046 = vadd.f32 %v9877, %v10045
    %10047 = vmatmul.bf16.gmra.mxu0 %v9045
    %v10048 = vpop.f32.mrf.mxu0
    %v10049 = vadd.f32 %v9880, %v10048
    %v10050 = vpop.f32.mrf.mxu0
    %v10051 = vadd.f32 %v9882, %v10050
    %10052 = vmatmul.bf16.gmra.mxu0 %v9048
    %v10053 = vpop.f32.mrf.mxu0
    %v10054 = vadd.f32 %v9885, %v10053
    %v10055 = vpop.f32.mrf.mxu0
    %v10056 = vadd.f32 %v9887, %v10055
    %10057 = vmatmul.bf16.gmra.mxu0 %v9051
    %v10058 = vpop.f32.mrf.mxu0
    %v10059 = vadd.f32 %v9890, %v10058
    %v10060 = vpop.f32.mrf.mxu0
    %v10061 = vadd.f32 %v9892, %v10060
    %10062 = vmatmul.bf16.gmra.mxu0 %v9054
    %v10063 = vpop.f32.mrf.mxu0
    %v10064 = vadd.f32 %v9895, %v10063
    %v10065 = vpop.f32.mrf.mxu0
    %v10066 = vadd.f32 %v9897, %v10065
    %10067 = vmatmul.bf16.gmra.mxu0 %v9057
    %v10068 = vpop.f32.mrf.mxu0
    %v10069 = vadd.f32 %v9900, %v10068
    %v10070 = vpop.f32.mrf.mxu0
    %v10071 = vadd.f32 %v9902, %v10070
    %10072 = vdwg.mxu0
    %v10073 = vmax.f32 %v9407, 0.0
    %v10074 = vmax.f32 %v9914, 0.0
    %v10075 = vmax.f32 %v9409, 0.0
    %v10076 = vmax.f32 %v9916, 0.0
    %v10077 = vmax.f32 %v9412, 0.0
    %v10078 = vmax.f32 %v9919, 0.0
    %v10079 = vmax.f32 %v9414, 0.0
    %v10080 = vmax.f32 %v9921, 0.0
    %v10081 = vmax.f32 %v9417, 0.0
    %v10082 = vmax.f32 %v9924, 0.0
    %v10083 = vmax.f32 %v9419, 0.0
    %v10084 = vmax.f32 %v9926, 0.0
    %v10085 = vmax.f32 %v9422, 0.0
    %v10086 = vmax.f32 %v9929, 0.0
    %v10087 = vmax.f32 %v9424, 0.0
    %v10088 = vmax.f32 %v9931, 0.0
    %v10089 = vmax.f32 %v9427, 0.0
    %v10090 = vmax.f32 %v9934, 0.0
    %v10091 = vmax.f32 %v9429, 0.0
    %v10092 = vmax.f32 %v9936, 0.0
    %v10093 = vmax.f32 %v9432, 0.0
    %v10094 = vmax.f32 %v9939, 0.0
    %v10095 = vmax.f32 %v9434, 0.0
    %v10096 = vmax.f32 %v9941, 0.0
    %v10097 = vmax.f32 %v9437, 0.0
    %v10098 = vmax.f32 %v9944, 0.0
    %v10099 = vmax.f32 %v9439, 0.0
    %v10100 = vmax.f32 %v9946, 0.0
    %v10101 = vmax.f32 %v9442, 0.0
    %v10102 = vmax.f32 %v9949, 0.0
    %v10103 = vmax.f32 %v9444, 0.0
    %v10104 = vmax.f32 %v9951, 0.0
    %v10105 = vmax.f32 %v9447, 0.0
    %v10106 = vmax.f32 %v9954, 0.0
    %v10107 = vmax.f32 %v9449, 0.0
    %v10108 = vmax.f32 %v9956, 0.0
    %v10109 = vmax.f32 %v9452, 0.0
    %v10110 = vmax.f32 %v9959, 0.0
    %v10111 = vmax.f32 %v9454, 0.0
    %v10112 = vmax.f32 %v9961, 0.0
    %v10113 = vmax.f32 %v9457, 0.0
    %v10114 = vmax.f32 %v9964, 0.0
    %v10115 = vmax.f32 %v9459, 0.0
    %v10116 = vmax.f32 %v9966, 0.0
    %v10117 = vmax.f32 %v9462, 0.0
    %v10118 = vmax.f32 %v9969, 0.0
    %v10119 = vmax.f32 %v9464, 0.0
    %v10120 = vmax.f32 %v9971, 0.0
    %v10121 = vmax.f32 %v9467, 0.0
    %v10122 = vmax.f32 %v9974, 0.0
    %v10123 = vmax.f32 %v9469, 0.0
    %v10124 = vmax.f32 %v9976, 0.0
    %v10125 = vmax.f32 %v9472, 0.0
    %v10126 = vmax.f32 %v9979, 0.0
    %v10127 = vmax.f32 %v9474, 0.0
    %v10128 = vmax.f32 %v9981, 0.0
    %v10129 = vmax.f32 %v9477, 0.0
    %v10130 = vmax.f32 %v9984, 0.0
    %v10131 = vmax.f32 %v9479, 0.0
    %v10132 = vmax.f32 %v9986, 0.0
    %v10133 = vmax.f32 %v9482, 0.0
    %v10134 = vmax.f32 %v9989, 0.0
    %v10135 = vmax.f32 %v9484, 0.0
    %v10136 = vmax.f32 %v9991, 0.0
    %v10137 = vmax.f32 %v9487, 0.0
    %v10138 = vmax.f32 %v9994, 0.0
    %v10139 = vmax.f32 %v9489, 0.0
    %v10140 = vmax.f32 %v9996, 0.0
    %v10141 = vmax.f32 %v9492, 0.0
    %v10142 = vmax.f32 %v9999, 0.0
    %v10143 = vmax.f32 %v9494, 0.0
    %v10144 = vmax.f32 %v10001, 0.0
    %v10145 = vmax.f32 %v9497, 0.0
    %v10146 = vmax.f32 %v10004, 0.0
    %v10147 = vmax.f32 %v9499, 0.0
    %v10148 = vmax.f32 %v10006, 0.0
    %v10149 = vmax.f32 %v9502, 0.0
    %v10150 = vmax.f32 %v10009, 0.0
    %v10151 = vmax.f32 %v9504, 0.0
    %v10152 = vmax.f32 %v10011, 0.0
    %v10153 = vmax.f32 %v9507, 0.0
    %v10154 = vmax.f32 %v10014, 0.0
    %v10155 = vmax.f32 %v9509, 0.0
    %v10156 = vmax.f32 %v10016, 0.0
    %v10157 = vmax.f32 %v9512, 0.0
    %v10158 = vmax.f32 %v10019, 0.0
    %v10159 = vmax.f32 %v9514, 0.0
    %v10160 = vmax.f32 %v10021, 0.0
    %v10161 = vmax.f32 %v9517, 0.0
    %v10162 = vmax.f32 %v10024, 0.0
    %v10163 = vmax.f32 %v9519, 0.0
    %v10164 = vmax.f32 %v10026, 0.0
    %v10165 = vmax.f32 %v9522, 0.0
    %v10166 = vmax.f32 %v10029, 0.0
    %v10167 = vmax.f32 %v9524, 0.0
    %v10168 = vmax.f32 %v10031, 0.0
    %v10169 = vmax.f32 %v9527, 0.0
    %v10170 = vmax.f32 %v10034, 0.0
    %v10171 = vmax.f32 %v9529, 0.0
    %v10172 = vmax.f32 %v10036, 0.0
    %v10173 = vmax.f32 %v9532, 0.0
    %v10174 = vmax.f32 %v10039, 0.0
    %v10175 = vmax.f32 %v9534, 0.0
    %v10176 = vmax.f32 %v10041, 0.0
    %v10177 = vmax.f32 %v9537, 0.0
    %v10178 = vmax.f32 %v10044, 0.0
    %v10179 = vmax.f32 %v9539, 0.0
    %v10180 = vmax.f32 %v10046, 0.0
    %v10181 = vmax.f32 %v9542, 0.0
    %v10182 = vmax.f32 %v10049, 0.0
    %v10183 = vmax.f32 %v9544, 0.0
    %v10184 = vmax.f32 %v10051, 0.0
    %v10185 = vmax.f32 %v9547, 0.0
    %v10186 = vmax.f32 %v10054, 0.0
    %v10187 = vmax.f32 %v9549, 0.0
    %v10188 = vmax.f32 %v10056, 0.0
    %v10189 = vmax.f32 %v9552, 0.0
    %v10190 = vmax.f32 %v10059, 0.0
    %v10191 = vmax.f32 %v9554, 0.0
    %v10192 = vmax.f32 %v10061, 0.0
    %v10193 = vmax.f32 %v9557, 0.0
    %v10194 = vmax.f32 %v10064, 0.0
    %v10195 = vmax.f32 %v9559, 0.0
    %v10196 = vmax.f32 %v10066, 0.0
    %v10197 = vmax.f32 %v9562, 0.0
    %v10198 = vmax.f32 %v10069, 0.0
    %v10199 = vmax.f32 %v9564, 0.0
    %v10200 = vmax.f32 %v10071, 0.0
    %v10201 = vpack.c.bf16 %v10074, %v10073
    %v10202 = vpack.c.bf16 %v10076, %v10075
    %v10203 = vpack.c.bf16 %v10078, %v10077
    %v10204 = vpack.c.bf16 %v10080, %v10079
    %v10205 = vpack.c.bf16 %v10082, %v10081
    %v10206 = vpack.c.bf16 %v10084, %v10083
    %v10207 = vpack.c.bf16 %v10086, %v10085
    %v10208 = vpack.c.bf16 %v10088, %v10087
    %v10209 = vpack.c.bf16 %v10090, %v10089
    %v10210 = vpack.c.bf16 %v10092, %v10091
    %v10211 = vpack.c.bf16 %v10094, %v10093
    %v10212 = vpack.c.bf16 %v10096, %v10095
    %v10213 = vpack.c.bf16 %v10098, %v10097
    %v10214 = vpack.c.bf16 %v10100, %v10099
    %v10215 = vpack.c.bf16 %v10102, %v10101
    %v10216 = vpack.c.bf16 %v10104, %v10103
    %v10217 = vpack.c.bf16 %v10106, %v10105
    %v10218 = vpack.c.bf16 %v10108, %v10107
    %v10219 = vpack.c.bf16 %v10110, %v10109
    %v10220 = vpack.c.bf16 %v10112, %v10111
    %v10221 = vpack.c.bf16 %v10114, %v10113
    %v10222 = vpack.c.bf16 %v10116, %v10115
    %v10223 = vpack.c.bf16 %v10118, %v10117
    %v10224 = vpack.c.bf16 %v10120, %v10119
    %v10225 = vpack.c.bf16 %v10122, %v10121
    %v10226 = vpack.c.bf16 %v10124, %v10123
    %v10227 = vpack.c.bf16 %v10126, %v10125
    %v10228 = vpack.c.bf16 %v10128, %v10127
    %v10229 = vpack.c.bf16 %v10130, %v10129
    %v10230 = vpack.c.bf16 %v10132, %v10131
    %v10231 = vpack.c.bf16 %v10134, %v10133
    %v10232 = vpack.c.bf16 %v10136, %v10135
    %v10233 = vpack.c.bf16 %v10138, %v10137
    %v10234 = vpack.c.bf16 %v10140, %v10139
    %v10235 = vpack.c.bf16 %v10142, %v10141
    %v10236 = vpack.c.bf16 %v10144, %v10143
    %v10237 = vpack.c.bf16 %v10146, %v10145
    %v10238 = vpack.c.bf16 %v10148, %v10147
    %v10239 = vpack.c.bf16 %v10150, %v10149
    %v10240 = vpack.c.bf16 %v10152, %v10151
    %v10241 = vpack.c.bf16 %v10154, %v10153
    %v10242 = vpack.c.bf16 %v10156, %v10155
    %v10243 = vpack.c.bf16 %v10158, %v10157
    %v10244 = vpack.c.bf16 %v10160, %v10159
    %v10245 = vpack.c.bf16 %v10162, %v10161
    %v10246 = vpack.c.bf16 %v10164, %v10163
    %v10247 = vpack.c.bf16 %v10166, %v10165
    %v10248 = vpack.c.bf16 %v10168, %v10167
    %v10249 = vpack.c.bf16 %v10170, %v10169
    %v10250 = vpack.c.bf16 %v10172, %v10171
    %v10251 = vpack.c.bf16 %v10174, %v10173
    %v10252 = vpack.c.bf16 %v10176, %v10175
    %v10253 = vpack.c.bf16 %v10178, %v10177
    %v10254 = vpack.c.bf16 %v10180, %v10179
    %v10255 = vpack.c.bf16 %v10182, %v10181
    %v10256 = vpack.c.bf16 %v10184, %v10183
    %v10257 = vpack.c.bf16 %v10186, %v10185
    %v10258 = vpack.c.bf16 %v10188, %v10187
    %v10259 = vpack.c.bf16 %v10190, %v10189
    %v10260 = vpack.c.bf16 %v10192, %v10191
    %v10261 = vpack.c.bf16 %v10194, %v10193
    %v10262 = vpack.c.bf16 %v10196, %v10195
    %v10263 = vpack.c.bf16 %v10198, %v10197
    %v10264 = vpack.c.bf16 %v10200, %v10199
    %10265 = vst [vmem:[#allocation14 + $0x8] sm:$0xff] %v10201
    %10266 = vst [vmem:[#allocation14 + $0x30] sm:$0xff] %v10202
    %10267 = vst [vmem:[#allocation14 + $0x58] sm:$0xff] %v10203
    %10268 = vst [vmem:[#allocation14 + $0x80] sm:$0xff] %v10204
    %10269 = vst [vmem:[#allocation14 + $0xa8] sm:$0xff] %v10205
    %10270 = vst [vmem:[#allocation14 + $0xd0] sm:$0xff] %v10206
    %10271 = vst [vmem:[#allocation14 + $0xf8] sm:$0xff] %v10207
    %10272 = vst [vmem:[#allocation14 + $0x120] sm:$0xff] %v10208
    %10273 = vst [vmem:[#allocation14 + $0x148] sm:$0xff] %v10209
    %10274 = vst [vmem:[#allocation14 + $0x170] sm:$0xff] %v10210
    %10275 = vst [vmem:[#allocation14 + $0x198] sm:$0xff] %v10211
    %10276 = vst [vmem:[#allocation14 + $0x1c0] sm:$0xff] %v10212
    %10277 = vst [vmem:[#allocation14 + $0x1e8] sm:$0xff] %v10213
    %10278 = vst [vmem:[#allocation14 + $0x210] sm:$0xff] %v10214
    %10279 = vst [vmem:[#allocation14 + $0x238] sm:$0xff] %v10215
    %10280 = vst [vmem:[#allocation14 + $0x260] sm:$0xff] %v10216
    %10281 = vst [vmem:[#allocation14 + $0x288] sm:$0xff] %v10217
    %10282 = vst [vmem:[#allocation14 + $0x2b0] sm:$0xff] %v10218
    %10283 = vst [vmem:[#allocation14 + $0x2d8] sm:$0xff] %v10219
    %10284 = vst [vmem:[#allocation14 + $0x300] sm:$0xff] %v10220
    %10285 = vst [vmem:[#allocation14 + $0x328] sm:$0xff] %v10221
    %10286 = vst [vmem:[#allocation14 + $0x350] sm:$0xff] %v10222
    %10287 = vst [vmem:[#allocation14 + $0x378] sm:$0xff] %v10223
    %10288 = vst [vmem:[#allocation14 + $0x3a0] sm:$0xff] %v10224
    %10289 = vst [vmem:[#allocation14 + $0x3c8] sm:$0xff] %v10225
    %10290 = vst [vmem:[#allocation14 + $0x3f0] sm:$0xff] %v10226
    %10291 = vst [vmem:[#allocation14 + $0x418] sm:$0xff] %v10227
    %10292 = vst [vmem:[#allocation14 + $0x440] sm:$0xff] %v10228
    %10293 = vst [vmem:[#allocation14 + $0x468] sm:$0xff] %v10229
    %10294 = vst [vmem:[#allocation14 + $0x490] sm:$0xff] %v10230
    %10295 = vst [vmem:[#allocation14 + $0x4b8] sm:$0xff] %v10231
    %10296 = vst [vmem:[#allocation14 + $0x4e0] sm:$0xff] %v10232
    %10297 = vst [vmem:[#allocation14 + $0x508] sm:$0xff] %v10233
    %10298 = vst [vmem:[#allocation14 + $0x530] sm:$0xff] %v10234
    %10299 = vst [vmem:[#allocation14 + $0x558] sm:$0xff] %v10235
    %10300 = vst [vmem:[#allocation14 + $0x580] sm:$0xff] %v10236
    %10301 = vst [vmem:[#allocation14 + $0x5a8] sm:$0xff] %v10237
    %10302 = vst [vmem:[#allocation14 + $0x5d0] sm:$0xff] %v10238
    %10303 = vst [vmem:[#allocation14 + $0x5f8] sm:$0xff] %v10239
    %10304 = vst [vmem:[#allocation14 + $0x620] sm:$0xff] %v10240
    %10305 = vst [vmem:[#allocation14 + $0x648] sm:$0xff] %v10241
    %10306 = vst [vmem:[#allocation14 + $0x670] sm:$0xff] %v10242
    %10307 = vst [vmem:[#allocation14 + $0x698] sm:$0xff] %v10243
    %10308 = vst [vmem:[#allocation14 + $0x6c0] sm:$0xff] %v10244
    %10309 = vst [vmem:[#allocation14 + $0x6e8] sm:$0xff] %v10245
    %10310 = vst [vmem:[#allocation14 + $0x710] sm:$0xff] %v10246
    %10311 = vst [vmem:[#allocation14 + $0x738] sm:$0xff] %v10247
    %10312 = vst [vmem:[#allocation14 + $0x760] sm:$0xff] %v10248
    %10313 = vst [vmem:[#allocation14 + $0x788] sm:$0xff] %v10249
    %10314 = vst [vmem:[#allocation14 + $0x7b0] sm:$0xff] %v10250
    %10315 = vst [vmem:[#allocation14 + $0x7d8] sm:$0xff] %v10251
    %10316 = vst [vmem:[#allocation14 + $0x800] sm:$0xff] %v10252
    %10317 = vst [vmem:[#allocation14 + $0x828] sm:$0xff] %v10253
    %10318 = vst [vmem:[#allocation14 + $0x850] sm:$0xff] %v10254
    %10319 = vst [vmem:[#allocation14 + $0x878] sm:$0xff] %v10255
    %10320 = vst [vmem:[#allocation14 + $0x8a0] sm:$0xff] %v10256
    %10321 = vst [vmem:[#allocation14 + $0x8c8] sm:$0xff] %v10257
    %10322 = vst [vmem:[#allocation14 + $0x8f0] sm:$0xff] %v10258
    %10323 = vst [vmem:[#allocation14 + $0x918] sm:$0xff] %v10259
    %10324 = vst [vmem:[#allocation14 + $0x940] sm:$0xff] %v10260
    %10325 = vst [vmem:[#allocation14 + $0x968] sm:$0xff] %v10261
    %10326 = vst [vmem:[#allocation14 + $0x990] sm:$0xff] %v10262
    %10327 = vst [vmem:[#allocation14 + $0x9b8] sm:$0xff] %v10263
    %10328 = vst [vmem:[#allocation14 + $0x9e0] sm:$0xff] %v10264
    %v10329 = vld [vmem:[#allocation3] sm:$0xf]
    %v10330 = vld [vmem:[#allocation3 + $0x4] sm:$0xf]
    %v10331 = vld [vmem:[#allocation3 + $0x8] sm:$0xf]
    %v10332 = vld [vmem:[#allocation3 + $0xc] sm:$0xf]
    %v10333 = vld [vmem:[#allocation3 + $0x10] sm:$0xf]
    %v10334 = vld [vmem:[#allocation3 + $0x14] sm:$0xf]
    %v10335 = vld [vmem:[#allocation3 + $0x18] sm:$0xf]
    %v10336 = vld [vmem:[#allocation3 + $0x1c] sm:$0xf]
    %v10337 = vld [vmem:[#allocation3 + $0x20] sm:$0xf]
    %v10338 = vld [vmem:[#allocation3 + $0x24] sm:$0xf]
    %v10339 = vld [vmem:[#allocation3 + $0x28] sm:$0xf]
    %v10340 = vld [vmem:[#allocation3 + $0x2c] sm:$0xf]
    %v10341 = vld [vmem:[#allocation3 + $0x30] sm:$0xf]
    %v10342 = vld [vmem:[#allocation3 + $0x34] sm:$0xf]
    %v10343 = vld [vmem:[#allocation3 + $0x38] sm:$0xf]
    %v10344 = vld [vmem:[#allocation3 + $0x3c] sm:$0xf]
    %v10345 = vld [vmem:[#allocation3 + $0x40] sm:$0xf]
    %v10346 = vld [vmem:[#allocation3 + $0x44] sm:$0xf]
    %v10347 = vld [vmem:[#allocation3 + $0x48] sm:$0xf]
    %v10348 = vld [vmem:[#allocation3 + $0x4c] sm:$0xf]
    %v10349 = vld [vmem:[#allocation3 + $0x50] sm:$0xf]
    %v10350 = vld [vmem:[#allocation3 + $0x54] sm:$0xf]
    %v10351 = vld [vmem:[#allocation3 + $0x58] sm:$0xf]
    %v10352 = vld [vmem:[#allocation3 + $0x5c] sm:$0xf]
    %v10353 = vld [vmem:[#allocation3 + $0x60] sm:$0xf]
    %v10354 = vld [vmem:[#allocation3 + $0x64] sm:$0xf]
    %v10355 = vld [vmem:[#allocation3 + $0x68] sm:$0xf]
    %v10356 = vld [vmem:[#allocation3 + $0x6c] sm:$0xf]
    %v10357 = vld [vmem:[#allocation3 + $0x70] sm:$0xf]
    %v10358 = vld [vmem:[#allocation3 + $0x74] sm:$0xf]
    %v10359 = vld [vmem:[#allocation3 + $0x78] sm:$0xf]
    %v10360 = vld [vmem:[#allocation3 + $0x7c] sm:$0xf]
    %v10361 = vld [vmem:[#allocation3 + $0x80] sm:$0xf]
    %v10362 = vld [vmem:[#allocation3 + $0x84] sm:$0xf]
    %v10363 = vld [vmem:[#allocation3 + $0x88] sm:$0xf]
    %v10364 = vld [vmem:[#allocation3 + $0x8c] sm:$0xf]
    %v10365 = vld [vmem:[#allocation3 + $0x90] sm:$0xf]
    %v10366 = vld [vmem:[#allocation3 + $0x94] sm:$0xf]
    %v10367 = vld [vmem:[#allocation3 + $0x98] sm:$0xf]
    %v10368 = vld [vmem:[#allocation3 + $0x9c] sm:$0xf]
    %v10369 = vld [vmem:[#allocation3 + $0xa0] sm:$0xf]
    %v10370 = vld [vmem:[#allocation3 + $0xa4] sm:$0xf]
    %v10371 = vld [vmem:[#allocation3 + $0xa8] sm:$0xf]
    %v10372 = vld [vmem:[#allocation3 + $0xac] sm:$0xf]
    %v10373 = vld [vmem:[#allocation3 + $0xb0] sm:$0xf]
    %v10374 = vld [vmem:[#allocation3 + $0xb4] sm:$0xf]
    %v10375 = vld [vmem:[#allocation3 + $0xb8] sm:$0xf]
    %v10376 = vld [vmem:[#allocation3 + $0xbc] sm:$0xf]
    %v10377 = vld [vmem:[#allocation3 + $0xc0] sm:$0xf]
    %v10378 = vld [vmem:[#allocation3 + $0xc4] sm:$0xf]
    %v10379 = vld [vmem:[#allocation3 + $0xc8] sm:$0xf]
    %v10380 = vld [vmem:[#allocation3 + $0xcc] sm:$0xf]
    %v10381 = vld [vmem:[#allocation3 + $0xd0] sm:$0xf]
    %v10382 = vld [vmem:[#allocation3 + $0xd4] sm:$0xf]
    %v10383 = vld [vmem:[#allocation3 + $0xd8] sm:$0xf]
    %v10384 = vld [vmem:[#allocation3 + $0xdc] sm:$0xf]
    %v10385 = vld [vmem:[#allocation3 + $0xe0] sm:$0xf]
    %v10386 = vld [vmem:[#allocation3 + $0xe4] sm:$0xf]
    %v10387 = vld [vmem:[#allocation3 + $0xe8] sm:$0xf]
    %v10388 = vld [vmem:[#allocation3 + $0xec] sm:$0xf]
    %v10389 = vld [vmem:[#allocation3 + $0xf0] sm:$0xf]
    %v10390 = vld [vmem:[#allocation3 + $0xf4] sm:$0xf]
    %v10391 = vld [vmem:[#allocation3 + $0xf8] sm:$0xf]
    %v10392 = vld [vmem:[#allocation3 + $0xfc] sm:$0xf]
    %v10393 = vunpack.c.l.bf16 %v10329
    %v10394 = vunpack.c.l.bf16 %v10330
    %v10395 = vunpack.c.l.bf16 %v10331
    %v10396 = vunpack.c.l.bf16 %v10332
    %v10397 = vunpack.c.l.bf16 %v10333
    %v10398 = vunpack.c.l.bf16 %v10334
    %v10399 = vunpack.c.l.bf16 %v10335
    %v10400 = vunpack.c.l.bf16 %v10336
    %v10401 = vunpack.c.l.bf16 %v10337
    %v10402 = vunpack.c.l.bf16 %v10338
    %v10403 = vunpack.c.l.bf16 %v10339
    %v10404 = vunpack.c.l.bf16 %v10340
    %v10405 = vunpack.c.l.bf16 %v10341
    %v10406 = vunpack.c.l.bf16 %v10342
    %v10407 = vunpack.c.l.bf16 %v10343
    %v10408 = vunpack.c.l.bf16 %v10344
    %v10409 = vunpack.c.l.bf16 %v10345
    %v10410 = vunpack.c.l.bf16 %v10346
    %v10411 = vunpack.c.l.bf16 %v10347
    %v10412 = vunpack.c.l.bf16 %v10348
    %v10413 = vunpack.c.l.bf16 %v10349
    %v10414 = vunpack.c.l.bf16 %v10350
    %v10415 = vunpack.c.l.bf16 %v10351
    %v10416 = vunpack.c.l.bf16 %v10352
    %v10417 = vunpack.c.l.bf16 %v10353
    %v10418 = vunpack.c.l.bf16 %v10354
    %v10419 = vunpack.c.l.bf16 %v10355
    %v10420 = vunpack.c.l.bf16 %v10356
    %v10421 = vunpack.c.l.bf16 %v10357
    %v10422 = vunpack.c.l.bf16 %v10358
    %v10423 = vunpack.c.l.bf16 %v10359
    %v10424 = vunpack.c.l.bf16 %v10360
    %v10425 = vunpack.c.l.bf16 %v10361
    %v10426 = vunpack.c.l.bf16 %v10362
    %v10427 = vunpack.c.l.bf16 %v10363
    %v10428 = vunpack.c.l.bf16 %v10364
    %v10429 = vunpack.c.l.bf16 %v10365
    %v10430 = vunpack.c.l.bf16 %v10366
    %v10431 = vunpack.c.l.bf16 %v10367
    %v10432 = vunpack.c.l.bf16 %v10368
    %v10433 = vunpack.c.l.bf16 %v10369
    %v10434 = vunpack.c.l.bf16 %v10370
    %v10435 = vunpack.c.l.bf16 %v10371
    %v10436 = vunpack.c.l.bf16 %v10372
    %v10437 = vunpack.c.l.bf16 %v10373
    %v10438 = vunpack.c.l.bf16 %v10374
    %v10439 = vunpack.c.l.bf16 %v10375
    %v10440 = vunpack.c.l.bf16 %v10376
    %v10441 = vunpack.c.l.bf16 %v10377
    %v10442 = vunpack.c.l.bf16 %v10378
    %v10443 = vunpack.c.l.bf16 %v10379
    %v10444 = vunpack.c.l.bf16 %v10380
    %v10445 = vunpack.c.l.bf16 %v10381
    %v10446 = vunpack.c.l.bf16 %v10382
    %v10447 = vunpack.c.l.bf16 %v10383
    %v10448 = vunpack.c.l.bf16 %v10384
    %v10449 = vunpack.c.l.bf16 %v10385
    %v10450 = vunpack.c.l.bf16 %v10386
    %v10451 = vunpack.c.l.bf16 %v10387
    %v10452 = vunpack.c.l.bf16 %v10388
    %v10453 = vunpack.c.l.bf16 %v10389
    %v10454 = vunpack.c.l.bf16 %v10390
    %v10455 = vunpack.c.l.bf16 %v10391
    %v10456 = vunpack.c.l.bf16 %v10392
    %v10457 = vsel %vm389, %v10393, 0.0
    %v10458 = vsel %vm389, %v10394, 0.0
    %v10459 = vadd.f32 %v10457, %v10458
    %v10460 = vsel %vm389, %v10395, 0.0
    %v10461 = vadd.f32 %v10459, %v10460
    %v10462 = vsel %vm389, %v10396, 0.0
    %v10463 = vadd.f32 %v10461, %v10462
    %v10464 = vsel %vm389, %v10397, 0.0
    %v10465 = vadd.f32 %v10463, %v10464
    %v10466 = vsel %vm389, %v10398, 0.0
    %v10467 = vadd.f32 %v10465, %v10466
    %v10468 = vsel %vm389, %v10399, 0.0
    %v10469 = vadd.f32 %v10467, %v10468
    %v10470 = vsel %vm389, %v10400, 0.0
    %v10471 = vadd.f32 %v10469, %v10470
    %v10472 = vsel %vm389, %v10401, 0.0
    %v10473 = vadd.f32 %v10471, %v10472
    %v10474 = vsel %vm389, %v10402, 0.0
    %v10475 = vadd.f32 %v10473, %v10474
    %v10476 = vsel %vm389, %v10403, 0.0
    %v10477 = vadd.f32 %v10475, %v10476
    %v10478 = vsel %vm389, %v10404, 0.0
    %v10479 = vadd.f32 %v10477, %v10478
    %v10480 = vsel %vm389, %v10405, 0.0
    %v10481 = vadd.f32 %v10479, %v10480
    %v10482 = vsel %vm389, %v10406, 0.0
    %v10483 = vadd.f32 %v10481, %v10482
    %v10484 = vsel %vm389, %v10407, 0.0
    %v10485 = vadd.f32 %v10483, %v10484
    %v10486 = vsel %vm389, %v10408, 0.0
    %v10487 = vadd.f32 %v10485, %v10486
    %v10488 = vsel %vm389, %v10409, 0.0
    %v10489 = vadd.f32 %v10487, %v10488
    %v10490 = vsel %vm389, %v10410, 0.0
    %v10491 = vadd.f32 %v10489, %v10490
    %v10492 = vsel %vm389, %v10411, 0.0
    %v10493 = vadd.f32 %v10491, %v10492
    %v10494 = vsel %vm389, %v10412, 0.0
    %v10495 = vadd.f32 %v10493, %v10494
    %v10496 = vsel %vm389, %v10413, 0.0
    %v10497 = vadd.f32 %v10495, %v10496
    %v10498 = vsel %vm389, %v10414, 0.0
    %v10499 = vadd.f32 %v10497, %v10498
    %v10500 = vsel %vm389, %v10415, 0.0
    %v10501 = vadd.f32 %v10499, %v10500
    %v10502 = vsel %vm389, %v10416, 0.0
    %v10503 = vadd.f32 %v10501, %v10502
    %v10504 = vsel %vm389, %v10417, 0.0
    %v10505 = vadd.f32 %v10503, %v10504
    %v10506 = vsel %vm389, %v10418, 0.0
    %v10507 = vadd.f32 %v10505, %v10506
    %v10508 = vsel %vm389, %v10419, 0.0
    %v10509 = vadd.f32 %v10507, %v10508
    %v10510 = vsel %vm389, %v10420, 0.0
    %v10511 = vadd.f32 %v10509, %v10510
    %v10512 = vsel %vm389, %v10421, 0.0
    %v10513 = vadd.f32 %v10511, %v10512
    %v10514 = vsel %vm389, %v10422, 0.0
    %v10515 = vadd.f32 %v10513, %v10514
    %v10516 = vsel %vm389, %v10423, 0.0
    %v10517 = vadd.f32 %v10515, %v10516
    %v10518 = vsel %vm389, %v10424, 0.0
    %v10519 = vadd.f32 %v10517, %v10518
    %v10520 = vrot.slane %v10519, 4
    %v10521 = vadd.f32 %v10519, %v10520
    %v10522 = vrot.slane %v10521, 2
    %v10523 = vadd.f32 %v10521, %v10522
    %v10524 = vrot.slane %v10523, 1
    %v10525 = vadd.f32 %v10523, %v10524
    %v10526 = vsel %vm389, %v10425, 0.0
    %v10527 = vsel %vm389, %v10426, 0.0
    %v10528 = vadd.f32 %v10526, %v10527
    %v10529 = vsel %vm389, %v10427, 0.0
    %v10530 = vadd.f32 %v10528, %v10529
    %v10531 = vsel %vm389, %v10428, 0.0
    %v10532 = vadd.f32 %v10530, %v10531
    %v10533 = vsel %vm389, %v10429, 0.0
    %v10534 = vadd.f32 %v10532, %v10533
    %v10535 = vsel %vm389, %v10430, 0.0
    %v10536 = vadd.f32 %v10534, %v10535
    %v10537 = vsel %vm389, %v10431, 0.0
    %v10538 = vadd.f32 %v10536, %v10537
    %v10539 = vsel %vm389, %v10432, 0.0
    %v10540 = vadd.f32 %v10538, %v10539
    %v10541 = vsel %vm389, %v10433, 0.0
    %v10542 = vadd.f32 %v10540, %v10541
    %v10543 = vsel %vm389, %v10434, 0.0
    %v10544 = vadd.f32 %v10542, %v10543
    %v10545 = vsel %vm389, %v10435, 0.0
    %v10546 = vadd.f32 %v10544, %v10545
    %v10547 = vsel %vm389, %v10436, 0.0
    %v10548 = vadd.f32 %v10546, %v10547
    %v10549 = vsel %vm389, %v10437, 0.0
    %v10550 = vadd.f32 %v10548, %v10549
    %v10551 = vsel %vm389, %v10438, 0.0
    %v10552 = vadd.f32 %v10550, %v10551
    %v10553 = vsel %vm389, %v10439, 0.0
    %v10554 = vadd.f32 %v10552, %v10553
    %v10555 = vsel %vm389, %v10440, 0.0
    %v10556 = vadd.f32 %v10554, %v10555
    %v10557 = vsel %vm389, %v10441, 0.0
    %v10558 = vadd.f32 %v10556, %v10557
    %v10559 = vsel %vm389, %v10442, 0.0
    %v10560 = vadd.f32 %v10558, %v10559
    %v10561 = vsel %vm389, %v10443, 0.0
    %v10562 = vadd.f32 %v10560, %v10561
    %v10563 = vsel %vm389, %v10444, 0.0
    %v10564 = vadd.f32 %v10562, %v10563
    %v10565 = vsel %vm389, %v10445, 0.0
    %v10566 = vadd.f32 %v10564, %v10565
    %v10567 = vsel %vm389, %v10446, 0.0
    %v10568 = vadd.f32 %v10566, %v10567
    %v10569 = vsel %vm389, %v10447, 0.0
    %v10570 = vadd.f32 %v10568, %v10569
    %v10571 = vsel %vm389, %v10448, 0.0
    %v10572 = vadd.f32 %v10570, %v10571
    %v10573 = vsel %vm389, %v10449, 0.0
    %v10574 = vadd.f32 %v10572, %v10573
    %v10575 = vsel %vm389, %v10450, 0.0
    %v10576 = vadd.f32 %v10574, %v10575
    %v10577 = vsel %vm389, %v10451, 0.0
    %v10578 = vadd.f32 %v10576, %v10577
    %v10579 = vsel %vm389, %v10452, 0.0
    %v10580 = vadd.f32 %v10578, %v10579
    %v10581 = vsel %vm389, %v10453, 0.0
    %v10582 = vadd.f32 %v10580, %v10581
    %v10583 = vsel %vm389, %v10454, 0.0
    %v10584 = vadd.f32 %v10582, %v10583
    %v10585 = vsel %vm389, %v10455, 0.0
    %v10586 = vadd.f32 %v10584, %v10585
    %v10587 = vsel %vm389, %v10456, 0.0
    %v10588 = vadd.f32 %v10586, %v10587
    %v10589 = vrot.slane %v10588, 4
    %v10590 = vadd.f32 %v10588, %v10589
    %v10591 = vrot.slane %v10590, 2
    %v10592 = vadd.f32 %v10590, %v10591
    %v10593 = vrot.slane %v10592, 1
    %v10594 = vadd.f32 %v10592, %v10593
    %v10595 = vrcp.pop 256.0
    %v10596 = vmul.f32 256.0, %v10595
    %v10597 = vsub.f32 1.0, %v10596
    %v10598 = vmul.f32 %v10595, %v10597
    %v10599 = vadd.f32 %v10595, %v10598
    %vm10600 = vweird.f32 %v10595
    %v10601 = vsel %vm10600, %v10595, %v10599
    %v10602 = vmul.f32 %v10525, %v10601
    %v10603 = vmul.f32 %v10594, %v10601
    %v10604 = vpack.c.bf16 %v10602, %v10602
    %v10605 = vpack.c.bf16 %v10603, %v10603
    %v10606 = vld [vmem:[#allocation11] sm:$0xff]
    %v10607 = vld [vmem:[#allocation11 + $0x8] sm:$0xff]
    %v10608 = vld [vmem:[#allocation11 + $0x10] sm:$0xff]
    %v10609 = vld [vmem:[#allocation11 + $0x18] sm:$0xff]
    %s10610 = scalar_lea.vmem [#allocation12], 4
    %v10611 = vld [vmem:[%s10610] ss:$8 sm:$0x3]
    %v10613 = vperm.slane %v10611, 0
    %v10614 = vperm.slane %v10611, 1
    %v10619 = vunpack.c.l.b16 %v10604
    %v10620 = vunpack.c.l.b16 %v10605
    %vm10621 = vcmask 1041409
    %v10622 = vsel %vm10621, %v10620, %v10619
    %v10623 = vpack.c.b16 %v10622, %v10622
    %v10628 = vunpack.c.l.b16 %v10606
    %v10629 = vunpack.c.h.b16 %v10606
    %v10630 = vunpack.c.l.b16 %v10607
    %v10631 = vunpack.c.h.b16 %v10607
    %v10632 = vunpack.c.l.b16 %v10608
    %v10633 = vunpack.c.h.b16 %v10608
    %v10634 = vunpack.c.l.b16 %v10609
    %v10635 = vunpack.c.h.b16 %v10609
    %v10636 = vpack.c.b16 %v10630, %v10628
    %v10637 = vpack.c.b16 %v10631, %v10629
    %v10638 = vpack.c.b16 %v10634, %v10632
    %v10639 = vpack.c.b16 %v10635, %v10633
    %v10645 = vsel %vm389, %v10623, 0
    %10647 = vmatpush.bf16.msra.mxu0 0
    %10648 = vmatpush.bf16.msra.mxu0 0
    %10649 = vmatpush.bf16.msra.mxu0 0
    %10650 = vmatpush.bf16.msra.mxu0 0
    %10651 = vmatpush.bf16.msra.mxu0 0
    %10652 = vmatpush.bf16.msra.mxu0 0
    %10653 = vmatpush.bf16.msra.mxu0 %v10638
    %10654 = vmatpush.bf16.msra.mxu0 %v10636
    %10655 = vmatmul.bf16.gmra.mxu0 %v10645
    %v10656 = vpop.f32.mrf.mxu0
    %v10657 = vadd.f32 %v10613, %v10656
    %v10658 = vpop.f32.mrf.mxu0
    %10659 = vdwg.mxu0
    %10660 = vmatpush.bf16.msra.mxu0 0
    %10661 = vmatpush.bf16.msra.mxu0 0
    %10662 = vmatpush.bf16.msra.mxu0 0
    %10663 = vmatpush.bf16.msra.mxu0 0
    %10664 = vmatpush.bf16.msra.mxu0 0
    %10665 = vmatpush.bf16.msra.mxu0 0
    %10666 = vmatpush.bf16.msra.mxu0 %v10639
    %10667 = vmatpush.bf16.msra.mxu0 %v10637
    %10668 = vmatmul.bf16.gmra.mxu0 %v10645
    %v10669 = vpop.f32.mrf.mxu0
    %v10670 = vadd.f32 %v10614, %v10669
    %v10671 = vpop.f32.mrf.mxu0
    %10672 = vdwg.mxu0
    %v10673 = vpack.c.bf16 %v10670, %v10657
    %v10675 = vrot.slane %v10673, 3
    %vm10676 = vcmask 1040384
    %v10679 = vsel %vm10676, %v10673, %v10675
    %v10681 = vunpack.i.l.s16 %v10679
    %v10682 = vunpack.i.h.s16 %v10679
    %v10683 = vpack.i.b16 %v10681, %v10681
    %v10684 = vpack.i.b16 %v10682, %v10682
    %v10685 = vperm.slane %v10683, 0
    %v10686 = vperm.slane %v10683, 1
    %v10687 = vperm.slane %v10684, 0
    %v10688 = vperm.slane %v10684, 1
    %v10690 = vpack.i.b16 %v10685, %v10685
    %v10692 = vperm.slane %v10690, 0
    %v10694 = vpack.i.b16 %v10686, %v10686
    %v10696 = vperm.slane %v10694, 0
    %v10698 = vpack.i.b16 %v10687, %v10687
    %v10700 = vperm.slane %v10698, 0
    %v10702 = vpack.i.b16 %v10688, %v10688
    %v10704 = vperm.slane %v10702, 0
    %v10709 = vunpack.c.l.b16 %v10692
    %v10710 = vunpack.c.l.b16 %v10696
    %v10711 = vunpack.c.l.b16 %v10700
    %v10712 = vunpack.c.l.b16 %v10704
    %v10713 = vpack.c.b16 %v10710, %v10709
    %v10714 = vpack.c.b16 %v10712, %v10711
    %10717 = vst [vmem:[#allocation14 + $0x20] sm:$0xff] %v10713
    %10718 = vst [vmem:[#allocation14 + $0x48] sm:$0xff] %v10713
    %10719 = vst [vmem:[#allocation14 + $0x70] sm:$0xff] %v10713
    %10720 = vst [vmem:[#allocation14 + $0x98] sm:$0xff] %v10713
    %10721 = vst [vmem:[#allocation14 + $0xc0] sm:$0xff] %v10713
    %10722 = vst [vmem:[#allocation14 + $0xe8] sm:$0xff] %v10713
    %10723 = vst [vmem:[#allocation14 + $0x110] sm:$0xff] %v10713
    %10724 = vst [vmem:[#allocation14 + $0x138] sm:$0xff] %v10713
    %10725 = vst [vmem:[#allocation14 + $0x160] sm:$0xff] %v10713
    %10726 = vst [vmem:[#allocation14 + $0x188] sm:$0xff] %v10713
    %10727 = vst [vmem:[#allocation14 + $0x1b0] sm:$0xff] %v10713
    %10728 = vst [vmem:[#allocation14 + $0x1d8] sm:$0xff] %v10713
    %10729 = vst [vmem:[#allocation14 + $0x200] sm:$0xff] %v10713
    %10730 = vst [vmem:[#allocation14 + $0x228] sm:$0xff] %v10713
    %10731 = vst [vmem:[#allocation14 + $0x250] sm:$0xff] %v10713
    %10732 = vst [vmem:[#allocation14 + $0x278] sm:$0xff] %v10713
    %10733 = vst [vmem:[#allocation14 + $0x2a0] sm:$0xff] %v10713
    %10734 = vst [vmem:[#allocation14 + $0x2c8] sm:$0xff] %v10713
    %10735 = vst [vmem:[#allocation14 + $0x2f0] sm:$0xff] %v10713
    %10736 = vst [vmem:[#allocation14 + $0x318] sm:$0xff] %v10713
    %10737 = vst [vmem:[#allocation14 + $0x340] sm:$0xff] %v10713
    %10738 = vst [vmem:[#allocation14 + $0x368] sm:$0xff] %v10713
    %10739 = vst [vmem:[#allocation14 + $0x390] sm:$0xff] %v10713
    %10740 = vst [vmem:[#allocation14 + $0x3b8] sm:$0xff] %v10713
    %10741 = vst [vmem:[#allocation14 + $0x3e0] sm:$0xff] %v10713
    %10742 = vst [vmem:[#allocation14 + $0x408] sm:$0xff] %v10713
    %10743 = vst [vmem:[#allocation14 + $0x430] sm:$0xff] %v10713
    %10744 = vst [vmem:[#allocation14 + $0x458] sm:$0xff] %v10713
    %10745 = vst [vmem:[#allocation14 + $0x480] sm:$0xff] %v10713
    %10746 = vst [vmem:[#allocation14 + $0x4a8] sm:$0xff] %v10713
    %10747 = vst [vmem:[#allocation14 + $0x4d0] sm:$0xff] %v10713
    %10748 = vst [vmem:[#allocation14 + $0x4f8] sm:$0xff] %v10713
    %10749 = vst [vmem:[#allocation14 + $0x520] sm:$0xff] %v10714
    %10750 = vst [vmem:[#allocation14 + $0x548] sm:$0xff] %v10714
    %10751 = vst [vmem:[#allocation14 + $0x570] sm:$0xff] %v10714
    %10752 = vst [vmem:[#allocation14 + $0x598] sm:$0xff] %v10714
    %10753 = vst [vmem:[#allocation14 + $0x5c0] sm:$0xff] %v10714
    %10754 = vst [vmem:[#allocation14 + $0x5e8] sm:$0xff] %v10714
    %10755 = vst [vmem:[#allocation14 + $0x610] sm:$0xff] %v10714
    %10756 = vst [vmem:[#allocation14 + $0x638] sm:$0xff] %v10714
    %10757 = vst [vmem:[#allocation14 + $0x660] sm:$0xff] %v10714
    %10758 = vst [vmem:[#allocation14 + $0x688] sm:$0xff] %v10714
    %10759 = vst [vmem:[#allocation14 + $0x6b0] sm:$0xff] %v10714
    %10760 = vst [vmem:[#allocation14 + $0x6d8] sm:$0xff] %v10714
    %10761 = vst [vmem:[#allocation14 + $0x700] sm:$0xff] %v10714
    %10762 = vst [vmem:[#allocation14 + $0x728] sm:$0xff] %v10714
    %10763 = vst [vmem:[#allocation14 + $0x750] sm:$0xff] %v10714
    %10764 = vst [vmem:[#allocation14 + $0x778] sm:$0xff] %v10714
    %10765 = vst [vmem:[#allocation14 + $0x7a0] sm:$0xff] %v10714
    %10766 = vst [vmem:[#allocation14 + $0x7c8] sm:$0xff] %v10714
    %10767 = vst [vmem:[#allocation14 + $0x7f0] sm:$0xff] %v10714
    %10768 = vst [vmem:[#allocation14 + $0x818] sm:$0xff] %v10714
    %10769 = vst [vmem:[#allocation14 + $0x840] sm:$0xff] %v10714
    %10770 = vst [vmem:[#allocation14 + $0x868] sm:$0xff] %v10714
    %10771 = vst [vmem:[#allocation14 + $0x890] sm:$0xff] %v10714
    %10772 = vst [vmem:[#allocation14 + $0x8b8] sm:$0xff] %v10714
    %10773 = vst [vmem:[#allocation14 + $0x8e0] sm:$0xff] %v10714
    %10774 = vst [vmem:[#allocation14 + $0x908] sm:$0xff] %v10714
    %10775 = vst [vmem:[#allocation14 + $0x930] sm:$0xff] %v10714
    %10776 = vst [vmem:[#allocation14 + $0x958] sm:$0xff] %v10714
    %10777 = vst [vmem:[#allocation14 + $0x980] sm:$0xff] %v10714
    %10778 = vst [vmem:[#allocation14 + $0x9a8] sm:$0xff] %v10714
    %10779 = vst [vmem:[#allocation14 + $0x9d0] sm:$0xff] %v10714
    %10780 = vst [vmem:[#allocation14 + $0x9f8] sm:$0xff] %v10714
    // Predicated region
    $region50: #{tpu_custom_call.1} parent=1 // pred_check
      _
    $region51: #{tpu_custom_call.1} parent=1 // pred_check_branch
      %10782 = sbr.rel (0) target = $region53
    $region52: #{tpu_custom_call.1} parent=1 // pred_region
      %10784 = vsyncadd [#allocation5], 0
      %s10785 = sshll.u32 [#allocation14], 4
      %s10786 = int_to_ptr.vmem [resolvable:$true] %s10785
      %s10787 = sshll.u32 %s6, 4
      %s10788 = int_to_ptr.hbm [resolvable:$true] %s10787
      %10793 = dma.vmem_to_hbm [thread:$0]  %s10786, 40960, %s10788, [#allocation5], 640, 640, 40
    $region53: #{tpu_custom_call.1} parent=1 // pred_fallthru
      _
    // Predicated region
    $region54: #{tpu_custom_call.1} parent=1 // pred_check
      _
    $region55: #{tpu_custom_call.1} parent=1 // pred_check_branch
      %10795 = sbr.rel (0) target = $region57
    $region56: #{tpu_custom_call.1} parent=1 // pred_region
      %10797 = dma.done [#allocation5], 40960
    $region57: #{tpu_custom_call.1} parent=1 // pred_fallthru
      _
    %10798 = vsyncpa [#allocation4], 1
    %10799 = vsyncpa [#allocation7], 1
    %10800 = vsyncpa [#allocation10], 1
    %10801 = vsyncpa [#allocation13], 1
    %10802 = vsyncpa [#allocation5], 1

</llo_original>
